<compile_context>
chip_gen: v6e
topology: v6e:2x2x1
jax: 0.10.0
libtpu: 0.0.40
codegen_flags: <defaults>
</compile_context>

<pallas_src>
import functools

import numpy as np

import jax
import jax.numpy as jnp
from jax.experimental import pallas as pl
from jax.experimental.pallas import tpu as pltpu

HID = 32          # LSTM hidden size of this small instantiation
T = 4             # sequence length after the conv tower: 2*2 spatial positions


# ---------------------------------------------------------------------------
# Fused Pallas kernel (one grid step == BT batch elements)
# ---------------------------------------------------------------------------
def _fused_kernel(x_ref, w1_ref, b1_ref, w2_ref, b2_ref, w3_ref, b3_ref,
                  m0_ref, m1_ref, bx0_ref, whh0_ref, wih1_ref, bx1_ref,
                  whh1_ref, wfc_ref, bfc_ref, out_ref, p0_scr, p2_scr, p3_scr):
    f32, bf16 = jnp.float32, jnp.bfloat16
    bt = x_ref.shape[0]
    G = 8 * HID                                    # fused (2-direction) gate width = 256

    def conv_block(p_ref, wb_ref, brow_ref, h, w, cin, cout):
        """Fused 3x3 conv (+ folded BN bias) + ReLU + 2x2 max-pool.

        p_ref:    (bt, h+2, w*cin) activation, y-halo rows zeroed, channel-minor lanes.
        wb_ref:   (3*w*cin, w*cout) banded conv weight, output cols [even x | odd x].
        brow_ref: (1, (w//2)*cout) folded BN bias tiled per pooled x.
        returns   (bt*(h//2), (w//2)*cout) pooled activation, channel-minor lanes.
        """
        kk = w * cin
        slab = jnp.concatenate([p_ref[:, dy:dy + h, :] for dy in range(3)], axis=2)
        slab = slab.reshape(bt * h, 3 * kk).astype(bf16)
        out = jnp.dot(slab, wb_ref[...], preferred_element_type=f32)   # (bt*h, w*cout)
        out = out.reshape(bt * (h // 2), 2, w * cout)
        out = jnp.maximum(out[:, 0, :], out[:, 1, :])                  # 2x row pool
        half = (w // 2) * cout
        pooled = jnp.maximum(out[:, :half], out[:, half:])             # 2x width pool
        return jnp.maximum(pooled + brow_ref[...], 0.0)                # BN bias + ReLU

    # ---------------- conv tower (y-padded, channel-minor layouts) ----------------
    p0_scr[:, 0:1, :] = jnp.zeros((bt, 1, 16), f32)
    p0_scr[:, 17:18, :] = jnp.zeros((bt, 1, 16), f32)
    p0_scr[:, 1:17, :] = x_ref[...]
    act1 = conv_block(p0_scr, w1_ref, b1_ref, 16, 16, 1, 32)           # (bt*8, 256)

    p2_scr[:, 0:1, :] = jnp.zeros((bt, 1, 256), f32)
    p2_scr[:, 9:10, :] = jnp.zeros((bt, 1, 256), f32)
    p2_scr[:, 1:9, :] = act1.reshape(bt, 8, 256)
    act2 = conv_block(p2_scr, w2_ref, b2_ref, 8, 8, 32, 64)            # (bt*4, 256)

    p3_scr[:, 0:1, :] = jnp.zeros((bt, 1, 256), f32)
    p3_scr[:, 5:6, :] = jnp.zeros((bt, 1, 256), f32)
    p3_scr[:, 1:5, :] = act2.reshape(bt, 4, 256)
    act3 = conv_block(p3_scr, w3_ref, b3_ref, 4, 4, 64, 128)           # (bt*2, 256)

    # ---------------- fused bidirectional 2-layer LSTM ----------------
    lane = jax.lax.broadcasted_iota(jnp.int32, (1, G), 1)
    fwd_lane = jnp.bitwise_and(lane, 2 * HID - 1) < HID                # forward-dir lanes

    def bidir_layer(gx_pair, whh):
        """Fused fwd+bwd recurrence; gate lanes [i_f i_r f_f f_r o_f o_r g_f g_r].
        gx_pair(k) -> (fwd input-proj of seq[k], bwd input-proj of seq[T-1-k]), (bt,G)."""
        h = jnp.zeros((bt, 2 * HID), f32)
        c = jnp.zeros((bt, 2 * HID), f32)
        hs = []
        for k in range(T):                                             # T=4, unrolled
            a_f, a_r = gx_pair(k)
            gx = jnp.where(fwd_lane, a_f, a_r)
            gates = gx + jnp.dot(h.astype(bf16), whh, preferred_element_type=f32)
            sg = jax.nn.sigmoid(gates[:, 0:6 * HID])                   # i, f, o gates
            g_g = jnp.tanh(gates[:, 6 * HID:8 * HID])                  # g gate
            i_g = sg[:, 0:2 * HID]
            f_g = sg[:, 2 * HID:4 * HID]
            o_g = sg[:, 4 * HID:6 * HID]
            c = f_g * c + i_g * g_g
            h = o_g * jnp.tanh(c)
            hs.append(h)
        # output at time t = [fwd state after step t | bwd state after step T-1-t]
        return [jnp.concatenate([hs[t][:, 0:HID], hs[T - 1 - t][:, HID:2 * HID]], axis=1)
                for t in range(T)]

    # layer 0: hoisted all-timestep input projection; the torch .view(B, H*W, C) NCHW
    # permutation of the conv3 activation is folded into m0/m1 during weight prep.
    a3 = act3.reshape(bt, 2, 256)
    gx0 = (jnp.dot(a3[:, 0, :].astype(bf16), m0_ref[...], preferred_element_type=f32)
           + jnp.dot(a3[:, 1, :].astype(bf16), m1_ref[...], preferred_element_type=f32)
           + bx0_ref[...])                                             # (bt, T*G)
    out0 = bidir_layer(lambda k: (gx0[:, k * G:(k + 1) * G],
                                  gx0[:, (T - 1 - k) * G:(T - k) * G]), whh0_ref[...])

    # layer 1: hoisted input projection over all timesteps (time-major row stacking)
    seq1 = jnp.concatenate(out0, axis=0)                               # (T*bt, 2*HID)
    gx1 = (jnp.dot(seq1.astype(bf16), wih1_ref[...], preferred_element_type=f32)
           + bx1_ref[...])                                             # (T*bt, G)
    out1 = bidir_layer(lambda k: (gx1[k * bt:(k + 1) * bt, :],
                                  gx1[(T - 1 - k) * bt:(T - k) * bt, :]), whh1_ref[...])

    # last timestep -> FC (classes padded to 128 lanes for a lane-dense store)
    logits = (jnp.dot(out1[T - 1].astype(bf16), wfc_ref[...], preferred_element_type=f32)
              + bfc_ref[...])
    out_ref[...] = logits


@functools.partial(jax.jit, static_argnames=("num_classes", "block_batch"))
def forward(x, prep, *, num_classes, block_batch=128):
    """x: (B, 1, 16, 16) float32; prep: operands from prepare_operands()."""
    B = x.shape[0]
    bt = int(min(block_batch, B))
    n_blk = -(-B // bt)
    Bp = n_blk * bt
    x2 = x[:, 0, :, :]
    if Bp != B:
        x2 = jnp.pad(x2, ((0, Bp - B), (0, 0), (0, 0)))

    in_specs = [pl.BlockSpec((bt, 16, 16), lambda i: (i, 0, 0))]
    for a in prep:                                 # constant (weight) blocks
        in_specs.append(pl.BlockSpec(a.shape, lambda i, _n=a.ndim: (0,) * _n))

    out = pl.pallas_call(
        _fused_kernel,
        out_shape=jax.ShapeDtypeStruct((Bp, 128), jnp.float32),
        grid=(n_blk,),
        in_specs=in_specs,
        out_specs=pl.BlockSpec((bt, 128), lambda i: (i, 0)),
        scratch_shapes=[pltpu.VMEM((bt, 18, 16), jnp.float32),    # y-padded conv1 input
                        pltpu.VMEM((bt, 10, 256), jnp.float32),   # y-padded conv2 input
                        pltpu.VMEM((bt, 6, 256), jnp.float32)],   # y-padded conv3 input
        compiler_params=pltpu.CompilerParams(
            dimension_semantics=("parallel",),
            vmem_limit_bytes=48 * 1024 * 1024),
    )(x2, *prep)
    return out[:B, :num_classes]


# ---------------------------------------------------------------------------
# One-time weight preparation (BN folding, dy-fused banded conv weights with the
# pool-friendly column order, fused bidirectional gate layout [i f o g] direction-minor,
# conv3->sequence permutation folded into the layer-0 W_ih, FC padded to 128 classes)
# ---------------------------------------------------------------------------
def fold_bn_params(convs, eps=1e-5):
    folded = []
    for (w, b, gamma, beta, mean, var) in convs:
        w, b, gamma, beta, mean, var = (np.asarray(a, np.float32)
                                        for a in (w, b, gamma, beta, mean, var))
        scale = gamma / np.sqrt(var + eps)
        folded.append((w * scale[:, None, None, None], (b - mean) * scale + beta))
    return folded


def _banded_conv_weight(w_eff, w):
    """(Cout, Cin, 3, 3) -> (3*w*Cin, w*Cout) with the three dy taps stacked along K
    (matching the in-kernel slab concat) and output columns ordered [even x | odd x]
    so the 2x2 width pool is one contiguous half-max. x-padding taps are simply
    omitted (they would only ever multiply zero padding)."""
    cout, cin, _, _ = w_eff.shape
    wb = np.zeros((3 * w * cin, w * cout), np.float32)
    for dy in range(3):
        for x in range(w):                         # output x
            for dx in range(3):
                xs = x + dx - 1                    # source x
                if 0 <= xs < w:
                    r0 = (dy * w + xs) * cin
                    wb[r0:r0 + cin, x * cout:(x + 1) * cout] = np.transpose(w_eff[:, :, dy, dx])
    even = np.concatenate([wb[:, x * cout:(x + 1) * cout] for x in range(0, w, 2)], axis=1)
    odd = np.concatenate([wb[:, x * cout:(x + 1) * cout] for x in range(1, w, 2)], axis=1)
    return np.concatenate([even, odd], axis=1)


def _fuse_gate_cols(a_f, a_r, h):
    """(N, 4h) per direction (torch-ish order [i f g o]) -> (N, 8h) fused columns
    ordered [i_f i_r f_f f_r o_f o_r g_f g_r] (sigmoid gates first, tanh gate last)."""
    cols = []
    for g in (0, 1, 3, 2):                         # i, f, o, g
        cols.append(a_f[:, g * h:(g + 1) * h])
        cols.append(a_r[:, g * h:(g + 1) * h])
    return np.concatenate(cols, axis=1)


def _fuse_whh(whh_f, whh_r, h):
    """Block-diagonal recurrent weight for the fused 2-direction recurrence."""
    big = np.zeros((2 * h, 8 * h), np.float32)
    for gi, g in enumerate((0, 1, 3, 2)):
        big[0:h, gi * 2 * h:gi * 2 * h + h] = whh_f[:, g * h:(g + 1) * h]
        big[h:2 * h, gi * 2 * h + h:(gi + 1) * 2 * h] = whh_r[:, g * h:(g + 1) * h]
    return big


def _build_m(wih0_fused, h_idx):
    """Fold the torch `.view(B, H*W, C)` (NCHW) permutation of the pooled conv3
    activation (kernel layout: rows=h, lanes=w*128+c) into the layer-0 input weights:
       M_h[w*128 + c, t*G + col] = wih0_fused[(c - 32 t)*4 + h*2 + w, col]."""
    g = wih0_fused.shape[1]                        # 8*HID
    m = np.zeros((2 * 128, T * g), np.float32)
    for t in range(T):
        for w in range(2):
            for cc in range(32):
                c = 32 * t + cc
                j = cc * 4 + h_idx * 2 + w
                m[w * 128 + c, t * g:(t + 1) * g] = wih0_fused[j, :]
    return m


def prepare_operands(convs_folded, lstm_layers, fc, num_classes):
    assert len(lstm_layers) == 2, "kernel is specialized to the 2-layer instantiation"
    ops = []
    for (w_eff, b_eff), w in zip(convs_folded, (16, 8, 4)):
        ops.append(jnp.asarray(_banded_conv_weight(w_eff, w), jnp.bfloat16))
        ops.append(jnp.asarray(np.tile(b_eff, w // 2)[None, :], jnp.float32))

    (f0, r0), (f1, r1) = lstm_layers
    wih0_f, whh0_f, b0_f = (np.asarray(a) for a in f0)
    wih0_r, whh0_r, b0_r = (np.asarray(a) for a in r0)
    wih1_f, whh1_f, b1_f = (np.asarray(a) for a in f1)
    wih1_r, whh1_r, b1_r = (np.asarray(a) for a in r1)

    wih0_fused = _fuse_gate_cols(wih0_f, wih0_r, HID)               # (128, 256)
    bx0 = np.tile(_fuse_gate_cols(b0_f, b0_r, HID), (1, T))         # (1, 1024)

    wfc = np.zeros((2 * HID, 128), np.float32)
    wfc[:, :num_classes] = np.asarray(fc[0])
    bfc = np.zeros((1, 128), np.float32)
    bfc[0, :num_classes] = np.asarray(fc[1]).reshape(-1)

    ops += [
        jnp.asarray(_build_m(wih0_fused, 0), jnp.bfloat16),         # m0 (pooled h = 0)
        jnp.asarray(_build_m(wih0_fused, 1), jnp.bfloat16),         # m1 (pooled h = 1)
        jnp.asarray(bx0, jnp.float32),
        jnp.asarray(_fuse_whh(whh0_f, whh0_r, HID), jnp.bfloat16),  # whh0 (64, 256)
        jnp.asarray(_fuse_gate_cols(wih1_f, wih1_r, HID), jnp.bfloat16),  # wih1 (64, 256)
        jnp.asarray(_fuse_gate_cols(b1_f, b1_r, HID), jnp.float32),       # bx1 (1, 256)
        jnp.asarray(_fuse_whh(whh1_f, whh1_r, HID), jnp.bfloat16),        # whh1 (64, 256)
        jnp.asarray(wfc, jnp.bfloat16),                                   # wfc (64, 128)
        jnp.asarray(bfc, jnp.float32),                                    # bfc (1, 128)
    ]
    return ops


# ---------------------------------------------------------------------------
# Deterministic synthetic parameters (no checkpoint)
# ---------------------------------------------------------------------------
def init_params(key, num_classes, hidden_size, num_layers):
    keys = iter(jax.random.split(key, 256))

    def nrm(shape, scale):
        return scale * jax.random.normal(next(keys), shape, dtype=jnp.float32)

    chans = [1, 32, 64, 128]
    convs = []
    for i in range(3):
        cin, cout = chans[i], chans[i + 1]
        w = nrm((cout, cin, 3, 3), 1.0 / (cin * 9.0) ** 0.5)
        b = nrm((cout,), 0.01)
        gamma = 1.0 + nrm((cout,), 0.01)
        beta = nrm((cout,), 0.01)
        mean = nrm((cout,), 0.01)
        var = jnp.abs(1.0 + nrm((cout,), 0.01))
        convs.append((w, b, gamma, beta, mean, var))

    lstm_layers = []
    for l in range(num_layers):
        din = 128 if l == 0 else 2 * hidden_size
        layer = []
        for _ in range(2):                         # forward, backward
            wih = nrm((din, 4 * hidden_size), 1.0 / din ** 0.5)        # (Din, 4H), [i|f|g|o]
            whh = nrm((hidden_size, 4 * hidden_size), 1.0 / hidden_size ** 0.5)
            bias = nrm((1, 4 * hidden_size), 0.01)                     # b_ih + b_hh combined
            layer.append((wih, whh, bias))
        lstm_layers.append(tuple(layer))

    wfc = nrm((2 * hidden_size, num_classes), 1.0 / (2.0 * hidden_size) ** 0.5)
    bfc = nrm((1, num_classes), 0.01)
    return convs, lstm_layers, (wfc, bfc)


# ---------------------------------------------------------------------------
# Pure-JAX reference with the SAME bf16 rounding points as the kernel
# (weights and pre-matmul activations), so the comparison can be tight.
# ---------------------------------------------------------------------------
def reference_forward(x, convs_folded, lstm_layers, fc):
    def q(a):
        return a.astype(jnp.bfloat16).astype(jnp.float32)

    h = x
    for (w_eff, b_eff) in convs_folded:
        y = jax.lax.conv_general_dilated(
            q(h), q(w_eff), window_strides=(1, 1), padding=((1, 1), (1, 1)),
            dimension_numbers=("NCHW", "OIHW", "NCHW"))
        y = jnp.maximum(y + b_eff[None, :, None, None], 0.0)
        n_, c_, hh_, ww_ = y.shape
        h = y.reshape(n_, c_, hh_ // 2, 2, ww_ // 2, 2).max(axis=(3, 5))

    n_, c_, hh_, ww_ = h.shape
    seq = h.reshape(n_, hh_ * ww_, c_)             # torch .view(B, H*W, C) on NCHW

    for layer in lstm_layers:
        dir_outs = []
        for d, (wih, whh, bias) in enumerate(layer):
            wih_q, whh_q = q(wih), q(whh)
            hs = jnp.zeros((n_, HID), jnp.float32)
            cs = jnp.zeros((n_, HID), jnp.float32)
            outs = []
            order = range(seq.shape[1]) if d == 0 else range(seq.shape[1] - 1, -1, -1)
            for t in order:
                g = q(seq[:, t, :]) @ wih_q + q(hs) @ whh_q + bias
                i_g = jax.nn.sigmoid(g[:, 0:HID])
                f_g = jax.nn.sigmoid(g[:, HID:2 * HID])
                g_g = jnp.tanh(g[:, 2 * HID:3 * HID])
                o_g = jax.nn.sigmoid(g[:, 3 * HID:4 * HID])
                cs = f_g * cs + i_g * g_g
                hs = o_g * jnp.tanh(cs)
                outs.append(hs)
            if d == 1:
                outs = outs[::-1]
            dir_outs.append(jnp.stack(outs, axis=1))
        seq = jnp.concatenate(dir_outs, axis=2)

    wfc, bfc = fc
    return q(seq[:, -1, :]) @ q(wfc) + bfc


if __name__ == "__main__":
    num_classes, hidden_size, num_layers = 7, 32, 2   # small instantiation of the module
    key = jax.random.PRNGKey(0)
    k_params, k_x = jax.random.split(key)

    convs, lstm_layers, fc = init_params(k_params, num_classes, hidden_size, num_layers)
    assert hidden_size == HID and num_layers == 2
    convs_folded = fold_bn_params(convs)
    prep = prepare_operands(convs_folded, lstm_layers, fc, num_classes)

    # input: (batch=16, channels=1, 16, 16) -> conv tower -> (B, 4, 128) seq -> bi-LSTM.
    # block_batch=8 -> grid=(2,), so megacore "parallel" sharding has work for 2 cores.
    x = jax.random.normal(k_x, (16, 1, 16, 16), dtype=jnp.float32)

    out = jax.block_until_ready(forward(x, prep, num_classes=num_classes, block_batch=8))
    assert out.shape == (16, num_classes), out.shape
    assert bool(jnp.all(jnp.isfinite(out)))

    ref = jax.block_until_ready(jax.jit(reference_forward)(x, convs_folded, lstm_layers, fc))
    rel_err = float(jnp.max(jnp.abs(out - ref)) / (jnp.max(jnp.abs(ref)) + 1e-6))
    assert rel_err < 2e-2, f"kernel/reference mismatch: rel_err={rel_err:.2e}"

    print("KERNEL_OK")
</pallas_src>

<mosaic_0001>
module attributes {stable_mosaic.version = 11 : i64} {
  func.func @_fused_kernel(%arg0: i32, %arg1: memref<8x16x16xf32, #tpu.memory_space<vmem>>, %arg2: memref<48x512xbf16, #tpu.memory_space<vmem>>, %arg3: memref<1x256xf32, #tpu.memory_space<vmem>>, %arg4: memref<768x512xbf16, #tpu.memory_space<vmem>>, %arg5: memref<1x256xf32, #tpu.memory_space<vmem>>, %arg6: memref<768x512xbf16, #tpu.memory_space<vmem>>, %arg7: memref<1x256xf32, #tpu.memory_space<vmem>>, %arg8: memref<256x1024xbf16, #tpu.memory_space<vmem>>, %arg9: memref<256x1024xbf16, #tpu.memory_space<vmem>>, %arg10: memref<1x1024xf32, #tpu.memory_space<vmem>>, %arg11: memref<64x256xbf16, #tpu.memory_space<vmem>>, %arg12: memref<64x256xbf16, #tpu.memory_space<vmem>>, %arg13: memref<1x256xf32, #tpu.memory_space<vmem>>, %arg14: memref<64x256xbf16, #tpu.memory_space<vmem>>, %arg15: memref<64x128xbf16, #tpu.memory_space<vmem>>, %arg16: memref<1x128xf32, #tpu.memory_space<vmem>>, %arg17: memref<8x128xf32, #tpu.memory_space<vmem>>, %arg18: memref<8x18x16xf32, #tpu.memory_space<vmem>>, %arg19: memref<8x10x256xf32, #tpu.memory_space<vmem>>, %arg20: memref<8x6x256xf32, #tpu.memory_space<vmem>>) attributes {dimension_semantics = [#tpu.dimension_semantics<parallel>], iteration_bounds = array<i64: 2>, scalar_prefetch = 0 : i64, scratch_operands = 3 : i64, tpu.core_type = #tpu.core_type<tc>, window_params = [{transform_indices = @transform_0, window_bounds = array<i64: 8, 16, 16>}, {pipeline_mode = #tpu.pipeline_mode<synchronous>, transform_indices = @transform_1, window_bounds = array<i64: 48, 512>}, {pipeline_mode = #tpu.pipeline_mode<synchronous>, transform_indices = @transform_2, window_bounds = array<i64: 1, 256>}, {pipeline_mode = #tpu.pipeline_mode<synchronous>, transform_indices = @transform_3, window_bounds = array<i64: 768, 512>}, {pipeline_mode = #tpu.pipeline_mode<synchronous>, transform_indices = @transform_4, window_bounds = array<i64: 1, 256>}, {pipeline_mode = #tpu.pipeline_mode<synchronous>, transform_indices = @transform_5, window_bounds = array<i64: 768, 512>}, {pipeline_mode = #tpu.pipeline_mode<synchronous>, transform_indices = @transform_6, window_bounds = array<i64: 1, 256>}, {pipeline_mode = #tpu.pipeline_mode<synchronous>, transform_indices = @transform_7, window_bounds = array<i64: 256, 1024>}, {pipeline_mode = #tpu.pipeline_mode<synchronous>, transform_indices = @transform_8, window_bounds = array<i64: 256, 1024>}, {pipeline_mode = #tpu.pipeline_mode<synchronous>, transform_indices = @transform_9, window_bounds = array<i64: 1, 1024>}, {pipeline_mode = #tpu.pipeline_mode<synchronous>, transform_indices = @transform_10, window_bounds = array<i64: 64, 256>}, {pipeline_mode = #tpu.pipeline_mode<synchronous>, transform_indices = @transform_11, window_bounds = array<i64: 64, 256>}, {pipeline_mode = #tpu.pipeline_mode<synchronous>, transform_indices = @transform_12, window_bounds = array<i64: 1, 256>}, {pipeline_mode = #tpu.pipeline_mode<synchronous>, transform_indices = @transform_13, window_bounds = array<i64: 64, 256>}, {pipeline_mode = #tpu.pipeline_mode<synchronous>, transform_indices = @transform_14, window_bounds = array<i64: 64, 128>}, {pipeline_mode = #tpu.pipeline_mode<synchronous>, transform_indices = @transform_15, window_bounds = array<i64: 1, 128>}, {transform_indices = @transform_16, window_bounds = array<i64: 8, 128>}]} {
    %cst = arith.constant 0.000000e+00 : f32
    %0 = vector.broadcast %cst : f32 to vector<8x1x16xf32>
    %c0 = arith.constant 0 : index
    %c0_0 = arith.constant 0 : index
    %c0_1 = arith.constant 0 : index
    %1 = vector.load %arg18[%c0, %c0_0, %c0_1] : memref<8x18x16xf32, #tpu.memory_space<vmem>>, vector<8x1x16xf32>
    tpu.vector_store %arg18[%c0, %c0_0, %c0_1], %0 {strides = array<i32>} : memref<8x18x16xf32, #tpu.memory_space<vmem>>, vector<8x1x16xf32>,
    %cst_2 = arith.constant 0.000000e+00 : f32
    %2 = vector.broadcast %cst_2 : f32 to vector<8x1x16xf32>
    %c0_3 = arith.constant 0 : index
    %c17 = arith.constant 17 : index
    %c0_4 = arith.constant 0 : index
    %3 = vector.load %arg18[%c0_3, %c17, %c0_4] : memref<8x18x16xf32, #tpu.memory_space<vmem>>, vector<8x1x16xf32>
    tpu.vector_store %arg18[%c0_3, %c17, %c0_4], %2 {strides = array<i32>} : memref<8x18x16xf32, #tpu.memory_space<vmem>>, vector<8x1x16xf32>,
    %c0_5 = arith.constant 0 : index
    %c0_6 = arith.constant 0 : index
    %c0_7 = arith.constant 0 : index
    %4 = vector.load %arg1[%c0_5, %c0_6, %c0_7] : memref<8x16x16xf32, #tpu.memory_space<vmem>>, vector<8x16x16xf32>
    %c0_8 = arith.constant 0 : index
    %c1 = arith.constant 1 : index
    %c0_9 = arith.constant 0 : index
    %5 = vector.load %arg18[%c0_8, %c1, %c0_9] : memref<8x18x16xf32, #tpu.memory_space<vmem>>, vector<8x16x16xf32>
    tpu.vector_store %arg18[%c0_8, %c1, %c0_9], %4 {strides = array<i32>} : memref<8x18x16xf32, #tpu.memory_space<vmem>>, vector<8x16x16xf32>,
    %c0_10 = arith.constant 0 : index
    %c0_11 = arith.constant 0 : index
    %c0_12 = arith.constant 0 : index
    %6 = vector.load %arg18[%c0_10, %c0_11, %c0_12] : memref<8x18x16xf32, #tpu.memory_space<vmem>>, vector<8x16x16xf32>
    %c0_13 = arith.constant 0 : index
    %c1_14 = arith.constant 1 : index
    %c0_15 = arith.constant 0 : index
    %7 = vector.load %arg18[%c0_13, %c1_14, %c0_15] : memref<8x18x16xf32, #tpu.memory_space<vmem>>, vector<8x16x16xf32>
    %c0_16 = arith.constant 0 : index
    %c2 = arith.constant 2 : index
    %c0_17 = arith.constant 0 : index
    %8 = vector.load %arg18[%c0_16, %c2, %c0_17] : memref<8x18x16xf32, #tpu.memory_space<vmem>>, vector<8x16x16xf32>
    %9 = tpu.concatenate %6, %7, %8 in 2 : vector<8x16x16xf32>, vector<8x16x16xf32>, vector<8x16x16xf32> -> vector<8x16x48xf32>
    %10 = vector.shape_cast %9 : vector<8x16x48xf32> to vector<128x48xf32>
    %11 = arith.truncf %10 : vector<128x48xf32> to vector<128x48xbf16>
    %c0_18 = arith.constant 0 : index
    %c0_19 = arith.constant 0 : index
    %12 = vector.load %arg2[%c0_18, %c0_19] : memref<48x512xbf16, #tpu.memory_space<vmem>>, vector<48x512xbf16>
    %cst_20 = arith.constant dense<0.000000e+00> : vector<128x512xf32>
    %13 = tpu.matmul %11, %12, %cst_20 {dimension_numbers = #tpu.dot_dimension_numbers<[1], [0], [0], [1], [0, 0, 1, 1], [], []>} : vector<128x48xbf16>, vector<48x512xbf16>, vector<128x512xf32> -> vector<128x512xf32>
    %14 = vector.shape_cast %13 : vector<128x512xf32> to vector<64x2x512xf32>
    %15 = vector.extract_strided_slice %14 {offsets = [0, 0, 0], sizes = [64, 1, 512], strides = [1, 1, 1]} : vector<64x2x512xf32> to vector<64x1x512xf32>
    %16 = vector.shape_cast %15 : vector<64x1x512xf32> to vector<64x512xf32>
    %17 = vector.extract_strided_slice %14 {offsets = [0, 1, 0], sizes = [64, 1, 512], strides = [1, 1, 1]} : vector<64x2x512xf32> to vector<64x1x512xf32>
    %18 = vector.shape_cast %17 : vector<64x1x512xf32> to vector<64x512xf32>
    %19 = arith.maximumf %16, %18 : vector<64x512xf32>
    %20 = vector.extract_strided_slice %19 {offsets = [0, 0], sizes = [64, 256], strides = [1, 1]} : vector<64x512xf32> to vector<64x256xf32>
    %21 = vector.extract_strided_slice %19 {offsets = [0, 256], sizes = [64, 256], strides = [1, 1]} : vector<64x512xf32> to vector<64x256xf32>
    %22 = arith.maximumf %20, %21 : vector<64x256xf32>
    %c0_21 = arith.constant 0 : index
    %c0_22 = arith.constant 0 : index
    %23 = vector.load %arg3[%c0_21, %c0_22] : memref<1x256xf32, #tpu.memory_space<vmem>>, vector<1x256xf32>
    %24 = vector.broadcast %23 : vector<1x256xf32> to vector<64x256xf32>
    %25 = arith.addf %22, %24 : vector<64x256xf32>
    %cst_23 = arith.constant 0.000000e+00 : f32
    %26 = vector.broadcast %cst_23 : f32 to vector<64x256xf32>
    %27 = arith.maximumf %25, %26 : vector<64x256xf32>
    %cst_24 = arith.constant 0.000000e+00 : f32
    %28 = vector.broadcast %cst_24 : f32 to vector<8x1x256xf32>
    %c0_25 = arith.constant 0 : index
    %c0_26 = arith.constant 0 : index
    %c0_27 = arith.constant 0 : index
    %29 = vector.load %arg19[%c0_25, %c0_26, %c0_27] : memref<8x10x256xf32, #tpu.memory_space<vmem>>, vector<8x1x256xf32>
    tpu.vector_store %arg19[%c0_25, %c0_26, %c0_27], %28 {strides = array<i32>} : memref<8x10x256xf32, #tpu.memory_space<vmem>>, vector<8x1x256xf32>,
    %cst_28 = arith.constant 0.000000e+00 : f32
    %30 = vector.broadcast %cst_28 : f32 to vector<8x1x256xf32>
    %c0_29 = arith.constant 0 : index
    %c9 = arith.constant 9 : index
    %c0_30 = arith.constant 0 : index
    %31 = vector.load %arg19[%c0_29, %c9, %c0_30] : memref<8x10x256xf32, #tpu.memory_space<vmem>>, vector<8x1x256xf32>
    tpu.vector_store %arg19[%c0_29, %c9, %c0_30], %30 {strides = array<i32>} : memref<8x10x256xf32, #tpu.memory_space<vmem>>, vector<8x1x256xf32>,
    %32 = vector.shape_cast %27 : vector<64x256xf32> to vector<8x8x256xf32>
    %c0_31 = arith.constant 0 : index
    %c1_32 = arith.constant 1 : index
    %c0_33 = arith.constant 0 : index
    %33 = vector.load %arg19[%c0_31, %c1_32, %c0_33] : memref<8x10x256xf32, #tpu.memory_space<vmem>>, vector<8x8x256xf32>
    tpu.vector_store %arg19[%c0_31, %c1_32, %c0_33], %32 {strides = array<i32>} : memref<8x10x256xf32, #tpu.memory_space<vmem>>, vector<8x8x256xf32>,
    %c0_34 = arith.constant 0 : index
    %c0_35 = arith.constant 0 : index
    %c0_36 = arith.constant 0 : index
    %34 = vector.load %arg19[%c0_34, %c0_35, %c0_36] : memref<8x10x256xf32, #tpu.memory_space<vmem>>, vector<8x8x256xf32>
    %c0_37 = arith.constant 0 : index
    %c1_38 = arith.constant 1 : index
    %c0_39 = arith.constant 0 : index
    %35 = vector.load %arg19[%c0_37, %c1_38, %c0_39] : memref<8x10x256xf32, #tpu.memory_space<vmem>>, vector<8x8x256xf32>
    %c0_40 = arith.constant 0 : index
    %c2_41 = arith.constant 2 : index
    %c0_42 = arith.constant 0 : index
    %36 = vector.load %arg19[%c0_40, %c2_41, %c0_42] : memref<8x10x256xf32, #tpu.memory_space<vmem>>, vector<8x8x256xf32>
    %37 = tpu.concatenate %34, %35, %36 in 2 : vector<8x8x256xf32>, vector<8x8x256xf32>, vector<8x8x256xf32> -> vector<8x8x768xf32>
    %38 = vector.shape_cast %37 : vector<8x8x768xf32> to vector<64x768xf32>
    %39 = arith.truncf %38 : vector<64x768xf32> to vector<64x768xbf16>
    %c0_43 = arith.constant 0 : index
    %c0_44 = arith.constant 0 : index
    %40 = vector.load %arg4[%c0_43, %c0_44] : memref<768x512xbf16, #tpu.memory_space<vmem>>, vector<768x512xbf16>
    %cst_45 = arith.constant dense<0.000000e+00> : vector<64x512xf32>
    %41 = tpu.matmul %39, %40, %cst_45 {dimension_numbers = #tpu.dot_dimension_numbers<[1], [0], [0], [1], [0, 0, 1, 1], [], []>} : vector<64x768xbf16>, vector<768x512xbf16>, vector<64x512xf32> -> vector<64x512xf32>
    %42 = vector.shape_cast %41 : vector<64x512xf32> to vector<32x2x512xf32>
    %43 = vector.extract_strided_slice %42 {offsets = [0, 0, 0], sizes = [32, 1, 512], strides = [1, 1, 1]} : vector<32x2x512xf32> to vector<32x1x512xf32>
    %44 = vector.shape_cast %43 : vector<32x1x512xf32> to vector<32x512xf32>
    %45 = vector.extract_strided_slice %42 {offsets = [0, 1, 0], sizes = [32, 1, 512], strides = [1, 1, 1]} : vector<32x2x512xf32> to vector<32x1x512xf32>
    %46 = vector.shape_cast %45 : vector<32x1x512xf32> to vector<32x512xf32>
    %47 = arith.maximumf %44, %46 : vector<32x512xf32>
    %48 = vector.extract_strided_slice %47 {offsets = [0, 0], sizes = [32, 256], strides = [1, 1]} : vector<32x512xf32> to vector<32x256xf32>
    %49 = vector.extract_strided_slice %47 {offsets = [0, 256], sizes = [32, 256], strides = [1, 1]} : vector<32x512xf32> to vector<32x256xf32>
    %50 = arith.maximumf %48, %49 : vector<32x256xf32>
    %c0_46 = arith.constant 0 : index
    %c0_47 = arith.constant 0 : index
    %51 = vector.load %arg5[%c0_46, %c0_47] : memref<1x256xf32, #tpu.memory_space<vmem>>, vector<1x256xf32>
    %52 = vector.broadcast %51 : vector<1x256xf32> to vector<32x256xf32>
    %53 = arith.addf %50, %52 : vector<32x256xf32>
    %cst_48 = arith.constant 0.000000e+00 : f32
    %54 = vector.broadcast %cst_48 : f32 to vector<32x256xf32>
    %55 = arith.maximumf %53, %54 : vector<32x256xf32>
    %cst_49 = arith.constant 0.000000e+00 : f32
    %56 = vector.broadcast %cst_49 : f32 to vector<8x1x256xf32>
    %c0_50 = arith.constant 0 : index
    %c0_51 = arith.constant 0 : index
    %c0_52 = arith.constant 0 : index
    %57 = vector.load %arg20[%c0_50, %c0_51, %c0_52] : memref<8x6x256xf32, #tpu.memory_space<vmem>>, vector<8x1x256xf32>
    tpu.vector_store %arg20[%c0_50, %c0_51, %c0_52], %56 {strides = array<i32>} : memref<8x6x256xf32, #tpu.memory_space<vmem>>, vector<8x1x256xf32>,
    %cst_53 = arith.constant 0.000000e+00 : f32
    %58 = vector.broadcast %cst_53 : f32 to vector<8x1x256xf32>
    %c0_54 = arith.constant 0 : index
    %c5 = arith.constant 5 : index
    %c0_55 = arith.constant 0 : index
    %59 = vector.load %arg20[%c0_54, %c5, %c0_55] : memref<8x6x256xf32, #tpu.memory_space<vmem>>, vector<8x1x256xf32>
    tpu.vector_store %arg20[%c0_54, %c5, %c0_55], %58 {strides = array<i32>} : memref<8x6x256xf32, #tpu.memory_space<vmem>>, vector<8x1x256xf32>,
    %60 = vector.shape_cast %55 : vector<32x256xf32> to vector<8x4x256xf32>
    %c0_56 = arith.constant 0 : index
    %c1_57 = arith.constant 1 : index
    %c0_58 = arith.constant 0 : index
    %61 = vector.load %arg20[%c0_56, %c1_57, %c0_58] : memref<8x6x256xf32, #tpu.memory_space<vmem>>, vector<8x4x256xf32>
    tpu.vector_store %arg20[%c0_56, %c1_57, %c0_58], %60 {strides = array<i32>} : memref<8x6x256xf32, #tpu.memory_space<vmem>>, vector<8x4x256xf32>,
    %c0_59 = arith.constant 0 : index
    %c0_60 = arith.constant 0 : index
    %c0_61 = arith.constant 0 : index
    %62 = vector.load %arg20[%c0_59, %c0_60, %c0_61] : memref<8x6x256xf32, #tpu.memory_space<vmem>>, vector<8x4x256xf32>
    %c0_62 = arith.constant 0 : index
    %c1_63 = arith.constant 1 : index
    %c0_64 = arith.constant 0 : index
    %63 = vector.load %arg20[%c0_62, %c1_63, %c0_64] : memref<8x6x256xf32, #tpu.memory_space<vmem>>, vector<8x4x256xf32>
    %c0_65 = arith.constant 0 : index
    %c2_66 = arith.constant 2 : index
    %c0_67 = arith.constant 0 : index
    %64 = vector.load %arg20[%c0_65, %c2_66, %c0_67] : memref<8x6x256xf32, #tpu.memory_space<vmem>>, vector<8x4x256xf32>
    %65 = tpu.concatenate %62, %63, %64 in 2 : vector<8x4x256xf32>, vector<8x4x256xf32>, vector<8x4x256xf32> -> vector<8x4x768xf32>
    %66 = vector.shape_cast %65 : vector<8x4x768xf32> to vector<32x768xf32>
    %67 = arith.truncf %66 : vector<32x768xf32> to vector<32x768xbf16>
    %c0_68 = arith.constant 0 : index
    %c0_69 = arith.constant 0 : index
    %68 = vector.load %arg6[%c0_68, %c0_69] : memref<768x512xbf16, #tpu.memory_space<vmem>>, vector<768x512xbf16>
    %cst_70 = arith.constant dense<0.000000e+00> : vector<32x512xf32>
    %69 = tpu.matmul %67, %68, %cst_70 {dimension_numbers = #tpu.dot_dimension_numbers<[1], [0], [0], [1], [0, 0, 1, 1], [], []>} : vector<32x768xbf16>, vector<768x512xbf16>, vector<32x512xf32> -> vector<32x512xf32>
    %70 = vector.shape_cast %69 : vector<32x512xf32> to vector<16x2x512xf32>
    %71 = vector.extract_strided_slice %70 {offsets = [0, 0, 0], sizes = [16, 1, 512], strides = [1, 1, 1]} : vector<16x2x512xf32> to vector<16x1x512xf32>
    %72 = vector.shape_cast %71 : vector<16x1x512xf32> to vector<16x512xf32>
    %73 = vector.extract_strided_slice %70 {offsets = [0, 1, 0], sizes = [16, 1, 512], strides = [1, 1, 1]} : vector<16x2x512xf32> to vector<16x1x512xf32>
    %74 = vector.shape_cast %73 : vector<16x1x512xf32> to vector<16x512xf32>
    %75 = arith.maximumf %72, %74 : vector<16x512xf32>
    %76 = vector.extract_strided_slice %75 {offsets = [0, 0], sizes = [16, 256], strides = [1, 1]} : vector<16x512xf32> to vector<16x256xf32>
    %77 = vector.extract_strided_slice %75 {offsets = [0, 256], sizes = [16, 256], strides = [1, 1]} : vector<16x512xf32> to vector<16x256xf32>
    %78 = arith.maximumf %76, %77 : vector<16x256xf32>
    %c0_71 = arith.constant 0 : index
    %c0_72 = arith.constant 0 : index
    %79 = vector.load %arg7[%c0_71, %c0_72] : memref<1x256xf32, #tpu.memory_space<vmem>>, vector<1x256xf32>
    %80 = vector.broadcast %79 : vector<1x256xf32> to vector<16x256xf32>
    %81 = arith.addf %78, %80 : vector<16x256xf32>
    %cst_73 = arith.constant 0.000000e+00 : f32
    %82 = vector.broadcast %cst_73 : f32 to vector<16x256xf32>
    %83 = arith.maximumf %81, %82 : vector<16x256xf32>
    %84 = tpu.iota {dimensions = array<i32: 1>} : vector<1x256xi32>
    %c63_i32 = arith.constant 63 : i32
    %85 = vector.broadcast %c63_i32 : i32 to vector<1x256xi32>
    %86 = arith.andi %84, %85 : vector<1x256xi32>
    %c32_i32 = arith.constant 32 : i32
    %87 = vector.broadcast %c32_i32 : i32 to vector<1x256xi32>
    %88 = arith.cmpi slt, %86, %87 : vector<1x256xi32>
    %89 = vector.shape_cast %83 : vector<16x256xf32> to vector<8x2x256xf32>
    %90 = vector.extract_strided_slice %89 {offsets = [0, 0, 0], sizes = [8, 1, 256], strides = [1, 1, 1]} : vector<8x2x256xf32> to vector<8x1x256xf32>
    %91 = vector.shape_cast %90 : vector<8x1x256xf32> to vector<8x256xf32>
    %92 = arith.truncf %91 : vector<8x256xf32> to vector<8x256xbf16>
    %c0_74 = arith.constant 0 : index
    %c0_75 = arith.constant 0 : index
    %93 = vector.load %arg8[%c0_74, %c0_75] : memref<256x1024xbf16, #tpu.memory_space<vmem>>, vector<256x1024xbf16>
    %cst_76 = arith.constant dense<0.000000e+00> : vector<8x1024xf32>
    %94 = tpu.matmul %92, %93, %cst_76 {dimension_numbers = #tpu.dot_dimension_numbers<[1], [0], [0], [1], [0, 0, 1, 1], [], []>} : vector<8x256xbf16>, vector<256x1024xbf16>, vector<8x1024xf32> -> vector<8x1024xf32>
    %95 = vector.extract_strided_slice %89 {offsets = [0, 1, 0], sizes = [8, 1, 256], strides = [1, 1, 1]} : vector<8x2x256xf32> to vector<8x1x256xf32>
    %96 = vector.shape_cast %95 : vector<8x1x256xf32> to vector<8x256xf32>
    %97 = arith.truncf %96 : vector<8x256xf32> to vector<8x256xbf16>
    %c0_77 = arith.constant 0 : index
    %c0_78 = arith.constant 0 : index
    %98 = vector.load %arg9[%c0_77, %c0_78] : memref<256x1024xbf16, #tpu.memory_space<vmem>>, vector<256x1024xbf16>
    %cst_79 = arith.constant dense<0.000000e+00> : vector<8x1024xf32>
    %99 = tpu.matmul %97, %98, %cst_79 {dimension_numbers = #tpu.dot_dimension_numbers<[1], [0], [0], [1], [0, 0, 1, 1], [], []>} : vector<8x256xbf16>, vector<256x1024xbf16>, vector<8x1024xf32> -> vector<8x1024xf32>
    %100 = arith.addf %94, %99 : vector<8x1024xf32>
    %c0_80 = arith.constant 0 : index
    %c0_81 = arith.constant 0 : index
    %101 = vector.load %arg10[%c0_80, %c0_81] : memref<1x1024xf32, #tpu.memory_space<vmem>>, vector<1x1024xf32>
    %102 = vector.broadcast %101 : vector<1x1024xf32> to vector<8x1024xf32>
    %103 = arith.addf %100, %102 : vector<8x1024xf32>
    %c0_82 = arith.constant 0 : index
    %c0_83 = arith.constant 0 : index
    %104 = vector.load %arg11[%c0_82, %c0_83] : memref<64x256xbf16, #tpu.memory_space<vmem>>, vector<64x256xbf16>
    %cst_84 = arith.constant 0.000000e+00 : f32
    %105 = vector.broadcast %cst_84 : f32 to vector<8x64xf32>
    %cst_85 = arith.constant 0.000000e+00 : f32
    %106 = vector.broadcast %cst_85 : f32 to vector<8x64xf32>
    %107 = vector.extract_strided_slice %103 {offsets = [0, 0], sizes = [8, 256], strides = [1, 1]} : vector<8x1024xf32> to vector<8x256xf32>
    %108 = vector.extract_strided_slice %103 {offsets = [0, 768], sizes = [8, 256], strides = [1, 1]} : vector<8x1024xf32> to vector<8x256xf32>
    %109 = vector.shape_cast %88 : vector<1x256xi1> to vector<1x256xi1>
    %110 = vector.broadcast %109 : vector<1x256xi1> to vector<8x256xi1>
    %111 = arith.select %110, %107, %108 : vector<8x256xi1>, vector<8x256xf32>
    %112 = arith.truncf %105 : vector<8x64xf32> to vector<8x64xbf16>
    %cst_86 = arith.constant dense<0.000000e+00> : vector<8x256xf32>
    %113 = tpu.matmul %112, %104, %cst_86 {dimension_numbers = #tpu.dot_dimension_numbers<[1], [0], [0], [1], [0, 0, 1, 1], [], []>} : vector<8x64xbf16>, vector<64x256xbf16>, vector<8x256xf32> -> vector<8x256xf32>
    %114 = arith.addf %111, %113 : vector<8x256xf32>
    %115 = vector.extract_strided_slice %114 {offsets = [0, 0], sizes = [8, 192], strides = [1, 1]} : vector<8x256xf32> to vector<8x192xf32>
    %116 = arith.negf %115 : vector<8x192xf32>
    %117 = math.exp %116 : vector<8x192xf32>
    %cst_87 = arith.constant 1.000000e+00 : f32
    %118 = vector.broadcast %cst_87 : f32 to vector<8x192xf32>
    %119 = arith.addf %118, %117 : vector<8x192xf32>
    %120 = arith.divf %118, %119 : vector<8x192xf32>
    %121 = vector.extract_strided_slice %114 {offsets = [0, 192], sizes = [8, 64], strides = [1, 1]} : vector<8x256xf32> to vector<8x64xf32>
    %122 = math.tanh %121 : vector<8x64xf32>
    %123 = vector.extract_strided_slice %120 {offsets = [0, 0], sizes = [8, 64], strides = [1, 1]} : vector<8x192xf32> to vector<8x64xf32>
    %124 = vector.extract_strided_slice %120 {offsets = [0, 64], sizes = [8, 64], strides = [1, 1]} : vector<8x192xf32> to vector<8x64xf32>
    %125 = vector.extract_strided_slice %120 {offsets = [0, 128], sizes = [8, 64], strides = [1, 1]} : vector<8x192xf32> to vector<8x64xf32>
    %126 = arith.mulf %124, %106 : vector<8x64xf32>
    %127 = arith.mulf %123, %122 : vector<8x64xf32>
    %128 = arith.addf %126, %127 : vector<8x64xf32>
    %129 = math.tanh %128 : vector<8x64xf32>
    %130 = arith.mulf %125, %129 : vector<8x64xf32>
    %131 = vector.extract_strided_slice %103 {offsets = [0, 256], sizes = [8, 256], strides = [1, 1]} : vector<8x1024xf32> to vector<8x256xf32>
    %132 = vector.extract_strided_slice %103 {offsets = [0, 512], sizes = [8, 256], strides = [1, 1]} : vector<8x1024xf32> to vector<8x256xf32>
    %133 = vector.shape_cast %88 : vector<1x256xi1> to vector<1x256xi1>
    %134 = vector.broadcast %133 : vector<1x256xi1> to vector<8x256xi1>
    %135 = arith.select %134, %131, %132 : vector<8x256xi1>, vector<8x256xf32>
    %136 = arith.truncf %130 : vector<8x64xf32> to vector<8x64xbf16>
    %cst_88 = arith.constant dense<0.000000e+00> : vector<8x256xf32>
    %137 = tpu.matmul %136, %104, %cst_88 {dimension_numbers = #tpu.dot_dimension_numbers<[1], [0], [0], [1], [0, 0, 1, 1], [], []>} : vector<8x64xbf16>, vector<64x256xbf16>, vector<8x256xf32> -> vector<8x256xf32>
    %138 = arith.addf %135, %137 : vector<8x256xf32>
    %139 = vector.extract_strided_slice %138 {offsets = [0, 0], sizes = [8, 192], strides = [1, 1]} : vector<8x256xf32> to vector<8x192xf32>
    %140 = arith.negf %139 : vector<8x192xf32>
    %141 = math.exp %140 : vector<8x192xf32>
    %cst_89 = arith.constant 1.000000e+00 : f32
    %142 = vector.broadcast %cst_89 : f32 to vector<8x192xf32>
    %143 = arith.addf %142, %141 : vector<8x192xf32>
    %144 = arith.divf %142, %143 : vector<8x192xf32>
    %145 = vector.extract_strided_slice %138 {offsets = [0, 192], sizes = [8, 64], strides = [1, 1]} : vector<8x256xf32> to vector<8x64xf32>
    %146 = math.tanh %145 : vector<8x64xf32>
    %147 = vector.extract_strided_slice %144 {offsets = [0, 0], sizes = [8, 64], strides = [1, 1]} : vector<8x192xf32> to vector<8x64xf32>
    %148 = vector.extract_strided_slice %144 {offsets = [0, 64], sizes = [8, 64], strides = [1, 1]} : vector<8x192xf32> to vector<8x64xf32>
    %149 = vector.extract_strided_slice %144 {offsets = [0, 128], sizes = [8, 64], strides = [1, 1]} : vector<8x192xf32> to vector<8x64xf32>
    %150 = arith.mulf %148, %128 : vector<8x64xf32>
    %151 = arith.mulf %147, %146 : vector<8x64xf32>
    %152 = arith.addf %150, %151 : vector<8x64xf32>
    %153 = math.tanh %152 : vector<8x64xf32>
    %154 = arith.mulf %149, %153 : vector<8x64xf32>
    %155 = vector.extract_strided_slice %103 {offsets = [0, 512], sizes = [8, 256], strides = [1, 1]} : vector<8x1024xf32> to vector<8x256xf32>
    %156 = vector.extract_strided_slice %103 {offsets = [0, 256], sizes = [8, 256], strides = [1, 1]} : vector<8x1024xf32> to vector<8x256xf32>
    %157 = vector.shape_cast %88 : vector<1x256xi1> to vector<1x256xi1>
    %158 = vector.broadcast %157 : vector<1x256xi1> to vector<8x256xi1>
    %159 = arith.select %158, %155, %156 : vector<8x256xi1>, vector<8x256xf32>
    %160 = arith.truncf %154 : vector<8x64xf32> to vector<8x64xbf16>
    %cst_90 = arith.constant dense<0.000000e+00> : vector<8x256xf32>
    %161 = tpu.matmul %160, %104, %cst_90 {dimension_numbers = #tpu.dot_dimension_numbers<[1], [0], [0], [1], [0, 0, 1, 1], [], []>} : vector<8x64xbf16>, vector<64x256xbf16>, vector<8x256xf32> -> vector<8x256xf32>
    %162 = arith.addf %159, %161 : vector<8x256xf32>
    %163 = vector.extract_strided_slice %162 {offsets = [0, 0], sizes = [8, 192], strides = [1, 1]} : vector<8x256xf32> to vector<8x192xf32>
    %164 = arith.negf %163 : vector<8x192xf32>
    %165 = math.exp %164 : vector<8x192xf32>
    %cst_91 = arith.constant 1.000000e+00 : f32
    %166 = vector.broadcast %cst_91 : f32 to vector<8x192xf32>
    %167 = arith.addf %166, %165 : vector<8x192xf32>
    %168 = arith.divf %166, %167 : vector<8x192xf32>
    %169 = vector.extract_strided_slice %162 {offsets = [0, 192], sizes = [8, 64], strides = [1, 1]} : vector<8x256xf32> to vector<8x64xf32>
    %170 = math.tanh %169 : vector<8x64xf32>
    %171 = vector.extract_strided_slice %168 {offsets = [0, 0], sizes = [8, 64], strides = [1, 1]} : vector<8x192xf32> to vector<8x64xf32>
    %172 = vector.extract_strided_slice %168 {offsets = [0, 64], sizes = [8, 64], strides = [1, 1]} : vector<8x192xf32> to vector<8x64xf32>
    %173 = vector.extract_strided_slice %168 {offsets = [0, 128], sizes = [8, 64], strides = [1, 1]} : vector<8x192xf32> to vector<8x64xf32>
    %174 = arith.mulf %172, %152 : vector<8x64xf32>
    %175 = arith.mulf %171, %170 : vector<8x64xf32>
    %176 = arith.addf %174, %175 : vector<8x64xf32>
    %177 = math.tanh %176 : vector<8x64xf32>
    %178 = arith.mulf %173, %177 : vector<8x64xf32>
    %179 = vector.extract_strided_slice %103 {offsets = [0, 768], sizes = [8, 256], strides = [1, 1]} : vector<8x1024xf32> to vector<8x256xf32>
    %180 = vector.extract_strided_slice %103 {offsets = [0, 0], sizes = [8, 256], strides = [1, 1]} : vector<8x1024xf32> to vector<8x256xf32>
    %181 = vector.shape_cast %88 : vector<1x256xi1> to vector<1x256xi1>
    %182 = vector.broadcast %181 : vector<1x256xi1> to vector<8x256xi1>
    %183 = arith.select %182, %179, %180 : vector<8x256xi1>, vector<8x256xf32>
    %184 = arith.truncf %178 : vector<8x64xf32> to vector<8x64xbf16>
    %cst_92 = arith.constant dense<0.000000e+00> : vector<8x256xf32>
    %185 = tpu.matmul %184, %104, %cst_92 {dimension_numbers = #tpu.dot_dimension_numbers<[1], [0], [0], [1], [0, 0, 1, 1], [], []>} : vector<8x64xbf16>, vector<64x256xbf16>, vector<8x256xf32> -> vector<8x256xf32>
    %186 = arith.addf %183, %185 : vector<8x256xf32>
    %187 = vector.extract_strided_slice %186 {offsets = [0, 0], sizes = [8, 192], strides = [1, 1]} : vector<8x256xf32> to vector<8x192xf32>
    %188 = arith.negf %187 : vector<8x192xf32>
    %189 = math.exp %188 : vector<8x192xf32>
    %cst_93 = arith.constant 1.000000e+00 : f32
    %190 = vector.broadcast %cst_93 : f32 to vector<8x192xf32>
    %191 = arith.addf %190, %189 : vector<8x192xf32>
    %192 = arith.divf %190, %191 : vector<8x192xf32>
    %193 = vector.extract_strided_slice %186 {offsets = [0, 192], sizes = [8, 64], strides = [1, 1]} : vector<8x256xf32> to vector<8x64xf32>
    %194 = math.tanh %193 : vector<8x64xf32>
    %195 = vector.extract_strided_slice %192 {offsets = [0, 0], sizes = [8, 64], strides = [1, 1]} : vector<8x192xf32> to vector<8x64xf32>
    %196 = vector.extract_strided_slice %192 {offsets = [0, 64], sizes = [8, 64], strides = [1, 1]} : vector<8x192xf32> to vector<8x64xf32>
    %197 = vector.extract_strided_slice %192 {offsets = [0, 128], sizes = [8, 64], strides = [1, 1]} : vector<8x192xf32> to vector<8x64xf32>
    %198 = arith.mulf %196, %176 : vector<8x64xf32>
    %199 = arith.mulf %195, %194 : vector<8x64xf32>
    %200 = arith.addf %198, %199 : vector<8x64xf32>
    %201 = math.tanh %200 : vector<8x64xf32>
    %202 = arith.mulf %197, %201 : vector<8x64xf32>
    %203 = vector.extract_strided_slice %130 {offsets = [0, 0], sizes = [8, 32], strides = [1, 1]} : vector<8x64xf32> to vector<8x32xf32>
    %204 = vector.extract_strided_slice %202 {offsets = [0, 32], sizes = [8, 32], strides = [1, 1]} : vector<8x64xf32> to vector<8x32xf32>
    %205 = tpu.concatenate %203, %204 in 1 : vector<8x32xf32>, vector<8x32xf32> -> vector<8x64xf32>
    %206 = vector.extract_strided_slice %154 {offsets = [0, 0], sizes = [8, 32], strides = [1, 1]} : vector<8x64xf32> to vector<8x32xf32>
    %207 = vector.extract_strided_slice %178 {offsets = [0, 32], sizes = [8, 32], strides = [1, 1]} : vector<8x64xf32> to vector<8x32xf32>
    %208 = tpu.concatenate %206, %207 in 1 : vector<8x32xf32>, vector<8x32xf32> -> vector<8x64xf32>
    %209 = vector.extract_strided_slice %178 {offsets = [0, 0], sizes = [8, 32], strides = [1, 1]} : vector<8x64xf32> to vector<8x32xf32>
    %210 = vector.extract_strided_slice %154 {offsets = [0, 32], sizes = [8, 32], strides = [1, 1]} : vector<8x64xf32> to vector<8x32xf32>
    %211 = tpu.concatenate %209, %210 in 1 : vector<8x32xf32>, vector<8x32xf32> -> vector<8x64xf32>
    %212 = vector.extract_strided_slice %202 {offsets = [0, 0], sizes = [8, 32], strides = [1, 1]} : vector<8x64xf32> to vector<8x32xf32>
    %213 = vector.extract_strided_slice %130 {offsets = [0, 32], sizes = [8, 32], strides = [1, 1]} : vector<8x64xf32> to vector<8x32xf32>
    %214 = tpu.concatenate %212, %213 in 1 : vector<8x32xf32>, vector<8x32xf32> -> vector<8x64xf32>
    %215 = tpu.concatenate %205, %208, %211, %214 in 0 : vector<8x64xf32>, vector<8x64xf32>, vector<8x64xf32>, vector<8x64xf32> -> vector<32x64xf32>
    %216 = arith.truncf %215 : vector<32x64xf32> to vector<32x64xbf16>
    %c0_94 = arith.constant 0 : index
    %c0_95 = arith.constant 0 : index
    %217 = vector.load %arg12[%c0_94, %c0_95] : memref<64x256xbf16, #tpu.memory_space<vmem>>, vector<64x256xbf16>
    %cst_96 = arith.constant dense<0.000000e+00> : vector<32x256xf32>
    %218 = tpu.matmul %216, %217, %cst_96 {dimension_numbers = #tpu.dot_dimension_numbers<[1], [0], [0], [1], [0, 0, 1, 1], [], []>} : vector<32x64xbf16>, vector<64x256xbf16>, vector<32x256xf32> -> vector<32x256xf32>
    %c0_97 = arith.constant 0 : index
    %c0_98 = arith.constant 0 : index
    %219 = vector.load %arg13[%c0_97, %c0_98] : memref<1x256xf32, #tpu.memory_space<vmem>>, vector<1x256xf32>
    %220 = vector.broadcast %219 : vector<1x256xf32> to vector<32x256xf32>
    %221 = arith.addf %218, %220 : vector<32x256xf32>
    %c0_99 = arith.constant 0 : index
    %c0_100 = arith.constant 0 : index
    %222 = vector.load %arg14[%c0_99, %c0_100] : memref<64x256xbf16, #tpu.memory_space<vmem>>, vector<64x256xbf16>
    %cst_101 = arith.constant 0.000000e+00 : f32
    %223 = vector.broadcast %cst_101 : f32 to vector<8x64xf32>
    %cst_102 = arith.constant 0.000000e+00 : f32
    %224 = vector.broadcast %cst_102 : f32 to vector<8x64xf32>
    %225 = vector.extract_strided_slice %221 {offsets = [0, 0], sizes = [8, 256], strides = [1, 1]} : vector<32x256xf32> to vector<8x256xf32>
    %226 = vector.extract_strided_slice %221 {offsets = [24, 0], sizes = [8, 256], strides = [1, 1]} : vector<32x256xf32> to vector<8x256xf32>
    %227 = vector.shape_cast %88 : vector<1x256xi1> to vector<1x256xi1>
    %228 = vector.broadcast %227 : vector<1x256xi1> to vector<8x256xi1>
    %229 = arith.select %228, %225, %226 : vector<8x256xi1>, vector<8x256xf32>
    %230 = arith.truncf %223 : vector<8x64xf32> to vector<8x64xbf16>
    %cst_103 = arith.constant dense<0.000000e+00> : vector<8x256xf32>
    %231 = tpu.matmul %230, %222, %cst_103 {dimension_numbers = #tpu.dot_dimension_numbers<[1], [0], [0], [1], [0, 0, 1, 1], [], []>} : vector<8x64xbf16>, vector<64x256xbf16>, vector<8x256xf32> -> vector<8x256xf32>
    %232 = arith.addf %229, %231 : vector<8x256xf32>
    %233 = vector.extract_strided_slice %232 {offsets = [0, 0], sizes = [8, 192], strides = [1, 1]} : vector<8x256xf32> to vector<8x192xf32>
    %234 = arith.negf %233 : vector<8x192xf32>
    %235 = math.exp %234 : vector<8x192xf32>
    %cst_104 = arith.constant 1.000000e+00 : f32
    %236 = vector.broadcast %cst_104 : f32 to vector<8x192xf32>
    %237 = arith.addf %236, %235 : vector<8x192xf32>
    %238 = arith.divf %236, %237 : vector<8x192xf32>
    %239 = vector.extract_strided_slice %232 {offsets = [0, 192], sizes = [8, 64], strides = [1, 1]} : vector<8x256xf32> to vector<8x64xf32>
    %240 = math.tanh %239 : vector<8x64xf32>
    %241 = vector.extract_strided_slice %238 {offsets = [0, 0], sizes = [8, 64], strides = [1, 1]} : vector<8x192xf32> to vector<8x64xf32>
    %242 = vector.extract_strided_slice %238 {offsets = [0, 64], sizes = [8, 64], strides = [1, 1]} : vector<8x192xf32> to vector<8x64xf32>
    %243 = vector.extract_strided_slice %238 {offsets = [0, 128], sizes = [8, 64], strides = [1, 1]} : vector<8x192xf32> to vector<8x64xf32>
    %244 = arith.mulf %242, %224 : vector<8x64xf32>
    %245 = arith.mulf %241, %240 : vector<8x64xf32>
    %246 = arith.addf %244, %245 : vector<8x64xf32>
    %247 = math.tanh %246 : vector<8x64xf32>
    %248 = arith.mulf %243, %247 : vector<8x64xf32>
    %249 = vector.extract_strided_slice %221 {offsets = [8, 0], sizes = [8, 256], strides = [1, 1]} : vector<32x256xf32> to vector<8x256xf32>
    %250 = vector.extract_strided_slice %221 {offsets = [16, 0], sizes = [8, 256], strides = [1, 1]} : vector<32x256xf32> to vector<8x256xf32>
    %251 = vector.shape_cast %88 : vector<1x256xi1> to vector<1x256xi1>
    %252 = vector.broadcast %251 : vector<1x256xi1> to vector<8x256xi1>
    %253 = arith.select %252, %249, %250 : vector<8x256xi1>, vector<8x256xf32>
    %254 = arith.truncf %248 : vector<8x64xf32> to vector<8x64xbf16>
    %cst_105 = arith.constant dense<0.000000e+00> : vector<8x256xf32>
    %255 = tpu.matmul %254, %222, %cst_105 {dimension_numbers = #tpu.dot_dimension_numbers<[1], [0], [0], [1], [0, 0, 1, 1], [], []>} : vector<8x64xbf16>, vector<64x256xbf16>, vector<8x256xf32> -> vector<8x256xf32>
    %256 = arith.addf %253, %255 : vector<8x256xf32>
    %257 = vector.extract_strided_slice %256 {offsets = [0, 0], sizes = [8, 192], strides = [1, 1]} : vector<8x256xf32> to vector<8x192xf32>
    %258 = arith.negf %257 : vector<8x192xf32>
    %259 = math.exp %258 : vector<8x192xf32>
    %cst_106 = arith.constant 1.000000e+00 : f32
    %260 = vector.broadcast %cst_106 : f32 to vector<8x192xf32>
    %261 = arith.addf %260, %259 : vector<8x192xf32>
    %262 = arith.divf %260, %261 : vector<8x192xf32>
    %263 = vector.extract_strided_slice %256 {offsets = [0, 192], sizes = [8, 64], strides = [1, 1]} : vector<8x256xf32> to vector<8x64xf32>
    %264 = math.tanh %263 : vector<8x64xf32>
    %265 = vector.extract_strided_slice %262 {offsets = [0, 0], sizes = [8, 64], strides = [1, 1]} : vector<8x192xf32> to vector<8x64xf32>
    %266 = vector.extract_strided_slice %262 {offsets = [0, 64], sizes = [8, 64], strides = [1, 1]} : vector<8x192xf32> to vector<8x64xf32>
    %267 = vector.extract_strided_slice %262 {offsets = [0, 128], sizes = [8, 64], strides = [1, 1]} : vector<8x192xf32> to vector<8x64xf32>
    %268 = arith.mulf %266, %246 : vector<8x64xf32>
    %269 = arith.mulf %265, %264 : vector<8x64xf32>
    %270 = arith.addf %268, %269 : vector<8x64xf32>
    %271 = math.tanh %270 : vector<8x64xf32>
    %272 = arith.mulf %267, %271 : vector<8x64xf32>
    %273 = vector.extract_strided_slice %221 {offsets = [16, 0], sizes = [8, 256], strides = [1, 1]} : vector<32x256xf32> to vector<8x256xf32>
    %274 = vector.extract_strided_slice %221 {offsets = [8, 0], sizes = [8, 256], strides = [1, 1]} : vector<32x256xf32> to vector<8x256xf32>
    %275 = vector.shape_cast %88 : vector<1x256xi1> to vector<1x256xi1>
    %276 = vector.broadcast %275 : vector<1x256xi1> to vector<8x256xi1>
    %277 = arith.select %276, %273, %274 : vector<8x256xi1>, vector<8x256xf32>
    %278 = arith.truncf %272 : vector<8x64xf32> to vector<8x64xbf16>
    %cst_107 = arith.constant dense<0.000000e+00> : vector<8x256xf32>
    %279 = tpu.matmul %278, %222, %cst_107 {dimension_numbers = #tpu.dot_dimension_numbers<[1], [0], [0], [1], [0, 0, 1, 1], [], []>} : vector<8x64xbf16>, vector<64x256xbf16>, vector<8x256xf32> -> vector<8x256xf32>
    %280 = arith.addf %277, %279 : vector<8x256xf32>
    %281 = vector.extract_strided_slice %280 {offsets = [0, 0], sizes = [8, 192], strides = [1, 1]} : vector<8x256xf32> to vector<8x192xf32>
    %282 = arith.negf %281 : vector<8x192xf32>
    %283 = math.exp %282 : vector<8x192xf32>
    %cst_108 = arith.constant 1.000000e+00 : f32
    %284 = vector.broadcast %cst_108 : f32 to vector<8x192xf32>
    %285 = arith.addf %284, %283 : vector<8x192xf32>
    %286 = arith.divf %284, %285 : vector<8x192xf32>
    %287 = vector.extract_strided_slice %280 {offsets = [0, 192], sizes = [8, 64], strides = [1, 1]} : vector<8x256xf32> to vector<8x64xf32>
    %288 = math.tanh %287 : vector<8x64xf32>
    %289 = vector.extract_strided_slice %286 {offsets = [0, 0], sizes = [8, 64], strides = [1, 1]} : vector<8x192xf32> to vector<8x64xf32>
    %290 = vector.extract_strided_slice %286 {offsets = [0, 64], sizes = [8, 64], strides = [1, 1]} : vector<8x192xf32> to vector<8x64xf32>
    %291 = vector.extract_strided_slice %286 {offsets = [0, 128], sizes = [8, 64], strides = [1, 1]} : vector<8x192xf32> to vector<8x64xf32>
    %292 = arith.mulf %290, %270 : vector<8x64xf32>
    %293 = arith.mulf %289, %288 : vector<8x64xf32>
    %294 = arith.addf %292, %293 : vector<8x64xf32>
    %295 = math.tanh %294 : vector<8x64xf32>
    %296 = arith.mulf %291, %295 : vector<8x64xf32>
    %297 = vector.extract_strided_slice %221 {offsets = [24, 0], sizes = [8, 256], strides = [1, 1]} : vector<32x256xf32> to vector<8x256xf32>
    %298 = vector.extract_strided_slice %221 {offsets = [0, 0], sizes = [8, 256], strides = [1, 1]} : vector<32x256xf32> to vector<8x256xf32>
    %299 = vector.shape_cast %88 : vector<1x256xi1> to vector<1x256xi1>
    %300 = vector.broadcast %299 : vector<1x256xi1> to vector<8x256xi1>
    %301 = arith.select %300, %297, %298 : vector<8x256xi1>, vector<8x256xf32>
    %302 = arith.truncf %296 : vector<8x64xf32> to vector<8x64xbf16>
    %cst_109 = arith.constant dense<0.000000e+00> : vector<8x256xf32>
    %303 = tpu.matmul %302, %222, %cst_109 {dimension_numbers = #tpu.dot_dimension_numbers<[1], [0], [0], [1], [0, 0, 1, 1], [], []>} : vector<8x64xbf16>, vector<64x256xbf16>, vector<8x256xf32> -> vector<8x256xf32>
    %304 = arith.addf %301, %303 : vector<8x256xf32>
    %305 = vector.extract_strided_slice %304 {offsets = [0, 0], sizes = [8, 192], strides = [1, 1]} : vector<8x256xf32> to vector<8x192xf32>
    %306 = arith.negf %305 : vector<8x192xf32>
    %307 = math.exp %306 : vector<8x192xf32>
    %cst_110 = arith.constant 1.000000e+00 : f32
    %308 = vector.broadcast %cst_110 : f32 to vector<8x192xf32>
    %309 = arith.addf %308, %307 : vector<8x192xf32>
    %310 = arith.divf %308, %309 : vector<8x192xf32>
    %311 = vector.extract_strided_slice %304 {offsets = [0, 192], sizes = [8, 64], strides = [1, 1]} : vector<8x256xf32> to vector<8x64xf32>
    %312 = math.tanh %311 : vector<8x64xf32>
    %313 = vector.extract_strided_slice %310 {offsets = [0, 0], sizes = [8, 64], strides = [1, 1]} : vector<8x192xf32> to vector<8x64xf32>
    %314 = vector.extract_strided_slice %310 {offsets = [0, 64], sizes = [8, 64], strides = [1, 1]} : vector<8x192xf32> to vector<8x64xf32>
    %315 = vector.extract_strided_slice %310 {offsets = [0, 128], sizes = [8, 64], strides = [1, 1]} : vector<8x192xf32> to vector<8x64xf32>
    %316 = arith.mulf %314, %294 : vector<8x64xf32>
    %317 = arith.mulf %313, %312 : vector<8x64xf32>
    %318 = arith.addf %316, %317 : vector<8x64xf32>
    %319 = math.tanh %318 : vector<8x64xf32>
    %320 = arith.mulf %315, %319 : vector<8x64xf32>
    %321 = vector.extract_strided_slice %320 {offsets = [0, 0], sizes = [8, 32], strides = [1, 1]} : vector<8x64xf32> to vector<8x32xf32>
    %322 = vector.extract_strided_slice %248 {offsets = [0, 32], sizes = [8, 32], strides = [1, 1]} : vector<8x64xf32> to vector<8x32xf32>
    %323 = tpu.concatenate %321, %322 in 1 : vector<8x32xf32>, vector<8x32xf32> -> vector<8x64xf32>
    %324 = arith.truncf %323 : vector<8x64xf32> to vector<8x64xbf16>
    %c0_111 = arith.constant 0 : index
    %c0_112 = arith.constant 0 : index
    %325 = vector.load %arg15[%c0_111, %c0_112] : memref<64x128xbf16, #tpu.memory_space<vmem>>, vector<64x128xbf16>
    %cst_113 = arith.constant dense<0.000000e+00> : vector<8x128xf32>
    %326 = tpu.matmul %324, %325, %cst_113 {dimension_numbers = #tpu.dot_dimension_numbers<[1], [0], [0], [1], [0, 0, 1, 1], [], []>} : vector<8x64xbf16>, vector<64x128xbf16>, vector<8x128xf32> -> vector<8x128xf32>
    %c0_114 = arith.constant 0 : index
    %c0_115 = arith.constant 0 : index
    %327 = vector.load %arg16[%c0_114, %c0_115] : memref<1x128xf32, #tpu.memory_space<vmem>>, vector<1x128xf32>
    %328 = vector.broadcast %327 : vector<1x128xf32> to vector<8x128xf32>
    %329 = arith.addf %326, %328 : vector<8x128xf32>
    %c0_116 = arith.constant 0 : index
    %c0_117 = arith.constant 0 : index
    %330 = vector.load %arg17[%c0_116, %c0_117] : memref<8x128xf32, #tpu.memory_space<vmem>>, vector<8x128xf32>
    tpu.vector_store %arg17[%c0_116, %c0_117], %329 {strides = array<i32>} : memref<8x128xf32, #tpu.memory_space<vmem>>, vector<8x128xf32>,
    return
  }
  func.func @transform_0(%arg0: i32) -> (i32, i32, i32) {
    %c0_i32 = arith.constant 0 : i32
    %c0_i32_0 = arith.constant 0 : i32
    %c0_i32_1 = arith.constant 0 : i32
    return %arg0, %c0_i32, %c0_i32_0 : i32, i32, i32
  }
  func.func @transform_1(%arg0: i32) -> (i32, i32) {
    %c0_i32 = arith.constant 0 : i32
    %c0_i32_0 = arith.constant 0 : i32
    %c0_i32_1 = arith.constant 0 : i32
    return %c0_i32, %c0_i32_0 : i32, i32
  }
  func.func @transform_2(%arg0: i32) -> (i32, i32) {
    %c0_i32 = arith.constant 0 : i32
    %c0_i32_0 = arith.constant 0 : i32
    %c0_i32_1 = arith.constant 0 : i32
    return %c0_i32, %c0_i32_0 : i32, i32
  }
  func.func @transform_3(%arg0: i32) -> (i32, i32) {
    %c0_i32 = arith.constant 0 : i32
    %c0_i32_0 = arith.constant 0 : i32
    %c0_i32_1 = arith.constant 0 : i32
    return %c0_i32, %c0_i32_0 : i32, i32
  }
  func.func @transform_4(%arg0: i32) -> (i32, i32) {
    %c0_i32 = arith.constant 0 : i32
    %c0_i32_0 = arith.constant 0 : i32
    %c0_i32_1 = arith.constant 0 : i32
    return %c0_i32, %c0_i32_0 : i32, i32
  }
  func.func @transform_5(%arg0: i32) -> (i32, i32) {
    %c0_i32 = arith.constant 0 : i32
    %c0_i32_0 = arith.constant 0 : i32
    %c0_i32_1 = arith.constant 0 : i32
    return %c0_i32, %c0_i32_0 : i32, i32
  }
  func.func @transform_6(%arg0: i32) -> (i32, i32) {
    %c0_i32 = arith.constant 0 : i32
    %c0_i32_0 = arith.constant 0 : i32
    %c0_i32_1 = arith.constant 0 : i32
    return %c0_i32, %c0_i32_0 : i32, i32
  }
  func.func @transform_7(%arg0: i32) -> (i32, i32) {
    %c0_i32 = arith.constant 0 : i32
    %c0_i32_0 = arith.constant 0 : i32
    %c0_i32_1 = arith.constant 0 : i32
    return %c0_i32, %c0_i32_0 : i32, i32
  }
  func.func @transform_8(%arg0: i32) -> (i32, i32) {
    %c0_i32 = arith.constant 0 : i32
    %c0_i32_0 = arith.constant 0 : i32
    %c0_i32_1 = arith.constant 0 : i32
    return %c0_i32, %c0_i32_0 : i32, i32
  }
  func.func @transform_9(%arg0: i32) -> (i32, i32) {
    %c0_i32 = arith.constant 0 : i32
    %c0_i32_0 = arith.constant 0 : i32
    %c0_i32_1 = arith.constant 0 : i32
    return %c0_i32, %c0_i32_0 : i32, i32
  }
  func.func @transform_10(%arg0: i32) -> (i32, i32) {
    %c0_i32 = arith.constant 0 : i32
    %c0_i32_0 = arith.constant 0 : i32
    %c0_i32_1 = arith.constant 0 : i32
    return %c0_i32, %c0_i32_0 : i32, i32
  }
  func.func @transform_11(%arg0: i32) -> (i32, i32) {
    %c0_i32 = arith.constant 0 : i32
    %c0_i32_0 = arith.constant 0 : i32
    %c0_i32_1 = arith.constant 0 : i32
    return %c0_i32, %c0_i32_0 : i32, i32
  }
  func.func @transform_12(%arg0: i32) -> (i32, i32) {
    %c0_i32 = arith.constant 0 : i32
    %c0_i32_0 = arith.constant 0 : i32
    %c0_i32_1 = arith.constant 0 : i32
    return %c0_i32, %c0_i32_0 : i32, i32
  }
  func.func @transform_13(%arg0: i32) -> (i32, i32) {
    %c0_i32 = arith.constant 0 : i32
    %c0_i32_0 = arith.constant 0 : i32
    %c0_i32_1 = arith.constant 0 : i32
    return %c0_i32, %c0_i32_0 : i32, i32
  }
  func.func @transform_14(%arg0: i32) -> (i32, i32) {
    %c0_i32 = arith.constant 0 : i32
    %c0_i32_0 = arith.constant 0 : i32
    %c0_i32_1 = arith.constant 0 : i32
    return %c0_i32, %c0_i32_0 : i32, i32
  }
  func.func @transform_15(%arg0: i32) -> (i32, i32) {
    %c0_i32 = arith.constant 0 : i32
    %c0_i32_0 = arith.constant 0 : i32
    %c0_i32_1 = arith.constant 0 : i32
    return %c0_i32, %c0_i32_0 : i32, i32
  }
  func.func @transform_16(%arg0: i32) -> (i32, i32) {
    %c0_i32 = arith.constant 0 : i32
    %c0_i32_0 = arith.constant 0 : i32
    return %arg0, %c0_i32 : i32, i32
  }
}

</mosaic_0001>

<llo_original>
// kernel: forward.1
$region0: #{forward.1}
  #allocation0 [shape = 'u32[]', space=smem, size = 0x4, offset = 0x4, fixed_abs, tag = 'smem constant byte address 0x4 - core index']
  #allocation1 [shape = 'u32[144,128]{1,0:T(1,128)}', space=vmem, size = 0x12000, scoped, tag = 'internal scratch']
  #allocation2 [shape = 'f32[8,18,16]{2,1,0:T(8,128)}', space=vmem, size = 0x18000, scoped, tag = 'scratch operand']
  #allocation3 [shape = 'f32[8,10,256]{2,1,0:T(8,128)}', space=vmem, size = 0x20000, scoped, tag = 'scratch operand']
  #allocation4 [shape = 'f32[8,6,256]{2,1,0:T(8,128)}', space=vmem, size = 0x10000, scoped, tag = 'scratch operand']
  %s0 = inlined_call_operand.hbm [shape: f32[16,16,16], index: 0, kind: input, shape index: {}]
  %s1 = inlined_call_operand.hbm [shape: bf16[48,512], index: 1, kind: input, shape index: {}]
  %s2 = inlined_call_operand.vmem [shape: f32[1,256], index: 2, kind: input, shape index: {}]
  %s3 = inlined_call_operand.hbm [shape: bf16[768,512], index: 3, kind: input, shape index: {}]
  %s4 = inlined_call_operand.vmem [shape: f32[1,256], index: 4, kind: input, shape index: {}]
  %s5 = inlined_call_operand.hbm [shape: bf16[768,512], index: 5, kind: input, shape index: {}]
  %s6 = inlined_call_operand.vmem [shape: f32[1,256], index: 6, kind: input, shape index: {}]
  %s7 = inlined_call_operand.hbm [shape: bf16[256,1024], index: 7, kind: input, shape index: {}]
  %s8 = inlined_call_operand.hbm [shape: bf16[256,1024], index: 8, kind: input, shape index: {}]
  %s9 = inlined_call_operand.vmem [shape: f32[1,1024], index: 9, kind: input, shape index: {}]
  %s10 = inlined_call_operand.hbm [shape: bf16[64,256], index: 10, kind: input, shape index: {}]
  %s11 = inlined_call_operand.hbm [shape: bf16[64,256], index: 11, kind: input, shape index: {}]
  %s12 = inlined_call_operand.vmem [shape: f32[1,256], index: 12, kind: input, shape index: {}]
  %s13 = inlined_call_operand.hbm [shape: bf16[64,256], index: 13, kind: input, shape index: {}]
  %s14 = inlined_call_operand.hbm [shape: bf16[64,128], index: 14, kind: input, shape index: {}]
  %s15 = inlined_call_operand.vmem [shape: f32[1,128], index: 15, kind: input, shape index: {}]
  %s16 = inlined_call_operand.vmem [shape: f32[16,128], index: 16, kind: output, shape index: {}]
  %s17 = sld [smem:[#allocation0]]
  $region137: #{forward.1} parent=0
    _
  %s19 = ssub.s32 1, %s17
  %s20 = scalar_select 0, %s19, %s17
  $region1: #{forward.1} parent=0
    #allocation5 [shape = 'u8[131072]{0}', space=vmem, size = 0x20000, scoped, tag = 'input window, operand 0']
    #allocation6 [shape = 's32[2]{0}', space=sflag, size = 0x8, scoped, tag = 'scoped memory for forward.1']
    #allocation7 [shape = 'u8[49152]{0}', space=vmem, size = 0xc000, scoped, tag = 'input window, operand 1, single buffered']
    #allocation8 [shape = 's32[1]{0}', space=sflag, size = 0x4, scoped, tag = 'scoped memory for forward.1']
    #allocation9 [shape = 'u8[786432]{0}', space=vmem, size = 0xc0000, scoped, tag = 'input window, operand 3, single buffered']
    #allocation10 [shape = 'u8[786432]{0}', space=vmem, size = 0xc0000, scoped, tag = 'input window, operand 5, single buffered']
    #allocation11 [shape = 's32[1]{0}', space=sflag, size = 0x4, scoped, tag = 'scoped memory for forward.1']
    #allocation12 [shape = 'u8[524288]{0}', space=vmem, size = 0x80000, scoped, tag = 'input window, operand 7, single buffered']
    #allocation13 [shape = 'u8[524288]{0}', space=vmem, size = 0x80000, scoped, tag = 'input window, operand 8, single buffered']
    #allocation14 [shape = 's32[1]{0}', space=sflag, size = 0x4, scoped, tag = 'scoped memory for forward.1']
    #allocation15 [shape = 'u8[32768]{0}', space=vmem, size = 0x8000, scoped, tag = 'input window, operand 10, single buffered']
    #allocation16 [shape = 'u8[32768]{0}', space=vmem, size = 0x8000, scoped, tag = 'input window, operand 11, single buffered']
    #allocation17 [shape = 's32[1]{0}', space=sflag, size = 0x4, scoped, tag = 'scoped memory for forward.1']
    #allocation18 [shape = 'u8[32768]{0}', space=vmem, size = 0x8000, scoped, tag = 'input window, operand 13, single buffered']
    #allocation19 [shape = 'u8[16384]{0}', space=vmem, size = 0x4000, scoped, tag = 'input window, operand 14, single buffered']
    #allocation20 [shape = 's32[1]{0}', space=sflag, size = 0x4, scoped, tag = 'scoped memory for forward.1']
    %21 = vsyncpa [#allocation6], 0
    %s22 = scalar_lea.sflag [#allocation6], 1
    %23 = vsyncpa %s22, 0
    %24 = vsyncpa [#allocation8], 0
    %25 = vsyncpa [#allocation11], 0
    %26 = vsyncpa [#allocation14], 0
    %27 = vsyncpa [#allocation17], 0
    %28 = vsyncpa [#allocation20], 0
    loop: start=0, step=1, limit=4
    $region2: #{forward.1} parent=1 // loop_pre_header
      _
    $region3: #{forward.1} parent=1 // loop_header
      %s30 = sphi 0, %s34
      %p31 = scmp.ge.s32.totalorder %s30, 4
      %s40 = sphi 0, %s42
      %s43 = sphi 0, %s40
      %s44 = sphi 0, %s43
      %s60 = sphi 0, %s44
      %s64 = sphi 0, %s64
      %s66 = sphi 0, %s64
      %s67 = sphi 0, %s66
      %s81 = sphi 0, %s67
      %s85 = sphi 0, %s85
      %s87 = sphi 0, %s85
      %s88 = sphi 0, %s87
      %s102 = sphi 0, %s88
      %s106 = sphi 0, %s106
      %s108 = sphi 0, %s106
      %s109 = sphi 0, %s108
      %s123 = sphi 0, %s109
      %s127 = sphi 0, %s127
      %s129 = sphi 0, %s127
      %s130 = sphi 0, %s129
      %s144 = sphi 0, %s130
      %s148 = sphi 0, %s148
      %s150 = sphi 0, %s148
      %s151 = sphi 0, %s150
      %s165 = sphi 0, %s151
      %s169 = sphi 0, %s169
      %s171 = sphi 0, %s169
      %s172 = sphi 0, %s171
      %s186 = sphi 0, %s172
      %s190 = sphi 0, %s190
      %s192 = sphi 0, %s190
      %s193 = sphi 0, %s192
      %s207 = sphi 0, %s193
      %s211 = sphi 0, %s211
      %s213 = sphi 0, %s211
      %s214 = sphi 0, %s213
      %s228 = sphi 0, %s214
      %s232 = sphi 0, %s232
      %s234 = sphi 0, %s232
      %s235 = sphi 0, %s234
      %s249 = sphi 0, %s235
      %s253 = sphi 0, %s253
      %s255 = sphi 0, %s253
      %s256 = sphi 0, %s255
      %s270 = sphi 0, %s256
      %s274 = sphi 0, %s274
      %s276 = sphi 0, %s274
      %s277 = sphi 0, %s276
      %s291 = sphi 0, %s277
      %s295 = sphi 0, %s295
      %s297 = sphi 0, %s295
      %s298 = sphi 0, %s297
      %s312 = sphi 0, %s298
      %s316 = sphi 0, %s316
      %s318 = sphi 0, %s316
      %s319 = sphi 0, %s318
      %s333 = sphi 0, %s319
      %s337 = sphi 0, %s337
      %s339 = sphi 0, %s337
      %s340 = sphi 0, %s339
      %s354 = sphi 0, %s340
      %s358 = sphi 0, %s358
      %s360 = sphi 0, %s358
      %s361 = sphi 0, %s360
      %s375 = sphi 0, %s361
      %s381 = sphi 0, %s383
      %s384 = sphi 0, %s381
      %s385 = sphi 0, %s384
      %s401 = sphi 0, %s385
    $region4: #{forward.1} parent=1 // loop_header_branch
      %33 = sbr.rel (%p31) target = $region8
    $region5: #{forward.1} parent=1 // loop_body
      %s35 = ssub.s32 %s30, 1
      %s36 = ssub.s32 %s30, 2
      %s37 = sadd.s32 %s30, 1
      %s38 = ssub.s32 %s30, %s37
      %p39 = scmp.eq.s32.totalorder %s38, 0
      %s41 = sadd.s32 %s40, 1
      %s42 = scalar_select %p39, %s40, %s41
      %p45 = pneg %p39
      %p46 = scmp.eq.s32.totalorder %s30, 1
      %p47 = por %p45, %p46
      %p48 = scmp.ne.s32.totalorder %s40, %s43
      %p49 = scmp.eq.s32.totalorder %s30, 0
      %p50 = por %p48, %p49
      %p51 = scmp.ne.s32.totalorder %s40, %s43
      %p52 = scmp.eq.s32.totalorder %s35, 1
      %p53 = por %p51, %p52
      %p54 = scmp.ne.s32.totalorder %s43, %s44
      %p55 = scmp.eq.s32.totalorder %s35, 0
      %p56 = por %p54, %p55
      %p57 = scmp.ne.s32.totalorder %s43, %s44
      %p58 = scmp.eq.s32.totalorder %s36, 1
      %p59 = por %p57, %p58
      %p61 = scmp.ne.s32.totalorder %s44, %s60
      %p62 = scmp.eq.s32.totalorder %s36, 0
      %p63 = por %p61, %p62
      %s65 = sadd.s32 %s64, 1
      %p68 = scmp.eq.s32.totalorder %s30, 1
      %p69 = scmp.ne.s32.totalorder %s64, %s66
      %p70 = scmp.eq.s32.totalorder %s30, 0
      %p71 = por %p69, %p70
      %p72 = scmp.ne.s32.totalorder %s64, %s66
      %p73 = scmp.eq.s32.totalorder %s35, 1
      %p74 = por %p72, %p73
      %p75 = scmp.ne.s32.totalorder %s66, %s67
      %p76 = scmp.eq.s32.totalorder %s35, 0
      %p77 = por %p75, %p76
      %p78 = scmp.ne.s32.totalorder %s66, %s67
      %p79 = scmp.eq.s32.totalorder %s36, 1
      %p80 = por %p78, %p79
      %p82 = scmp.ne.s32.totalorder %s67, %s81
      %p83 = scmp.eq.s32.totalorder %s36, 0
      %p84 = por %p82, %p83
      %s86 = sadd.s32 %s85, 1
      %p89 = scmp.eq.s32.totalorder %s30, 1
      %p90 = scmp.ne.s32.totalorder %s85, %s87
      %p91 = scmp.eq.s32.totalorder %s30, 0
      %p92 = por %p90, %p91
      %p93 = scmp.ne.s32.totalorder %s85, %s87
      %p94 = scmp.eq.s32.totalorder %s35, 1
      %p95 = por %p93, %p94
      %p96 = scmp.ne.s32.totalorder %s87, %s88
      %p97 = scmp.eq.s32.totalorder %s35, 0
      %p98 = por %p96, %p97
      %p99 = scmp.ne.s32.totalorder %s87, %s88
      %p100 = scmp.eq.s32.totalorder %s36, 1
      %p101 = por %p99, %p100
      %p103 = scmp.ne.s32.totalorder %s88, %s102
      %p104 = scmp.eq.s32.totalorder %s36, 0
      %p105 = por %p103, %p104
      %s107 = sadd.s32 %s106, 1
      %p110 = scmp.eq.s32.totalorder %s30, 1
      %p111 = scmp.ne.s32.totalorder %s106, %s108
      %p112 = scmp.eq.s32.totalorder %s30, 0
      %p113 = por %p111, %p112
      %p114 = scmp.ne.s32.totalorder %s106, %s108
      %p115 = scmp.eq.s32.totalorder %s35, 1
      %p116 = por %p114, %p115
      %p117 = scmp.ne.s32.totalorder %s108, %s109
      %p118 = scmp.eq.s32.totalorder %s35, 0
      %p119 = por %p117, %p118
      %p120 = scmp.ne.s32.totalorder %s108, %s109
      %p121 = scmp.eq.s32.totalorder %s36, 1
      %p122 = por %p120, %p121
      %p124 = scmp.ne.s32.totalorder %s109, %s123
      %p125 = scmp.eq.s32.totalorder %s36, 0
      %p126 = por %p124, %p125
      %s128 = sadd.s32 %s127, 1
      %p131 = scmp.eq.s32.totalorder %s30, 1
      %p132 = scmp.ne.s32.totalorder %s127, %s129
      %p133 = scmp.eq.s32.totalorder %s30, 0
      %p134 = por %p132, %p133
      %p135 = scmp.ne.s32.totalorder %s127, %s129
      %p136 = scmp.eq.s32.totalorder %s35, 1
      %p137 = por %p135, %p136
      %p138 = scmp.ne.s32.totalorder %s129, %s130
      %p139 = scmp.eq.s32.totalorder %s35, 0
      %p140 = por %p138, %p139
      %p141 = scmp.ne.s32.totalorder %s129, %s130
      %p142 = scmp.eq.s32.totalorder %s36, 1
      %p143 = por %p141, %p142
      %p145 = scmp.ne.s32.totalorder %s130, %s144
      %p146 = scmp.eq.s32.totalorder %s36, 0
      %p147 = por %p145, %p146
      %s149 = sadd.s32 %s148, 1
      %p152 = scmp.eq.s32.totalorder %s30, 1
      %p153 = scmp.ne.s32.totalorder %s148, %s150
      %p154 = scmp.eq.s32.totalorder %s30, 0
      %p155 = por %p153, %p154
      %p156 = scmp.ne.s32.totalorder %s148, %s150
      %p157 = scmp.eq.s32.totalorder %s35, 1
      %p158 = por %p156, %p157
      %p159 = scmp.ne.s32.totalorder %s150, %s151
      %p160 = scmp.eq.s32.totalorder %s35, 0
      %p161 = por %p159, %p160
      %p162 = scmp.ne.s32.totalorder %s150, %s151
      %p163 = scmp.eq.s32.totalorder %s36, 1
      %p164 = por %p162, %p163
      %p166 = scmp.ne.s32.totalorder %s151, %s165
      %p167 = scmp.eq.s32.totalorder %s36, 0
      %p168 = por %p166, %p167
      %s170 = sadd.s32 %s169, 1
      %p173 = scmp.eq.s32.totalorder %s30, 1
      %p174 = scmp.ne.s32.totalorder %s169, %s171
      %p175 = scmp.eq.s32.totalorder %s30, 0
      %p176 = por %p174, %p175
      %p177 = scmp.ne.s32.totalorder %s169, %s171
      %p178 = scmp.eq.s32.totalorder %s35, 1
      %p179 = por %p177, %p178
      %p180 = scmp.ne.s32.totalorder %s171, %s172
      %p181 = scmp.eq.s32.totalorder %s35, 0
      %p182 = por %p180, %p181
      %p183 = scmp.ne.s32.totalorder %s171, %s172
      %p184 = scmp.eq.s32.totalorder %s36, 1
      %p185 = por %p183, %p184
      %p187 = scmp.ne.s32.totalorder %s172, %s186
      %p188 = scmp.eq.s32.totalorder %s36, 0
      %p189 = por %p187, %p188
      %s191 = sadd.s32 %s190, 1
      %p194 = scmp.eq.s32.totalorder %s30, 1
      %p195 = scmp.ne.s32.totalorder %s190, %s192
      %p196 = scmp.eq.s32.totalorder %s30, 0
      %p197 = por %p195, %p196
      %p198 = scmp.ne.s32.totalorder %s190, %s192
      %p199 = scmp.eq.s32.totalorder %s35, 1
      %p200 = por %p198, %p199
      %p201 = scmp.ne.s32.totalorder %s192, %s193
      %p202 = scmp.eq.s32.totalorder %s35, 0
      %p203 = por %p201, %p202
      %p204 = scmp.ne.s32.totalorder %s192, %s193
      %p205 = scmp.eq.s32.totalorder %s36, 1
      %p206 = por %p204, %p205
      %p208 = scmp.ne.s32.totalorder %s193, %s207
      %p209 = scmp.eq.s32.totalorder %s36, 0
      %p210 = por %p208, %p209
      %s212 = sadd.s32 %s211, 1
      %p215 = scmp.eq.s32.totalorder %s30, 1
      %p216 = scmp.ne.s32.totalorder %s211, %s213
      %p217 = scmp.eq.s32.totalorder %s30, 0
      %p218 = por %p216, %p217
      %p219 = scmp.ne.s32.totalorder %s211, %s213
      %p220 = scmp.eq.s32.totalorder %s35, 1
      %p221 = por %p219, %p220
      %p222 = scmp.ne.s32.totalorder %s213, %s214
      %p223 = scmp.eq.s32.totalorder %s35, 0
      %p224 = por %p222, %p223
      %p225 = scmp.ne.s32.totalorder %s213, %s214
      %p226 = scmp.eq.s32.totalorder %s36, 1
      %p227 = por %p225, %p226
      %p229 = scmp.ne.s32.totalorder %s214, %s228
      %p230 = scmp.eq.s32.totalorder %s36, 0
      %p231 = por %p229, %p230
      %s233 = sadd.s32 %s232, 1
      %p236 = scmp.eq.s32.totalorder %s30, 1
      %p237 = scmp.ne.s32.totalorder %s232, %s234
      %p238 = scmp.eq.s32.totalorder %s30, 0
      %p239 = por %p237, %p238
      %p240 = scmp.ne.s32.totalorder %s232, %s234
      %p241 = scmp.eq.s32.totalorder %s35, 1
      %p242 = por %p240, %p241
      %p243 = scmp.ne.s32.totalorder %s234, %s235
      %p244 = scmp.eq.s32.totalorder %s35, 0
      %p245 = por %p243, %p244
      %p246 = scmp.ne.s32.totalorder %s234, %s235
      %p247 = scmp.eq.s32.totalorder %s36, 1
      %p248 = por %p246, %p247
      %p250 = scmp.ne.s32.totalorder %s235, %s249
      %p251 = scmp.eq.s32.totalorder %s36, 0
      %p252 = por %p250, %p251
      %s254 = sadd.s32 %s253, 1
      %p257 = scmp.eq.s32.totalorder %s30, 1
      %p258 = scmp.ne.s32.totalorder %s253, %s255
      %p259 = scmp.eq.s32.totalorder %s30, 0
      %p260 = por %p258, %p259
      %p261 = scmp.ne.s32.totalorder %s253, %s255
      %p262 = scmp.eq.s32.totalorder %s35, 1
      %p263 = por %p261, %p262
      %p264 = scmp.ne.s32.totalorder %s255, %s256
      %p265 = scmp.eq.s32.totalorder %s35, 0
      %p266 = por %p264, %p265
      %p267 = scmp.ne.s32.totalorder %s255, %s256
      %p268 = scmp.eq.s32.totalorder %s36, 1
      %p269 = por %p267, %p268
      %p271 = scmp.ne.s32.totalorder %s256, %s270
      %p272 = scmp.eq.s32.totalorder %s36, 0
      %p273 = por %p271, %p272
      %s275 = sadd.s32 %s274, 1
      %p278 = scmp.eq.s32.totalorder %s30, 1
      %p279 = scmp.ne.s32.totalorder %s274, %s276
      %p280 = scmp.eq.s32.totalorder %s30, 0
      %p281 = por %p279, %p280
      %p282 = scmp.ne.s32.totalorder %s274, %s276
      %p283 = scmp.eq.s32.totalorder %s35, 1
      %p284 = por %p282, %p283
      %p285 = scmp.ne.s32.totalorder %s276, %s277
      %p286 = scmp.eq.s32.totalorder %s35, 0
      %p287 = por %p285, %p286
      %p288 = scmp.ne.s32.totalorder %s276, %s277
      %p289 = scmp.eq.s32.totalorder %s36, 1
      %p290 = por %p288, %p289
      %p292 = scmp.ne.s32.totalorder %s277, %s291
      %p293 = scmp.eq.s32.totalorder %s36, 0
      %p294 = por %p292, %p293
      %s296 = sadd.s32 %s295, 1
      %p299 = scmp.eq.s32.totalorder %s30, 1
      %p300 = scmp.ne.s32.totalorder %s295, %s297
      %p301 = scmp.eq.s32.totalorder %s30, 0
      %p302 = por %p300, %p301
      %p303 = scmp.ne.s32.totalorder %s295, %s297
      %p304 = scmp.eq.s32.totalorder %s35, 1
      %p305 = por %p303, %p304
      %p306 = scmp.ne.s32.totalorder %s297, %s298
      %p307 = scmp.eq.s32.totalorder %s35, 0
      %p308 = por %p306, %p307
      %p309 = scmp.ne.s32.totalorder %s297, %s298
      %p310 = scmp.eq.s32.totalorder %s36, 1
      %p311 = por %p309, %p310
      %p313 = scmp.ne.s32.totalorder %s298, %s312
      %p314 = scmp.eq.s32.totalorder %s36, 0
      %p315 = por %p313, %p314
      %s317 = sadd.s32 %s316, 1
      %p320 = scmp.eq.s32.totalorder %s30, 1
      %p321 = scmp.ne.s32.totalorder %s316, %s318
      %p322 = scmp.eq.s32.totalorder %s30, 0
      %p323 = por %p321, %p322
      %p324 = scmp.ne.s32.totalorder %s316, %s318
      %p325 = scmp.eq.s32.totalorder %s35, 1
      %p326 = por %p324, %p325
      %p327 = scmp.ne.s32.totalorder %s318, %s319
      %p328 = scmp.eq.s32.totalorder %s35, 0
      %p329 = por %p327, %p328
      %p330 = scmp.ne.s32.totalorder %s318, %s319
      %p331 = scmp.eq.s32.totalorder %s36, 1
      %p332 = por %p330, %p331
      %p334 = scmp.ne.s32.totalorder %s319, %s333
      %p335 = scmp.eq.s32.totalorder %s36, 0
      %p336 = por %p334, %p335
      %s338 = sadd.s32 %s337, 1
      %p341 = scmp.eq.s32.totalorder %s30, 1
      %p342 = scmp.ne.s32.totalorder %s337, %s339
      %p343 = scmp.eq.s32.totalorder %s30, 0
      %p344 = por %p342, %p343
      %p345 = scmp.ne.s32.totalorder %s337, %s339
      %p346 = scmp.eq.s32.totalorder %s35, 1
      %p347 = por %p345, %p346
      %p348 = scmp.ne.s32.totalorder %s339, %s340
      %p349 = scmp.eq.s32.totalorder %s35, 0
      %p350 = por %p348, %p349
      %p351 = scmp.ne.s32.totalorder %s339, %s340
      %p352 = scmp.eq.s32.totalorder %s36, 1
      %p353 = por %p351, %p352
      %p355 = scmp.ne.s32.totalorder %s340, %s354
      %p356 = scmp.eq.s32.totalorder %s36, 0
      %p357 = por %p355, %p356
      %s359 = sadd.s32 %s358, 1
      %p362 = scmp.eq.s32.totalorder %s30, 1
      %p363 = scmp.ne.s32.totalorder %s358, %s360
      %p364 = scmp.eq.s32.totalorder %s30, 0
      %p365 = por %p363, %p364
      %p366 = scmp.ne.s32.totalorder %s358, %s360
      %p367 = scmp.eq.s32.totalorder %s35, 1
      %p368 = por %p366, %p367
      %p369 = scmp.ne.s32.totalorder %s360, %s361
      %p370 = scmp.eq.s32.totalorder %s35, 0
      %p371 = por %p369, %p370
      %p372 = scmp.ne.s32.totalorder %s360, %s361
      %p373 = scmp.eq.s32.totalorder %s36, 1
      %p374 = por %p372, %p373
      %p376 = scmp.ne.s32.totalorder %s361, %s375
      %p377 = scmp.eq.s32.totalorder %s36, 0
      %p378 = por %p376, %p377
      %s379 = ssub.s32 %s30, %s37
      %p380 = scmp.eq.s32.totalorder %s379, 0
      %s382 = sadd.s32 %s381, 1
      %s383 = scalar_select %p380, %s381, %s382
      %p386 = pneg %p380
      %p387 = scmp.eq.s32.totalorder %s30, 1
      %p388 = por %p386, %p387
      %p389 = scmp.ne.s32.totalorder %s381, %s384
      %p390 = scmp.eq.s32.totalorder %s30, 0
      %p391 = por %p389, %p390
      %p392 = scmp.ne.s32.totalorder %s381, %s384
      %p393 = scmp.eq.s32.totalorder %s35, 1
      %p394 = por %p392, %p393
      %p395 = scmp.ne.s32.totalorder %s384, %s385
      %p396 = scmp.eq.s32.totalorder %s35, 0
      %p397 = por %p395, %p396
      %p398 = scmp.ne.s32.totalorder %s384, %s385
      %p399 = scmp.eq.s32.totalorder %s36, 1
      %p400 = por %p398, %p399
      %p402 = scmp.ne.s32.totalorder %s385, %s401
      %p403 = scmp.eq.s32.totalorder %s36, 0
      %p404 = por %p402, %p403
      %p405 = scmp.le.s32.totalorder 1, %s30
      %p406 = scmp.lt.s32.totalorder %s30, 3
      %p407 = pnand %p405, %p406
      %p408 = pneg %p407
      // Predicated region
      $region9: #{forward.1} parent=5 // pred_check
        _
      $region10: #{forward.1} parent=5 // pred_check_branch
        %410 = sbr.rel (%p407) target = $region12
      $region11: #{forward.1} parent=5 // pred_region
        %s411 = ssub.s32 %s30, 1
        // Predicated region
        $region13: #{forward.1} parent=11 // pred_check
          %p412 = pneg %p77
        $region14: #{forward.1} parent=11 // pred_check_branch
          %414 = sbr.rel (%p412) target = $region16
        $region15: #{forward.1} parent=11 // pred_region
          %s416 = ssub.s32 1536, 1536
          %417 = vsyncadd [#allocation8], %s416
          %s418 = sshll.u32 [#allocation7], 4
          %s419 = int_to_ptr.vmem [resolvable:$true] %s418
          %424 = dma.hbm_to_vmem [thread:$0]  %s1, 1536, %s419, [#allocation8], 256, 256, 16
        $region16: #{forward.1} parent=11 // pred_fallthru
          _
        // Predicated region
        $region17: #{forward.1} parent=11 // pred_check
          %p425 = pneg %p98
        $region18: #{forward.1} parent=11 // pred_check_branch
          %427 = sbr.rel (%p425) target = $region20
        $region19: #{forward.1} parent=11 // pred_region
          _
        $region20: #{forward.1} parent=11 // pred_fallthru
          _
        // Predicated region
        $region21: #{forward.1} parent=11 // pred_check
          %p428 = pneg %p119
        $region22: #{forward.1} parent=11 // pred_check_branch
          %430 = sbr.rel (%p428) target = $region24
        $region23: #{forward.1} parent=11 // pred_region
          %s432 = ssub.s32 24576, 24576
          %433 = vsyncadd [#allocation8], %s432
          %s434 = sshll.u32 [#allocation9], 4
          %s435 = int_to_ptr.vmem [resolvable:$true] %s434
          %440 = dma.hbm_to_vmem [thread:$0]  %s3, 24576, %s435, [#allocation8], 256, 256, 16
        $region24: #{forward.1} parent=11 // pred_fallthru
          _
        // Predicated region
        $region25: #{forward.1} parent=11 // pred_check
          %p441 = pneg %p140
        $region26: #{forward.1} parent=11 // pred_check_branch
          %443 = sbr.rel (%p441) target = $region28
        $region27: #{forward.1} parent=11 // pred_region
          _
        $region28: #{forward.1} parent=11 // pred_fallthru
          _
        // Predicated region
        $region29: #{forward.1} parent=11 // pred_check
          %p444 = pneg %p161
        $region30: #{forward.1} parent=11 // pred_check_branch
          %446 = sbr.rel (%p444) target = $region32
        $region31: #{forward.1} parent=11 // pred_region
          %s448 = ssub.s32 24576, 24576
          %449 = vsyncadd [#allocation11], %s448
          %s450 = sshll.u32 [#allocation10], 4
          %s451 = int_to_ptr.vmem [resolvable:$true] %s450
          %456 = dma.hbm_to_vmem [thread:$0]  %s5, 24576, %s451, [#allocation11], 256, 256, 16
        $region32: #{forward.1} parent=11 // pred_fallthru
          _
        // Predicated region
        $region33: #{forward.1} parent=11 // pred_check
          %p457 = pneg %p182
        $region34: #{forward.1} parent=11 // pred_check_branch
          %459 = sbr.rel (%p457) target = $region36
        $region35: #{forward.1} parent=11 // pred_region
          _
        $region36: #{forward.1} parent=11 // pred_fallthru
          _
        // Predicated region
        $region37: #{forward.1} parent=11 // pred_check
          %p460 = pneg %p203
        $region38: #{forward.1} parent=11 // pred_check_branch
          %462 = sbr.rel (%p460) target = $region40
        $region39: #{forward.1} parent=11 // pred_region
          %s464 = ssub.s32 16384, 16384
          %465 = vsyncadd [#allocation11], %s464
          %s466 = sshll.u32 [#allocation12], 4
          %s467 = int_to_ptr.vmem [resolvable:$true] %s466
          %472 = dma.hbm_to_vmem [thread:$0]  %s7, 16384, %s467, [#allocation11], 512, 512, 32
        $region40: #{forward.1} parent=11 // pred_fallthru
          _
        // Predicated region
        $region41: #{forward.1} parent=11 // pred_check
          %p473 = pneg %p224
        $region42: #{forward.1} parent=11 // pred_check_branch
          %475 = sbr.rel (%p473) target = $region44
        $region43: #{forward.1} parent=11 // pred_region
          %s477 = ssub.s32 16384, 16384
          %478 = vsyncadd [#allocation14], %s477
          %s479 = sshll.u32 [#allocation13], 4
          %s480 = int_to_ptr.vmem [resolvable:$true] %s479
          %485 = dma.hbm_to_vmem [thread:$0]  %s8, 16384, %s480, [#allocation14], 512, 512, 32
        $region44: #{forward.1} parent=11 // pred_fallthru
          _
        // Predicated region
        $region45: #{forward.1} parent=11 // pred_check
          %p486 = pneg %p245
        $region46: #{forward.1} parent=11 // pred_check_branch
          %488 = sbr.rel (%p486) target = $region48
        $region47: #{forward.1} parent=11 // pred_region
          _
        $region48: #{forward.1} parent=11 // pred_fallthru
          _
        // Predicated region
        $region49: #{forward.1} parent=11 // pred_check
          %p489 = pneg %p266
        $region50: #{forward.1} parent=11 // pred_check_branch
          %491 = sbr.rel (%p489) target = $region52
        $region51: #{forward.1} parent=11 // pred_region
          %s493 = ssub.s32 1024, 1024
          %494 = vsyncadd [#allocation14], %s493
          %s495 = sshll.u32 [#allocation15], 4
          %s496 = int_to_ptr.vmem [resolvable:$true] %s495
          %501 = dma.hbm_to_vmem [thread:$0]  %s10, 1024, %s496, [#allocation14], 128, 128, 8
        $region52: #{forward.1} parent=11 // pred_fallthru
          _
        // Predicated region
        $region53: #{forward.1} parent=11 // pred_check
          %p502 = pneg %p287
        $region54: #{forward.1} parent=11 // pred_check_branch
          %504 = sbr.rel (%p502) target = $region56
        $region55: #{forward.1} parent=11 // pred_region
          %s506 = ssub.s32 1024, 1024
          %507 = vsyncadd [#allocation17], %s506
          %s508 = sshll.u32 [#allocation16], 4
          %s509 = int_to_ptr.vmem [resolvable:$true] %s508
          %514 = dma.hbm_to_vmem [thread:$0]  %s11, 1024, %s509, [#allocation17], 128, 128, 8
        $region56: #{forward.1} parent=11 // pred_fallthru
          _
        // Predicated region
        $region57: #{forward.1} parent=11 // pred_check
          %p515 = pneg %p308
        $region58: #{forward.1} parent=11 // pred_check_branch
          %517 = sbr.rel (%p515) target = $region60
        $region59: #{forward.1} parent=11 // pred_region
          _
        $region60: #{forward.1} parent=11 // pred_fallthru
          _
        // Predicated region
        $region61: #{forward.1} parent=11 // pred_check
          %p518 = pneg %p329
        $region62: #{forward.1} parent=11 // pred_check_branch
          %520 = sbr.rel (%p518) target = $region64
        $region63: #{forward.1} parent=11 // pred_region
          %s522 = ssub.s32 1024, 1024
          %523 = vsyncadd [#allocation17], %s522
          %s524 = sshll.u32 [#allocation18], 4
          %s525 = int_to_ptr.vmem [resolvable:$true] %s524
          %530 = dma.hbm_to_vmem [thread:$0]  %s13, 1024, %s525, [#allocation17], 128, 128, 8
        $region64: #{forward.1} parent=11 // pred_fallthru
          _
        // Predicated region
        $region65: #{forward.1} parent=11 // pred_check
          %p531 = pneg %p350
        $region66: #{forward.1} parent=11 // pred_check_branch
          %533 = sbr.rel (%p531) target = $region68
        $region67: #{forward.1} parent=11 // pred_region
          %s535 = ssub.s32 512, 512
          %536 = vsyncadd [#allocation20], %s535
          %s537 = sshll.u32 [#allocation19], 4
          %s538 = int_to_ptr.vmem [resolvable:$true] %s537
          %543 = dma.hbm_to_vmem [thread:$0]  %s14, 512, %s538, [#allocation20], 64, 64, 4
        $region68: #{forward.1} parent=11 // pred_fallthru
          _
        // Predicated region
        $region69: #{forward.1} parent=11 // pred_check
          %p544 = pneg %p371
        $region70: #{forward.1} parent=11 // pred_check_branch
          %546 = sbr.rel (%p544) target = $region72
        $region71: #{forward.1} parent=11 // pred_region
          _
        $region72: #{forward.1} parent=11 // pred_fallthru
          _
      $region12: #{forward.1} parent=5 // pred_fallthru
        _
      %p547 = scmp.lt.s32.totalorder %s30, 2
      // Predicated region
      $region73: #{forward.1} parent=5 // pred_check
        %p548 = pneg %p547
      $region74: #{forward.1} parent=5 // pred_check_branch
        %550 = sbr.rel (%p548) target = $region76
      $region75: #{forward.1} parent=5 // pred_region
        // Predicated region
        $region77: #{forward.1} parent=75 // pred_check
          %p551 = pneg %p50
        $region78: #{forward.1} parent=75 // pred_check_branch
          %553 = sbr.rel (%p551) target = $region80
        $region79: #{forward.1} parent=75 // pred_region
          %s554 = sand.u32 %s40, 1
          %s555 = scalar_lea.sflag [#allocation6], %s554
          %s556 = sand.u32 %s40, 1
          %s557 = smul.addr %s556, 128
          %s558 = scalar_lea.vmem [#allocation5], %s557
          %s559 = smul.u32 8, %s30
          %s561 = ssub.s32 2048, 2048
          %562 = vsyncadd %s555, %s561
          %s563 = smul.addr %s559, 2
          %s564 = smul.addr %s563, 128
          %s565 = scalar_lea.hbm %s0, %s564
          %s566 = sshll.u32 %s558, 4
          %s567 = int_to_ptr.vmem [resolvable:$true] %s566
          %572 = dma.hbm_to_vmem [thread:$0]  %s565, 2048, %s567, %s555, 128, 128, 8
        $region80: #{forward.1} parent=75 // pred_fallthru
          _
      $region76: #{forward.1} parent=5 // pred_fallthru
        _
      %p573 = scmp.le.s32.totalorder 1, %s30
      %p574 = scmp.lt.s32.totalorder %s30, 3
      %p575 = pnand %p573, %p574
      %p576 = pneg %p575
      // Predicated region
      $region81: #{forward.1} parent=5 // pred_check
        _
      $region82: #{forward.1} parent=5 // pred_check_branch
        %578 = sbr.rel (%p575) target = $region84
      $region83: #{forward.1} parent=5 // pred_region
        %s579 = ssub.s32 %s30, 1
        %s580 = sand.u32 %s43, 1
        %s581 = scalar_lea.sflag [#allocation6], %s580
        %s582 = sand.u32 %s43, 1
        %s583 = smul.addr %s582, 128
        %s584 = scalar_lea.vmem [#allocation5], %s583
        // Predicated region
        $region85: #{forward.1} parent=83 // pred_check
          %p585 = pneg %p56
        $region86: #{forward.1} parent=83 // pred_check_branch
          %587 = sbr.rel (%p585) target = $region88
        $region87: #{forward.1} parent=83 // pred_region
          %588 = dma.done %s581, 2048
        $region88: #{forward.1} parent=83 // pred_fallthru
          _
        // Predicated region
        $region89: #{forward.1} parent=83 // pred_check
          %p589 = pneg %p77
        $region90: #{forward.1} parent=83 // pred_check_branch
          %591 = sbr.rel (%p589) target = $region92
        $region91: #{forward.1} parent=83 // pred_region
          %592 = dma.done [#allocation8], 1536
        $region92: #{forward.1} parent=83 // pred_fallthru
          _
        // Predicated region
        $region93: #{forward.1} parent=83 // pred_check
          %p593 = pneg %p119
        $region94: #{forward.1} parent=83 // pred_check_branch
          %595 = sbr.rel (%p593) target = $region96
        $region95: #{forward.1} parent=83 // pred_region
          %596 = dma.done [#allocation8], 24576
        $region96: #{forward.1} parent=83 // pred_fallthru
          _
        // Predicated region
        $region97: #{forward.1} parent=83 // pred_check
          %p597 = pneg %p161
        $region98: #{forward.1} parent=83 // pred_check_branch
          %599 = sbr.rel (%p597) target = $region100
        $region99: #{forward.1} parent=83 // pred_region
          %600 = dma.done [#allocation11], 24576
        $region100: #{forward.1} parent=83 // pred_fallthru
          _
        // Predicated region
        $region101: #{forward.1} parent=83 // pred_check
          %p601 = pneg %p203
        $region102: #{forward.1} parent=83 // pred_check_branch
          %603 = sbr.rel (%p601) target = $region104
        $region103: #{forward.1} parent=83 // pred_region
          %604 = dma.done [#allocation11], 16384
        $region104: #{forward.1} parent=83 // pred_fallthru
          _
        // Predicated region
        $region105: #{forward.1} parent=83 // pred_check
          %p605 = pneg %p224
        $region106: #{forward.1} parent=83 // pred_check_branch
          %607 = sbr.rel (%p605) target = $region108
        $region107: #{forward.1} parent=83 // pred_region
          %608 = dma.done [#allocation14], 16384
        $region108: #{forward.1} parent=83 // pred_fallthru
          _
        // Predicated region
        $region109: #{forward.1} parent=83 // pred_check
          %p609 = pneg %p266
        $region110: #{forward.1} parent=83 // pred_check_branch
          %611 = sbr.rel (%p609) target = $region112
        $region111: #{forward.1} parent=83 // pred_region
          %612 = dma.done [#allocation14], 1024
        $region112: #{forward.1} parent=83 // pred_fallthru
          _
        // Predicated region
        $region113: #{forward.1} parent=83 // pred_check
          %p613 = pneg %p287
        $region114: #{forward.1} parent=83 // pred_check_branch
          %615 = sbr.rel (%p613) target = $region116
        $region115: #{forward.1} parent=83 // pred_region
          %616 = dma.done [#allocation17], 1024
        $region116: #{forward.1} parent=83 // pred_fallthru
          _
        // Predicated region
        $region117: #{forward.1} parent=83 // pred_check
          %p617 = pneg %p329
        $region118: #{forward.1} parent=83 // pred_check_branch
          %619 = sbr.rel (%p617) target = $region120
        $region119: #{forward.1} parent=83 // pred_region
          %620 = dma.done [#allocation17], 1024
        $region120: #{forward.1} parent=83 // pred_fallthru
          _
        // Predicated region
        $region121: #{forward.1} parent=83 // pred_check
          %p621 = pneg %p350
        $region122: #{forward.1} parent=83 // pred_check_branch
          %623 = sbr.rel (%p621) target = $region124
        $region123: #{forward.1} parent=83 // pred_region
          %624 = dma.done [#allocation20], 512
        $region124: #{forward.1} parent=83 // pred_fallthru
          _
        %s625 = sand.u32 %s43, 1
        %s626 = scalar_lea.sflag [#allocation6], %s625
        %s627 = sand.u32 %s43, 1
        %s628 = smul.addr %s627, 128
        %s629 = scalar_lea.vmem [#allocation5], %s628
        %p630 = pneg %p56
        %p631 = pneg %p53
        %p632 = pneg %p77
        %p633 = pneg %p74
        %p634 = pneg %p98
        %p635 = pneg %p95
        %p636 = pneg %p119
        %p637 = pneg %p116
        %p638 = pneg %p140
        %p639 = pneg %p137
        %p640 = pneg %p161
        %p641 = pneg %p158
        %p642 = pneg %p182
        %p643 = pneg %p179
        %p644 = pneg %p203
        %p645 = pneg %p200
        %p646 = pneg %p224
        %p647 = pneg %p221
        %p648 = pneg %p245
        %p649 = pneg %p242
        %p650 = pneg %p266
        %p651 = pneg %p263
        %p652 = pneg %p287
        %p653 = pneg %p284
        %p654 = pneg %p308
        %p655 = pneg %p305
        %p656 = pneg %p329
        %p657 = pneg %p326
        %p658 = pneg %p350
        %p659 = pneg %p347
        %p660 = pneg %p371
        %p661 = pneg %p368
        %p662 = pneg %p397
        %p663 = pneg %p394
        %p664 = scmp.lt.s32.totalorder %s35, 1
        %s665 = scalar_select %p664, %s35, 1
        %s666 = smul.addr %s665, 8
        %s667 = scalar_lea.vmem %s16, %s666
        %s668 = smul.u32 8, %s35
        %p669 = scmp.lt.s32.totalorder %s35, 1
        %s670 = scalar_select %p669, %s35, 1
        %s671 = smul.addr %s670, 8
        %s672 = scalar_lea.vmem %s16, %s671
        %vm674 = vcmask 122880
        %675 = vst.msk [vmem:[#allocation2] sm:$0x1] %vm674, 0.0
        %676 = vst.msk [vmem:[#allocation2 + $0x18] sm:$0x1] %vm674, 0.0
        %677 = vst.msk [vmem:[#allocation2 + $0x30] sm:$0x1] %vm674, 0.0
        %678 = vst.msk [vmem:[#allocation2 + $0x48] sm:$0x1] %vm674, 0.0
        %679 = vst.msk [vmem:[#allocation2 + $0x60] sm:$0x1] %vm674, 0.0
        %680 = vst.msk [vmem:[#allocation2 + $0x78] sm:$0x1] %vm674, 0.0
        %681 = vst.msk [vmem:[#allocation2 + $0x90] sm:$0x1] %vm674, 0.0
        %682 = vst.msk [vmem:[#allocation2 + $0xa8] sm:$0x1] %vm674, 0.0
        %683 = vst.msk [vmem:[#allocation2 + $0x11] sm:$0x1] %vm674, 0.0
        %684 = vst.msk [vmem:[#allocation2 + $0x29] sm:$0x1] %vm674, 0.0
        %685 = vst.msk [vmem:[#allocation2 + $0x41] sm:$0x1] %vm674, 0.0
        %686 = vst.msk [vmem:[#allocation2 + $0x59] sm:$0x1] %vm674, 0.0
        %687 = vst.msk [vmem:[#allocation2 + $0x71] sm:$0x1] %vm674, 0.0
        %688 = vst.msk [vmem:[#allocation2 + $0x89] sm:$0x1] %vm674, 0.0
        %689 = vst.msk [vmem:[#allocation2 + $0xa1] sm:$0x1] %vm674, 0.0
        %690 = vst.msk [vmem:[#allocation2 + $0xb9] sm:$0x1] %vm674, 0.0
        %v691 = vld [vmem:[%s584] sm:$0xff]
        %v692 = vld [vmem:[%s584 + $0x8] sm:$0xff]
        %v693 = vld [vmem:[%s584 + $0x10] sm:$0xff]
        %v694 = vld [vmem:[%s584 + $0x18] sm:$0xff]
        %v695 = vld [vmem:[%s584 + $0x20] sm:$0xff]
        %v696 = vld [vmem:[%s584 + $0x28] sm:$0xff]
        %v697 = vld [vmem:[%s584 + $0x30] sm:$0xff]
        %v698 = vld [vmem:[%s584 + $0x38] sm:$0xff]
        %v699 = vld [vmem:[%s584 + $0x40] sm:$0xff]
        %v700 = vld [vmem:[%s584 + $0x48] sm:$0xff]
        %v701 = vld [vmem:[%s584 + $0x50] sm:$0xff]
        %v702 = vld [vmem:[%s584 + $0x58] sm:$0xff]
        %v703 = vld [vmem:[%s584 + $0x60] sm:$0xff]
        %v704 = vld [vmem:[%s584 + $0x68] sm:$0xff]
        %v705 = vld [vmem:[%s584 + $0x70] sm:$0xff]
        %v706 = vld [vmem:[%s584 + $0x78] sm:$0xff]
        %vm707 = vcmask 130048
        %708 = vst.msk [vmem:[#allocation2 + $0x1] sm:$0xff] %vm707, %v691
        %709 = vst.msk [vmem:[#allocation2 + $0x9] sm:$0xff] %vm707, %v692
        %710 = vst.msk [vmem:[#allocation2 + $0x19] sm:$0xff] %vm707, %v693
        %711 = vst.msk [vmem:[#allocation2 + $0x21] sm:$0xff] %vm707, %v694
        %712 = vst.msk [vmem:[#allocation2 + $0x31] sm:$0xff] %vm707, %v695
        %713 = vst.msk [vmem:[#allocation2 + $0x39] sm:$0xff] %vm707, %v696
        %714 = vst.msk [vmem:[#allocation2 + $0x49] sm:$0xff] %vm707, %v697
        %715 = vst.msk [vmem:[#allocation2 + $0x51] sm:$0xff] %vm707, %v698
        %716 = vst.msk [vmem:[#allocation2 + $0x61] sm:$0xff] %vm707, %v699
        %717 = vst.msk [vmem:[#allocation2 + $0x69] sm:$0xff] %vm707, %v700
        %718 = vst.msk [vmem:[#allocation2 + $0x79] sm:$0xff] %vm707, %v701
        %719 = vst.msk [vmem:[#allocation2 + $0x81] sm:$0xff] %vm707, %v702
        %720 = vst.msk [vmem:[#allocation2 + $0x91] sm:$0xff] %vm707, %v703
        %721 = vst.msk [vmem:[#allocation2 + $0x99] sm:$0xff] %vm707, %v704
        %722 = vst.msk [vmem:[#allocation2 + $0xa9] sm:$0xff] %vm707, %v705
        %723 = vst.msk [vmem:[#allocation2 + $0xb1] sm:$0xff] %vm707, %v706
        %v724 = vld [vmem:[#allocation2] sm:$0xff]
        %v725 = vld [vmem:[#allocation2 + $0x8] sm:$0xff]
        %v726 = vld [vmem:[#allocation2 + $0x18] sm:$0xff]
        %v727 = vld [vmem:[#allocation2 + $0x20] sm:$0xff]
        %v728 = vld [vmem:[#allocation2 + $0x30] sm:$0xff]
        %v729 = vld [vmem:[#allocation2 + $0x38] sm:$0xff]
        %v730 = vld [vmem:[#allocation2 + $0x48] sm:$0xff]
        %v731 = vld [vmem:[#allocation2 + $0x50] sm:$0xff]
        %v732 = vld [vmem:[#allocation2 + $0x60] sm:$0xff]
        %v733 = vld [vmem:[#allocation2 + $0x68] sm:$0xff]
        %v734 = vld [vmem:[#allocation2 + $0x78] sm:$0xff]
        %v735 = vld [vmem:[#allocation2 + $0x80] sm:$0xff]
        %v736 = vld [vmem:[#allocation2 + $0x90] sm:$0xff]
        %v737 = vld [vmem:[#allocation2 + $0x98] sm:$0xff]
        %v738 = vld [vmem:[#allocation2 + $0xa8] sm:$0xff]
        %v739 = vld [vmem:[#allocation2 + $0xb0] sm:$0xff]
        %v740 = vld [vmem:[#allocation2 + $0x1] sm:$0xff]
        %v741 = vld [vmem:[#allocation2 + $0x9] sm:$0xff]
        %v742 = vld [vmem:[#allocation2 + $0x19] sm:$0xff]
        %v743 = vld [vmem:[#allocation2 + $0x21] sm:$0xff]
        %v744 = vld [vmem:[#allocation2 + $0x31] sm:$0xff]
        %v745 = vld [vmem:[#allocation2 + $0x39] sm:$0xff]
        %v746 = vld [vmem:[#allocation2 + $0x49] sm:$0xff]
        %v747 = vld [vmem:[#allocation2 + $0x51] sm:$0xff]
        %v748 = vld [vmem:[#allocation2 + $0x61] sm:$0xff]
        %v749 = vld [vmem:[#allocation2 + $0x69] sm:$0xff]
        %v750 = vld [vmem:[#allocation2 + $0x79] sm:$0xff]
        %v751 = vld [vmem:[#allocation2 + $0x81] sm:$0xff]
        %v752 = vld [vmem:[#allocation2 + $0x91] sm:$0xff]
        %v753 = vld [vmem:[#allocation2 + $0x99] sm:$0xff]
        %v754 = vld [vmem:[#allocation2 + $0xa9] sm:$0xff]
        %v755 = vld [vmem:[#allocation2 + $0xb1] sm:$0xff]
        %v756 = vld [vmem:[#allocation2 + $0x2] sm:$0xff]
        %v757 = vld [vmem:[#allocation2 + $0xa] sm:$0xff]
        %v758 = vld [vmem:[#allocation2 + $0x1a] sm:$0xff]
        %v759 = vld [vmem:[#allocation2 + $0x22] sm:$0xff]
        %v760 = vld [vmem:[#allocation2 + $0x32] sm:$0xff]
        %v761 = vld [vmem:[#allocation2 + $0x3a] sm:$0xff]
        %v762 = vld [vmem:[#allocation2 + $0x4a] sm:$0xff]
        %v763 = vld [vmem:[#allocation2 + $0x52] sm:$0xff]
        %v764 = vld [vmem:[#allocation2 + $0x62] sm:$0xff]
        %v765 = vld [vmem:[#allocation2 + $0x6a] sm:$0xff]
        %v766 = vld [vmem:[#allocation2 + $0x7a] sm:$0xff]
        %v767 = vld [vmem:[#allocation2 + $0x82] sm:$0xff]
        %v768 = vld [vmem:[#allocation2 + $0x92] sm:$0xff]
        %v769 = vld [vmem:[#allocation2 + $0x9a] sm:$0xff]
        %v770 = vld [vmem:[#allocation2 + $0xaa] sm:$0xff]
        %v771 = vld [vmem:[#allocation2 + $0xb2] sm:$0xff]
        %788 = vrot.lane.b32.xlu0 %v740, 16
        %v789 = vpop.permute.xlu0 %788
        %790 = vrot.lane.b32.xlu0 %v741, 16
        %v791 = vpop.permute.xlu0 %790
        %792 = vrot.lane.b32.xlu0 %v742, 16
        %v793 = vpop.permute.xlu0 %792
        %794 = vrot.lane.b32.xlu0 %v743, 16
        %v795 = vpop.permute.xlu0 %794
        %796 = vrot.lane.b32.xlu0 %v744, 16
        %v797 = vpop.permute.xlu0 %796
        %798 = vrot.lane.b32.xlu0 %v745, 16
        %v799 = vpop.permute.xlu0 %798
        %800 = vrot.lane.b32.xlu0 %v746, 16
        %v801 = vpop.permute.xlu0 %800
        %802 = vrot.lane.b32.xlu0 %v747, 16
        %v803 = vpop.permute.xlu0 %802
        %804 = vrot.lane.b32.xlu0 %v748, 16
        %v805 = vpop.permute.xlu0 %804
        %806 = vrot.lane.b32.xlu0 %v749, 16
        %v807 = vpop.permute.xlu0 %806
        %808 = vrot.lane.b32.xlu0 %v750, 16
        %v809 = vpop.permute.xlu0 %808
        %810 = vrot.lane.b32.xlu0 %v751, 16
        %v811 = vpop.permute.xlu0 %810
        %812 = vrot.lane.b32.xlu0 %v752, 16
        %v813 = vpop.permute.xlu0 %812
        %814 = vrot.lane.b32.xlu0 %v753, 16
        %v815 = vpop.permute.xlu0 %814
        %816 = vrot.lane.b32.xlu0 %v754, 16
        %v817 = vpop.permute.xlu0 %816
        %818 = vrot.lane.b32.xlu0 %v755, 16
        %v819 = vpop.permute.xlu0 %818
        %852 = vrot.lane.b32.xlu0 %v756, 32
        %v853 = vpop.permute.xlu0 %852
        %854 = vrot.lane.b32.xlu0 %v757, 32
        %v855 = vpop.permute.xlu0 %854
        %856 = vrot.lane.b32.xlu0 %v758, 32
        %v857 = vpop.permute.xlu0 %856
        %858 = vrot.lane.b32.xlu0 %v759, 32
        %v859 = vpop.permute.xlu0 %858
        %860 = vrot.lane.b32.xlu0 %v760, 32
        %v861 = vpop.permute.xlu0 %860
        %862 = vrot.lane.b32.xlu0 %v761, 32
        %v863 = vpop.permute.xlu0 %862
        %864 = vrot.lane.b32.xlu0 %v762, 32
        %v865 = vpop.permute.xlu0 %864
        %866 = vrot.lane.b32.xlu0 %v763, 32
        %v867 = vpop.permute.xlu0 %866
        %868 = vrot.lane.b32.xlu0 %v764, 32
        %v869 = vpop.permute.xlu0 %868
        %870 = vrot.lane.b32.xlu0 %v765, 32
        %v871 = vpop.permute.xlu0 %870
        %872 = vrot.lane.b32.xlu0 %v766, 32
        %v873 = vpop.permute.xlu0 %872
        %874 = vrot.lane.b32.xlu0 %v767, 32
        %v875 = vpop.permute.xlu0 %874
        %876 = vrot.lane.b32.xlu0 %v768, 32
        %v877 = vpop.permute.xlu0 %876
        %878 = vrot.lane.b32.xlu0 %v769, 32
        %v879 = vpop.permute.xlu0 %878
        %880 = vrot.lane.b32.xlu0 %v770, 32
        %v881 = vpop.permute.xlu0 %880
        %882 = vrot.lane.b32.xlu0 %v771, 32
        %v883 = vpop.permute.xlu0 %882
        %v900 = vsel %vm707, %v724, %v789
        %v901 = vsel %vm707, %v725, %v791
        %v902 = vsel %vm707, %v726, %v793
        %v903 = vsel %vm707, %v727, %v795
        %v904 = vsel %vm707, %v728, %v797
        %v905 = vsel %vm707, %v729, %v799
        %v906 = vsel %vm707, %v730, %v801
        %v907 = vsel %vm707, %v731, %v803
        %v908 = vsel %vm707, %v732, %v805
        %v909 = vsel %vm707, %v733, %v807
        %v910 = vsel %vm707, %v734, %v809
        %v911 = vsel %vm707, %v735, %v811
        %v912 = vsel %vm707, %v736, %v813
        %v913 = vsel %vm707, %v737, %v815
        %v914 = vsel %vm707, %v738, %v817
        %v915 = vsel %vm707, %v739, %v819
        %vm916 = vcmask 261120
        %v917 = vsel %vm916, %v900, %v853
        %v918 = vsel %vm916, %v901, %v855
        %v919 = vsel %vm916, %v902, %v857
        %v920 = vsel %vm916, %v903, %v859
        %v921 = vsel %vm916, %v904, %v861
        %v922 = vsel %vm916, %v905, %v863
        %v923 = vsel %vm916, %v906, %v865
        %v924 = vsel %vm916, %v907, %v867
        %v925 = vsel %vm916, %v908, %v869
        %v926 = vsel %vm916, %v909, %v871
        %v927 = vsel %vm916, %v910, %v873
        %v928 = vsel %vm916, %v911, %v875
        %v929 = vsel %vm916, %v912, %v877
        %v930 = vsel %vm916, %v913, %v879
        %v931 = vsel %vm916, %v914, %v881
        %v932 = vsel %vm916, %v915, %v883
        %v933 = vpack.c.bf16 %v918, %v917
        %v934 = vpack.c.bf16 %v920, %v919
        %v935 = vpack.c.bf16 %v922, %v921
        %v936 = vpack.c.bf16 %v924, %v923
        %v937 = vpack.c.bf16 %v926, %v925
        %v938 = vpack.c.bf16 %v928, %v927
        %v939 = vpack.c.bf16 %v930, %v929
        %v940 = vpack.c.bf16 %v932, %v931
        %v941 = vld [vmem:[#allocation7] sm:$0xff]
        %v942 = vld [vmem:[#allocation7 + $0x8] sm:$0xff]
        %v943 = vld [vmem:[#allocation7 + $0x10] sm:$0xff]
        %v944 = vld [vmem:[#allocation7 + $0x18] sm:$0xff]
        %v945 = vld [vmem:[#allocation7 + $0x20] sm:$0xff]
        %v946 = vld [vmem:[#allocation7 + $0x28] sm:$0xff]
        %v947 = vld [vmem:[#allocation7 + $0x30] sm:$0xff]
        %v948 = vld [vmem:[#allocation7 + $0x38] sm:$0xff]
        %v949 = vld [vmem:[#allocation7 + $0x40] sm:$0xff]
        %v950 = vld [vmem:[#allocation7 + $0x48] sm:$0xff]
        %v951 = vld [vmem:[#allocation7 + $0x50] sm:$0xff]
        %v952 = vld [vmem:[#allocation7 + $0x58] sm:$0xff]
        %v965 = vunpack.c.l.b16 %v941
        %v966 = vunpack.c.h.b16 %v941
        %v967 = vunpack.c.l.b16 %v942
        %v968 = vunpack.c.h.b16 %v942
        %v969 = vunpack.c.l.b16 %v943
        %v970 = vunpack.c.h.b16 %v943
        %v971 = vunpack.c.l.b16 %v944
        %v972 = vunpack.c.h.b16 %v944
        %v973 = vunpack.c.l.b16 %v945
        %v974 = vunpack.c.h.b16 %v945
        %v975 = vunpack.c.l.b16 %v946
        %v976 = vunpack.c.h.b16 %v946
        %v977 = vunpack.c.l.b16 %v947
        %v978 = vunpack.c.h.b16 %v947
        %v979 = vunpack.c.l.b16 %v948
        %v980 = vunpack.c.h.b16 %v948
        %v981 = vunpack.c.l.b16 %v949
        %v982 = vunpack.c.h.b16 %v949
        %v983 = vunpack.c.l.b16 %v950
        %v984 = vunpack.c.h.b16 %v950
        %v985 = vunpack.c.l.b16 %v951
        %v986 = vunpack.c.h.b16 %v951
        %v987 = vunpack.c.l.b16 %v952
        %v988 = vunpack.c.h.b16 %v952
        %v989 = vpack.c.b16 %v969, %v965
        %v990 = vpack.c.b16 %v970, %v966
        %v991 = vpack.c.b16 %v971, %v967
        %v992 = vpack.c.b16 %v972, %v968
        %v993 = vpack.c.b16 %v977, %v973
        %v994 = vpack.c.b16 %v978, %v974
        %v995 = vpack.c.b16 %v979, %v975
        %v996 = vpack.c.b16 %v980, %v976
        %v997 = vpack.c.b16 %v985, %v981
        %v998 = vpack.c.b16 %v986, %v982
        %v999 = vpack.c.b16 %v987, %v983
        %v1000 = vpack.c.b16 %v988, %v984
        %vm1013 = vcmask 392192
        %v1015 = vsel %vm1013, %v933, 0
        %v1018 = vsel %vm1013, %v934, 0
        %v1021 = vsel %vm1013, %v935, 0
        %v1024 = vsel %vm1013, %v936, 0
        %v1027 = vsel %vm1013, %v937, 0
        %v1030 = vsel %vm1013, %v938, 0
        %v1033 = vsel %vm1013, %v939, 0
        %v1036 = vsel %vm1013, %v940, 0
        %1038 = vmatprep.subr.bf16.mxu0 0
        %1039 = vmatpush1.bf16.msra.mxu0 0
        %1040 = vmatprep.subr.bf16.mxu0 0
        %1041 = vmatpush1.bf16.msra.mxu0 0
        %1042 = vmatprep.subr.bf16.mxu0 0
        %1043 = vmatpush1.bf16.msra.mxu0 0
        %1044 = vmatprep.subr.bf16.mxu0 0
        %1045 = vmatpush1.bf16.msra.mxu0 0
        %1046 = vmatprep.subr.bf16.mxu0 0
        %1047 = vmatpush1.bf16.msra.mxu0 0
        %1048 = vmatprep.subr.bf16.mxu0 %v998
        %1049 = vmatpush1.bf16.msra.mxu0 %v997
        %1050 = vmatprep.subr.bf16.mxu0 %v994
        %1051 = vmatpush1.bf16.msra.mxu0 %v993
        %1052 = vmatprep.subr.bf16.mxu0 %v990
        %1053 = vmatpush1.bf16.msra.mxu0 %v989
        %1054 = vmatprep.subr.bf16.mxu0 0
        %1055 = vmatpush2.bf16.msra.mxu0 0
        %1056 = vmatprep.subr.bf16.mxu0 0
        %1057 = vmatpush2.bf16.msra.mxu0 0
        %1058 = vmatprep.subr.bf16.mxu0 0
        %1059 = vmatpush2.bf16.msra.mxu0 0
        %1060 = vmatprep.subr.bf16.mxu0 0
        %1061 = vmatpush2.bf16.msra.mxu0 0
        %1062 = vmatprep.subr.bf16.mxu0 0
        %1063 = vmatpush2.bf16.msra.mxu0 0
        %1064 = vmatprep.subr.bf16.mxu0 0
        %1065 = vmatpush2.bf16.msra.mxu0 0
        %1066 = vmatprep.subr.bf16.mxu0 0
        %1067 = vmatpush2.bf16.msra.mxu0 0
        %1068 = vmatprep.subr.bf16.mxu0 0
        %1069 = vmatpush2.bf16.msra.mxu0 0
        %1070 = vmatprep.mubr.bf16.mxu0 0
        %1071 = vmatmul.mubr.bf16.gmra.mxu0 %v1015
        %v1072 = vpop.f32.mrf.mxu0
        %v1073 = vadd.f32 0.0, %v1072
        %v1074 = vpop.f32.mrf.mxu0
        %v1075 = vadd.f32 0.0, %v1074
        %v1076 = vpop.f32.mrf.mxu0
        %v1077 = vadd.f32 0.0, %v1076
        %v1078 = vpop.f32.mrf.mxu0
        %v1079 = vadd.f32 0.0, %v1078
        %1080 = vmatprep.mubr.bf16.mxu0 0
        %1081 = vmatmul.mubr.bf16.gmra.mxu0 %v1018
        %v1082 = vpop.f32.mrf.mxu0
        %v1083 = vadd.f32 0.0, %v1082
        %v1084 = vpop.f32.mrf.mxu0
        %v1085 = vadd.f32 0.0, %v1084
        %v1086 = vpop.f32.mrf.mxu0
        %v1087 = vadd.f32 0.0, %v1086
        %v1088 = vpop.f32.mrf.mxu0
        %v1089 = vadd.f32 0.0, %v1088
        %1090 = vmatprep.mubr.bf16.mxu0 0
        %1091 = vmatmul.mubr.bf16.gmra.mxu0 %v1021
        %v1092 = vpop.f32.mrf.mxu0
        %v1093 = vadd.f32 0.0, %v1092
        %v1094 = vpop.f32.mrf.mxu0
        %v1095 = vadd.f32 0.0, %v1094
        %v1096 = vpop.f32.mrf.mxu0
        %v1097 = vadd.f32 0.0, %v1096
        %v1098 = vpop.f32.mrf.mxu0
        %v1099 = vadd.f32 0.0, %v1098
        %1100 = vmatprep.mubr.bf16.mxu0 0
        %1101 = vmatmul.mubr.bf16.gmra.mxu0 %v1024
        %v1102 = vpop.f32.mrf.mxu0
        %v1103 = vadd.f32 0.0, %v1102
        %v1104 = vpop.f32.mrf.mxu0
        %v1105 = vadd.f32 0.0, %v1104
        %v1106 = vpop.f32.mrf.mxu0
        %v1107 = vadd.f32 0.0, %v1106
        %v1108 = vpop.f32.mrf.mxu0
        %v1109 = vadd.f32 0.0, %v1108
        %1110 = vmatprep.mubr.bf16.mxu0 0
        %1111 = vmatmul.mubr.bf16.gmra.mxu0 %v1027
        %v1112 = vpop.f32.mrf.mxu0
        %v1113 = vadd.f32 0.0, %v1112
        %v1114 = vpop.f32.mrf.mxu0
        %v1115 = vadd.f32 0.0, %v1114
        %v1116 = vpop.f32.mrf.mxu0
        %v1117 = vadd.f32 0.0, %v1116
        %v1118 = vpop.f32.mrf.mxu0
        %v1119 = vadd.f32 0.0, %v1118
        %1120 = vmatprep.mubr.bf16.mxu0 0
        %1121 = vmatmul.mubr.bf16.gmra.mxu0 %v1030
        %v1122 = vpop.f32.mrf.mxu0
        %v1123 = vadd.f32 0.0, %v1122
        %v1124 = vpop.f32.mrf.mxu0
        %v1125 = vadd.f32 0.0, %v1124
        %v1126 = vpop.f32.mrf.mxu0
        %v1127 = vadd.f32 0.0, %v1126
        %v1128 = vpop.f32.mrf.mxu0
        %v1129 = vadd.f32 0.0, %v1128
        %1130 = vmatprep.mubr.bf16.mxu0 0
        %1131 = vmatmul.mubr.bf16.gmra.mxu0 %v1033
        %v1132 = vpop.f32.mrf.mxu0
        %v1133 = vadd.f32 0.0, %v1132
        %v1134 = vpop.f32.mrf.mxu0
        %v1135 = vadd.f32 0.0, %v1134
        %v1136 = vpop.f32.mrf.mxu0
        %v1137 = vadd.f32 0.0, %v1136
        %v1138 = vpop.f32.mrf.mxu0
        %v1139 = vadd.f32 0.0, %v1138
        %1140 = vmatprep.mubr.bf16.mxu0 0
        %1141 = vmatmul.mubr.bf16.gmra.mxu0 %v1036
        %v1142 = vpop.f32.mrf.mxu0
        %v1143 = vadd.f32 0.0, %v1142
        %v1144 = vpop.f32.mrf.mxu0
        %v1145 = vadd.f32 0.0, %v1144
        %v1146 = vpop.f32.mrf.mxu0
        %v1147 = vadd.f32 0.0, %v1146
        %v1148 = vpop.f32.mrf.mxu0
        %v1149 = vadd.f32 0.0, %v1148
        %1150 = vdwg.mxu0
        %1151 = vmatprep.subr.bf16.mxu0 0
        %1152 = vmatpush1.bf16.msra.mxu0 0
        %1153 = vmatprep.subr.bf16.mxu0 0
        %1154 = vmatpush1.bf16.msra.mxu0 0
        %1155 = vmatprep.subr.bf16.mxu0 0
        %1156 = vmatpush1.bf16.msra.mxu0 0
        %1157 = vmatprep.subr.bf16.mxu0 0
        %1158 = vmatpush1.bf16.msra.mxu0 0
        %1159 = vmatprep.subr.bf16.mxu0 0
        %1160 = vmatpush1.bf16.msra.mxu0 0
        %1161 = vmatprep.subr.bf16.mxu0 %v1000
        %1162 = vmatpush1.bf16.msra.mxu0 %v999
        %1163 = vmatprep.subr.bf16.mxu0 %v996
        %1164 = vmatpush1.bf16.msra.mxu0 %v995
        %1165 = vmatprep.subr.bf16.mxu0 %v992
        %1166 = vmatpush1.bf16.msra.mxu0 %v991
        %1167 = vmatprep.subr.bf16.mxu0 0
        %1168 = vmatpush2.bf16.msra.mxu0 0
        %1169 = vmatprep.subr.bf16.mxu0 0
        %1170 = vmatpush2.bf16.msra.mxu0 0
        %1171 = vmatprep.subr.bf16.mxu0 0
        %1172 = vmatpush2.bf16.msra.mxu0 0
        %1173 = vmatprep.subr.bf16.mxu0 0
        %1174 = vmatpush2.bf16.msra.mxu0 0
        %1175 = vmatprep.subr.bf16.mxu0 0
        %1176 = vmatpush2.bf16.msra.mxu0 0
        %1177 = vmatprep.subr.bf16.mxu0 0
        %1178 = vmatpush2.bf16.msra.mxu0 0
        %1179 = vmatprep.subr.bf16.mxu0 0
        %1180 = vmatpush2.bf16.msra.mxu0 0
        %1181 = vmatprep.subr.bf16.mxu0 0
        %1182 = vmatpush2.bf16.msra.mxu0 0
        %1183 = vmatprep.mubr.bf16.mxu0 0
        %1184 = vmatmul.mubr.bf16.gmra.mxu0 %v1015
        %v1185 = vpop.f32.mrf.mxu0
        %v1186 = vadd.f32 0.0, %v1185
        %v1187 = vpop.f32.mrf.mxu0
        %v1188 = vadd.f32 0.0, %v1187
        %v1189 = vpop.f32.mrf.mxu0
        %v1190 = vadd.f32 0.0, %v1189
        %v1191 = vpop.f32.mrf.mxu0
        %v1192 = vadd.f32 0.0, %v1191
        %1193 = vmatprep.mubr.bf16.mxu0 0
        %1194 = vmatmul.mubr.bf16.gmra.mxu0 %v1018
        %v1195 = vpop.f32.mrf.mxu0
        %v1196 = vadd.f32 0.0, %v1195
        %v1197 = vpop.f32.mrf.mxu0
        %v1198 = vadd.f32 0.0, %v1197
        %v1199 = vpop.f32.mrf.mxu0
        %v1200 = vadd.f32 0.0, %v1199
        %v1201 = vpop.f32.mrf.mxu0
        %v1202 = vadd.f32 0.0, %v1201
        %1203 = vmatprep.mubr.bf16.mxu0 0
        %1204 = vmatmul.mubr.bf16.gmra.mxu0 %v1021
        %v1205 = vpop.f32.mrf.mxu0
        %v1206 = vadd.f32 0.0, %v1205
        %v1207 = vpop.f32.mrf.mxu0
        %v1208 = vadd.f32 0.0, %v1207
        %v1209 = vpop.f32.mrf.mxu0
        %v1210 = vadd.f32 0.0, %v1209
        %v1211 = vpop.f32.mrf.mxu0
        %v1212 = vadd.f32 0.0, %v1211
        %1213 = vmatprep.mubr.bf16.mxu0 0
        %1214 = vmatmul.mubr.bf16.gmra.mxu0 %v1024
        %v1215 = vpop.f32.mrf.mxu0
        %v1216 = vadd.f32 0.0, %v1215
        %v1217 = vpop.f32.mrf.mxu0
        %v1218 = vadd.f32 0.0, %v1217
        %v1219 = vpop.f32.mrf.mxu0
        %v1220 = vadd.f32 0.0, %v1219
        %v1221 = vpop.f32.mrf.mxu0
        %v1222 = vadd.f32 0.0, %v1221
        %1223 = vmatprep.mubr.bf16.mxu0 0
        %1224 = vmatmul.mubr.bf16.gmra.mxu0 %v1027
        %v1225 = vpop.f32.mrf.mxu0
        %v1226 = vadd.f32 0.0, %v1225
        %v1227 = vpop.f32.mrf.mxu0
        %v1228 = vadd.f32 0.0, %v1227
        %v1229 = vpop.f32.mrf.mxu0
        %v1230 = vadd.f32 0.0, %v1229
        %v1231 = vpop.f32.mrf.mxu0
        %v1232 = vadd.f32 0.0, %v1231
        %1233 = vmatprep.mubr.bf16.mxu0 0
        %1234 = vmatmul.mubr.bf16.gmra.mxu0 %v1030
        %v1235 = vpop.f32.mrf.mxu0
        %v1236 = vadd.f32 0.0, %v1235
        %v1237 = vpop.f32.mrf.mxu0
        %v1238 = vadd.f32 0.0, %v1237
        %v1239 = vpop.f32.mrf.mxu0
        %v1240 = vadd.f32 0.0, %v1239
        %v1241 = vpop.f32.mrf.mxu0
        %v1242 = vadd.f32 0.0, %v1241
        %1243 = vmatprep.mubr.bf16.mxu0 0
        %1244 = vmatmul.mubr.bf16.gmra.mxu0 %v1033
        %v1245 = vpop.f32.mrf.mxu0
        %v1246 = vadd.f32 0.0, %v1245
        %v1247 = vpop.f32.mrf.mxu0
        %v1248 = vadd.f32 0.0, %v1247
        %v1249 = vpop.f32.mrf.mxu0
        %v1250 = vadd.f32 0.0, %v1249
        %v1251 = vpop.f32.mrf.mxu0
        %v1252 = vadd.f32 0.0, %v1251
        %1253 = vmatprep.mubr.bf16.mxu0 0
        %1254 = vmatmul.mubr.bf16.gmra.mxu0 %v1036
        %v1255 = vpop.f32.mrf.mxu0
        %v1256 = vadd.f32 0.0, %v1255
        %v1257 = vpop.f32.mrf.mxu0
        %v1258 = vadd.f32 0.0, %v1257
        %v1259 = vpop.f32.mrf.mxu0
        %v1260 = vadd.f32 0.0, %v1259
        %v1261 = vpop.f32.mrf.mxu0
        %v1262 = vadd.f32 0.0, %v1261
        %1263 = vdwg.mxu0
        %v1328 = vcombine.low %v1073, %v1075
        %v1329 = vcombine.high %v1073, %v1075
        %v1330 = vcombine.low %v1186, %v1188
        %v1331 = vcombine.high %v1186, %v1188
        %v1333 = vunpack.c.l.s4 1983009808
        %v1334 = vunpack.c.0.s8 %v1333
        %v1335 = vlaneseq
        %v1336 = vshrl.u32 %v1335, 7
        %v1337 = vsub.s32 %v1334, %v1336
        %v1338 = vrot.slane %v1328, %v1337
        %v1340 = vunpack.c.l.s4 1983009808
        %v1341 = vunpack.c.0.s8 %v1340
        %v1342 = vlaneseq
        %v1343 = vshrl.u32 %v1342, 7
        %v1344 = vsub.s32 %v1341, %v1343
        %v1345 = vrot.slane %v1329, %v1344
        %v1347 = vunpack.c.l.s4 1983009808
        %v1348 = vunpack.c.0.s8 %v1347
        %v1349 = vlaneseq
        %v1350 = vshrl.u32 %v1349, 7
        %v1351 = vsub.s32 %v1348, %v1350
        %v1352 = vrot.slane %v1330, %v1351
        %v1354 = vunpack.c.l.s4 1983009808
        %v1355 = vunpack.c.0.s8 %v1354
        %v1356 = vlaneseq
        %v1357 = vshrl.u32 %v1356, 7
        %v1358 = vsub.s32 %v1355, %v1357
        %v1359 = vrot.slane %v1331, %v1358
        %v1360 = vcombine.low %v1338, %v1352
        %v1361 = vcombine.high %v1338, %v1352
        %v1362 = vcombine.low %v1345, %v1359
        %v1363 = vcombine.high %v1345, %v1359
        %v1364 = vcombine.low %v1077, %v1079
        %v1365 = vcombine.high %v1077, %v1079
        %v1366 = vcombine.low %v1190, %v1192
        %v1367 = vcombine.high %v1190, %v1192
        %v1369 = vunpack.c.l.s4 1983009808
        %v1370 = vunpack.c.0.s8 %v1369
        %v1371 = vlaneseq
        %v1372 = vshrl.u32 %v1371, 7
        %v1373 = vsub.s32 %v1370, %v1372
        %v1374 = vrot.slane %v1364, %v1373
        %v1376 = vunpack.c.l.s4 1983009808
        %v1377 = vunpack.c.0.s8 %v1376
        %v1378 = vlaneseq
        %v1379 = vshrl.u32 %v1378, 7
        %v1380 = vsub.s32 %v1377, %v1379
        %v1381 = vrot.slane %v1365, %v1380
        %v1383 = vunpack.c.l.s4 1983009808
        %v1384 = vunpack.c.0.s8 %v1383
        %v1385 = vlaneseq
        %v1386 = vshrl.u32 %v1385, 7
        %v1387 = vsub.s32 %v1384, %v1386
        %v1388 = vrot.slane %v1366, %v1387
        %v1390 = vunpack.c.l.s4 1983009808
        %v1391 = vunpack.c.0.s8 %v1390
        %v1392 = vlaneseq
        %v1393 = vshrl.u32 %v1392, 7
        %v1394 = vsub.s32 %v1391, %v1393
        %v1395 = vrot.slane %v1367, %v1394
        %v1396 = vcombine.low %v1374, %v1388
        %v1397 = vcombine.high %v1374, %v1388
        %v1398 = vcombine.low %v1381, %v1395
        %v1399 = vcombine.high %v1381, %v1395
        %v1400 = vcombine.low %v1083, %v1085
        %v1401 = vcombine.high %v1083, %v1085
        %v1402 = vcombine.low %v1196, %v1198
        %v1403 = vcombine.high %v1196, %v1198
        %v1405 = vunpack.c.l.s4 1983009808
        %v1406 = vunpack.c.0.s8 %v1405
        %v1407 = vlaneseq
        %v1408 = vshrl.u32 %v1407, 7
        %v1409 = vsub.s32 %v1406, %v1408
        %v1410 = vrot.slane %v1400, %v1409
        %v1412 = vunpack.c.l.s4 1983009808
        %v1413 = vunpack.c.0.s8 %v1412
        %v1414 = vlaneseq
        %v1415 = vshrl.u32 %v1414, 7
        %v1416 = vsub.s32 %v1413, %v1415
        %v1417 = vrot.slane %v1401, %v1416
        %v1419 = vunpack.c.l.s4 1983009808
        %v1420 = vunpack.c.0.s8 %v1419
        %v1421 = vlaneseq
        %v1422 = vshrl.u32 %v1421, 7
        %v1423 = vsub.s32 %v1420, %v1422
        %v1424 = vrot.slane %v1402, %v1423
        %v1426 = vunpack.c.l.s4 1983009808
        %v1427 = vunpack.c.0.s8 %v1426
        %v1428 = vlaneseq
        %v1429 = vshrl.u32 %v1428, 7
        %v1430 = vsub.s32 %v1427, %v1429
        %v1431 = vrot.slane %v1403, %v1430
        %v1432 = vcombine.low %v1410, %v1424
        %v1433 = vcombine.high %v1410, %v1424
        %v1434 = vcombine.low %v1417, %v1431
        %v1435 = vcombine.high %v1417, %v1431
        %v1436 = vcombine.low %v1087, %v1089
        %v1437 = vcombine.high %v1087, %v1089
        %v1438 = vcombine.low %v1200, %v1202
        %v1439 = vcombine.high %v1200, %v1202
        %v1441 = vunpack.c.l.s4 1983009808
        %v1442 = vunpack.c.0.s8 %v1441
        %v1443 = vlaneseq
        %v1444 = vshrl.u32 %v1443, 7
        %v1445 = vsub.s32 %v1442, %v1444
        %v1446 = vrot.slane %v1436, %v1445
        %v1448 = vunpack.c.l.s4 1983009808
        %v1449 = vunpack.c.0.s8 %v1448
        %v1450 = vlaneseq
        %v1451 = vshrl.u32 %v1450, 7
        %v1452 = vsub.s32 %v1449, %v1451
        %v1453 = vrot.slane %v1437, %v1452
        %v1455 = vunpack.c.l.s4 1983009808
        %v1456 = vunpack.c.0.s8 %v1455
        %v1457 = vlaneseq
        %v1458 = vshrl.u32 %v1457, 7
        %v1459 = vsub.s32 %v1456, %v1458
        %v1460 = vrot.slane %v1438, %v1459
        %v1462 = vunpack.c.l.s4 1983009808
        %v1463 = vunpack.c.0.s8 %v1462
        %v1464 = vlaneseq
        %v1465 = vshrl.u32 %v1464, 7
        %v1466 = vsub.s32 %v1463, %v1465
        %v1467 = vrot.slane %v1439, %v1466
        %v1468 = vcombine.low %v1446, %v1460
        %v1469 = vcombine.high %v1446, %v1460
        %v1470 = vcombine.low %v1453, %v1467
        %v1471 = vcombine.high %v1453, %v1467
        %v1472 = vcombine.low %v1093, %v1095
        %v1473 = vcombine.high %v1093, %v1095
        %v1474 = vcombine.low %v1206, %v1208
        %v1475 = vcombine.high %v1206, %v1208
        %v1477 = vunpack.c.l.s4 1983009808
        %v1478 = vunpack.c.0.s8 %v1477
        %v1479 = vlaneseq
        %v1480 = vshrl.u32 %v1479, 7
        %v1481 = vsub.s32 %v1478, %v1480
        %v1482 = vrot.slane %v1472, %v1481
        %v1484 = vunpack.c.l.s4 1983009808
        %v1485 = vunpack.c.0.s8 %v1484
        %v1486 = vlaneseq
        %v1487 = vshrl.u32 %v1486, 7
        %v1488 = vsub.s32 %v1485, %v1487
        %v1489 = vrot.slane %v1473, %v1488
        %v1491 = vunpack.c.l.s4 1983009808
        %v1492 = vunpack.c.0.s8 %v1491
        %v1493 = vlaneseq
        %v1494 = vshrl.u32 %v1493, 7
        %v1495 = vsub.s32 %v1492, %v1494
        %v1496 = vrot.slane %v1474, %v1495
        %v1498 = vunpack.c.l.s4 1983009808
        %v1499 = vunpack.c.0.s8 %v1498
        %v1500 = vlaneseq
        %v1501 = vshrl.u32 %v1500, 7
        %v1502 = vsub.s32 %v1499, %v1501
        %v1503 = vrot.slane %v1475, %v1502
        %v1504 = vcombine.low %v1482, %v1496
        %v1505 = vcombine.high %v1482, %v1496
        %v1506 = vcombine.low %v1489, %v1503
        %v1507 = vcombine.high %v1489, %v1503
        %v1508 = vcombine.low %v1097, %v1099
        %v1509 = vcombine.high %v1097, %v1099
        %v1510 = vcombine.low %v1210, %v1212
        %v1511 = vcombine.high %v1210, %v1212
        %v1513 = vunpack.c.l.s4 1983009808
        %v1514 = vunpack.c.0.s8 %v1513
        %v1515 = vlaneseq
        %v1516 = vshrl.u32 %v1515, 7
        %v1517 = vsub.s32 %v1514, %v1516
        %v1518 = vrot.slane %v1508, %v1517
        %v1520 = vunpack.c.l.s4 1983009808
        %v1521 = vunpack.c.0.s8 %v1520
        %v1522 = vlaneseq
        %v1523 = vshrl.u32 %v1522, 7
        %v1524 = vsub.s32 %v1521, %v1523
        %v1525 = vrot.slane %v1509, %v1524
        %v1527 = vunpack.c.l.s4 1983009808
        %v1528 = vunpack.c.0.s8 %v1527
        %v1529 = vlaneseq
        %v1530 = vshrl.u32 %v1529, 7
        %v1531 = vsub.s32 %v1528, %v1530
        %v1532 = vrot.slane %v1510, %v1531
        %v1534 = vunpack.c.l.s4 1983009808
        %v1535 = vunpack.c.0.s8 %v1534
        %v1536 = vlaneseq
        %v1537 = vshrl.u32 %v1536, 7
        %v1538 = vsub.s32 %v1535, %v1537
        %v1539 = vrot.slane %v1511, %v1538
        %v1540 = vcombine.low %v1518, %v1532
        %v1541 = vcombine.high %v1518, %v1532
        %v1542 = vcombine.low %v1525, %v1539
        %v1543 = vcombine.high %v1525, %v1539
        %v1544 = vcombine.low %v1103, %v1105
        %v1545 = vcombine.high %v1103, %v1105
        %v1546 = vcombine.low %v1216, %v1218
        %v1547 = vcombine.high %v1216, %v1218
        %v1549 = vunpack.c.l.s4 1983009808
        %v1550 = vunpack.c.0.s8 %v1549
        %v1551 = vlaneseq
        %v1552 = vshrl.u32 %v1551, 7
        %v1553 = vsub.s32 %v1550, %v1552
        %v1554 = vrot.slane %v1544, %v1553
        %v1556 = vunpack.c.l.s4 1983009808
        %v1557 = vunpack.c.0.s8 %v1556
        %v1558 = vlaneseq
        %v1559 = vshrl.u32 %v1558, 7
        %v1560 = vsub.s32 %v1557, %v1559
        %v1561 = vrot.slane %v1545, %v1560
        %v1563 = vunpack.c.l.s4 1983009808
        %v1564 = vunpack.c.0.s8 %v1563
        %v1565 = vlaneseq
        %v1566 = vshrl.u32 %v1565, 7
        %v1567 = vsub.s32 %v1564, %v1566
        %v1568 = vrot.slane %v1546, %v1567
        %v1570 = vunpack.c.l.s4 1983009808
        %v1571 = vunpack.c.0.s8 %v1570
        %v1572 = vlaneseq
        %v1573 = vshrl.u32 %v1572, 7
        %v1574 = vsub.s32 %v1571, %v1573
        %v1575 = vrot.slane %v1547, %v1574
        %v1576 = vcombine.low %v1554, %v1568
        %v1577 = vcombine.high %v1554, %v1568
        %v1578 = vcombine.low %v1561, %v1575
        %v1579 = vcombine.high %v1561, %v1575
        %v1580 = vcombine.low %v1107, %v1109
        %v1581 = vcombine.high %v1107, %v1109
        %v1582 = vcombine.low %v1220, %v1222
        %v1583 = vcombine.high %v1220, %v1222
        %v1585 = vunpack.c.l.s4 1983009808
        %v1586 = vunpack.c.0.s8 %v1585
        %v1587 = vlaneseq
        %v1588 = vshrl.u32 %v1587, 7
        %v1589 = vsub.s32 %v1586, %v1588
        %v1590 = vrot.slane %v1580, %v1589
        %v1592 = vunpack.c.l.s4 1983009808
        %v1593 = vunpack.c.0.s8 %v1592
        %v1594 = vlaneseq
        %v1595 = vshrl.u32 %v1594, 7
        %v1596 = vsub.s32 %v1593, %v1595
        %v1597 = vrot.slane %v1581, %v1596
        %v1599 = vunpack.c.l.s4 1983009808
        %v1600 = vunpack.c.0.s8 %v1599
        %v1601 = vlaneseq
        %v1602 = vshrl.u32 %v1601, 7
        %v1603 = vsub.s32 %v1600, %v1602
        %v1604 = vrot.slane %v1582, %v1603
        %v1606 = vunpack.c.l.s4 1983009808
        %v1607 = vunpack.c.0.s8 %v1606
        %v1608 = vlaneseq
        %v1609 = vshrl.u32 %v1608, 7
        %v1610 = vsub.s32 %v1607, %v1609
        %v1611 = vrot.slane %v1583, %v1610
        %v1612 = vcombine.low %v1590, %v1604
        %v1613 = vcombine.high %v1590, %v1604
        %v1614 = vcombine.low %v1597, %v1611
        %v1615 = vcombine.high %v1597, %v1611
        %v1616 = vcombine.low %v1113, %v1115
        %v1617 = vcombine.high %v1113, %v1115
        %v1618 = vcombine.low %v1226, %v1228
        %v1619 = vcombine.high %v1226, %v1228
        %v1621 = vunpack.c.l.s4 1983009808
        %v1622 = vunpack.c.0.s8 %v1621
        %v1623 = vlaneseq
        %v1624 = vshrl.u32 %v1623, 7
        %v1625 = vsub.s32 %v1622, %v1624
        %v1626 = vrot.slane %v1616, %v1625
        %v1628 = vunpack.c.l.s4 1983009808
        %v1629 = vunpack.c.0.s8 %v1628
        %v1630 = vlaneseq
        %v1631 = vshrl.u32 %v1630, 7
        %v1632 = vsub.s32 %v1629, %v1631
        %v1633 = vrot.slane %v1617, %v1632
        %v1635 = vunpack.c.l.s4 1983009808
        %v1636 = vunpack.c.0.s8 %v1635
        %v1637 = vlaneseq
        %v1638 = vshrl.u32 %v1637, 7
        %v1639 = vsub.s32 %v1636, %v1638
        %v1640 = vrot.slane %v1618, %v1639
        %v1642 = vunpack.c.l.s4 1983009808
        %v1643 = vunpack.c.0.s8 %v1642
        %v1644 = vlaneseq
        %v1645 = vshrl.u32 %v1644, 7
        %v1646 = vsub.s32 %v1643, %v1645
        %v1647 = vrot.slane %v1619, %v1646
        %v1648 = vcombine.low %v1626, %v1640
        %v1649 = vcombine.high %v1626, %v1640
        %v1650 = vcombine.low %v1633, %v1647
        %v1651 = vcombine.high %v1633, %v1647
        %v1652 = vcombine.low %v1117, %v1119
        %v1653 = vcombine.high %v1117, %v1119
        %v1654 = vcombine.low %v1230, %v1232
        %v1655 = vcombine.high %v1230, %v1232
        %v1657 = vunpack.c.l.s4 1983009808
        %v1658 = vunpack.c.0.s8 %v1657
        %v1659 = vlaneseq
        %v1660 = vshrl.u32 %v1659, 7
        %v1661 = vsub.s32 %v1658, %v1660
        %v1662 = vrot.slane %v1652, %v1661
        %v1664 = vunpack.c.l.s4 1983009808
        %v1665 = vunpack.c.0.s8 %v1664
        %v1666 = vlaneseq
        %v1667 = vshrl.u32 %v1666, 7
        %v1668 = vsub.s32 %v1665, %v1667
        %v1669 = vrot.slane %v1653, %v1668
        %v1671 = vunpack.c.l.s4 1983009808
        %v1672 = vunpack.c.0.s8 %v1671
        %v1673 = vlaneseq
        %v1674 = vshrl.u32 %v1673, 7
        %v1675 = vsub.s32 %v1672, %v1674
        %v1676 = vrot.slane %v1654, %v1675
        %v1678 = vunpack.c.l.s4 1983009808
        %v1679 = vunpack.c.0.s8 %v1678
        %v1680 = vlaneseq
        %v1681 = vshrl.u32 %v1680, 7
        %v1682 = vsub.s32 %v1679, %v1681
        %v1683 = vrot.slane %v1655, %v1682
        %v1684 = vcombine.low %v1662, %v1676
        %v1685 = vcombine.high %v1662, %v1676
        %v1686 = vcombine.low %v1669, %v1683
        %v1687 = vcombine.high %v1669, %v1683
        %v1688 = vcombine.low %v1123, %v1125
        %v1689 = vcombine.high %v1123, %v1125
        %v1690 = vcombine.low %v1236, %v1238
        %v1691 = vcombine.high %v1236, %v1238
        %v1693 = vunpack.c.l.s4 1983009808
        %v1694 = vunpack.c.0.s8 %v1693
        %v1695 = vlaneseq
        %v1696 = vshrl.u32 %v1695, 7
        %v1697 = vsub.s32 %v1694, %v1696
        %v1698 = vrot.slane %v1688, %v1697
        %v1700 = vunpack.c.l.s4 1983009808
        %v1701 = vunpack.c.0.s8 %v1700
        %v1702 = vlaneseq
        %v1703 = vshrl.u32 %v1702, 7
        %v1704 = vsub.s32 %v1701, %v1703
        %v1705 = vrot.slane %v1689, %v1704
        %v1707 = vunpack.c.l.s4 1983009808
        %v1708 = vunpack.c.0.s8 %v1707
        %v1709 = vlaneseq
        %v1710 = vshrl.u32 %v1709, 7
        %v1711 = vsub.s32 %v1708, %v1710
        %v1712 = vrot.slane %v1690, %v1711
        %v1714 = vunpack.c.l.s4 1983009808
        %v1715 = vunpack.c.0.s8 %v1714
        %v1716 = vlaneseq
        %v1717 = vshrl.u32 %v1716, 7
        %v1718 = vsub.s32 %v1715, %v1717
        %v1719 = vrot.slane %v1691, %v1718
        %v1720 = vcombine.low %v1698, %v1712
        %v1721 = vcombine.high %v1698, %v1712
        %v1722 = vcombine.low %v1705, %v1719
        %v1723 = vcombine.high %v1705, %v1719
        %v1724 = vcombine.low %v1127, %v1129
        %v1725 = vcombine.high %v1127, %v1129
        %v1726 = vcombine.low %v1240, %v1242
        %v1727 = vcombine.high %v1240, %v1242
        %v1729 = vunpack.c.l.s4 1983009808
        %v1730 = vunpack.c.0.s8 %v1729
        %v1731 = vlaneseq
        %v1732 = vshrl.u32 %v1731, 7
        %v1733 = vsub.s32 %v1730, %v1732
        %v1734 = vrot.slane %v1724, %v1733
        %v1736 = vunpack.c.l.s4 1983009808
        %v1737 = vunpack.c.0.s8 %v1736
        %v1738 = vlaneseq
        %v1739 = vshrl.u32 %v1738, 7
        %v1740 = vsub.s32 %v1737, %v1739
        %v1741 = vrot.slane %v1725, %v1740
        %v1743 = vunpack.c.l.s4 1983009808
        %v1744 = vunpack.c.0.s8 %v1743
        %v1745 = vlaneseq
        %v1746 = vshrl.u32 %v1745, 7
        %v1747 = vsub.s32 %v1744, %v1746
        %v1748 = vrot.slane %v1726, %v1747
        %v1750 = vunpack.c.l.s4 1983009808
        %v1751 = vunpack.c.0.s8 %v1750
        %v1752 = vlaneseq
        %v1753 = vshrl.u32 %v1752, 7
        %v1754 = vsub.s32 %v1751, %v1753
        %v1755 = vrot.slane %v1727, %v1754
        %v1756 = vcombine.low %v1734, %v1748
        %v1757 = vcombine.high %v1734, %v1748
        %v1758 = vcombine.low %v1741, %v1755
        %v1759 = vcombine.high %v1741, %v1755
        %v1760 = vcombine.low %v1133, %v1135
        %v1761 = vcombine.high %v1133, %v1135
        %v1762 = vcombine.low %v1246, %v1248
        %v1763 = vcombine.high %v1246, %v1248
        %v1765 = vunpack.c.l.s4 1983009808
        %v1766 = vunpack.c.0.s8 %v1765
        %v1767 = vlaneseq
        %v1768 = vshrl.u32 %v1767, 7
        %v1769 = vsub.s32 %v1766, %v1768
        %v1770 = vrot.slane %v1760, %v1769
        %v1772 = vunpack.c.l.s4 1983009808
        %v1773 = vunpack.c.0.s8 %v1772
        %v1774 = vlaneseq
        %v1775 = vshrl.u32 %v1774, 7
        %v1776 = vsub.s32 %v1773, %v1775
        %v1777 = vrot.slane %v1761, %v1776
        %v1779 = vunpack.c.l.s4 1983009808
        %v1780 = vunpack.c.0.s8 %v1779
        %v1781 = vlaneseq
        %v1782 = vshrl.u32 %v1781, 7
        %v1783 = vsub.s32 %v1780, %v1782
        %v1784 = vrot.slane %v1762, %v1783
        %v1786 = vunpack.c.l.s4 1983009808
        %v1787 = vunpack.c.0.s8 %v1786
        %v1788 = vlaneseq
        %v1789 = vshrl.u32 %v1788, 7
        %v1790 = vsub.s32 %v1787, %v1789
        %v1791 = vrot.slane %v1763, %v1790
        %v1792 = vcombine.low %v1770, %v1784
        %v1793 = vcombine.high %v1770, %v1784
        %v1794 = vcombine.low %v1777, %v1791
        %v1795 = vcombine.high %v1777, %v1791
        %v1796 = vcombine.low %v1137, %v1139
        %v1797 = vcombine.high %v1137, %v1139
        %v1798 = vcombine.low %v1250, %v1252
        %v1799 = vcombine.high %v1250, %v1252
        %v1801 = vunpack.c.l.s4 1983009808
        %v1802 = vunpack.c.0.s8 %v1801
        %v1803 = vlaneseq
        %v1804 = vshrl.u32 %v1803, 7
        %v1805 = vsub.s32 %v1802, %v1804
        %v1806 = vrot.slane %v1796, %v1805
        %v1808 = vunpack.c.l.s4 1983009808
        %v1809 = vunpack.c.0.s8 %v1808
        %v1810 = vlaneseq
        %v1811 = vshrl.u32 %v1810, 7
        %v1812 = vsub.s32 %v1809, %v1811
        %v1813 = vrot.slane %v1797, %v1812
        %v1815 = vunpack.c.l.s4 1983009808
        %v1816 = vunpack.c.0.s8 %v1815
        %v1817 = vlaneseq
        %v1818 = vshrl.u32 %v1817, 7
        %v1819 = vsub.s32 %v1816, %v1818
        %v1820 = vrot.slane %v1798, %v1819
        %v1822 = vunpack.c.l.s4 1983009808
        %v1823 = vunpack.c.0.s8 %v1822
        %v1824 = vlaneseq
        %v1825 = vshrl.u32 %v1824, 7
        %v1826 = vsub.s32 %v1823, %v1825
        %v1827 = vrot.slane %v1799, %v1826
        %v1828 = vcombine.low %v1806, %v1820
        %v1829 = vcombine.high %v1806, %v1820
        %v1830 = vcombine.low %v1813, %v1827
        %v1831 = vcombine.high %v1813, %v1827
        %v1832 = vcombine.low %v1143, %v1145
        %v1833 = vcombine.high %v1143, %v1145
        %v1834 = vcombine.low %v1256, %v1258
        %v1835 = vcombine.high %v1256, %v1258
        %v1837 = vunpack.c.l.s4 1983009808
        %v1838 = vunpack.c.0.s8 %v1837
        %v1839 = vlaneseq
        %v1840 = vshrl.u32 %v1839, 7
        %v1841 = vsub.s32 %v1838, %v1840
        %v1842 = vrot.slane %v1832, %v1841
        %v1844 = vunpack.c.l.s4 1983009808
        %v1845 = vunpack.c.0.s8 %v1844
        %v1846 = vlaneseq
        %v1847 = vshrl.u32 %v1846, 7
        %v1848 = vsub.s32 %v1845, %v1847
        %v1849 = vrot.slane %v1833, %v1848
        %v1851 = vunpack.c.l.s4 1983009808
        %v1852 = vunpack.c.0.s8 %v1851
        %v1853 = vlaneseq
        %v1854 = vshrl.u32 %v1853, 7
        %v1855 = vsub.s32 %v1852, %v1854
        %v1856 = vrot.slane %v1834, %v1855
        %v1858 = vunpack.c.l.s4 1983009808
        %v1859 = vunpack.c.0.s8 %v1858
        %v1860 = vlaneseq
        %v1861 = vshrl.u32 %v1860, 7
        %v1862 = vsub.s32 %v1859, %v1861
        %v1863 = vrot.slane %v1835, %v1862
        %v1864 = vcombine.low %v1842, %v1856
        %v1865 = vcombine.high %v1842, %v1856
        %v1866 = vcombine.low %v1849, %v1863
        %v1867 = vcombine.high %v1849, %v1863
        %v1868 = vcombine.low %v1147, %v1149
        %v1869 = vcombine.high %v1147, %v1149
        %v1870 = vcombine.low %v1260, %v1262
        %v1871 = vcombine.high %v1260, %v1262
        %v1873 = vunpack.c.l.s4 1983009808
        %v1874 = vunpack.c.0.s8 %v1873
        %v1875 = vlaneseq
        %v1876 = vshrl.u32 %v1875, 7
        %v1877 = vsub.s32 %v1874, %v1876
        %v1878 = vrot.slane %v1868, %v1877
        %v1880 = vunpack.c.l.s4 1983009808
        %v1881 = vunpack.c.0.s8 %v1880
        %v1882 = vlaneseq
        %v1883 = vshrl.u32 %v1882, 7
        %v1884 = vsub.s32 %v1881, %v1883
        %v1885 = vrot.slane %v1869, %v1884
        %v1887 = vunpack.c.l.s4 1983009808
        %v1888 = vunpack.c.0.s8 %v1887
        %v1889 = vlaneseq
        %v1890 = vshrl.u32 %v1889, 7
        %v1891 = vsub.s32 %v1888, %v1890
        %v1892 = vrot.slane %v1870, %v1891
        %v1894 = vunpack.c.l.s4 1983009808
        %v1895 = vunpack.c.0.s8 %v1894
        %v1896 = vlaneseq
        %v1897 = vshrl.u32 %v1896, 7
        %v1898 = vsub.s32 %v1895, %v1897
        %v1899 = vrot.slane %v1871, %v1898
        %v1900 = vcombine.low %v1878, %v1892
        %v1901 = vcombine.high %v1878, %v1892
        %v1902 = vcombine.low %v1885, %v1899
        %v1903 = vcombine.high %v1885, %v1899
        %v1968 = vrot.slane %v1360, 7
        %v1969 = vrot.slane %v1968, 2
        %v1970 = vrot.slane %v1361, 7
        %v1971 = vrot.slane %v1970, 2
        %v1972 = vrot.slane %v1362, 7
        %v1973 = vrot.slane %v1972, 2
        %v1974 = vrot.slane %v1363, 7
        %v1975 = vrot.slane %v1974, 2
        %v1976 = vrot.slane %v1396, 7
        %v1977 = vrot.slane %v1976, 2
        %v1978 = vrot.slane %v1397, 7
        %v1979 = vrot.slane %v1978, 2
        %v1980 = vrot.slane %v1398, 7
        %v1981 = vrot.slane %v1980, 2
        %v1982 = vrot.slane %v1399, 7
        %v1983 = vrot.slane %v1982, 2
        %v1984 = vrot.slane %v1432, 7
        %v1985 = vrot.slane %v1984, 2
        %v1986 = vrot.slane %v1433, 7
        %v1987 = vrot.slane %v1986, 2
        %v1988 = vrot.slane %v1434, 7
        %v1989 = vrot.slane %v1988, 2
        %v1990 = vrot.slane %v1435, 7
        %v1991 = vrot.slane %v1990, 2
        %v1992 = vrot.slane %v1468, 7
        %v1993 = vrot.slane %v1992, 2
        %v1994 = vrot.slane %v1469, 7
        %v1995 = vrot.slane %v1994, 2
        %v1996 = vrot.slane %v1470, 7
        %v1997 = vrot.slane %v1996, 2
        %v1998 = vrot.slane %v1471, 7
        %v1999 = vrot.slane %v1998, 2
        %v2000 = vrot.slane %v1504, 7
        %v2001 = vrot.slane %v2000, 2
        %v2002 = vrot.slane %v1505, 7
        %v2003 = vrot.slane %v2002, 2
        %v2004 = vrot.slane %v1506, 7
        %v2005 = vrot.slane %v2004, 2
        %v2006 = vrot.slane %v1507, 7
        %v2007 = vrot.slane %v2006, 2
        %v2008 = vrot.slane %v1540, 7
        %v2009 = vrot.slane %v2008, 2
        %v2010 = vrot.slane %v1541, 7
        %v2011 = vrot.slane %v2010, 2
        %v2012 = vrot.slane %v1542, 7
        %v2013 = vrot.slane %v2012, 2
        %v2014 = vrot.slane %v1543, 7
        %v2015 = vrot.slane %v2014, 2
        %v2016 = vrot.slane %v1576, 7
        %v2017 = vrot.slane %v2016, 2
        %v2018 = vrot.slane %v1577, 7
        %v2019 = vrot.slane %v2018, 2
        %v2020 = vrot.slane %v1578, 7
        %v2021 = vrot.slane %v2020, 2
        %v2022 = vrot.slane %v1579, 7
        %v2023 = vrot.slane %v2022, 2
        %v2024 = vrot.slane %v1612, 7
        %v2025 = vrot.slane %v2024, 2
        %v2026 = vrot.slane %v1613, 7
        %v2027 = vrot.slane %v2026, 2
        %v2028 = vrot.slane %v1614, 7
        %v2029 = vrot.slane %v2028, 2
        %v2030 = vrot.slane %v1615, 7
        %v2031 = vrot.slane %v2030, 2
        %v2032 = vrot.slane %v1648, 7
        %v2033 = vrot.slane %v2032, 2
        %v2034 = vrot.slane %v1649, 7
        %v2035 = vrot.slane %v2034, 2
        %v2036 = vrot.slane %v1650, 7
        %v2037 = vrot.slane %v2036, 2
        %v2038 = vrot.slane %v1651, 7
        %v2039 = vrot.slane %v2038, 2
        %v2040 = vrot.slane %v1684, 7
        %v2041 = vrot.slane %v2040, 2
        %v2042 = vrot.slane %v1685, 7
        %v2043 = vrot.slane %v2042, 2
        %v2044 = vrot.slane %v1686, 7
        %v2045 = vrot.slane %v2044, 2
        %v2046 = vrot.slane %v1687, 7
        %v2047 = vrot.slane %v2046, 2
        %v2048 = vrot.slane %v1720, 7
        %v2049 = vrot.slane %v2048, 2
        %v2050 = vrot.slane %v1721, 7
        %v2051 = vrot.slane %v2050, 2
        %v2052 = vrot.slane %v1722, 7
        %v2053 = vrot.slane %v2052, 2
        %v2054 = vrot.slane %v1723, 7
        %v2055 = vrot.slane %v2054, 2
        %v2056 = vrot.slane %v1756, 7
        %v2057 = vrot.slane %v2056, 2
        %v2058 = vrot.slane %v1757, 7
        %v2059 = vrot.slane %v2058, 2
        %v2060 = vrot.slane %v1758, 7
        %v2061 = vrot.slane %v2060, 2
        %v2062 = vrot.slane %v1759, 7
        %v2063 = vrot.slane %v2062, 2
        %v2064 = vrot.slane %v1792, 7
        %v2065 = vrot.slane %v2064, 2
        %v2066 = vrot.slane %v1793, 7
        %v2067 = vrot.slane %v2066, 2
        %v2068 = vrot.slane %v1794, 7
        %v2069 = vrot.slane %v2068, 2
        %v2070 = vrot.slane %v1795, 7
        %v2071 = vrot.slane %v2070, 2
        %v2072 = vrot.slane %v1828, 7
        %v2073 = vrot.slane %v2072, 2
        %v2074 = vrot.slane %v1829, 7
        %v2075 = vrot.slane %v2074, 2
        %v2076 = vrot.slane %v1830, 7
        %v2077 = vrot.slane %v2076, 2
        %v2078 = vrot.slane %v1831, 7
        %v2079 = vrot.slane %v2078, 2
        %v2080 = vrot.slane %v1864, 7
        %v2081 = vrot.slane %v2080, 2
        %v2082 = vrot.slane %v1865, 7
        %v2083 = vrot.slane %v2082, 2
        %v2084 = vrot.slane %v1866, 7
        %v2085 = vrot.slane %v2084, 2
        %v2086 = vrot.slane %v1867, 7
        %v2087 = vrot.slane %v2086, 2
        %v2088 = vrot.slane %v1900, 7
        %v2089 = vrot.slane %v2088, 2
        %v2090 = vrot.slane %v1901, 7
        %v2091 = vrot.slane %v2090, 2
        %v2092 = vrot.slane %v1902, 7
        %v2093 = vrot.slane %v2092, 2
        %v2094 = vrot.slane %v1903, 7
        %v2095 = vrot.slane %v2094, 2
        %v2160 = vmax.f32 %v1360, %v1969
        %v2161 = vmax.f32 %v1361, %v1971
        %v2162 = vmax.f32 %v1362, %v1973
        %v2163 = vmax.f32 %v1363, %v1975
        %v2164 = vmax.f32 %v1396, %v1977
        %v2165 = vmax.f32 %v1397, %v1979
        %v2166 = vmax.f32 %v1398, %v1981
        %v2167 = vmax.f32 %v1399, %v1983
        %v2168 = vmax.f32 %v1432, %v1985
        %v2169 = vmax.f32 %v1433, %v1987
        %v2170 = vmax.f32 %v1434, %v1989
        %v2171 = vmax.f32 %v1435, %v1991
        %v2172 = vmax.f32 %v1468, %v1993
        %v2173 = vmax.f32 %v1469, %v1995
        %v2174 = vmax.f32 %v1470, %v1997
        %v2175 = vmax.f32 %v1471, %v1999
        %v2176 = vmax.f32 %v1504, %v2001
        %v2177 = vmax.f32 %v1505, %v2003
        %v2178 = vmax.f32 %v1506, %v2005
        %v2179 = vmax.f32 %v1507, %v2007
        %v2180 = vmax.f32 %v1540, %v2009
        %v2181 = vmax.f32 %v1541, %v2011
        %v2182 = vmax.f32 %v1542, %v2013
        %v2183 = vmax.f32 %v1543, %v2015
        %v2184 = vmax.f32 %v1576, %v2017
        %v2185 = vmax.f32 %v1577, %v2019
        %v2186 = vmax.f32 %v1578, %v2021
        %v2187 = vmax.f32 %v1579, %v2023
        %v2188 = vmax.f32 %v1612, %v2025
        %v2189 = vmax.f32 %v1613, %v2027
        %v2190 = vmax.f32 %v1614, %v2029
        %v2191 = vmax.f32 %v1615, %v2031
        %v2192 = vmax.f32 %v1648, %v2033
        %v2193 = vmax.f32 %v1649, %v2035
        %v2194 = vmax.f32 %v1650, %v2037
        %v2195 = vmax.f32 %v1651, %v2039
        %v2196 = vmax.f32 %v1684, %v2041
        %v2197 = vmax.f32 %v1685, %v2043
        %v2198 = vmax.f32 %v1686, %v2045
        %v2199 = vmax.f32 %v1687, %v2047
        %v2200 = vmax.f32 %v1720, %v2049
        %v2201 = vmax.f32 %v1721, %v2051
        %v2202 = vmax.f32 %v1722, %v2053
        %v2203 = vmax.f32 %v1723, %v2055
        %v2204 = vmax.f32 %v1756, %v2057
        %v2205 = vmax.f32 %v1757, %v2059
        %v2206 = vmax.f32 %v1758, %v2061
        %v2207 = vmax.f32 %v1759, %v2063
        %v2208 = vmax.f32 %v1792, %v2065
        %v2209 = vmax.f32 %v1793, %v2067
        %v2210 = vmax.f32 %v1794, %v2069
        %v2211 = vmax.f32 %v1795, %v2071
        %v2212 = vmax.f32 %v1828, %v2073
        %v2213 = vmax.f32 %v1829, %v2075
        %v2214 = vmax.f32 %v1830, %v2077
        %v2215 = vmax.f32 %v1831, %v2079
        %v2216 = vmax.f32 %v1864, %v2081
        %v2217 = vmax.f32 %v1865, %v2083
        %v2218 = vmax.f32 %v1866, %v2085
        %v2219 = vmax.f32 %v1867, %v2087
        %v2220 = vmax.f32 %v1900, %v2089
        %v2221 = vmax.f32 %v1901, %v2091
        %v2222 = vmax.f32 %v1902, %v2093
        %v2223 = vmax.f32 %v1903, %v2095
        %v2288 = vrot.slane %v2160, 4
        %v2289 = vrot.slane %v2161, 4
        %v2290 = vrot.slane %v2162, 4
        %v2291 = vrot.slane %v2163, 4
        %v2292 = vrot.slane %v2164, 4
        %v2293 = vrot.slane %v2165, 4
        %v2294 = vrot.slane %v2166, 4
        %v2295 = vrot.slane %v2167, 4
        %v2296 = vrot.slane %v2168, 4
        %v2297 = vrot.slane %v2169, 4
        %v2298 = vrot.slane %v2170, 4
        %v2299 = vrot.slane %v2171, 4
        %v2300 = vrot.slane %v2172, 4
        %v2301 = vrot.slane %v2173, 4
        %v2302 = vrot.slane %v2174, 4
        %v2303 = vrot.slane %v2175, 4
        %v2304 = vrot.slane %v2176, 4
        %v2305 = vrot.slane %v2177, 4
        %v2306 = vrot.slane %v2178, 4
        %v2307 = vrot.slane %v2179, 4
        %v2308 = vrot.slane %v2180, 4
        %v2309 = vrot.slane %v2181, 4
        %v2310 = vrot.slane %v2182, 4
        %v2311 = vrot.slane %v2183, 4
        %v2312 = vrot.slane %v2184, 4
        %v2313 = vrot.slane %v2185, 4
        %v2314 = vrot.slane %v2186, 4
        %v2315 = vrot.slane %v2187, 4
        %v2316 = vrot.slane %v2188, 4
        %v2317 = vrot.slane %v2189, 4
        %v2318 = vrot.slane %v2190, 4
        %v2319 = vrot.slane %v2191, 4
        %v2320 = vrot.slane %v2192, 4
        %v2321 = vrot.slane %v2193, 4
        %v2322 = vrot.slane %v2194, 4
        %v2323 = vrot.slane %v2195, 4
        %v2324 = vrot.slane %v2196, 4
        %v2325 = vrot.slane %v2197, 4
        %v2326 = vrot.slane %v2198, 4
        %v2327 = vrot.slane %v2199, 4
        %v2328 = vrot.slane %v2200, 4
        %v2329 = vrot.slane %v2201, 4
        %v2330 = vrot.slane %v2202, 4
        %v2331 = vrot.slane %v2203, 4
        %v2332 = vrot.slane %v2204, 4
        %v2333 = vrot.slane %v2205, 4
        %v2334 = vrot.slane %v2206, 4
        %v2335 = vrot.slane %v2207, 4
        %v2336 = vrot.slane %v2208, 4
        %v2337 = vrot.slane %v2209, 4
        %v2338 = vrot.slane %v2210, 4
        %v2339 = vrot.slane %v2211, 4
        %v2340 = vrot.slane %v2212, 4
        %v2341 = vrot.slane %v2213, 4
        %v2342 = vrot.slane %v2214, 4
        %v2343 = vrot.slane %v2215, 4
        %v2344 = vrot.slane %v2216, 4
        %v2345 = vrot.slane %v2217, 4
        %v2346 = vrot.slane %v2218, 4
        %v2347 = vrot.slane %v2219, 4
        %v2348 = vrot.slane %v2220, 4
        %v2349 = vrot.slane %v2221, 4
        %v2350 = vrot.slane %v2222, 4
        %v2351 = vrot.slane %v2223, 4
        %v2416 = vmax.f32 %v2160, %v2288
        %v2417 = vmax.f32 %v2161, %v2289
        %v2418 = vmax.f32 %v2162, %v2290
        %v2419 = vmax.f32 %v2163, %v2291
        %v2420 = vmax.f32 %v2164, %v2292
        %v2421 = vmax.f32 %v2165, %v2293
        %v2422 = vmax.f32 %v2166, %v2294
        %v2423 = vmax.f32 %v2167, %v2295
        %v2424 = vmax.f32 %v2168, %v2296
        %v2425 = vmax.f32 %v2169, %v2297
        %v2426 = vmax.f32 %v2170, %v2298
        %v2427 = vmax.f32 %v2171, %v2299
        %v2428 = vmax.f32 %v2172, %v2300
        %v2429 = vmax.f32 %v2173, %v2301
        %v2430 = vmax.f32 %v2174, %v2302
        %v2431 = vmax.f32 %v2175, %v2303
        %v2432 = vmax.f32 %v2176, %v2304
        %v2433 = vmax.f32 %v2177, %v2305
        %v2434 = vmax.f32 %v2178, %v2306
        %v2435 = vmax.f32 %v2179, %v2307
        %v2436 = vmax.f32 %v2180, %v2308
        %v2437 = vmax.f32 %v2181, %v2309
        %v2438 = vmax.f32 %v2182, %v2310
        %v2439 = vmax.f32 %v2183, %v2311
        %v2440 = vmax.f32 %v2184, %v2312
        %v2441 = vmax.f32 %v2185, %v2313
        %v2442 = vmax.f32 %v2186, %v2314
        %v2443 = vmax.f32 %v2187, %v2315
        %v2444 = vmax.f32 %v2188, %v2316
        %v2445 = vmax.f32 %v2189, %v2317
        %v2446 = vmax.f32 %v2190, %v2318
        %v2447 = vmax.f32 %v2191, %v2319
        %v2448 = vmax.f32 %v2192, %v2320
        %v2449 = vmax.f32 %v2193, %v2321
        %v2450 = vmax.f32 %v2194, %v2322
        %v2451 = vmax.f32 %v2195, %v2323
        %v2452 = vmax.f32 %v2196, %v2324
        %v2453 = vmax.f32 %v2197, %v2325
        %v2454 = vmax.f32 %v2198, %v2326
        %v2455 = vmax.f32 %v2199, %v2327
        %v2456 = vmax.f32 %v2200, %v2328
        %v2457 = vmax.f32 %v2201, %v2329
        %v2458 = vmax.f32 %v2202, %v2330
        %v2459 = vmax.f32 %v2203, %v2331
        %v2460 = vmax.f32 %v2204, %v2332
        %v2461 = vmax.f32 %v2205, %v2333
        %v2462 = vmax.f32 %v2206, %v2334
        %v2463 = vmax.f32 %v2207, %v2335
        %v2464 = vmax.f32 %v2208, %v2336
        %v2465 = vmax.f32 %v2209, %v2337
        %v2466 = vmax.f32 %v2210, %v2338
        %v2467 = vmax.f32 %v2211, %v2339
        %v2468 = vmax.f32 %v2212, %v2340
        %v2469 = vmax.f32 %v2213, %v2341
        %v2470 = vmax.f32 %v2214, %v2342
        %v2471 = vmax.f32 %v2215, %v2343
        %v2472 = vmax.f32 %v2216, %v2344
        %v2473 = vmax.f32 %v2217, %v2345
        %v2474 = vmax.f32 %v2218, %v2346
        %v2475 = vmax.f32 %v2219, %v2347
        %v2476 = vmax.f32 %v2220, %v2348
        %v2477 = vmax.f32 %v2221, %v2349
        %v2478 = vmax.f32 %v2222, %v2350
        %v2479 = vmax.f32 %v2223, %v2351
        %v2480 = vld [vmem:[%s2] sm:$0x3]
        %v2482 = vlaneseq
        %v2483 = vshrl.u32 %v2482, 7
        %v2484 = vsub.s32 0, %v2483
        %v2485 = vrot.slane %v2480, %v2484
        %v2486 = vlaneseq
        %v2487 = vshrl.u32 %v2486, 7
        %v2488 = vsub.s32 1, %v2487
        %v2489 = vrot.slane %v2480, %v2488
        %v2490 = vcombine.low %v2485, %v2489
        %v2491 = vcombine.high %v2485, %v2489
        %v2493 = vunpack.c.l.s4 1983009808
        %v2494 = vunpack.c.0.s8 %v2493
        %v2495 = vlaneseq
        %v2496 = vshrl.u32 %v2495, 7
        %v2497 = vsub.s32 %v2494, %v2496
        %v2498 = vrot.slane %v2490, %v2497
        %v2500 = vunpack.c.l.s4 1983009808
        %v2501 = vunpack.c.0.s8 %v2500
        %v2502 = vlaneseq
        %v2503 = vshrl.u32 %v2502, 7
        %v2504 = vsub.s32 %v2501, %v2503
        %v2505 = vrot.slane %v2491, %v2504
        %v2506 = vcombine.high %v2498, %v2498
        %v2507 = vcombine.high %v2505, %v2505
        %v2508 = vrot.slane %v2498, 1
        %v2509 = vrot.slane %v2506, 1
        %v2510 = vrot.slane %v2505, 1
        %v2511 = vrot.slane %v2507, 1
        %v2520 = vadd.f32 %v2416, %v2498
        %v2521 = vadd.f32 %v2417, %v2508
        %v2522 = vadd.f32 %v2418, %v2506
        %v2523 = vadd.f32 %v2419, %v2509
        %v2524 = vadd.f32 %v2420, %v2505
        %v2525 = vadd.f32 %v2421, %v2510
        %v2526 = vadd.f32 %v2422, %v2507
        %v2527 = vadd.f32 %v2423, %v2511
        %v2528 = vadd.f32 %v2424, %v2498
        %v2529 = vadd.f32 %v2425, %v2508
        %v2530 = vadd.f32 %v2426, %v2506
        %v2531 = vadd.f32 %v2427, %v2509
        %v2532 = vadd.f32 %v2428, %v2505
        %v2533 = vadd.f32 %v2429, %v2510
        %v2534 = vadd.f32 %v2430, %v2507
        %v2535 = vadd.f32 %v2431, %v2511
        %v2536 = vadd.f32 %v2432, %v2498
        %v2537 = vadd.f32 %v2433, %v2508
        %v2538 = vadd.f32 %v2434, %v2506
        %v2539 = vadd.f32 %v2435, %v2509
        %v2540 = vadd.f32 %v2436, %v2505
        %v2541 = vadd.f32 %v2437, %v2510
        %v2542 = vadd.f32 %v2438, %v2507
        %v2543 = vadd.f32 %v2439, %v2511
        %v2544 = vadd.f32 %v2440, %v2498
        %v2545 = vadd.f32 %v2441, %v2508
        %v2546 = vadd.f32 %v2442, %v2506
        %v2547 = vadd.f32 %v2443, %v2509
        %v2548 = vadd.f32 %v2444, %v2505
        %v2549 = vadd.f32 %v2445, %v2510
        %v2550 = vadd.f32 %v2446, %v2507
        %v2551 = vadd.f32 %v2447, %v2511
        %v2552 = vadd.f32 %v2448, %v2498
        %v2553 = vadd.f32 %v2449, %v2508
        %v2554 = vadd.f32 %v2450, %v2506
        %v2555 = vadd.f32 %v2451, %v2509
        %v2556 = vadd.f32 %v2452, %v2505
        %v2557 = vadd.f32 %v2453, %v2510
        %v2558 = vadd.f32 %v2454, %v2507
        %v2559 = vadd.f32 %v2455, %v2511
        %v2560 = vadd.f32 %v2456, %v2498
        %v2561 = vadd.f32 %v2457, %v2508
        %v2562 = vadd.f32 %v2458, %v2506
        %v2563 = vadd.f32 %v2459, %v2509
        %v2564 = vadd.f32 %v2460, %v2505
        %v2565 = vadd.f32 %v2461, %v2510
        %v2566 = vadd.f32 %v2462, %v2507
        %v2567 = vadd.f32 %v2463, %v2511
        %v2568 = vadd.f32 %v2464, %v2498
        %v2569 = vadd.f32 %v2465, %v2508
        %v2570 = vadd.f32 %v2466, %v2506
        %v2571 = vadd.f32 %v2467, %v2509
        %v2572 = vadd.f32 %v2468, %v2505
        %v2573 = vadd.f32 %v2469, %v2510
        %v2574 = vadd.f32 %v2470, %v2507
        %v2575 = vadd.f32 %v2471, %v2511
        %v2576 = vadd.f32 %v2472, %v2498
        %v2577 = vadd.f32 %v2473, %v2508
        %v2578 = vadd.f32 %v2474, %v2506
        %v2579 = vadd.f32 %v2475, %v2509
        %v2580 = vadd.f32 %v2476, %v2505
        %v2581 = vadd.f32 %v2477, %v2510
        %v2582 = vadd.f32 %v2478, %v2507
        %v2583 = vadd.f32 %v2479, %v2511
        %v2584 = vmax.f32 %v2520, 0.0
        %v2585 = vmax.f32 %v2521, 0.0
        %v2586 = vmax.f32 %v2522, 0.0
        %v2587 = vmax.f32 %v2523, 0.0
        %v2588 = vmax.f32 %v2524, 0.0
        %v2589 = vmax.f32 %v2525, 0.0
        %v2590 = vmax.f32 %v2526, 0.0
        %v2591 = vmax.f32 %v2527, 0.0
        %v2592 = vmax.f32 %v2528, 0.0
        %v2593 = vmax.f32 %v2529, 0.0
        %v2594 = vmax.f32 %v2530, 0.0
        %v2595 = vmax.f32 %v2531, 0.0
        %v2596 = vmax.f32 %v2532, 0.0
        %v2597 = vmax.f32 %v2533, 0.0
        %v2598 = vmax.f32 %v2534, 0.0
        %v2599 = vmax.f32 %v2535, 0.0
        %v2600 = vmax.f32 %v2536, 0.0
        %v2601 = vmax.f32 %v2537, 0.0
        %v2602 = vmax.f32 %v2538, 0.0
        %v2603 = vmax.f32 %v2539, 0.0
        %v2604 = vmax.f32 %v2540, 0.0
        %v2605 = vmax.f32 %v2541, 0.0
        %v2606 = vmax.f32 %v2542, 0.0
        %v2607 = vmax.f32 %v2543, 0.0
        %v2608 = vmax.f32 %v2544, 0.0
        %v2609 = vmax.f32 %v2545, 0.0
        %v2610 = vmax.f32 %v2546, 0.0
        %v2611 = vmax.f32 %v2547, 0.0
        %v2612 = vmax.f32 %v2548, 0.0
        %v2613 = vmax.f32 %v2549, 0.0
        %v2614 = vmax.f32 %v2550, 0.0
        %v2615 = vmax.f32 %v2551, 0.0
        %v2616 = vmax.f32 %v2552, 0.0
        %v2617 = vmax.f32 %v2553, 0.0
        %v2618 = vmax.f32 %v2554, 0.0
        %v2619 = vmax.f32 %v2555, 0.0
        %v2620 = vmax.f32 %v2556, 0.0
        %v2621 = vmax.f32 %v2557, 0.0
        %v2622 = vmax.f32 %v2558, 0.0
        %v2623 = vmax.f32 %v2559, 0.0
        %v2624 = vmax.f32 %v2560, 0.0
        %v2625 = vmax.f32 %v2561, 0.0
        %v2626 = vmax.f32 %v2562, 0.0
        %v2627 = vmax.f32 %v2563, 0.0
        %v2628 = vmax.f32 %v2564, 0.0
        %v2629 = vmax.f32 %v2565, 0.0
        %v2630 = vmax.f32 %v2566, 0.0
        %v2631 = vmax.f32 %v2567, 0.0
        %v2632 = vmax.f32 %v2568, 0.0
        %v2633 = vmax.f32 %v2569, 0.0
        %v2634 = vmax.f32 %v2570, 0.0
        %v2635 = vmax.f32 %v2571, 0.0
        %v2636 = vmax.f32 %v2572, 0.0
        %v2637 = vmax.f32 %v2573, 0.0
        %v2638 = vmax.f32 %v2574, 0.0
        %v2639 = vmax.f32 %v2575, 0.0
        %v2640 = vmax.f32 %v2576, 0.0
        %v2641 = vmax.f32 %v2577, 0.0
        %v2642 = vmax.f32 %v2578, 0.0
        %v2643 = vmax.f32 %v2579, 0.0
        %v2644 = vmax.f32 %v2580, 0.0
        %v2645 = vmax.f32 %v2581, 0.0
        %v2646 = vmax.f32 %v2582, 0.0
        %v2647 = vmax.f32 %v2583, 0.0
        %v2648 = vlaneseq
        %vm2649 = vcmp.ge.s32.totalorder %v2648, 0
        %vm2650 = vcmp.lt.s32.totalorder %v2648, 256
        %vm2651 = vmand %vm2649, %vm2650
        %2652 = vst.msk [vmem:[#allocation3] ss:$8 sm:$0x3] %vm2651, 0.0
        %2653 = vst.msk [vmem:[#allocation3] ss:$8 sm:$0x0] %vm2651, 0.0
        %s2654 = scalar_lea.vmem [#allocation3], 32
        %2655 = vst.msk [vmem:[%s2654] ss:$8 sm:$0x3] %vm2651, 0.0
        %2656 = vst.msk [vmem:[%s2654] ss:$8 sm:$0x0] %vm2651, 0.0
        %s2657 = scalar_lea.vmem [#allocation3], 64
        %2658 = vst.msk [vmem:[%s2657] ss:$8 sm:$0x3] %vm2651, 0.0
        %2659 = vst.msk [vmem:[%s2657] ss:$8 sm:$0x0] %vm2651, 0.0
        %s2660 = scalar_lea.vmem [#allocation3], 96
        %2661 = vst.msk [vmem:[%s2660] ss:$8 sm:$0x3] %vm2651, 0.0
        %2662 = vst.msk [vmem:[%s2660] ss:$8 sm:$0x0] %vm2651, 0.0
        %s2663 = scalar_lea.vmem [#allocation3], 128
        %2664 = vst.msk [vmem:[%s2663] ss:$8 sm:$0x3] %vm2651, 0.0
        %2665 = vst.msk [vmem:[%s2663] ss:$8 sm:$0x0] %vm2651, 0.0
        %s2666 = scalar_lea.vmem [#allocation3], 160
        %2667 = vst.msk [vmem:[%s2666] ss:$8 sm:$0x3] %vm2651, 0.0
        %2668 = vst.msk [vmem:[%s2666] ss:$8 sm:$0x0] %vm2651, 0.0
        %s2669 = scalar_lea.vmem [#allocation3], 192
        %2670 = vst.msk [vmem:[%s2669] ss:$8 sm:$0x3] %vm2651, 0.0
        %2671 = vst.msk [vmem:[%s2669] ss:$8 sm:$0x0] %vm2651, 0.0
        %s2672 = scalar_lea.vmem [#allocation3], 224
        %2673 = vst.msk [vmem:[%s2672] ss:$8 sm:$0x3] %vm2651, 0.0
        %2674 = vst.msk [vmem:[%s2672] ss:$8 sm:$0x0] %vm2651, 0.0
        %s2675 = scalar_lea.vmem [#allocation3], 17
        %2676 = vst.msk [vmem:[%s2675] ss:$8 sm:$0x3] %vm2651, 0.0
        %2677 = vst.msk [vmem:[%s2675] ss:$8 sm:$0x0] %vm2651, 0.0
        %s2678 = scalar_lea.vmem [#allocation3], 49
        %2679 = vst.msk [vmem:[%s2678] ss:$8 sm:$0x3] %vm2651, 0.0
        %2680 = vst.msk [vmem:[%s2678] ss:$8 sm:$0x0] %vm2651, 0.0
        %s2681 = scalar_lea.vmem [#allocation3], 81
        %2682 = vst.msk [vmem:[%s2681] ss:$8 sm:$0x3] %vm2651, 0.0
        %2683 = vst.msk [vmem:[%s2681] ss:$8 sm:$0x0] %vm2651, 0.0
        %s2684 = scalar_lea.vmem [#allocation3], 113
        %2685 = vst.msk [vmem:[%s2684] ss:$8 sm:$0x3] %vm2651, 0.0
        %2686 = vst.msk [vmem:[%s2684] ss:$8 sm:$0x0] %vm2651, 0.0
        %s2687 = scalar_lea.vmem [#allocation3], 145
        %2688 = vst.msk [vmem:[%s2687] ss:$8 sm:$0x3] %vm2651, 0.0
        %2689 = vst.msk [vmem:[%s2687] ss:$8 sm:$0x0] %vm2651, 0.0
        %s2690 = scalar_lea.vmem [#allocation3], 177
        %2691 = vst.msk [vmem:[%s2690] ss:$8 sm:$0x3] %vm2651, 0.0
        %2692 = vst.msk [vmem:[%s2690] ss:$8 sm:$0x0] %vm2651, 0.0
        %s2693 = scalar_lea.vmem [#allocation3], 209
        %2694 = vst.msk [vmem:[%s2693] ss:$8 sm:$0x3] %vm2651, 0.0
        %2695 = vst.msk [vmem:[%s2693] ss:$8 sm:$0x0] %vm2651, 0.0
        %s2696 = scalar_lea.vmem [#allocation3], 241
        %2697 = vst.msk [vmem:[%s2696] ss:$8 sm:$0x3] %vm2651, 0.0
        %2698 = vst.msk [vmem:[%s2696] ss:$8 sm:$0x0] %vm2651, 0.0
        %v2763 = vlaneseq
        %v2764 = vshrl.u32 %v2763, 7
        %v2765 = vsub.s32 0, %v2764
        %v2766 = vrot.slane %v2584, %v2765
        %v2767 = vlaneseq
        %v2768 = vshrl.u32 %v2767, 7
        %v2769 = vsub.s32 2, %v2768
        %v2770 = vrot.slane %v2584, %v2769
        %v2771 = vlaneseq
        %v2772 = vshrl.u32 %v2771, 7
        %v2773 = vsub.s32 0, %v2772
        %v2774 = vrot.slane %v2585, %v2773
        %v2775 = vlaneseq
        %v2776 = vshrl.u32 %v2775, 7
        %v2777 = vsub.s32 2, %v2776
        %v2778 = vrot.slane %v2585, %v2777
        %v2779 = vlaneseq
        %v2780 = vshrl.u32 %v2779, 7
        %v2781 = vsub.s32 0, %v2780
        %v2782 = vrot.slane %v2586, %v2781
        %v2783 = vlaneseq
        %v2784 = vshrl.u32 %v2783, 7
        %v2785 = vsub.s32 2, %v2784
        %v2786 = vrot.slane %v2586, %v2785
        %v2787 = vlaneseq
        %v2788 = vshrl.u32 %v2787, 7
        %v2789 = vsub.s32 0, %v2788
        %v2790 = vrot.slane %v2587, %v2789
        %v2791 = vlaneseq
        %v2792 = vshrl.u32 %v2791, 7
        %v2793 = vsub.s32 2, %v2792
        %v2794 = vrot.slane %v2587, %v2793
        %v2795 = vlaneseq
        %v2796 = vshrl.u32 %v2795, 7
        %v2797 = vsub.s32 0, %v2796
        %v2798 = vrot.slane %v2588, %v2797
        %v2799 = vlaneseq
        %v2800 = vshrl.u32 %v2799, 7
        %v2801 = vsub.s32 2, %v2800
        %v2802 = vrot.slane %v2588, %v2801
        %v2803 = vlaneseq
        %v2804 = vshrl.u32 %v2803, 7
        %v2805 = vsub.s32 0, %v2804
        %v2806 = vrot.slane %v2589, %v2805
        %v2807 = vlaneseq
        %v2808 = vshrl.u32 %v2807, 7
        %v2809 = vsub.s32 2, %v2808
        %v2810 = vrot.slane %v2589, %v2809
        %v2811 = vlaneseq
        %v2812 = vshrl.u32 %v2811, 7
        %v2813 = vsub.s32 0, %v2812
        %v2814 = vrot.slane %v2590, %v2813
        %v2815 = vlaneseq
        %v2816 = vshrl.u32 %v2815, 7
        %v2817 = vsub.s32 2, %v2816
        %v2818 = vrot.slane %v2590, %v2817
        %v2819 = vlaneseq
        %v2820 = vshrl.u32 %v2819, 7
        %v2821 = vsub.s32 0, %v2820
        %v2822 = vrot.slane %v2591, %v2821
        %v2823 = vlaneseq
        %v2824 = vshrl.u32 %v2823, 7
        %v2825 = vsub.s32 2, %v2824
        %v2826 = vrot.slane %v2591, %v2825
        %v2827 = vlaneseq
        %v2828 = vshrl.u32 %v2827, 7
        %v2829 = vsub.s32 0, %v2828
        %v2830 = vrot.slane %v2592, %v2829
        %v2831 = vlaneseq
        %v2832 = vshrl.u32 %v2831, 7
        %v2833 = vsub.s32 2, %v2832
        %v2834 = vrot.slane %v2592, %v2833
        %v2835 = vlaneseq
        %v2836 = vshrl.u32 %v2835, 7
        %v2837 = vsub.s32 0, %v2836
        %v2838 = vrot.slane %v2593, %v2837
        %v2839 = vlaneseq
        %v2840 = vshrl.u32 %v2839, 7
        %v2841 = vsub.s32 2, %v2840
        %v2842 = vrot.slane %v2593, %v2841
        %v2843 = vlaneseq
        %v2844 = vshrl.u32 %v2843, 7
        %v2845 = vsub.s32 0, %v2844
        %v2846 = vrot.slane %v2594, %v2845
        %v2847 = vlaneseq
        %v2848 = vshrl.u32 %v2847, 7
        %v2849 = vsub.s32 2, %v2848
        %v2850 = vrot.slane %v2594, %v2849
        %v2851 = vlaneseq
        %v2852 = vshrl.u32 %v2851, 7
        %v2853 = vsub.s32 0, %v2852
        %v2854 = vrot.slane %v2595, %v2853
        %v2855 = vlaneseq
        %v2856 = vshrl.u32 %v2855, 7
        %v2857 = vsub.s32 2, %v2856
        %v2858 = vrot.slane %v2595, %v2857
        %v2859 = vlaneseq
        %v2860 = vshrl.u32 %v2859, 7
        %v2861 = vsub.s32 0, %v2860
        %v2862 = vrot.slane %v2596, %v2861
        %v2863 = vlaneseq
        %v2864 = vshrl.u32 %v2863, 7
        %v2865 = vsub.s32 2, %v2864
        %v2866 = vrot.slane %v2596, %v2865
        %v2867 = vlaneseq
        %v2868 = vshrl.u32 %v2867, 7
        %v2869 = vsub.s32 0, %v2868
        %v2870 = vrot.slane %v2597, %v2869
        %v2871 = vlaneseq
        %v2872 = vshrl.u32 %v2871, 7
        %v2873 = vsub.s32 2, %v2872
        %v2874 = vrot.slane %v2597, %v2873
        %v2875 = vlaneseq
        %v2876 = vshrl.u32 %v2875, 7
        %v2877 = vsub.s32 0, %v2876
        %v2878 = vrot.slane %v2598, %v2877
        %v2879 = vlaneseq
        %v2880 = vshrl.u32 %v2879, 7
        %v2881 = vsub.s32 2, %v2880
        %v2882 = vrot.slane %v2598, %v2881
        %v2883 = vlaneseq
        %v2884 = vshrl.u32 %v2883, 7
        %v2885 = vsub.s32 0, %v2884
        %v2886 = vrot.slane %v2599, %v2885
        %v2887 = vlaneseq
        %v2888 = vshrl.u32 %v2887, 7
        %v2889 = vsub.s32 2, %v2888
        %v2890 = vrot.slane %v2599, %v2889
        %v2891 = vlaneseq
        %v2892 = vshrl.u32 %v2891, 7
        %v2893 = vsub.s32 0, %v2892
        %v2894 = vrot.slane %v2600, %v2893
        %v2895 = vlaneseq
        %v2896 = vshrl.u32 %v2895, 7
        %v2897 = vsub.s32 2, %v2896
        %v2898 = vrot.slane %v2600, %v2897
        %v2899 = vlaneseq
        %v2900 = vshrl.u32 %v2899, 7
        %v2901 = vsub.s32 0, %v2900
        %v2902 = vrot.slane %v2601, %v2901
        %v2903 = vlaneseq
        %v2904 = vshrl.u32 %v2903, 7
        %v2905 = vsub.s32 2, %v2904
        %v2906 = vrot.slane %v2601, %v2905
        %v2907 = vlaneseq
        %v2908 = vshrl.u32 %v2907, 7
        %v2909 = vsub.s32 0, %v2908
        %v2910 = vrot.slane %v2602, %v2909
        %v2911 = vlaneseq
        %v2912 = vshrl.u32 %v2911, 7
        %v2913 = vsub.s32 2, %v2912
        %v2914 = vrot.slane %v2602, %v2913
        %v2915 = vlaneseq
        %v2916 = vshrl.u32 %v2915, 7
        %v2917 = vsub.s32 0, %v2916
        %v2918 = vrot.slane %v2603, %v2917
        %v2919 = vlaneseq
        %v2920 = vshrl.u32 %v2919, 7
        %v2921 = vsub.s32 2, %v2920
        %v2922 = vrot.slane %v2603, %v2921
        %v2923 = vlaneseq
        %v2924 = vshrl.u32 %v2923, 7
        %v2925 = vsub.s32 0, %v2924
        %v2926 = vrot.slane %v2604, %v2925
        %v2927 = vlaneseq
        %v2928 = vshrl.u32 %v2927, 7
        %v2929 = vsub.s32 2, %v2928
        %v2930 = vrot.slane %v2604, %v2929
        %v2931 = vlaneseq
        %v2932 = vshrl.u32 %v2931, 7
        %v2933 = vsub.s32 0, %v2932
        %v2934 = vrot.slane %v2605, %v2933
        %v2935 = vlaneseq
        %v2936 = vshrl.u32 %v2935, 7
        %v2937 = vsub.s32 2, %v2936
        %v2938 = vrot.slane %v2605, %v2937
        %v2939 = vlaneseq
        %v2940 = vshrl.u32 %v2939, 7
        %v2941 = vsub.s32 0, %v2940
        %v2942 = vrot.slane %v2606, %v2941
        %v2943 = vlaneseq
        %v2944 = vshrl.u32 %v2943, 7
        %v2945 = vsub.s32 2, %v2944
        %v2946 = vrot.slane %v2606, %v2945
        %v2947 = vlaneseq
        %v2948 = vshrl.u32 %v2947, 7
        %v2949 = vsub.s32 0, %v2948
        %v2950 = vrot.slane %v2607, %v2949
        %v2951 = vlaneseq
        %v2952 = vshrl.u32 %v2951, 7
        %v2953 = vsub.s32 2, %v2952
        %v2954 = vrot.slane %v2607, %v2953
        %v2955 = vlaneseq
        %v2956 = vshrl.u32 %v2955, 7
        %v2957 = vsub.s32 0, %v2956
        %v2958 = vrot.slane %v2608, %v2957
        %v2959 = vlaneseq
        %v2960 = vshrl.u32 %v2959, 7
        %v2961 = vsub.s32 2, %v2960
        %v2962 = vrot.slane %v2608, %v2961
        %v2963 = vlaneseq
        %v2964 = vshrl.u32 %v2963, 7
        %v2965 = vsub.s32 0, %v2964
        %v2966 = vrot.slane %v2609, %v2965
        %v2967 = vlaneseq
        %v2968 = vshrl.u32 %v2967, 7
        %v2969 = vsub.s32 2, %v2968
        %v2970 = vrot.slane %v2609, %v2969
        %v2971 = vlaneseq
        %v2972 = vshrl.u32 %v2971, 7
        %v2973 = vsub.s32 0, %v2972
        %v2974 = vrot.slane %v2610, %v2973
        %v2975 = vlaneseq
        %v2976 = vshrl.u32 %v2975, 7
        %v2977 = vsub.s32 2, %v2976
        %v2978 = vrot.slane %v2610, %v2977
        %v2979 = vlaneseq
        %v2980 = vshrl.u32 %v2979, 7
        %v2981 = vsub.s32 0, %v2980
        %v2982 = vrot.slane %v2611, %v2981
        %v2983 = vlaneseq
        %v2984 = vshrl.u32 %v2983, 7
        %v2985 = vsub.s32 2, %v2984
        %v2986 = vrot.slane %v2611, %v2985
        %v2987 = vlaneseq
        %v2988 = vshrl.u32 %v2987, 7
        %v2989 = vsub.s32 0, %v2988
        %v2990 = vrot.slane %v2612, %v2989
        %v2991 = vlaneseq
        %v2992 = vshrl.u32 %v2991, 7
        %v2993 = vsub.s32 2, %v2992
        %v2994 = vrot.slane %v2612, %v2993
        %v2995 = vlaneseq
        %v2996 = vshrl.u32 %v2995, 7
        %v2997 = vsub.s32 0, %v2996
        %v2998 = vrot.slane %v2613, %v2997
        %v2999 = vlaneseq
        %v3000 = vshrl.u32 %v2999, 7
        %v3001 = vsub.s32 2, %v3000
        %v3002 = vrot.slane %v2613, %v3001
        %v3003 = vlaneseq
        %v3004 = vshrl.u32 %v3003, 7
        %v3005 = vsub.s32 0, %v3004
        %v3006 = vrot.slane %v2614, %v3005
        %v3007 = vlaneseq
        %v3008 = vshrl.u32 %v3007, 7
        %v3009 = vsub.s32 2, %v3008
        %v3010 = vrot.slane %v2614, %v3009
        %v3011 = vlaneseq
        %v3012 = vshrl.u32 %v3011, 7
        %v3013 = vsub.s32 0, %v3012
        %v3014 = vrot.slane %v2615, %v3013
        %v3015 = vlaneseq
        %v3016 = vshrl.u32 %v3015, 7
        %v3017 = vsub.s32 2, %v3016
        %v3018 = vrot.slane %v2615, %v3017
        %v3019 = vlaneseq
        %v3020 = vshrl.u32 %v3019, 7
        %v3021 = vsub.s32 0, %v3020
        %v3022 = vrot.slane %v2616, %v3021
        %v3023 = vlaneseq
        %v3024 = vshrl.u32 %v3023, 7
        %v3025 = vsub.s32 2, %v3024
        %v3026 = vrot.slane %v2616, %v3025
        %v3027 = vlaneseq
        %v3028 = vshrl.u32 %v3027, 7
        %v3029 = vsub.s32 0, %v3028
        %v3030 = vrot.slane %v2617, %v3029
        %v3031 = vlaneseq
        %v3032 = vshrl.u32 %v3031, 7
        %v3033 = vsub.s32 2, %v3032
        %v3034 = vrot.slane %v2617, %v3033
        %v3035 = vlaneseq
        %v3036 = vshrl.u32 %v3035, 7
        %v3037 = vsub.s32 0, %v3036
        %v3038 = vrot.slane %v2618, %v3037
        %v3039 = vlaneseq
        %v3040 = vshrl.u32 %v3039, 7
        %v3041 = vsub.s32 2, %v3040
        %v3042 = vrot.slane %v2618, %v3041
        %v3043 = vlaneseq
        %v3044 = vshrl.u32 %v3043, 7
        %v3045 = vsub.s32 0, %v3044
        %v3046 = vrot.slane %v2619, %v3045
        %v3047 = vlaneseq
        %v3048 = vshrl.u32 %v3047, 7
        %v3049 = vsub.s32 2, %v3048
        %v3050 = vrot.slane %v2619, %v3049
        %v3051 = vlaneseq
        %v3052 = vshrl.u32 %v3051, 7
        %v3053 = vsub.s32 0, %v3052
        %v3054 = vrot.slane %v2620, %v3053
        %v3055 = vlaneseq
        %v3056 = vshrl.u32 %v3055, 7
        %v3057 = vsub.s32 2, %v3056
        %v3058 = vrot.slane %v2620, %v3057
        %v3059 = vlaneseq
        %v3060 = vshrl.u32 %v3059, 7
        %v3061 = vsub.s32 0, %v3060
        %v3062 = vrot.slane %v2621, %v3061
        %v3063 = vlaneseq
        %v3064 = vshrl.u32 %v3063, 7
        %v3065 = vsub.s32 2, %v3064
        %v3066 = vrot.slane %v2621, %v3065
        %v3067 = vlaneseq
        %v3068 = vshrl.u32 %v3067, 7
        %v3069 = vsub.s32 0, %v3068
        %v3070 = vrot.slane %v2622, %v3069
        %v3071 = vlaneseq
        %v3072 = vshrl.u32 %v3071, 7
        %v3073 = vsub.s32 2, %v3072
        %v3074 = vrot.slane %v2622, %v3073
        %v3075 = vlaneseq
        %v3076 = vshrl.u32 %v3075, 7
        %v3077 = vsub.s32 0, %v3076
        %v3078 = vrot.slane %v2623, %v3077
        %v3079 = vlaneseq
        %v3080 = vshrl.u32 %v3079, 7
        %v3081 = vsub.s32 2, %v3080
        %v3082 = vrot.slane %v2623, %v3081
        %v3083 = vlaneseq
        %v3084 = vshrl.u32 %v3083, 7
        %v3085 = vsub.s32 0, %v3084
        %v3086 = vrot.slane %v2624, %v3085
        %v3087 = vlaneseq
        %v3088 = vshrl.u32 %v3087, 7
        %v3089 = vsub.s32 2, %v3088
        %v3090 = vrot.slane %v2624, %v3089
        %v3091 = vlaneseq
        %v3092 = vshrl.u32 %v3091, 7
        %v3093 = vsub.s32 0, %v3092
        %v3094 = vrot.slane %v2625, %v3093
        %v3095 = vlaneseq
        %v3096 = vshrl.u32 %v3095, 7
        %v3097 = vsub.s32 2, %v3096
        %v3098 = vrot.slane %v2625, %v3097
        %v3099 = vlaneseq
        %v3100 = vshrl.u32 %v3099, 7
        %v3101 = vsub.s32 0, %v3100
        %v3102 = vrot.slane %v2626, %v3101
        %v3103 = vlaneseq
        %v3104 = vshrl.u32 %v3103, 7
        %v3105 = vsub.s32 2, %v3104
        %v3106 = vrot.slane %v2626, %v3105
        %v3107 = vlaneseq
        %v3108 = vshrl.u32 %v3107, 7
        %v3109 = vsub.s32 0, %v3108
        %v3110 = vrot.slane %v2627, %v3109
        %v3111 = vlaneseq
        %v3112 = vshrl.u32 %v3111, 7
        %v3113 = vsub.s32 2, %v3112
        %v3114 = vrot.slane %v2627, %v3113
        %v3115 = vlaneseq
        %v3116 = vshrl.u32 %v3115, 7
        %v3117 = vsub.s32 0, %v3116
        %v3118 = vrot.slane %v2628, %v3117
        %v3119 = vlaneseq
        %v3120 = vshrl.u32 %v3119, 7
        %v3121 = vsub.s32 2, %v3120
        %v3122 = vrot.slane %v2628, %v3121
        %v3123 = vlaneseq
        %v3124 = vshrl.u32 %v3123, 7
        %v3125 = vsub.s32 0, %v3124
        %v3126 = vrot.slane %v2629, %v3125
        %v3127 = vlaneseq
        %v3128 = vshrl.u32 %v3127, 7
        %v3129 = vsub.s32 2, %v3128
        %v3130 = vrot.slane %v2629, %v3129
        %v3131 = vlaneseq
        %v3132 = vshrl.u32 %v3131, 7
        %v3133 = vsub.s32 0, %v3132
        %v3134 = vrot.slane %v2630, %v3133
        %v3135 = vlaneseq
        %v3136 = vshrl.u32 %v3135, 7
        %v3137 = vsub.s32 2, %v3136
        %v3138 = vrot.slane %v2630, %v3137
        %v3139 = vlaneseq
        %v3140 = vshrl.u32 %v3139, 7
        %v3141 = vsub.s32 0, %v3140
        %v3142 = vrot.slane %v2631, %v3141
        %v3143 = vlaneseq
        %v3144 = vshrl.u32 %v3143, 7
        %v3145 = vsub.s32 2, %v3144
        %v3146 = vrot.slane %v2631, %v3145
        %v3147 = vlaneseq
        %v3148 = vshrl.u32 %v3147, 7
        %v3149 = vsub.s32 0, %v3148
        %v3150 = vrot.slane %v2632, %v3149
        %v3151 = vlaneseq
        %v3152 = vshrl.u32 %v3151, 7
        %v3153 = vsub.s32 2, %v3152
        %v3154 = vrot.slane %v2632, %v3153
        %v3155 = vlaneseq
        %v3156 = vshrl.u32 %v3155, 7
        %v3157 = vsub.s32 0, %v3156
        %v3158 = vrot.slane %v2633, %v3157
        %v3159 = vlaneseq
        %v3160 = vshrl.u32 %v3159, 7
        %v3161 = vsub.s32 2, %v3160
        %v3162 = vrot.slane %v2633, %v3161
        %v3163 = vlaneseq
        %v3164 = vshrl.u32 %v3163, 7
        %v3165 = vsub.s32 0, %v3164
        %v3166 = vrot.slane %v2634, %v3165
        %v3167 = vlaneseq
        %v3168 = vshrl.u32 %v3167, 7
        %v3169 = vsub.s32 2, %v3168
        %v3170 = vrot.slane %v2634, %v3169
        %v3171 = vlaneseq
        %v3172 = vshrl.u32 %v3171, 7
        %v3173 = vsub.s32 0, %v3172
        %v3174 = vrot.slane %v2635, %v3173
        %v3175 = vlaneseq
        %v3176 = vshrl.u32 %v3175, 7
        %v3177 = vsub.s32 2, %v3176
        %v3178 = vrot.slane %v2635, %v3177
        %v3179 = vlaneseq
        %v3180 = vshrl.u32 %v3179, 7
        %v3181 = vsub.s32 0, %v3180
        %v3182 = vrot.slane %v2636, %v3181
        %v3183 = vlaneseq
        %v3184 = vshrl.u32 %v3183, 7
        %v3185 = vsub.s32 2, %v3184
        %v3186 = vrot.slane %v2636, %v3185
        %v3187 = vlaneseq
        %v3188 = vshrl.u32 %v3187, 7
        %v3189 = vsub.s32 0, %v3188
        %v3190 = vrot.slane %v2637, %v3189
        %v3191 = vlaneseq
        %v3192 = vshrl.u32 %v3191, 7
        %v3193 = vsub.s32 2, %v3192
        %v3194 = vrot.slane %v2637, %v3193
        %v3195 = vlaneseq
        %v3196 = vshrl.u32 %v3195, 7
        %v3197 = vsub.s32 0, %v3196
        %v3198 = vrot.slane %v2638, %v3197
        %v3199 = vlaneseq
        %v3200 = vshrl.u32 %v3199, 7
        %v3201 = vsub.s32 2, %v3200
        %v3202 = vrot.slane %v2638, %v3201
        %v3203 = vlaneseq
        %v3204 = vshrl.u32 %v3203, 7
        %v3205 = vsub.s32 0, %v3204
        %v3206 = vrot.slane %v2639, %v3205
        %v3207 = vlaneseq
        %v3208 = vshrl.u32 %v3207, 7
        %v3209 = vsub.s32 2, %v3208
        %v3210 = vrot.slane %v2639, %v3209
        %v3211 = vlaneseq
        %v3212 = vshrl.u32 %v3211, 7
        %v3213 = vsub.s32 0, %v3212
        %v3214 = vrot.slane %v2640, %v3213
        %v3215 = vlaneseq
        %v3216 = vshrl.u32 %v3215, 7
        %v3217 = vsub.s32 2, %v3216
        %v3218 = vrot.slane %v2640, %v3217
        %v3219 = vlaneseq
        %v3220 = vshrl.u32 %v3219, 7
        %v3221 = vsub.s32 0, %v3220
        %v3222 = vrot.slane %v2641, %v3221
        %v3223 = vlaneseq
        %v3224 = vshrl.u32 %v3223, 7
        %v3225 = vsub.s32 2, %v3224
        %v3226 = vrot.slane %v2641, %v3225
        %v3227 = vlaneseq
        %v3228 = vshrl.u32 %v3227, 7
        %v3229 = vsub.s32 0, %v3228
        %v3230 = vrot.slane %v2642, %v3229
        %v3231 = vlaneseq
        %v3232 = vshrl.u32 %v3231, 7
        %v3233 = vsub.s32 2, %v3232
        %v3234 = vrot.slane %v2642, %v3233
        %v3235 = vlaneseq
        %v3236 = vshrl.u32 %v3235, 7
        %v3237 = vsub.s32 0, %v3236
        %v3238 = vrot.slane %v2643, %v3237
        %v3239 = vlaneseq
        %v3240 = vshrl.u32 %v3239, 7
        %v3241 = vsub.s32 2, %v3240
        %v3242 = vrot.slane %v2643, %v3241
        %v3243 = vlaneseq
        %v3244 = vshrl.u32 %v3243, 7
        %v3245 = vsub.s32 0, %v3244
        %v3246 = vrot.slane %v2644, %v3245
        %v3247 = vlaneseq
        %v3248 = vshrl.u32 %v3247, 7
        %v3249 = vsub.s32 2, %v3248
        %v3250 = vrot.slane %v2644, %v3249
        %v3251 = vlaneseq
        %v3252 = vshrl.u32 %v3251, 7
        %v3253 = vsub.s32 0, %v3252
        %v3254 = vrot.slane %v2645, %v3253
        %v3255 = vlaneseq
        %v3256 = vshrl.u32 %v3255, 7
        %v3257 = vsub.s32 2, %v3256
        %v3258 = vrot.slane %v2645, %v3257
        %v3259 = vlaneseq
        %v3260 = vshrl.u32 %v3259, 7
        %v3261 = vsub.s32 0, %v3260
        %v3262 = vrot.slane %v2646, %v3261
        %v3263 = vlaneseq
        %v3264 = vshrl.u32 %v3263, 7
        %v3265 = vsub.s32 2, %v3264
        %v3266 = vrot.slane %v2646, %v3265
        %v3267 = vlaneseq
        %v3268 = vshrl.u32 %v3267, 7
        %v3269 = vsub.s32 0, %v3268
        %v3270 = vrot.slane %v2647, %v3269
        %v3271 = vlaneseq
        %v3272 = vshrl.u32 %v3271, 7
        %v3273 = vsub.s32 2, %v3272
        %v3274 = vrot.slane %v2647, %v3273
        %vm3275 = vcmask 1042434
        %v3276 = vsel %vm3275, %v2774, %v2766
        %vm3277 = vcmask 1043459
        %v3278 = vsel %vm3277, %v2782, %v3276
        %vm3279 = vcmask 1044484
        %v3280 = vsel %vm3279, %v2790, %v3278
        %vm3281 = vcmask 1045509
        %v3282 = vsel %vm3281, %v2798, %v3280
        %vm3283 = vcmask 1046534
        %v3284 = vsel %vm3283, %v2806, %v3282
        %vm3285 = vcmask 1047559
        %v3286 = vsel %vm3285, %v2814, %v3284
        %v3287 = vsel %vm3275, %v2778, %v2770
        %v3288 = vsel %vm3277, %v2786, %v3287
        %v3289 = vsel %vm3279, %v2794, %v3288
        %v3290 = vsel %vm3281, %v2802, %v3289
        %v3291 = vsel %vm3283, %v2810, %v3290
        %v3292 = vsel %vm3285, %v2818, %v3291
        %v3293 = vsel %vm3275, %v2838, %v2830
        %v3294 = vsel %vm3277, %v2846, %v3293
        %v3295 = vsel %vm3279, %v2854, %v3294
        %v3296 = vsel %vm3281, %v2862, %v3295
        %v3297 = vsel %vm3283, %v2870, %v3296
        %v3298 = vsel %vm3285, %v2878, %v3297
        %v3299 = vsel %vm3275, %v2842, %v2834
        %v3300 = vsel %vm3277, %v2850, %v3299
        %v3301 = vsel %vm3279, %v2858, %v3300
        %v3302 = vsel %vm3281, %v2866, %v3301
        %v3303 = vsel %vm3283, %v2874, %v3302
        %v3304 = vsel %vm3285, %v2882, %v3303
        %v3305 = vsel %vm3275, %v2902, %v2894
        %v3306 = vsel %vm3277, %v2910, %v3305
        %v3307 = vsel %vm3279, %v2918, %v3306
        %v3308 = vsel %vm3281, %v2926, %v3307
        %v3309 = vsel %vm3283, %v2934, %v3308
        %v3310 = vsel %vm3285, %v2942, %v3309
        %v3311 = vsel %vm3275, %v2906, %v2898
        %v3312 = vsel %vm3277, %v2914, %v3311
        %v3313 = vsel %vm3279, %v2922, %v3312
        %v3314 = vsel %vm3281, %v2930, %v3313
        %v3315 = vsel %vm3283, %v2938, %v3314
        %v3316 = vsel %vm3285, %v2946, %v3315
        %v3317 = vsel %vm3275, %v2966, %v2958
        %v3318 = vsel %vm3277, %v2974, %v3317
        %v3319 = vsel %vm3279, %v2982, %v3318
        %v3320 = vsel %vm3281, %v2990, %v3319
        %v3321 = vsel %vm3283, %v2998, %v3320
        %v3322 = vsel %vm3285, %v3006, %v3321
        %v3323 = vsel %vm3275, %v2970, %v2962
        %v3324 = vsel %vm3277, %v2978, %v3323
        %v3325 = vsel %vm3279, %v2986, %v3324
        %v3326 = vsel %vm3281, %v2994, %v3325
        %v3327 = vsel %vm3283, %v3002, %v3326
        %v3328 = vsel %vm3285, %v3010, %v3327
        %v3329 = vsel %vm3275, %v3030, %v3022
        %v3330 = vsel %vm3277, %v3038, %v3329
        %v3331 = vsel %vm3279, %v3046, %v3330
        %v3332 = vsel %vm3281, %v3054, %v3331
        %v3333 = vsel %vm3283, %v3062, %v3332
        %v3334 = vsel %vm3285, %v3070, %v3333
        %v3335 = vsel %vm3275, %v3034, %v3026
        %v3336 = vsel %vm3277, %v3042, %v3335
        %v3337 = vsel %vm3279, %v3050, %v3336
        %v3338 = vsel %vm3281, %v3058, %v3337
        %v3339 = vsel %vm3283, %v3066, %v3338
        %v3340 = vsel %vm3285, %v3074, %v3339
        %v3341 = vsel %vm3275, %v3094, %v3086
        %v3342 = vsel %vm3277, %v3102, %v3341
        %v3343 = vsel %vm3279, %v3110, %v3342
        %v3344 = vsel %vm3281, %v3118, %v3343
        %v3345 = vsel %vm3283, %v3126, %v3344
        %v3346 = vsel %vm3285, %v3134, %v3345
        %v3347 = vsel %vm3275, %v3098, %v3090
        %v3348 = vsel %vm3277, %v3106, %v3347
        %v3349 = vsel %vm3279, %v3114, %v3348
        %v3350 = vsel %vm3281, %v3122, %v3349
        %v3351 = vsel %vm3283, %v3130, %v3350
        %v3352 = vsel %vm3285, %v3138, %v3351
        %v3353 = vsel %vm3275, %v3158, %v3150
        %v3354 = vsel %vm3277, %v3166, %v3353
        %v3355 = vsel %vm3279, %v3174, %v3354
        %v3356 = vsel %vm3281, %v3182, %v3355
        %v3357 = vsel %vm3283, %v3190, %v3356
        %v3358 = vsel %vm3285, %v3198, %v3357
        %v3359 = vsel %vm3275, %v3162, %v3154
        %v3360 = vsel %vm3277, %v3170, %v3359
        %v3361 = vsel %vm3279, %v3178, %v3360
        %v3362 = vsel %vm3281, %v3186, %v3361
        %v3363 = vsel %vm3283, %v3194, %v3362
        %v3364 = vsel %vm3285, %v3202, %v3363
        %v3365 = vsel %vm3275, %v3222, %v3214
        %v3366 = vsel %vm3277, %v3230, %v3365
        %v3367 = vsel %vm3279, %v3238, %v3366
        %v3368 = vsel %vm3281, %v3246, %v3367
        %v3369 = vsel %vm3283, %v3254, %v3368
        %v3370 = vsel %vm3285, %v3262, %v3369
        %v3371 = vsel %vm3275, %v3226, %v3218
        %v3372 = vsel %vm3277, %v3234, %v3371
        %v3373 = vsel %vm3279, %v3242, %v3372
        %v3374 = vsel %vm3281, %v3250, %v3373
        %v3375 = vsel %vm3283, %v3258, %v3374
        %v3376 = vsel %vm3285, %v3266, %v3375
        %3409 = vst [vmem:[#allocation3] sm:$0xfe] %v3286
        %3410 = vst [vmem:[#allocation3 + $0x8] sm:$0xfe] %v3292
        %3411 = vst [vmem:[#allocation3 + $0x10] sm:$0x1] %v2822
        %3412 = vst [vmem:[#allocation3 + $0x18] sm:$0x1] %v2826
        %3413 = vst [vmem:[#allocation3 + $0x20] sm:$0xfe] %v3298
        %3414 = vst [vmem:[#allocation3 + $0x28] sm:$0xfe] %v3304
        %3415 = vst [vmem:[#allocation3 + $0x30] sm:$0x1] %v2886
        %3416 = vst [vmem:[#allocation3 + $0x38] sm:$0x1] %v2890
        %3417 = vst [vmem:[#allocation3 + $0x40] sm:$0xfe] %v3310
        %3418 = vst [vmem:[#allocation3 + $0x48] sm:$0xfe] %v3316
        %3419 = vst [vmem:[#allocation3 + $0x50] sm:$0x1] %v2950
        %3420 = vst [vmem:[#allocation3 + $0x58] sm:$0x1] %v2954
        %3421 = vst [vmem:[#allocation3 + $0x60] sm:$0xfe] %v3322
        %3422 = vst [vmem:[#allocation3 + $0x68] sm:$0xfe] %v3328
        %3423 = vst [vmem:[#allocation3 + $0x70] sm:$0x1] %v3014
        %3424 = vst [vmem:[#allocation3 + $0x78] sm:$0x1] %v3018
        %3425 = vst [vmem:[#allocation3 + $0x80] sm:$0xfe] %v3334
        %3426 = vst [vmem:[#allocation3 + $0x88] sm:$0xfe] %v3340
        %3427 = vst [vmem:[#allocation3 + $0x90] sm:$0x1] %v3078
        %3428 = vst [vmem:[#allocation3 + $0x98] sm:$0x1] %v3082
        %3429 = vst [vmem:[#allocation3 + $0xa0] sm:$0xfe] %v3346
        %3430 = vst [vmem:[#allocation3 + $0xa8] sm:$0xfe] %v3352
        %3431 = vst [vmem:[#allocation3 + $0xb0] sm:$0x1] %v3142
        %3432 = vst [vmem:[#allocation3 + $0xb8] sm:$0x1] %v3146
        %3433 = vst [vmem:[#allocation3 + $0xc0] sm:$0xfe] %v3358
        %3434 = vst [vmem:[#allocation3 + $0xc8] sm:$0xfe] %v3364
        %3435 = vst [vmem:[#allocation3 + $0xd0] sm:$0x1] %v3206
        %3436 = vst [vmem:[#allocation3 + $0xd8] sm:$0x1] %v3210
        %3437 = vst [vmem:[#allocation3 + $0xe0] sm:$0xfe] %v3370
        %3438 = vst [vmem:[#allocation3 + $0xe8] sm:$0xfe] %v3376
        %3439 = vst [vmem:[#allocation3 + $0xf0] sm:$0x1] %v3270
        %3440 = vst [vmem:[#allocation3 + $0xf8] sm:$0x1] %v3274
        %v3441 = vld [vmem:[#allocation3] sm:$0xff]
        %v3442 = vld [vmem:[#allocation3 + $0x8] sm:$0xff]
        %v3443 = vld [vmem:[#allocation3 + $0x20] sm:$0xff]
        %v3444 = vld [vmem:[#allocation3 + $0x28] sm:$0xff]
        %v3445 = vld [vmem:[#allocation3 + $0x40] sm:$0xff]
        %v3446 = vld [vmem:[#allocation3 + $0x48] sm:$0xff]
        %v3447 = vld [vmem:[#allocation3 + $0x60] sm:$0xff]
        %v3448 = vld [vmem:[#allocation3 + $0x68] sm:$0xff]
        %v3449 = vld [vmem:[#allocation3 + $0x80] sm:$0xff]
        %v3450 = vld [vmem:[#allocation3 + $0x88] sm:$0xff]
        %v3451 = vld [vmem:[#allocation3 + $0xa0] sm:$0xff]
        %v3452 = vld [vmem:[#allocation3 + $0xa8] sm:$0xff]
        %v3453 = vld [vmem:[#allocation3 + $0xc0] sm:$0xff]
        %v3454 = vld [vmem:[#allocation3 + $0xc8] sm:$0xff]
        %v3455 = vld [vmem:[#allocation3 + $0xe0] sm:$0xff]
        %v3456 = vld [vmem:[#allocation3 + $0xe8] sm:$0xff]
        %v3457 = vld [vmem:[#allocation3] sm:$0xfe]
        %v3458 = vld [vmem:[#allocation3 + $0x8] sm:$0xfe]
        %v3459 = vld [vmem:[#allocation3 + $0x10] sm:$0x1]
        %v3460 = vld [vmem:[#allocation3 + $0x18] sm:$0x1]
        %v3461 = vld [vmem:[#allocation3 + $0x20] sm:$0xfe]
        %v3462 = vld [vmem:[#allocation3 + $0x28] sm:$0xfe]
        %v3463 = vld [vmem:[#allocation3 + $0x30] sm:$0x1]
        %v3464 = vld [vmem:[#allocation3 + $0x38] sm:$0x1]
        %v3465 = vld [vmem:[#allocation3 + $0x40] sm:$0xfe]
        %v3466 = vld [vmem:[#allocation3 + $0x48] sm:$0xfe]
        %v3467 = vld [vmem:[#allocation3 + $0x50] sm:$0x1]
        %v3468 = vld [vmem:[#allocation3 + $0x58] sm:$0x1]
        %v3469 = vld [vmem:[#allocation3 + $0x60] sm:$0xfe]
        %v3470 = vld [vmem:[#allocation3 + $0x68] sm:$0xfe]
        %v3471 = vld [vmem:[#allocation3 + $0x70] sm:$0x1]
        %v3472 = vld [vmem:[#allocation3 + $0x78] sm:$0x1]
        %v3473 = vld [vmem:[#allocation3 + $0x80] sm:$0xfe]
        %v3474 = vld [vmem:[#allocation3 + $0x88] sm:$0xfe]
        %v3475 = vld [vmem:[#allocation3 + $0x90] sm:$0x1]
        %v3476 = vld [vmem:[#allocation3 + $0x98] sm:$0x1]
        %v3477 = vld [vmem:[#allocation3 + $0xa0] sm:$0xfe]
        %v3478 = vld [vmem:[#allocation3 + $0xa8] sm:$0xfe]
        %v3479 = vld [vmem:[#allocation3 + $0xb0] sm:$0x1]
        %v3480 = vld [vmem:[#allocation3 + $0xb8] sm:$0x1]
        %v3481 = vld [vmem:[#allocation3 + $0xc0] sm:$0xfe]
        %v3482 = vld [vmem:[#allocation3 + $0xc8] sm:$0xfe]
        %v3483 = vld [vmem:[#allocation3 + $0xd0] sm:$0x1]
        %v3484 = vld [vmem:[#allocation3 + $0xd8] sm:$0x1]
        %v3485 = vld [vmem:[#allocation3 + $0xe0] sm:$0xfe]
        %v3486 = vld [vmem:[#allocation3 + $0xe8] sm:$0xfe]
        %v3487 = vld [vmem:[#allocation3 + $0xf0] sm:$0x1]
        %v3488 = vld [vmem:[#allocation3 + $0xf8] sm:$0x1]
        %v3489 = vld [vmem:[#allocation3] sm:$0xfc]
        %v3490 = vld [vmem:[#allocation3 + $0x8] sm:$0xfc]
        %v3491 = vld [vmem:[#allocation3 + $0x10] sm:$0x3]
        %v3492 = vld [vmem:[#allocation3 + $0x18] sm:$0x3]
        %v3493 = vld [vmem:[#allocation3 + $0x20] sm:$0xfc]
        %v3494 = vld [vmem:[#allocation3 + $0x28] sm:$0xfc]
        %v3495 = vld [vmem:[#allocation3 + $0x30] sm:$0x3]
        %v3496 = vld [vmem:[#allocation3 + $0x38] sm:$0x3]
        %v3497 = vld [vmem:[#allocation3 + $0x40] sm:$0xfc]
        %v3498 = vld [vmem:[#allocation3 + $0x48] sm:$0xfc]
        %v3499 = vld [vmem:[#allocation3 + $0x50] sm:$0x3]
        %v3500 = vld [vmem:[#allocation3 + $0x58] sm:$0x3]
        %v3501 = vld [vmem:[#allocation3 + $0x60] sm:$0xfc]
        %v3502 = vld [vmem:[#allocation3 + $0x68] sm:$0xfc]
        %v3503 = vld [vmem:[#allocation3 + $0x70] sm:$0x3]
        %v3504 = vld [vmem:[#allocation3 + $0x78] sm:$0x3]
        %v3505 = vld [vmem:[#allocation3 + $0x80] sm:$0xfc]
        %v3506 = vld [vmem:[#allocation3 + $0x88] sm:$0xfc]
        %v3507 = vld [vmem:[#allocation3 + $0x90] sm:$0x3]
        %v3508 = vld [vmem:[#allocation3 + $0x98] sm:$0x3]
        %v3509 = vld [vmem:[#allocation3 + $0xa0] sm:$0xfc]
        %v3510 = vld [vmem:[#allocation3 + $0xa8] sm:$0xfc]
        %v3511 = vld [vmem:[#allocation3 + $0xb0] sm:$0x3]
        %v3512 = vld [vmem:[#allocation3 + $0xb8] sm:$0x3]
        %v3513 = vld [vmem:[#allocation3 + $0xc0] sm:$0xfc]
        %v3514 = vld [vmem:[#allocation3 + $0xc8] sm:$0xfc]
        %v3515 = vld [vmem:[#allocation3 + $0xd0] sm:$0x3]
        %v3516 = vld [vmem:[#allocation3 + $0xd8] sm:$0x3]
        %v3517 = vld [vmem:[#allocation3 + $0xe0] sm:$0xfc]
        %v3518 = vld [vmem:[#allocation3 + $0xe8] sm:$0xfc]
        %v3519 = vld [vmem:[#allocation3 + $0xf0] sm:$0x3]
        %v3520 = vld [vmem:[#allocation3 + $0xf8] sm:$0x3]
        %vm3553 = vcmask 1046528
        %v3554 = vrot.slane %v3457, 1
        %v3555 = vrot.slane %v3459, 1
        %v3556 = vsel %vm3553, %v3554, %v3555
        %v3557 = vrot.slane %v3458, 1
        %v3558 = vrot.slane %v3460, 1
        %v3559 = vsel %vm3553, %v3557, %v3558
        %v3560 = vrot.slane %v3461, 1
        %v3561 = vrot.slane %v3463, 1
        %v3562 = vsel %vm3553, %v3560, %v3561
        %v3563 = vrot.slane %v3462, 1
        %v3564 = vrot.slane %v3464, 1
        %v3565 = vsel %vm3553, %v3563, %v3564
        %v3566 = vrot.slane %v3465, 1
        %v3567 = vrot.slane %v3467, 1
        %v3568 = vsel %vm3553, %v3566, %v3567
        %v3569 = vrot.slane %v3466, 1
        %v3570 = vrot.slane %v3468, 1
        %v3571 = vsel %vm3553, %v3569, %v3570
        %v3572 = vrot.slane %v3469, 1
        %v3573 = vrot.slane %v3471, 1
        %v3574 = vsel %vm3553, %v3572, %v3573
        %v3575 = vrot.slane %v3470, 1
        %v3576 = vrot.slane %v3472, 1
        %v3577 = vsel %vm3553, %v3575, %v3576
        %v3578 = vrot.slane %v3473, 1
        %v3579 = vrot.slane %v3475, 1
        %v3580 = vsel %vm3553, %v3578, %v3579
        %v3581 = vrot.slane %v3474, 1
        %v3582 = vrot.slane %v3476, 1
        %v3583 = vsel %vm3553, %v3581, %v3582
        %v3584 = vrot.slane %v3477, 1
        %v3585 = vrot.slane %v3479, 1
        %v3586 = vsel %vm3553, %v3584, %v3585
        %v3587 = vrot.slane %v3478, 1
        %v3588 = vrot.slane %v3480, 1
        %v3589 = vsel %vm3553, %v3587, %v3588
        %v3590 = vrot.slane %v3481, 1
        %v3591 = vrot.slane %v3483, 1
        %v3592 = vsel %vm3553, %v3590, %v3591
        %v3593 = vrot.slane %v3482, 1
        %v3594 = vrot.slane %v3484, 1
        %v3595 = vsel %vm3553, %v3593, %v3594
        %v3596 = vrot.slane %v3485, 1
        %v3597 = vrot.slane %v3487, 1
        %v3598 = vsel %vm3553, %v3596, %v3597
        %v3599 = vrot.slane %v3486, 1
        %v3600 = vrot.slane %v3488, 1
        %v3601 = vsel %vm3553, %v3599, %v3600
        %vm3650 = vcmask 1045504
        %v3651 = vrot.slane %v3489, 2
        %v3652 = vrot.slane %v3491, 2
        %v3653 = vsel %vm3650, %v3651, %v3652
        %v3654 = vrot.slane %v3490, 2
        %v3655 = vrot.slane %v3492, 2
        %v3656 = vsel %vm3650, %v3654, %v3655
        %v3657 = vrot.slane %v3493, 2
        %v3658 = vrot.slane %v3495, 2
        %v3659 = vsel %vm3650, %v3657, %v3658
        %v3660 = vrot.slane %v3494, 2
        %v3661 = vrot.slane %v3496, 2
        %v3662 = vsel %vm3650, %v3660, %v3661
        %v3663 = vrot.slane %v3497, 2
        %v3664 = vrot.slane %v3499, 2
        %v3665 = vsel %vm3650, %v3663, %v3664
        %v3666 = vrot.slane %v3498, 2
        %v3667 = vrot.slane %v3500, 2
        %v3668 = vsel %vm3650, %v3666, %v3667
        %v3669 = vrot.slane %v3501, 2
        %v3670 = vrot.slane %v3503, 2
        %v3671 = vsel %vm3650, %v3669, %v3670
        %v3672 = vrot.slane %v3502, 2
        %v3673 = vrot.slane %v3504, 2
        %v3674 = vsel %vm3650, %v3672, %v3673
        %v3675 = vrot.slane %v3505, 2
        %v3676 = vrot.slane %v3507, 2
        %v3677 = vsel %vm3650, %v3675, %v3676
        %v3678 = vrot.slane %v3506, 2
        %v3679 = vrot.slane %v3508, 2
        %v3680 = vsel %vm3650, %v3678, %v3679
        %v3681 = vrot.slane %v3509, 2
        %v3682 = vrot.slane %v3511, 2
        %v3683 = vsel %vm3650, %v3681, %v3682
        %v3684 = vrot.slane %v3510, 2
        %v3685 = vrot.slane %v3512, 2
        %v3686 = vsel %vm3650, %v3684, %v3685
        %v3687 = vrot.slane %v3513, 2
        %v3688 = vrot.slane %v3515, 2
        %v3689 = vsel %vm3650, %v3687, %v3688
        %v3690 = vrot.slane %v3514, 2
        %v3691 = vrot.slane %v3516, 2
        %v3692 = vsel %vm3650, %v3690, %v3691
        %v3693 = vrot.slane %v3517, 2
        %v3694 = vrot.slane %v3519, 2
        %v3695 = vsel %vm3650, %v3693, %v3694
        %v3696 = vrot.slane %v3518, 2
        %v3697 = vrot.slane %v3520, 2
        %v3698 = vsel %vm3650, %v3696, %v3697
        %v3715 = vpack.c.bf16 %v3443, %v3441
        %v3716 = vpack.c.bf16 %v3444, %v3442
        %v3717 = vpack.c.bf16 %v3562, %v3556
        %v3718 = vpack.c.bf16 %v3565, %v3559
        %v3719 = vpack.c.bf16 %v3659, %v3653
        %v3720 = vpack.c.bf16 %v3662, %v3656
        %v3721 = vpack.c.bf16 %v3447, %v3445
        %v3722 = vpack.c.bf16 %v3448, %v3446
        %v3723 = vpack.c.bf16 %v3574, %v3568
        %v3724 = vpack.c.bf16 %v3577, %v3571
        %v3725 = vpack.c.bf16 %v3671, %v3665
        %v3726 = vpack.c.bf16 %v3674, %v3668
        %v3727 = vpack.c.bf16 %v3451, %v3449
        %v3728 = vpack.c.bf16 %v3452, %v3450
        %v3729 = vpack.c.bf16 %v3586, %v3580
        %v3730 = vpack.c.bf16 %v3589, %v3583
        %v3731 = vpack.c.bf16 %v3683, %v3677
        %v3732 = vpack.c.bf16 %v3686, %v3680
        %v3733 = vpack.c.bf16 %v3455, %v3453
        %v3734 = vpack.c.bf16 %v3456, %v3454
        %v3735 = vpack.c.bf16 %v3598, %v3592
        %v3736 = vpack.c.bf16 %v3601, %v3595
        %v3737 = vpack.c.bf16 %v3695, %v3689
        %v3738 = vpack.c.bf16 %v3698, %v3692
        %v3739 = vld [vmem:[#allocation9] sm:$0xff]
        %v3740 = vld [vmem:[#allocation9 + $0x8] sm:$0xff]
        %v3741 = vld [vmem:[#allocation9 + $0x10] sm:$0xff]
        %v3742 = vld [vmem:[#allocation9 + $0x18] sm:$0xff]
        %v3743 = vld [vmem:[#allocation9 + $0x20] sm:$0xff]
        %v3744 = vld [vmem:[#allocation9 + $0x28] sm:$0xff]
        %v3745 = vld [vmem:[#allocation9 + $0x30] sm:$0xff]
        %v3746 = vld [vmem:[#allocation9 + $0x38] sm:$0xff]
        %v3747 = vld [vmem:[#allocation9 + $0x40] sm:$0xff]
        %v3748 = vld [vmem:[#allocation9 + $0x48] sm:$0xff]
        %v3749 = vld [vmem:[#allocation9 + $0x50] sm:$0xff]
        %v3750 = vld [vmem:[#allocation9 + $0x58] sm:$0xff]
        %v3751 = vld [vmem:[#allocation9 + $0x60] sm:$0xff]
        %v3752 = vld [vmem:[#allocation9 + $0x68] sm:$0xff]
        %v3753 = vld [vmem:[#allocation9 + $0x70] sm:$0xff]
        %v3754 = vld [vmem:[#allocation9 + $0x78] sm:$0xff]
        %v3755 = vld [vmem:[#allocation9 + $0x80] sm:$0xff]
        %v3756 = vld [vmem:[#allocation9 + $0x88] sm:$0xff]
        %v3757 = vld [vmem:[#allocation9 + $0x90] sm:$0xff]
        %v3758 = vld [vmem:[#allocation9 + $0x98] sm:$0xff]
        %v3759 = vld [vmem:[#allocation9 + $0xa0] sm:$0xff]
        %v3760 = vld [vmem:[#allocation9 + $0xa8] sm:$0xff]
        %v3761 = vld [vmem:[#allocation9 + $0xb0] sm:$0xff]
        %v3762 = vld [vmem:[#allocation9 + $0xb8] sm:$0xff]
        %v3763 = vld [vmem:[#allocation9 + $0xc0] sm:$0xff]
        %v3764 = vld [vmem:[#allocation9 + $0xc8] sm:$0xff]
        %v3765 = vld [vmem:[#allocation9 + $0xd0] sm:$0xff]
        %v3766 = vld [vmem:[#allocation9 + $0xd8] sm:$0xff]
        %v3767 = vld [vmem:[#allocation9 + $0xe0] sm:$0xff]
        %v3768 = vld [vmem:[#allocation9 + $0xe8] sm:$0xff]
        %v3769 = vld [vmem:[#allocation9 + $0xf0] sm:$0xff]
        %v3770 = vld [vmem:[#allocation9 + $0xf8] sm:$0xff]
        %v3771 = vld [vmem:[#allocation9 + $0x100] sm:$0xff]
        %v3772 = vld [vmem:[#allocation9 + $0x108] sm:$0xff]
        %v3773 = vld [vmem:[#allocation9 + $0x110] sm:$0xff]
        %v3774 = vld [vmem:[#allocation9 + $0x118] sm:$0xff]
        %v3775 = vld [vmem:[#allocation9 + $0x120] sm:$0xff]
        %v3776 = vld [vmem:[#allocation9 + $0x128] sm:$0xff]
        %v3777 = vld [vmem:[#allocation9 + $0x130] sm:$0xff]
        %v3778 = vld [vmem:[#allocation9 + $0x138] sm:$0xff]
        %v3779 = vld [vmem:[#allocation9 + $0x140] sm:$0xff]
        %v3780 = vld [vmem:[#allocation9 + $0x148] sm:$0xff]
        %v3781 = vld [vmem:[#allocation9 + $0x150] sm:$0xff]
        %v3782 = vld [vmem:[#allocation9 + $0x158] sm:$0xff]
        %v3783 = vld [vmem:[#allocation9 + $0x160] sm:$0xff]
        %v3784 = vld [vmem:[#allocation9 + $0x168] sm:$0xff]
        %v3785 = vld [vmem:[#allocation9 + $0x170] sm:$0xff]
        %v3786 = vld [vmem:[#allocation9 + $0x178] sm:$0xff]
        %v3787 = vld [vmem:[#allocation9 + $0x180] sm:$0xff]
        %v3788 = vld [vmem:[#allocation9 + $0x188] sm:$0xff]
        %v3789 = vld [vmem:[#allocation9 + $0x190] sm:$0xff]
        %v3790 = vld [vmem:[#allocation9 + $0x198] sm:$0xff]
        %v3791 = vld [vmem:[#allocation9 + $0x1a0] sm:$0xff]
        %v3792 = vld [vmem:[#allocation9 + $0x1a8] sm:$0xff]
        %v3793 = vld [vmem:[#allocation9 + $0x1b0] sm:$0xff]
        %v3794 = vld [vmem:[#allocation9 + $0x1b8] sm:$0xff]
        %v3795 = vld [vmem:[#allocation9 + $0x1c0] sm:$0xff]
        %v3796 = vld [vmem:[#allocation9 + $0x1c8] sm:$0xff]
        %v3797 = vld [vmem:[#allocation9 + $0x1d0] sm:$0xff]
        %v3798 = vld [vmem:[#allocation9 + $0x1d8] sm:$0xff]
        %v3799 = vld [vmem:[#allocation9 + $0x1e0] sm:$0xff]
        %v3800 = vld [vmem:[#allocation9 + $0x1e8] sm:$0xff]
        %v3801 = vld [vmem:[#allocation9 + $0x1f0] sm:$0xff]
        %v3802 = vld [vmem:[#allocation9 + $0x1f8] sm:$0xff]
        %v3803 = vld [vmem:[#allocation9 + $0x200] sm:$0xff]
        %v3804 = vld [vmem:[#allocation9 + $0x208] sm:$0xff]
        %v3805 = vld [vmem:[#allocation9 + $0x210] sm:$0xff]
        %v3806 = vld [vmem:[#allocation9 + $0x218] sm:$0xff]
        %v3807 = vld [vmem:[#allocation9 + $0x220] sm:$0xff]
        %v3808 = vld [vmem:[#allocation9 + $0x228] sm:$0xff]
        %v3809 = vld [vmem:[#allocation9 + $0x230] sm:$0xff]
        %v3810 = vld [vmem:[#allocation9 + $0x238] sm:$0xff]
        %v3811 = vld [vmem:[#allocation9 + $0x240] sm:$0xff]
        %v3812 = vld [vmem:[#allocation9 + $0x248] sm:$0xff]
        %v3813 = vld [vmem:[#allocation9 + $0x250] sm:$0xff]
        %v3814 = vld [vmem:[#allocation9 + $0x258] sm:$0xff]
        %v3815 = vld [vmem:[#allocation9 + $0x260] sm:$0xff]
        %v3816 = vld [vmem:[#allocation9 + $0x268] sm:$0xff]
        %v3817 = vld [vmem:[#allocation9 + $0x270] sm:$0xff]
        %v3818 = vld [vmem:[#allocation9 + $0x278] sm:$0xff]
        %v3819 = vld [vmem:[#allocation9 + $0x280] sm:$0xff]
        %v3820 = vld [vmem:[#allocation9 + $0x288] sm:$0xff]
        %v3821 = vld [vmem:[#allocation9 + $0x290] sm:$0xff]
        %v3822 = vld [vmem:[#allocation9 + $0x298] sm:$0xff]
        %v3823 = vld [vmem:[#allocation9 + $0x2a0] sm:$0xff]
        %v3824 = vld [vmem:[#allocation9 + $0x2a8] sm:$0xff]
        %v3825 = vld [vmem:[#allocation9 + $0x2b0] sm:$0xff]
        %v3826 = vld [vmem:[#allocation9 + $0x2b8] sm:$0xff]
        %v3827 = vld [vmem:[#allocation9 + $0x2c0] sm:$0xff]
        %v3828 = vld [vmem:[#allocation9 + $0x2c8] sm:$0xff]
        %v3829 = vld [vmem:[#allocation9 + $0x2d0] sm:$0xff]
        %v3830 = vld [vmem:[#allocation9 + $0x2d8] sm:$0xff]
        %v3831 = vld [vmem:[#allocation9 + $0x2e0] sm:$0xff]
        %v3832 = vld [vmem:[#allocation9 + $0x2e8] sm:$0xff]
        %v3833 = vld [vmem:[#allocation9 + $0x2f0] sm:$0xff]
        %v3834 = vld [vmem:[#allocation9 + $0x2f8] sm:$0xff]
        %v3835 = vld [vmem:[#allocation9 + $0x300] sm:$0xff]
        %v3836 = vld [vmem:[#allocation9 + $0x308] sm:$0xff]
        %v3837 = vld [vmem:[#allocation9 + $0x310] sm:$0xff]
        %v3838 = vld [vmem:[#allocation9 + $0x318] sm:$0xff]
        %v3839 = vld [vmem:[#allocation9 + $0x320] sm:$0xff]
        %v3840 = vld [vmem:[#allocation9 + $0x328] sm:$0xff]
        %v3841 = vld [vmem:[#allocation9 + $0x330] sm:$0xff]
        %v3842 = vld [vmem:[#allocation9 + $0x338] sm:$0xff]
        %v3843 = vld [vmem:[#allocation9 + $0x340] sm:$0xff]
        %v3844 = vld [vmem:[#allocation9 + $0x348] sm:$0xff]
        %v3845 = vld [vmem:[#allocation9 + $0x350] sm:$0xff]
        %v3846 = vld [vmem:[#allocation9 + $0x358] sm:$0xff]
        %v3847 = vld [vmem:[#allocation9 + $0x360] sm:$0xff]
        %v3848 = vld [vmem:[#allocation9 + $0x368] sm:$0xff]
        %v3849 = vld [vmem:[#allocation9 + $0x370] sm:$0xff]
        %v3850 = vld [vmem:[#allocation9 + $0x378] sm:$0xff]
        %v3851 = vld [vmem:[#allocation9 + $0x380] sm:$0xff]
        %v3852 = vld [vmem:[#allocation9 + $0x388] sm:$0xff]
        %v3853 = vld [vmem:[#allocation9 + $0x390] sm:$0xff]
        %v3854 = vld [vmem:[#allocation9 + $0x398] sm:$0xff]
        %v3855 = vld [vmem:[#allocation9 + $0x3a0] sm:$0xff]
        %v3856 = vld [vmem:[#allocation9 + $0x3a8] sm:$0xff]
        %v3857 = vld [vmem:[#allocation9 + $0x3b0] sm:$0xff]
        %v3858 = vld [vmem:[#allocation9 + $0x3b8] sm:$0xff]
        %v3859 = vld [vmem:[#allocation9 + $0x3c0] sm:$0xff]
        %v3860 = vld [vmem:[#allocation9 + $0x3c8] sm:$0xff]
        %v3861 = vld [vmem:[#allocation9 + $0x3d0] sm:$0xff]
        %v3862 = vld [vmem:[#allocation9 + $0x3d8] sm:$0xff]
        %v3863 = vld [vmem:[#allocation9 + $0x3e0] sm:$0xff]
        %v3864 = vld [vmem:[#allocation9 + $0x3e8] sm:$0xff]
        %v3865 = vld [vmem:[#allocation9 + $0x3f0] sm:$0xff]
        %v3866 = vld [vmem:[#allocation9 + $0x3f8] sm:$0xff]
        %v3867 = vld [vmem:[#allocation9 + $0x400] sm:$0xff]
        %v3868 = vld [vmem:[#allocation9 + $0x408] sm:$0xff]
        %v3869 = vld [vmem:[#allocation9 + $0x410] sm:$0xff]
        %v3870 = vld [vmem:[#allocation9 + $0x418] sm:$0xff]
        %v3871 = vld [vmem:[#allocation9 + $0x420] sm:$0xff]
        %v3872 = vld [vmem:[#allocation9 + $0x428] sm:$0xff]
        %v3873 = vld [vmem:[#allocation9 + $0x430] sm:$0xff]
        %v3874 = vld [vmem:[#allocation9 + $0x438] sm:$0xff]
        %v3875 = vld [vmem:[#allocation9 + $0x440] sm:$0xff]
        %v3876 = vld [vmem:[#allocation9 + $0x448] sm:$0xff]
        %v3877 = vld [vmem:[#allocation9 + $0x450] sm:$0xff]
        %v3878 = vld [vmem:[#allocation9 + $0x458] sm:$0xff]
        %v3879 = vld [vmem:[#allocation9 + $0x460] sm:$0xff]
        %v3880 = vld [vmem:[#allocation9 + $0x468] sm:$0xff]
        %v3881 = vld [vmem:[#allocation9 + $0x470] sm:$0xff]
        %v3882 = vld [vmem:[#allocation9 + $0x478] sm:$0xff]
        %v3883 = vld [vmem:[#allocation9 + $0x480] sm:$0xff]
        %v3884 = vld [vmem:[#allocation9 + $0x488] sm:$0xff]
        %v3885 = vld [vmem:[#allocation9 + $0x490] sm:$0xff]
        %v3886 = vld [vmem:[#allocation9 + $0x498] sm:$0xff]
        %v3887 = vld [vmem:[#allocation9 + $0x4a0] sm:$0xff]
        %v3888 = vld [vmem:[#allocation9 + $0x4a8] sm:$0xff]
        %v3889 = vld [vmem:[#allocation9 + $0x4b0] sm:$0xff]
        %v3890 = vld [vmem:[#allocation9 + $0x4b8] sm:$0xff]
        %v3891 = vld [vmem:[#allocation9 + $0x4c0] sm:$0xff]
        %v3892 = vld [vmem:[#allocation9 + $0x4c8] sm:$0xff]
        %v3893 = vld [vmem:[#allocation9 + $0x4d0] sm:$0xff]
        %v3894 = vld [vmem:[#allocation9 + $0x4d8] sm:$0xff]
        %v3895 = vld [vmem:[#allocation9 + $0x4e0] sm:$0xff]
        %v3896 = vld [vmem:[#allocation9 + $0x4e8] sm:$0xff]
        %v3897 = vld [vmem:[#allocation9 + $0x4f0] sm:$0xff]
        %v3898 = vld [vmem:[#allocation9 + $0x4f8] sm:$0xff]
        %v3899 = vld [vmem:[#allocation9 + $0x500] sm:$0xff]
        %v3900 = vld [vmem:[#allocation9 + $0x508] sm:$0xff]
        %v3901 = vld [vmem:[#allocation9 + $0x510] sm:$0xff]
        %v3902 = vld [vmem:[#allocation9 + $0x518] sm:$0xff]
        %v3903 = vld [vmem:[#allocation9 + $0x520] sm:$0xff]
        %v3904 = vld [vmem:[#allocation9 + $0x528] sm:$0xff]
        %v3905 = vld [vmem:[#allocation9 + $0x530] sm:$0xff]
        %v3906 = vld [vmem:[#allocation9 + $0x538] sm:$0xff]
        %v3907 = vld [vmem:[#allocation9 + $0x540] sm:$0xff]
        %v3908 = vld [vmem:[#allocation9 + $0x548] sm:$0xff]
        %v3909 = vld [vmem:[#allocation9 + $0x550] sm:$0xff]
        %v3910 = vld [vmem:[#allocation9 + $0x558] sm:$0xff]
        %v3911 = vld [vmem:[#allocation9 + $0x560] sm:$0xff]
        %v3912 = vld [vmem:[#allocation9 + $0x568] sm:$0xff]
        %v3913 = vld [vmem:[#allocation9 + $0x570] sm:$0xff]
        %v3914 = vld [vmem:[#allocation9 + $0x578] sm:$0xff]
        %v3915 = vld [vmem:[#allocation9 + $0x580] sm:$0xff]
        %v3916 = vld [vmem:[#allocation9 + $0x588] sm:$0xff]
        %v3917 = vld [vmem:[#allocation9 + $0x590] sm:$0xff]
        %v3918 = vld [vmem:[#allocation9 + $0x598] sm:$0xff]
        %v3919 = vld [vmem:[#allocation9 + $0x5a0] sm:$0xff]
        %v3920 = vld [vmem:[#allocation9 + $0x5a8] sm:$0xff]
        %v3921 = vld [vmem:[#allocation9 + $0x5b0] sm:$0xff]
        %v3922 = vld [vmem:[#allocation9 + $0x5b8] sm:$0xff]
        %v3923 = vld [vmem:[#allocation9 + $0x5c0] sm:$0xff]
        %v3924 = vld [vmem:[#allocation9 + $0x5c8] sm:$0xff]
        %v3925 = vld [vmem:[#allocation9 + $0x5d0] sm:$0xff]
        %v3926 = vld [vmem:[#allocation9 + $0x5d8] sm:$0xff]
        %v3927 = vld [vmem:[#allocation9 + $0x5e0] sm:$0xff]
        %v3928 = vld [vmem:[#allocation9 + $0x5e8] sm:$0xff]
        %v3929 = vld [vmem:[#allocation9 + $0x5f0] sm:$0xff]
        %v3930 = vld [vmem:[#allocation9 + $0x5f8] sm:$0xff]
        %v4123 = vunpack.c.l.b16 %v3739
        %v4124 = vunpack.c.h.b16 %v3739
        %v4125 = vunpack.c.l.b16 %v3740
        %v4126 = vunpack.c.h.b16 %v3740
        %v4127 = vunpack.c.l.b16 %v3741
        %v4128 = vunpack.c.h.b16 %v3741
        %v4129 = vunpack.c.l.b16 %v3742
        %v4130 = vunpack.c.h.b16 %v3742
        %v4131 = vunpack.c.l.b16 %v3743
        %v4132 = vunpack.c.h.b16 %v3743
        %v4133 = vunpack.c.l.b16 %v3744
        %v4134 = vunpack.c.h.b16 %v3744
        %v4135 = vunpack.c.l.b16 %v3745
        %v4136 = vunpack.c.h.b16 %v3745
        %v4137 = vunpack.c.l.b16 %v3746
        %v4138 = vunpack.c.h.b16 %v3746
        %v4139 = vunpack.c.l.b16 %v3747
        %v4140 = vunpack.c.h.b16 %v3747
        %v4141 = vunpack.c.l.b16 %v3748
        %v4142 = vunpack.c.h.b16 %v3748
        %v4143 = vunpack.c.l.b16 %v3749
        %v4144 = vunpack.c.h.b16 %v3749
        %v4145 = vunpack.c.l.b16 %v3750
        %v4146 = vunpack.c.h.b16 %v3750
        %v4147 = vunpack.c.l.b16 %v3751
        %v4148 = vunpack.c.h.b16 %v3751
        %v4149 = vunpack.c.l.b16 %v3752
        %v4150 = vunpack.c.h.b16 %v3752
        %v4151 = vunpack.c.l.b16 %v3753
        %v4152 = vunpack.c.h.b16 %v3753
        %v4153 = vunpack.c.l.b16 %v3754
        %v4154 = vunpack.c.h.b16 %v3754
        %v4155 = vunpack.c.l.b16 %v3755
        %v4156 = vunpack.c.h.b16 %v3755
        %v4157 = vunpack.c.l.b16 %v3756
        %v4158 = vunpack.c.h.b16 %v3756
        %v4159 = vunpack.c.l.b16 %v3757
        %v4160 = vunpack.c.h.b16 %v3757
        %v4161 = vunpack.c.l.b16 %v3758
        %v4162 = vunpack.c.h.b16 %v3758
        %v4163 = vunpack.c.l.b16 %v3759
        %v4164 = vunpack.c.h.b16 %v3759
        %v4165 = vunpack.c.l.b16 %v3760
        %v4166 = vunpack.c.h.b16 %v3760
        %v4167 = vunpack.c.l.b16 %v3761
        %v4168 = vunpack.c.h.b16 %v3761
        %v4169 = vunpack.c.l.b16 %v3762
        %v4170 = vunpack.c.h.b16 %v3762
        %v4171 = vunpack.c.l.b16 %v3763
        %v4172 = vunpack.c.h.b16 %v3763
        %v4173 = vunpack.c.l.b16 %v3764
        %v4174 = vunpack.c.h.b16 %v3764
        %v4175 = vunpack.c.l.b16 %v3765
        %v4176 = vunpack.c.h.b16 %v3765
        %v4177 = vunpack.c.l.b16 %v3766
        %v4178 = vunpack.c.h.b16 %v3766
        %v4179 = vunpack.c.l.b16 %v3767
        %v4180 = vunpack.c.h.b16 %v3767
        %v4181 = vunpack.c.l.b16 %v3768
        %v4182 = vunpack.c.h.b16 %v3768
        %v4183 = vunpack.c.l.b16 %v3769
        %v4184 = vunpack.c.h.b16 %v3769
        %v4185 = vunpack.c.l.b16 %v3770
        %v4186 = vunpack.c.h.b16 %v3770
        %v4187 = vunpack.c.l.b16 %v3771
        %v4188 = vunpack.c.h.b16 %v3771
        %v4189 = vunpack.c.l.b16 %v3772
        %v4190 = vunpack.c.h.b16 %v3772
        %v4191 = vunpack.c.l.b16 %v3773
        %v4192 = vunpack.c.h.b16 %v3773
        %v4193 = vunpack.c.l.b16 %v3774
        %v4194 = vunpack.c.h.b16 %v3774
        %v4195 = vunpack.c.l.b16 %v3775
        %v4196 = vunpack.c.h.b16 %v3775
        %v4197 = vunpack.c.l.b16 %v3776
        %v4198 = vunpack.c.h.b16 %v3776
        %v4199 = vunpack.c.l.b16 %v3777
        %v4200 = vunpack.c.h.b16 %v3777
        %v4201 = vunpack.c.l.b16 %v3778
        %v4202 = vunpack.c.h.b16 %v3778
        %v4203 = vunpack.c.l.b16 %v3779
        %v4204 = vunpack.c.h.b16 %v3779
        %v4205 = vunpack.c.l.b16 %v3780
        %v4206 = vunpack.c.h.b16 %v3780
        %v4207 = vunpack.c.l.b16 %v3781
        %v4208 = vunpack.c.h.b16 %v3781
        %v4209 = vunpack.c.l.b16 %v3782
        %v4210 = vunpack.c.h.b16 %v3782
        %v4211 = vunpack.c.l.b16 %v3783
        %v4212 = vunpack.c.h.b16 %v3783
        %v4213 = vunpack.c.l.b16 %v3784
        %v4214 = vunpack.c.h.b16 %v3784
        %v4215 = vunpack.c.l.b16 %v3785
        %v4216 = vunpack.c.h.b16 %v3785
        %v4217 = vunpack.c.l.b16 %v3786
        %v4218 = vunpack.c.h.b16 %v3786
        %v4219 = vunpack.c.l.b16 %v3787
        %v4220 = vunpack.c.h.b16 %v3787
        %v4221 = vunpack.c.l.b16 %v3788
        %v4222 = vunpack.c.h.b16 %v3788
        %v4223 = vunpack.c.l.b16 %v3789
        %v4224 = vunpack.c.h.b16 %v3789
        %v4225 = vunpack.c.l.b16 %v3790
        %v4226 = vunpack.c.h.b16 %v3790
        %v4227 = vunpack.c.l.b16 %v3791
        %v4228 = vunpack.c.h.b16 %v3791
        %v4229 = vunpack.c.l.b16 %v3792
        %v4230 = vunpack.c.h.b16 %v3792
        %v4231 = vunpack.c.l.b16 %v3793
        %v4232 = vunpack.c.h.b16 %v3793
        %v4233 = vunpack.c.l.b16 %v3794
        %v4234 = vunpack.c.h.b16 %v3794
        %v4235 = vunpack.c.l.b16 %v3795
        %v4236 = vunpack.c.h.b16 %v3795
        %v4237 = vunpack.c.l.b16 %v3796
        %v4238 = vunpack.c.h.b16 %v3796
        %v4239 = vunpack.c.l.b16 %v3797
        %v4240 = vunpack.c.h.b16 %v3797
        %v4241 = vunpack.c.l.b16 %v3798
        %v4242 = vunpack.c.h.b16 %v3798
        %v4243 = vunpack.c.l.b16 %v3799
        %v4244 = vunpack.c.h.b16 %v3799
        %v4245 = vunpack.c.l.b16 %v3800
        %v4246 = vunpack.c.h.b16 %v3800
        %v4247 = vunpack.c.l.b16 %v3801
        %v4248 = vunpack.c.h.b16 %v3801
        %v4249 = vunpack.c.l.b16 %v3802
        %v4250 = vunpack.c.h.b16 %v3802
        %v4251 = vunpack.c.l.b16 %v3803
        %v4252 = vunpack.c.h.b16 %v3803
        %v4253 = vunpack.c.l.b16 %v3804
        %v4254 = vunpack.c.h.b16 %v3804
        %v4255 = vunpack.c.l.b16 %v3805
        %v4256 = vunpack.c.h.b16 %v3805
        %v4257 = vunpack.c.l.b16 %v3806
        %v4258 = vunpack.c.h.b16 %v3806
        %v4259 = vunpack.c.l.b16 %v3807
        %v4260 = vunpack.c.h.b16 %v3807
        %v4261 = vunpack.c.l.b16 %v3808
        %v4262 = vunpack.c.h.b16 %v3808
        %v4263 = vunpack.c.l.b16 %v3809
        %v4264 = vunpack.c.h.b16 %v3809
        %v4265 = vunpack.c.l.b16 %v3810
        %v4266 = vunpack.c.h.b16 %v3810
        %v4267 = vunpack.c.l.b16 %v3811
        %v4268 = vunpack.c.h.b16 %v3811
        %v4269 = vunpack.c.l.b16 %v3812
        %v4270 = vunpack.c.h.b16 %v3812
        %v4271 = vunpack.c.l.b16 %v3813
        %v4272 = vunpack.c.h.b16 %v3813
        %v4273 = vunpack.c.l.b16 %v3814
        %v4274 = vunpack.c.h.b16 %v3814
        %v4275 = vunpack.c.l.b16 %v3815
        %v4276 = vunpack.c.h.b16 %v3815
        %v4277 = vunpack.c.l.b16 %v3816
        %v4278 = vunpack.c.h.b16 %v3816
        %v4279 = vunpack.c.l.b16 %v3817
        %v4280 = vunpack.c.h.b16 %v3817
        %v4281 = vunpack.c.l.b16 %v3818
        %v4282 = vunpack.c.h.b16 %v3818
        %v4283 = vunpack.c.l.b16 %v3819
        %v4284 = vunpack.c.h.b16 %v3819
        %v4285 = vunpack.c.l.b16 %v3820
        %v4286 = vunpack.c.h.b16 %v3820
        %v4287 = vunpack.c.l.b16 %v3821
        %v4288 = vunpack.c.h.b16 %v3821
        %v4289 = vunpack.c.l.b16 %v3822
        %v4290 = vunpack.c.h.b16 %v3822
        %v4291 = vunpack.c.l.b16 %v3823
        %v4292 = vunpack.c.h.b16 %v3823
        %v4293 = vunpack.c.l.b16 %v3824
        %v4294 = vunpack.c.h.b16 %v3824
        %v4295 = vunpack.c.l.b16 %v3825
        %v4296 = vunpack.c.h.b16 %v3825
        %v4297 = vunpack.c.l.b16 %v3826
        %v4298 = vunpack.c.h.b16 %v3826
        %v4299 = vunpack.c.l.b16 %v3827
        %v4300 = vunpack.c.h.b16 %v3827
        %v4301 = vunpack.c.l.b16 %v3828
        %v4302 = vunpack.c.h.b16 %v3828
        %v4303 = vunpack.c.l.b16 %v3829
        %v4304 = vunpack.c.h.b16 %v3829
        %v4305 = vunpack.c.l.b16 %v3830
        %v4306 = vunpack.c.h.b16 %v3830
        %v4307 = vunpack.c.l.b16 %v3831
        %v4308 = vunpack.c.h.b16 %v3831
        %v4309 = vunpack.c.l.b16 %v3832
        %v4310 = vunpack.c.h.b16 %v3832
        %v4311 = vunpack.c.l.b16 %v3833
        %v4312 = vunpack.c.h.b16 %v3833
        %v4313 = vunpack.c.l.b16 %v3834
        %v4314 = vunpack.c.h.b16 %v3834
        %v4315 = vunpack.c.l.b16 %v3835
        %v4316 = vunpack.c.h.b16 %v3835
        %v4317 = vunpack.c.l.b16 %v3836
        %v4318 = vunpack.c.h.b16 %v3836
        %v4319 = vunpack.c.l.b16 %v3837
        %v4320 = vunpack.c.h.b16 %v3837
        %v4321 = vunpack.c.l.b16 %v3838
        %v4322 = vunpack.c.h.b16 %v3838
        %v4323 = vunpack.c.l.b16 %v3839
        %v4324 = vunpack.c.h.b16 %v3839
        %v4325 = vunpack.c.l.b16 %v3840
        %v4326 = vunpack.c.h.b16 %v3840
        %v4327 = vunpack.c.l.b16 %v3841
        %v4328 = vunpack.c.h.b16 %v3841
        %v4329 = vunpack.c.l.b16 %v3842
        %v4330 = vunpack.c.h.b16 %v3842
        %v4331 = vunpack.c.l.b16 %v3843
        %v4332 = vunpack.c.h.b16 %v3843
        %v4333 = vunpack.c.l.b16 %v3844
        %v4334 = vunpack.c.h.b16 %v3844
        %v4335 = vunpack.c.l.b16 %v3845
        %v4336 = vunpack.c.h.b16 %v3845
        %v4337 = vunpack.c.l.b16 %v3846
        %v4338 = vunpack.c.h.b16 %v3846
        %v4339 = vunpack.c.l.b16 %v3847
        %v4340 = vunpack.c.h.b16 %v3847
        %v4341 = vunpack.c.l.b16 %v3848
        %v4342 = vunpack.c.h.b16 %v3848
        %v4343 = vunpack.c.l.b16 %v3849
        %v4344 = vunpack.c.h.b16 %v3849
        %v4345 = vunpack.c.l.b16 %v3850
        %v4346 = vunpack.c.h.b16 %v3850
        %v4347 = vunpack.c.l.b16 %v3851
        %v4348 = vunpack.c.h.b16 %v3851
        %v4349 = vunpack.c.l.b16 %v3852
        %v4350 = vunpack.c.h.b16 %v3852
        %v4351 = vunpack.c.l.b16 %v3853
        %v4352 = vunpack.c.h.b16 %v3853
        %v4353 = vunpack.c.l.b16 %v3854
        %v4354 = vunpack.c.h.b16 %v3854
        %v4355 = vunpack.c.l.b16 %v3855
        %v4356 = vunpack.c.h.b16 %v3855
        %v4357 = vunpack.c.l.b16 %v3856
        %v4358 = vunpack.c.h.b16 %v3856
        %v4359 = vunpack.c.l.b16 %v3857
        %v4360 = vunpack.c.h.b16 %v3857
        %v4361 = vunpack.c.l.b16 %v3858
        %v4362 = vunpack.c.h.b16 %v3858
        %v4363 = vunpack.c.l.b16 %v3859
        %v4364 = vunpack.c.h.b16 %v3859
        %v4365 = vunpack.c.l.b16 %v3860
        %v4366 = vunpack.c.h.b16 %v3860
        %v4367 = vunpack.c.l.b16 %v3861
        %v4368 = vunpack.c.h.b16 %v3861
        %v4369 = vunpack.c.l.b16 %v3862
        %v4370 = vunpack.c.h.b16 %v3862
        %v4371 = vunpack.c.l.b16 %v3863
        %v4372 = vunpack.c.h.b16 %v3863
        %v4373 = vunpack.c.l.b16 %v3864
        %v4374 = vunpack.c.h.b16 %v3864
        %v4375 = vunpack.c.l.b16 %v3865
        %v4376 = vunpack.c.h.b16 %v3865
        %v4377 = vunpack.c.l.b16 %v3866
        %v4378 = vunpack.c.h.b16 %v3866
        %v4379 = vunpack.c.l.b16 %v3867
        %v4380 = vunpack.c.h.b16 %v3867
        %v4381 = vunpack.c.l.b16 %v3868
        %v4382 = vunpack.c.h.b16 %v3868
        %v4383 = vunpack.c.l.b16 %v3869
        %v4384 = vunpack.c.h.b16 %v3869
        %v4385 = vunpack.c.l.b16 %v3870
        %v4386 = vunpack.c.h.b16 %v3870
        %v4387 = vunpack.c.l.b16 %v3871
        %v4388 = vunpack.c.h.b16 %v3871
        %v4389 = vunpack.c.l.b16 %v3872
        %v4390 = vunpack.c.h.b16 %v3872
        %v4391 = vunpack.c.l.b16 %v3873
        %v4392 = vunpack.c.h.b16 %v3873
        %v4393 = vunpack.c.l.b16 %v3874
        %v4394 = vunpack.c.h.b16 %v3874
        %v4395 = vunpack.c.l.b16 %v3875
        %v4396 = vunpack.c.h.b16 %v3875
        %v4397 = vunpack.c.l.b16 %v3876
        %v4398 = vunpack.c.h.b16 %v3876
        %v4399 = vunpack.c.l.b16 %v3877
        %v4400 = vunpack.c.h.b16 %v3877
        %v4401 = vunpack.c.l.b16 %v3878
        %v4402 = vunpack.c.h.b16 %v3878
        %v4403 = vunpack.c.l.b16 %v3879
        %v4404 = vunpack.c.h.b16 %v3879
        %v4405 = vunpack.c.l.b16 %v3880
        %v4406 = vunpack.c.h.b16 %v3880
        %v4407 = vunpack.c.l.b16 %v3881
        %v4408 = vunpack.c.h.b16 %v3881
        %v4409 = vunpack.c.l.b16 %v3882
        %v4410 = vunpack.c.h.b16 %v3882
        %v4411 = vunpack.c.l.b16 %v3883
        %v4412 = vunpack.c.h.b16 %v3883
        %v4413 = vunpack.c.l.b16 %v3884
        %v4414 = vunpack.c.h.b16 %v3884
        %v4415 = vunpack.c.l.b16 %v3885
        %v4416 = vunpack.c.h.b16 %v3885
        %v4417 = vunpack.c.l.b16 %v3886
        %v4418 = vunpack.c.h.b16 %v3886
        %v4419 = vunpack.c.l.b16 %v3887
        %v4420 = vunpack.c.h.b16 %v3887
        %v4421 = vunpack.c.l.b16 %v3888
        %v4422 = vunpack.c.h.b16 %v3888
        %v4423 = vunpack.c.l.b16 %v3889
        %v4424 = vunpack.c.h.b16 %v3889
        %v4425 = vunpack.c.l.b16 %v3890
        %v4426 = vunpack.c.h.b16 %v3890
        %v4427 = vunpack.c.l.b16 %v3891
        %v4428 = vunpack.c.h.b16 %v3891
        %v4429 = vunpack.c.l.b16 %v3892
        %v4430 = vunpack.c.h.b16 %v3892
        %v4431 = vunpack.c.l.b16 %v3893
        %v4432 = vunpack.c.h.b16 %v3893
        %v4433 = vunpack.c.l.b16 %v3894
        %v4434 = vunpack.c.h.b16 %v3894
        %v4435 = vunpack.c.l.b16 %v3895
        %v4436 = vunpack.c.h.b16 %v3895
        %v4437 = vunpack.c.l.b16 %v3896
        %v4438 = vunpack.c.h.b16 %v3896
        %v4439 = vunpack.c.l.b16 %v3897
        %v4440 = vunpack.c.h.b16 %v3897
        %v4441 = vunpack.c.l.b16 %v3898
        %v4442 = vunpack.c.h.b16 %v3898
        %v4443 = vunpack.c.l.b16 %v3899
        %v4444 = vunpack.c.h.b16 %v3899
        %v4445 = vunpack.c.l.b16 %v3900
        %v4446 = vunpack.c.h.b16 %v3900
        %v4447 = vunpack.c.l.b16 %v3901
        %v4448 = vunpack.c.h.b16 %v3901
        %v4449 = vunpack.c.l.b16 %v3902
        %v4450 = vunpack.c.h.b16 %v3902
        %v4451 = vunpack.c.l.b16 %v3903
        %v4452 = vunpack.c.h.b16 %v3903
        %v4453 = vunpack.c.l.b16 %v3904
        %v4454 = vunpack.c.h.b16 %v3904
        %v4455 = vunpack.c.l.b16 %v3905
        %v4456 = vunpack.c.h.b16 %v3905
        %v4457 = vunpack.c.l.b16 %v3906
        %v4458 = vunpack.c.h.b16 %v3906
        %v4459 = vunpack.c.l.b16 %v3907
        %v4460 = vunpack.c.h.b16 %v3907
        %v4461 = vunpack.c.l.b16 %v3908
        %v4462 = vunpack.c.h.b16 %v3908
        %v4463 = vunpack.c.l.b16 %v3909
        %v4464 = vunpack.c.h.b16 %v3909
        %v4465 = vunpack.c.l.b16 %v3910
        %v4466 = vunpack.c.h.b16 %v3910
        %v4467 = vunpack.c.l.b16 %v3911
        %v4468 = vunpack.c.h.b16 %v3911
        %v4469 = vunpack.c.l.b16 %v3912
        %v4470 = vunpack.c.h.b16 %v3912
        %v4471 = vunpack.c.l.b16 %v3913
        %v4472 = vunpack.c.h.b16 %v3913
        %v4473 = vunpack.c.l.b16 %v3914
        %v4474 = vunpack.c.h.b16 %v3914
        %v4475 = vunpack.c.l.b16 %v3915
        %v4476 = vunpack.c.h.b16 %v3915
        %v4477 = vunpack.c.l.b16 %v3916
        %v4478 = vunpack.c.h.b16 %v3916
        %v4479 = vunpack.c.l.b16 %v3917
        %v4480 = vunpack.c.h.b16 %v3917
        %v4481 = vunpack.c.l.b16 %v3918
        %v4482 = vunpack.c.h.b16 %v3918
        %v4483 = vunpack.c.l.b16 %v3919
        %v4484 = vunpack.c.h.b16 %v3919
        %v4485 = vunpack.c.l.b16 %v3920
        %v4486 = vunpack.c.h.b16 %v3920
        %v4487 = vunpack.c.l.b16 %v3921
        %v4488 = vunpack.c.h.b16 %v3921
        %v4489 = vunpack.c.l.b16 %v3922
        %v4490 = vunpack.c.h.b16 %v3922
        %v4491 = vunpack.c.l.b16 %v3923
        %v4492 = vunpack.c.h.b16 %v3923
        %v4493 = vunpack.c.l.b16 %v3924
        %v4494 = vunpack.c.h.b16 %v3924
        %v4495 = vunpack.c.l.b16 %v3925
        %v4496 = vunpack.c.h.b16 %v3925
        %v4497 = vunpack.c.l.b16 %v3926
        %v4498 = vunpack.c.h.b16 %v3926
        %v4499 = vunpack.c.l.b16 %v3927
        %v4500 = vunpack.c.h.b16 %v3927
        %v4501 = vunpack.c.l.b16 %v3928
        %v4502 = vunpack.c.h.b16 %v3928
        %v4503 = vunpack.c.l.b16 %v3929
        %v4504 = vunpack.c.h.b16 %v3929
        %v4505 = vunpack.c.l.b16 %v3930
        %v4506 = vunpack.c.h.b16 %v3930
        %v4507 = vpack.c.b16 %v4127, %v4123
        %v4508 = vpack.c.b16 %v4128, %v4124
        %v4509 = vpack.c.b16 %v4129, %v4125
        %v4510 = vpack.c.b16 %v4130, %v4126
        %v4511 = vpack.c.b16 %v4135, %v4131
        %v4512 = vpack.c.b16 %v4136, %v4132
        %v4513 = vpack.c.b16 %v4137, %v4133
        %v4514 = vpack.c.b16 %v4138, %v4134
        %v4515 = vpack.c.b16 %v4143, %v4139
        %v4516 = vpack.c.b16 %v4144, %v4140
        %v4517 = vpack.c.b16 %v4145, %v4141
        %v4518 = vpack.c.b16 %v4146, %v4142
        %v4519 = vpack.c.b16 %v4151, %v4147
        %v4520 = vpack.c.b16 %v4152, %v4148
        %v4521 = vpack.c.b16 %v4153, %v4149
        %v4522 = vpack.c.b16 %v4154, %v4150
        %v4523 = vpack.c.b16 %v4159, %v4155
        %v4524 = vpack.c.b16 %v4160, %v4156
        %v4525 = vpack.c.b16 %v4161, %v4157
        %v4526 = vpack.c.b16 %v4162, %v4158
        %v4527 = vpack.c.b16 %v4167, %v4163
        %v4528 = vpack.c.b16 %v4168, %v4164
        %v4529 = vpack.c.b16 %v4169, %v4165
        %v4530 = vpack.c.b16 %v4170, %v4166
        %v4531 = vpack.c.b16 %v4175, %v4171
        %v4532 = vpack.c.b16 %v4176, %v4172
        %v4533 = vpack.c.b16 %v4177, %v4173
        %v4534 = vpack.c.b16 %v4178, %v4174
        %v4535 = vpack.c.b16 %v4183, %v4179
        %v4536 = vpack.c.b16 %v4184, %v4180
        %v4537 = vpack.c.b16 %v4185, %v4181
        %v4538 = vpack.c.b16 %v4186, %v4182
        %v4539 = vpack.c.b16 %v4191, %v4187
        %v4540 = vpack.c.b16 %v4192, %v4188
        %v4541 = vpack.c.b16 %v4193, %v4189
        %v4542 = vpack.c.b16 %v4194, %v4190
        %v4543 = vpack.c.b16 %v4199, %v4195
        %v4544 = vpack.c.b16 %v4200, %v4196
        %v4545 = vpack.c.b16 %v4201, %v4197
        %v4546 = vpack.c.b16 %v4202, %v4198
        %v4547 = vpack.c.b16 %v4207, %v4203
        %v4548 = vpack.c.b16 %v4208, %v4204
        %v4549 = vpack.c.b16 %v4209, %v4205
        %v4550 = vpack.c.b16 %v4210, %v4206
        %v4551 = vpack.c.b16 %v4215, %v4211
        %v4552 = vpack.c.b16 %v4216, %v4212
        %v4553 = vpack.c.b16 %v4217, %v4213
        %v4554 = vpack.c.b16 %v4218, %v4214
        %v4555 = vpack.c.b16 %v4223, %v4219
        %v4556 = vpack.c.b16 %v4224, %v4220
        %v4557 = vpack.c.b16 %v4225, %v4221
        %v4558 = vpack.c.b16 %v4226, %v4222
        %v4559 = vpack.c.b16 %v4231, %v4227
        %v4560 = vpack.c.b16 %v4232, %v4228
        %v4561 = vpack.c.b16 %v4233, %v4229
        %v4562 = vpack.c.b16 %v4234, %v4230
        %v4563 = vpack.c.b16 %v4239, %v4235
        %v4564 = vpack.c.b16 %v4240, %v4236
        %v4565 = vpack.c.b16 %v4241, %v4237
        %v4566 = vpack.c.b16 %v4242, %v4238
        %v4567 = vpack.c.b16 %v4247, %v4243
        %v4568 = vpack.c.b16 %v4248, %v4244
        %v4569 = vpack.c.b16 %v4249, %v4245
        %v4570 = vpack.c.b16 %v4250, %v4246
        %v4571 = vpack.c.b16 %v4255, %v4251
        %v4572 = vpack.c.b16 %v4256, %v4252
        %v4573 = vpack.c.b16 %v4257, %v4253
        %v4574 = vpack.c.b16 %v4258, %v4254
        %v4575 = vpack.c.b16 %v4263, %v4259
        %v4576 = vpack.c.b16 %v4264, %v4260
        %v4577 = vpack.c.b16 %v4265, %v4261
        %v4578 = vpack.c.b16 %v4266, %v4262
        %v4579 = vpack.c.b16 %v4271, %v4267
        %v4580 = vpack.c.b16 %v4272, %v4268
        %v4581 = vpack.c.b16 %v4273, %v4269
        %v4582 = vpack.c.b16 %v4274, %v4270
        %v4583 = vpack.c.b16 %v4279, %v4275
        %v4584 = vpack.c.b16 %v4280, %v4276
        %v4585 = vpack.c.b16 %v4281, %v4277
        %v4586 = vpack.c.b16 %v4282, %v4278
        %v4587 = vpack.c.b16 %v4287, %v4283
        %v4588 = vpack.c.b16 %v4288, %v4284
        %v4589 = vpack.c.b16 %v4289, %v4285
        %v4590 = vpack.c.b16 %v4290, %v4286
        %v4591 = vpack.c.b16 %v4295, %v4291
        %v4592 = vpack.c.b16 %v4296, %v4292
        %v4593 = vpack.c.b16 %v4297, %v4293
        %v4594 = vpack.c.b16 %v4298, %v4294
        %v4595 = vpack.c.b16 %v4303, %v4299
        %v4596 = vpack.c.b16 %v4304, %v4300
        %v4597 = vpack.c.b16 %v4305, %v4301
        %v4598 = vpack.c.b16 %v4306, %v4302
        %v4599 = vpack.c.b16 %v4311, %v4307
        %v4600 = vpack.c.b16 %v4312, %v4308
        %v4601 = vpack.c.b16 %v4313, %v4309
        %v4602 = vpack.c.b16 %v4314, %v4310
        %v4603 = vpack.c.b16 %v4319, %v4315
        %v4604 = vpack.c.b16 %v4320, %v4316
        %v4605 = vpack.c.b16 %v4321, %v4317
        %v4606 = vpack.c.b16 %v4322, %v4318
        %v4607 = vpack.c.b16 %v4327, %v4323
        %v4608 = vpack.c.b16 %v4328, %v4324
        %v4609 = vpack.c.b16 %v4329, %v4325
        %v4610 = vpack.c.b16 %v4330, %v4326
        %v4611 = vpack.c.b16 %v4335, %v4331
        %v4612 = vpack.c.b16 %v4336, %v4332
        %v4613 = vpack.c.b16 %v4337, %v4333
        %v4614 = vpack.c.b16 %v4338, %v4334
        %v4615 = vpack.c.b16 %v4343, %v4339
        %v4616 = vpack.c.b16 %v4344, %v4340
        %v4617 = vpack.c.b16 %v4345, %v4341
        %v4618 = vpack.c.b16 %v4346, %v4342
        %v4619 = vpack.c.b16 %v4351, %v4347
        %v4620 = vpack.c.b16 %v4352, %v4348
        %v4621 = vpack.c.b16 %v4353, %v4349
        %v4622 = vpack.c.b16 %v4354, %v4350
        %v4623 = vpack.c.b16 %v4359, %v4355
        %v4624 = vpack.c.b16 %v4360, %v4356
        %v4625 = vpack.c.b16 %v4361, %v4357
        %v4626 = vpack.c.b16 %v4362, %v4358
        %v4627 = vpack.c.b16 %v4367, %v4363
        %v4628 = vpack.c.b16 %v4368, %v4364
        %v4629 = vpack.c.b16 %v4369, %v4365
        %v4630 = vpack.c.b16 %v4370, %v4366
        %v4631 = vpack.c.b16 %v4375, %v4371
        %v4632 = vpack.c.b16 %v4376, %v4372
        %v4633 = vpack.c.b16 %v4377, %v4373
        %v4634 = vpack.c.b16 %v4378, %v4374
        %v4635 = vpack.c.b16 %v4383, %v4379
        %v4636 = vpack.c.b16 %v4384, %v4380
        %v4637 = vpack.c.b16 %v4385, %v4381
        %v4638 = vpack.c.b16 %v4386, %v4382
        %v4639 = vpack.c.b16 %v4391, %v4387
        %v4640 = vpack.c.b16 %v4392, %v4388
        %v4641 = vpack.c.b16 %v4393, %v4389
        %v4642 = vpack.c.b16 %v4394, %v4390
        %v4643 = vpack.c.b16 %v4399, %v4395
        %v4644 = vpack.c.b16 %v4400, %v4396
        %v4645 = vpack.c.b16 %v4401, %v4397
        %v4646 = vpack.c.b16 %v4402, %v4398
        %v4647 = vpack.c.b16 %v4407, %v4403
        %v4648 = vpack.c.b16 %v4408, %v4404
        %v4649 = vpack.c.b16 %v4409, %v4405
        %v4650 = vpack.c.b16 %v4410, %v4406
        %v4651 = vpack.c.b16 %v4415, %v4411
        %v4652 = vpack.c.b16 %v4416, %v4412
        %v4653 = vpack.c.b16 %v4417, %v4413
        %v4654 = vpack.c.b16 %v4418, %v4414
        %v4655 = vpack.c.b16 %v4423, %v4419
        %v4656 = vpack.c.b16 %v4424, %v4420
        %v4657 = vpack.c.b16 %v4425, %v4421
        %v4658 = vpack.c.b16 %v4426, %v4422
        %v4659 = vpack.c.b16 %v4431, %v4427
        %v4660 = vpack.c.b16 %v4432, %v4428
        %v4661 = vpack.c.b16 %v4433, %v4429
        %v4662 = vpack.c.b16 %v4434, %v4430
        %v4663 = vpack.c.b16 %v4439, %v4435
        %v4664 = vpack.c.b16 %v4440, %v4436
        %v4665 = vpack.c.b16 %v4441, %v4437
        %v4666 = vpack.c.b16 %v4442, %v4438
        %v4667 = vpack.c.b16 %v4447, %v4443
        %v4668 = vpack.c.b16 %v4448, %v4444
        %v4669 = vpack.c.b16 %v4449, %v4445
        %v4670 = vpack.c.b16 %v4450, %v4446
        %v4671 = vpack.c.b16 %v4455, %v4451
        %v4672 = vpack.c.b16 %v4456, %v4452
        %v4673 = vpack.c.b16 %v4457, %v4453
        %v4674 = vpack.c.b16 %v4458, %v4454
        %v4675 = vpack.c.b16 %v4463, %v4459
        %v4676 = vpack.c.b16 %v4464, %v4460
        %v4677 = vpack.c.b16 %v4465, %v4461
        %v4678 = vpack.c.b16 %v4466, %v4462
        %v4679 = vpack.c.b16 %v4471, %v4467
        %v4680 = vpack.c.b16 %v4472, %v4468
        %v4681 = vpack.c.b16 %v4473, %v4469
        %v4682 = vpack.c.b16 %v4474, %v4470
        %v4683 = vpack.c.b16 %v4479, %v4475
        %v4684 = vpack.c.b16 %v4480, %v4476
        %v4685 = vpack.c.b16 %v4481, %v4477
        %v4686 = vpack.c.b16 %v4482, %v4478
        %v4687 = vpack.c.b16 %v4487, %v4483
        %v4688 = vpack.c.b16 %v4488, %v4484
        %v4689 = vpack.c.b16 %v4489, %v4485
        %v4690 = vpack.c.b16 %v4490, %v4486
        %v4691 = vpack.c.b16 %v4495, %v4491
        %v4692 = vpack.c.b16 %v4496, %v4492
        %v4693 = vpack.c.b16 %v4497, %v4493
        %v4694 = vpack.c.b16 %v4498, %v4494
        %v4695 = vpack.c.b16 %v4503, %v4499
        %v4696 = vpack.c.b16 %v4504, %v4500
        %v4697 = vpack.c.b16 %v4505, %v4501
        %v4698 = vpack.c.b16 %v4506, %v4502
        %4891 = vmatprep.subr.bf16.mxu0 %v4536
        %4892 = vmatpush1.bf16.msra.mxu0 %v4535
        %4893 = vmatprep.subr.bf16.mxu0 %v4532
        %4894 = vmatpush1.bf16.msra.mxu0 %v4531
        %4895 = vmatprep.subr.bf16.mxu0 %v4528
        %4896 = vmatpush1.bf16.msra.mxu0 %v4527
        %4897 = vmatprep.subr.bf16.mxu0 %v4524
        %4898 = vmatpush1.bf16.msra.mxu0 %v4523
        %4899 = vmatprep.subr.bf16.mxu0 %v4520
        %4900 = vmatpush1.bf16.msra.mxu0 %v4519
        %4901 = vmatprep.subr.bf16.mxu0 %v4516
        %4902 = vmatpush1.bf16.msra.mxu0 %v4515
        %4903 = vmatprep.subr.bf16.mxu0 %v4512
        %4904 = vmatpush1.bf16.msra.mxu0 %v4511
        %4905 = vmatprep.subr.bf16.mxu0 %v4508
        %4906 = vmatpush1.bf16.msra.mxu0 %v4507
        %4907 = vmatprep.subr.bf16.mxu0 %v4568
        %4908 = vmatpush2.bf16.msra.mxu0 %v4567
        %4909 = vmatprep.subr.bf16.mxu0 %v4564
        %4910 = vmatpush2.bf16.msra.mxu0 %v4563
        %4911 = vmatprep.subr.bf16.mxu0 %v4560
        %4912 = vmatpush2.bf16.msra.mxu0 %v4559
        %4913 = vmatprep.subr.bf16.mxu0 %v4556
        %4914 = vmatpush2.bf16.msra.mxu0 %v4555
        %4915 = vmatprep.subr.bf16.mxu0 %v4552
        %4916 = vmatpush2.bf16.msra.mxu0 %v4551
        %4917 = vmatprep.subr.bf16.mxu0 %v4548
        %4918 = vmatpush2.bf16.msra.mxu0 %v4547
        %4919 = vmatprep.subr.bf16.mxu0 %v4544
        %4920 = vmatpush2.bf16.msra.mxu0 %v4543
        %4921 = vmatprep.subr.bf16.mxu0 %v4540
        %4922 = vmatpush2.bf16.msra.mxu0 %v4539
        %4923 = vmatprep.mubr.bf16.mxu0 %v3716
        %4924 = vmatmul.mubr.bf16.gmra.mxu0 %v3715
        %v4925 = vpop.f32.mrf.mxu0
        %v4926 = vadd.f32 0.0, %v4925
        %v4927 = vpop.f32.mrf.mxu0
        %v4928 = vadd.f32 0.0, %v4927
        %v4929 = vpop.f32.mrf.mxu0
        %v4930 = vadd.f32 0.0, %v4929
        %v4931 = vpop.f32.mrf.mxu0
        %v4932 = vadd.f32 0.0, %v4931
        %4933 = vmatprep.mubr.bf16.mxu0 %v3722
        %4934 = vmatmul.mubr.bf16.gmra.mxu0 %v3721
        %v4935 = vpop.f32.mrf.mxu0
        %v4936 = vadd.f32 0.0, %v4935
        %v4937 = vpop.f32.mrf.mxu0
        %v4938 = vadd.f32 0.0, %v4937
        %v4939 = vpop.f32.mrf.mxu0
        %v4940 = vadd.f32 0.0, %v4939
        %v4941 = vpop.f32.mrf.mxu0
        %v4942 = vadd.f32 0.0, %v4941
        %4943 = vmatprep.mubr.bf16.mxu0 %v3728
        %4944 = vmatmul.mubr.bf16.gmra.mxu0 %v3727
        %v4945 = vpop.f32.mrf.mxu0
        %v4946 = vadd.f32 0.0, %v4945
        %v4947 = vpop.f32.mrf.mxu0
        %v4948 = vadd.f32 0.0, %v4947
        %v4949 = vpop.f32.mrf.mxu0
        %v4950 = vadd.f32 0.0, %v4949
        %v4951 = vpop.f32.mrf.mxu0
        %v4952 = vadd.f32 0.0, %v4951
        %4953 = vmatprep.mubr.bf16.mxu0 %v3734
        %4954 = vmatmul.mubr.bf16.gmra.mxu0 %v3733
        %v4955 = vpop.f32.mrf.mxu0
        %v4956 = vadd.f32 0.0, %v4955
        %v4957 = vpop.f32.mrf.mxu0
        %v4958 = vadd.f32 0.0, %v4957
        %v4959 = vpop.f32.mrf.mxu0
        %v4960 = vadd.f32 0.0, %v4959
        %v4961 = vpop.f32.mrf.mxu0
        %v4962 = vadd.f32 0.0, %v4961
        %4963 = vdwg.mxu0
        %4964 = vmatprep.subr.bf16.mxu0 %v4600
        %4965 = vmatpush1.bf16.msra.mxu0 %v4599
        %4966 = vmatprep.subr.bf16.mxu0 %v4596
        %4967 = vmatpush1.bf16.msra.mxu0 %v4595
        %4968 = vmatprep.subr.bf16.mxu0 %v4592
        %4969 = vmatpush1.bf16.msra.mxu0 %v4591
        %4970 = vmatprep.subr.bf16.mxu0 %v4588
        %4971 = vmatpush1.bf16.msra.mxu0 %v4587
        %4972 = vmatprep.subr.bf16.mxu0 %v4584
        %4973 = vmatpush1.bf16.msra.mxu0 %v4583
        %4974 = vmatprep.subr.bf16.mxu0 %v4580
        %4975 = vmatpush1.bf16.msra.mxu0 %v4579
        %4976 = vmatprep.subr.bf16.mxu0 %v4576
        %4977 = vmatpush1.bf16.msra.mxu0 %v4575
        %4978 = vmatprep.subr.bf16.mxu0 %v4572
        %4979 = vmatpush1.bf16.msra.mxu0 %v4571
        %4980 = vmatprep.subr.bf16.mxu0 %v4632
        %4981 = vmatpush2.bf16.msra.mxu0 %v4631
        %4982 = vmatprep.subr.bf16.mxu0 %v4628
        %4983 = vmatpush2.bf16.msra.mxu0 %v4627
        %4984 = vmatprep.subr.bf16.mxu0 %v4624
        %4985 = vmatpush2.bf16.msra.mxu0 %v4623
        %4986 = vmatprep.subr.bf16.mxu0 %v4620
        %4987 = vmatpush2.bf16.msra.mxu0 %v4619
        %4988 = vmatprep.subr.bf16.mxu0 %v4616
        %4989 = vmatpush2.bf16.msra.mxu0 %v4615
        %4990 = vmatprep.subr.bf16.mxu0 %v4612
        %4991 = vmatpush2.bf16.msra.mxu0 %v4611
        %4992 = vmatprep.subr.bf16.mxu0 %v4608
        %4993 = vmatpush2.bf16.msra.mxu0 %v4607
        %4994 = vmatprep.subr.bf16.mxu0 %v4604
        %4995 = vmatpush2.bf16.msra.mxu0 %v4603
        %4996 = vmatprep.mubr.bf16.mxu0 %v3718
        %4997 = vmatmul.mubr.bf16.gmra.mxu0 %v3717
        %v4998 = vpop.f32.mrf.mxu0
        %v4999 = vadd.f32 %v4926, %v4998
        %v5000 = vpop.f32.mrf.mxu0
        %v5001 = vadd.f32 %v4928, %v5000
        %v5002 = vpop.f32.mrf.mxu0
        %v5003 = vadd.f32 %v4930, %v5002
        %v5004 = vpop.f32.mrf.mxu0
        %v5005 = vadd.f32 %v4932, %v5004
        %5006 = vmatprep.mubr.bf16.mxu0 %v3724
        %5007 = vmatmul.mubr.bf16.gmra.mxu0 %v3723
        %v5008 = vpop.f32.mrf.mxu0
        %v5009 = vadd.f32 %v4936, %v5008
        %v5010 = vpop.f32.mrf.mxu0
        %v5011 = vadd.f32 %v4938, %v5010
        %v5012 = vpop.f32.mrf.mxu0
        %v5013 = vadd.f32 %v4940, %v5012
        %v5014 = vpop.f32.mrf.mxu0
        %v5015 = vadd.f32 %v4942, %v5014
        %5016 = vmatprep.mubr.bf16.mxu0 %v3730
        %5017 = vmatmul.mubr.bf16.gmra.mxu0 %v3729
        %v5018 = vpop.f32.mrf.mxu0
        %v5019 = vadd.f32 %v4946, %v5018
        %v5020 = vpop.f32.mrf.mxu0
        %v5021 = vadd.f32 %v4948, %v5020
        %v5022 = vpop.f32.mrf.mxu0
        %v5023 = vadd.f32 %v4950, %v5022
        %v5024 = vpop.f32.mrf.mxu0
        %v5025 = vadd.f32 %v4952, %v5024
        %5026 = vmatprep.mubr.bf16.mxu0 %v3736
        %5027 = vmatmul.mubr.bf16.gmra.mxu0 %v3735
        %v5028 = vpop.f32.mrf.mxu0
        %v5029 = vadd.f32 %v4956, %v5028
        %v5030 = vpop.f32.mrf.mxu0
        %v5031 = vadd.f32 %v4958, %v5030
        %v5032 = vpop.f32.mrf.mxu0
        %v5033 = vadd.f32 %v4960, %v5032
        %v5034 = vpop.f32.mrf.mxu0
        %v5035 = vadd.f32 %v4962, %v5034
        %5036 = vdwg.mxu0
        %5037 = vmatprep.subr.bf16.mxu0 %v4664
        %5038 = vmatpush1.bf16.msra.mxu0 %v4663
        %5039 = vmatprep.subr.bf16.mxu0 %v4660
        %5040 = vmatpush1.bf16.msra.mxu0 %v4659
        %5041 = vmatprep.subr.bf16.mxu0 %v4656
        %5042 = vmatpush1.bf16.msra.mxu0 %v4655
        %5043 = vmatprep.subr.bf16.mxu0 %v4652
        %5044 = vmatpush1.bf16.msra.mxu0 %v4651
        %5045 = vmatprep.subr.bf16.mxu0 %v4648
        %5046 = vmatpush1.bf16.msra.mxu0 %v4647
        %5047 = vmatprep.subr.bf16.mxu0 %v4644
        %5048 = vmatpush1.bf16.msra.mxu0 %v4643
        %5049 = vmatprep.subr.bf16.mxu0 %v4640
        %5050 = vmatpush1.bf16.msra.mxu0 %v4639
        %5051 = vmatprep.subr.bf16.mxu0 %v4636
        %5052 = vmatpush1.bf16.msra.mxu0 %v4635
        %5053 = vmatprep.subr.bf16.mxu0 %v4696
        %5054 = vmatpush2.bf16.msra.mxu0 %v4695
        %5055 = vmatprep.subr.bf16.mxu0 %v4692
        %5056 = vmatpush2.bf16.msra.mxu0 %v4691
        %5057 = vmatprep.subr.bf16.mxu0 %v4688
        %5058 = vmatpush2.bf16.msra.mxu0 %v4687
        %5059 = vmatprep.subr.bf16.mxu0 %v4684
        %5060 = vmatpush2.bf16.msra.mxu0 %v4683
        %5061 = vmatprep.subr.bf16.mxu0 %v4680
        %5062 = vmatpush2.bf16.msra.mxu0 %v4679
        %5063 = vmatprep.subr.bf16.mxu0 %v4676
        %5064 = vmatpush2.bf16.msra.mxu0 %v4675
        %5065 = vmatprep.subr.bf16.mxu0 %v4672
        %5066 = vmatpush2.bf16.msra.mxu0 %v4671
        %5067 = vmatprep.subr.bf16.mxu0 %v4668
        %5068 = vmatpush2.bf16.msra.mxu0 %v4667
        %5069 = vmatprep.mubr.bf16.mxu0 %v3720
        %5070 = vmatmul.mubr.bf16.gmra.mxu0 %v3719
        %v5071 = vpop.f32.mrf.mxu0
        %v5072 = vadd.f32 %v4999, %v5071
        %v5073 = vpop.f32.mrf.mxu0
        %v5074 = vadd.f32 %v5001, %v5073
        %v5075 = vpop.f32.mrf.mxu0
        %v5076 = vadd.f32 %v5003, %v5075
        %v5077 = vpop.f32.mrf.mxu0
        %v5078 = vadd.f32 %v5005, %v5077
        %5079 = vmatprep.mubr.bf16.mxu0 %v3726
        %5080 = vmatmul.mubr.bf16.gmra.mxu0 %v3725
        %v5081 = vpop.f32.mrf.mxu0
        %v5082 = vadd.f32 %v5009, %v5081
        %v5083 = vpop.f32.mrf.mxu0
        %v5084 = vadd.f32 %v5011, %v5083
        %v5085 = vpop.f32.mrf.mxu0
        %v5086 = vadd.f32 %v5013, %v5085
        %v5087 = vpop.f32.mrf.mxu0
        %v5088 = vadd.f32 %v5015, %v5087
        %5089 = vmatprep.mubr.bf16.mxu0 %v3732
        %5090 = vmatmul.mubr.bf16.gmra.mxu0 %v3731
        %v5091 = vpop.f32.mrf.mxu0
        %v5092 = vadd.f32 %v5019, %v5091
        %v5093 = vpop.f32.mrf.mxu0
        %v5094 = vadd.f32 %v5021, %v5093
        %v5095 = vpop.f32.mrf.mxu0
        %v5096 = vadd.f32 %v5023, %v5095
        %v5097 = vpop.f32.mrf.mxu0
        %v5098 = vadd.f32 %v5025, %v5097
        %5099 = vmatprep.mubr.bf16.mxu0 %v3738
        %5100 = vmatmul.mubr.bf16.gmra.mxu0 %v3737
        %v5101 = vpop.f32.mrf.mxu0
        %v5102 = vadd.f32 %v5029, %v5101
        %v5103 = vpop.f32.mrf.mxu0
        %v5104 = vadd.f32 %v5031, %v5103
        %v5105 = vpop.f32.mrf.mxu0
        %v5106 = vadd.f32 %v5033, %v5105
        %v5107 = vpop.f32.mrf.mxu0
        %v5108 = vadd.f32 %v5035, %v5107
        %5109 = vdwg.mxu0
        %5110 = vmatprep.subr.bf16.mxu0 %v4538
        %5111 = vmatpush1.bf16.msra.mxu0 %v4537
        %5112 = vmatprep.subr.bf16.mxu0 %v4534
        %5113 = vmatpush1.bf16.msra.mxu0 %v4533
        %5114 = vmatprep.subr.bf16.mxu0 %v4530
        %5115 = vmatpush1.bf16.msra.mxu0 %v4529
        %5116 = vmatprep.subr.bf16.mxu0 %v4526
        %5117 = vmatpush1.bf16.msra.mxu0 %v4525
        %5118 = vmatprep.subr.bf16.mxu0 %v4522
        %5119 = vmatpush1.bf16.msra.mxu0 %v4521
        %5120 = vmatprep.subr.bf16.mxu0 %v4518
        %5121 = vmatpush1.bf16.msra.mxu0 %v4517
        %5122 = vmatprep.subr.bf16.mxu0 %v4514
        %5123 = vmatpush1.bf16.msra.mxu0 %v4513
        %5124 = vmatprep.subr.bf16.mxu0 %v4510
        %5125 = vmatpush1.bf16.msra.mxu0 %v4509
        %5126 = vmatprep.subr.bf16.mxu0 %v4570
        %5127 = vmatpush2.bf16.msra.mxu0 %v4569
        %5128 = vmatprep.subr.bf16.mxu0 %v4566
        %5129 = vmatpush2.bf16.msra.mxu0 %v4565
        %5130 = vmatprep.subr.bf16.mxu0 %v4562
        %5131 = vmatpush2.bf16.msra.mxu0 %v4561
        %5132 = vmatprep.subr.bf16.mxu0 %v4558
        %5133 = vmatpush2.bf16.msra.mxu0 %v4557
        %5134 = vmatprep.subr.bf16.mxu0 %v4554
        %5135 = vmatpush2.bf16.msra.mxu0 %v4553
        %5136 = vmatprep.subr.bf16.mxu0 %v4550
        %5137 = vmatpush2.bf16.msra.mxu0 %v4549
        %5138 = vmatprep.subr.bf16.mxu0 %v4546
        %5139 = vmatpush2.bf16.msra.mxu0 %v4545
        %5140 = vmatprep.subr.bf16.mxu0 %v4542
        %5141 = vmatpush2.bf16.msra.mxu0 %v4541
        %5142 = vmatprep.mubr.bf16.mxu0 %v3716
        %5143 = vmatmul.mubr.bf16.gmra.mxu0 %v3715
        %v5144 = vpop.f32.mrf.mxu0
        %v5145 = vadd.f32 0.0, %v5144
        %v5146 = vpop.f32.mrf.mxu0
        %v5147 = vadd.f32 0.0, %v5146
        %v5148 = vpop.f32.mrf.mxu0
        %v5149 = vadd.f32 0.0, %v5148
        %v5150 = vpop.f32.mrf.mxu0
        %v5151 = vadd.f32 0.0, %v5150
        %5152 = vmatprep.mubr.bf16.mxu0 %v3722
        %5153 = vmatmul.mubr.bf16.gmra.mxu0 %v3721
        %v5154 = vpop.f32.mrf.mxu0
        %v5155 = vadd.f32 0.0, %v5154
        %v5156 = vpop.f32.mrf.mxu0
        %v5157 = vadd.f32 0.0, %v5156
        %v5158 = vpop.f32.mrf.mxu0
        %v5159 = vadd.f32 0.0, %v5158
        %v5160 = vpop.f32.mrf.mxu0
        %v5161 = vadd.f32 0.0, %v5160
        %5162 = vmatprep.mubr.bf16.mxu0 %v3728
        %5163 = vmatmul.mubr.bf16.gmra.mxu0 %v3727
        %v5164 = vpop.f32.mrf.mxu0
        %v5165 = vadd.f32 0.0, %v5164
        %v5166 = vpop.f32.mrf.mxu0
        %v5167 = vadd.f32 0.0, %v5166
        %v5168 = vpop.f32.mrf.mxu0
        %v5169 = vadd.f32 0.0, %v5168
        %v5170 = vpop.f32.mrf.mxu0
        %v5171 = vadd.f32 0.0, %v5170
        %5172 = vmatprep.mubr.bf16.mxu0 %v3734
        %5173 = vmatmul.mubr.bf16.gmra.mxu0 %v3733
        %v5174 = vpop.f32.mrf.mxu0
        %v5175 = vadd.f32 0.0, %v5174
        %v5176 = vpop.f32.mrf.mxu0
        %v5177 = vadd.f32 0.0, %v5176
        %v5178 = vpop.f32.mrf.mxu0
        %v5179 = vadd.f32 0.0, %v5178
        %v5180 = vpop.f32.mrf.mxu0
        %v5181 = vadd.f32 0.0, %v5180
        %5182 = vdwg.mxu0
        %5183 = vmatprep.subr.bf16.mxu0 %v4602
        %5184 = vmatpush1.bf16.msra.mxu0 %v4601
        %5185 = vmatprep.subr.bf16.mxu0 %v4598
        %5186 = vmatpush1.bf16.msra.mxu0 %v4597
        %5187 = vmatprep.subr.bf16.mxu0 %v4594
        %5188 = vmatpush1.bf16.msra.mxu0 %v4593
        %5189 = vmatprep.subr.bf16.mxu0 %v4590
        %5190 = vmatpush1.bf16.msra.mxu0 %v4589
        %5191 = vmatprep.subr.bf16.mxu0 %v4586
        %5192 = vmatpush1.bf16.msra.mxu0 %v4585
        %5193 = vmatprep.subr.bf16.mxu0 %v4582
        %5194 = vmatpush1.bf16.msra.mxu0 %v4581
        %5195 = vmatprep.subr.bf16.mxu0 %v4578
        %5196 = vmatpush1.bf16.msra.mxu0 %v4577
        %5197 = vmatprep.subr.bf16.mxu0 %v4574
        %5198 = vmatpush1.bf16.msra.mxu0 %v4573
        %5199 = vmatprep.subr.bf16.mxu0 %v4634
        %5200 = vmatpush2.bf16.msra.mxu0 %v4633
        %5201 = vmatprep.subr.bf16.mxu0 %v4630
        %5202 = vmatpush2.bf16.msra.mxu0 %v4629
        %5203 = vmatprep.subr.bf16.mxu0 %v4626
        %5204 = vmatpush2.bf16.msra.mxu0 %v4625
        %5205 = vmatprep.subr.bf16.mxu0 %v4622
        %5206 = vmatpush2.bf16.msra.mxu0 %v4621
        %5207 = vmatprep.subr.bf16.mxu0 %v4618
        %5208 = vmatpush2.bf16.msra.mxu0 %v4617
        %5209 = vmatprep.subr.bf16.mxu0 %v4614
        %5210 = vmatpush2.bf16.msra.mxu0 %v4613
        %5211 = vmatprep.subr.bf16.mxu0 %v4610
        %5212 = vmatpush2.bf16.msra.mxu0 %v4609
        %5213 = vmatprep.subr.bf16.mxu0 %v4606
        %5214 = vmatpush2.bf16.msra.mxu0 %v4605
        %5215 = vmatprep.mubr.bf16.mxu0 %v3718
        %5216 = vmatmul.mubr.bf16.gmra.mxu0 %v3717
        %v5217 = vpop.f32.mrf.mxu0
        %v5218 = vadd.f32 %v5145, %v5217
        %v5219 = vpop.f32.mrf.mxu0
        %v5220 = vadd.f32 %v5147, %v5219
        %v5221 = vpop.f32.mrf.mxu0
        %v5222 = vadd.f32 %v5149, %v5221
        %v5223 = vpop.f32.mrf.mxu0
        %v5224 = vadd.f32 %v5151, %v5223
        %5225 = vmatprep.mubr.bf16.mxu0 %v3724
        %5226 = vmatmul.mubr.bf16.gmra.mxu0 %v3723
        %v5227 = vpop.f32.mrf.mxu0
        %v5228 = vadd.f32 %v5155, %v5227
        %v5229 = vpop.f32.mrf.mxu0
        %v5230 = vadd.f32 %v5157, %v5229
        %v5231 = vpop.f32.mrf.mxu0
        %v5232 = vadd.f32 %v5159, %v5231
        %v5233 = vpop.f32.mrf.mxu0
        %v5234 = vadd.f32 %v5161, %v5233
        %5235 = vmatprep.mubr.bf16.mxu0 %v3730
        %5236 = vmatmul.mubr.bf16.gmra.mxu0 %v3729
        %v5237 = vpop.f32.mrf.mxu0
        %v5238 = vadd.f32 %v5165, %v5237
        %v5239 = vpop.f32.mrf.mxu0
        %v5240 = vadd.f32 %v5167, %v5239
        %v5241 = vpop.f32.mrf.mxu0
        %v5242 = vadd.f32 %v5169, %v5241
        %v5243 = vpop.f32.mrf.mxu0
        %v5244 = vadd.f32 %v5171, %v5243
        %5245 = vmatprep.mubr.bf16.mxu0 %v3736
        %5246 = vmatmul.mubr.bf16.gmra.mxu0 %v3735
        %v5247 = vpop.f32.mrf.mxu0
        %v5248 = vadd.f32 %v5175, %v5247
        %v5249 = vpop.f32.mrf.mxu0
        %v5250 = vadd.f32 %v5177, %v5249
        %v5251 = vpop.f32.mrf.mxu0
        %v5252 = vadd.f32 %v5179, %v5251
        %v5253 = vpop.f32.mrf.mxu0
        %v5254 = vadd.f32 %v5181, %v5253
        %5255 = vdwg.mxu0
        %5256 = vmatprep.subr.bf16.mxu0 %v4666
        %5257 = vmatpush1.bf16.msra.mxu0 %v4665
        %5258 = vmatprep.subr.bf16.mxu0 %v4662
        %5259 = vmatpush1.bf16.msra.mxu0 %v4661
        %5260 = vmatprep.subr.bf16.mxu0 %v4658
        %5261 = vmatpush1.bf16.msra.mxu0 %v4657
        %5262 = vmatprep.subr.bf16.mxu0 %v4654
        %5263 = vmatpush1.bf16.msra.mxu0 %v4653
        %5264 = vmatprep.subr.bf16.mxu0 %v4650
        %5265 = vmatpush1.bf16.msra.mxu0 %v4649
        %5266 = vmatprep.subr.bf16.mxu0 %v4646
        %5267 = vmatpush1.bf16.msra.mxu0 %v4645
        %5268 = vmatprep.subr.bf16.mxu0 %v4642
        %5269 = vmatpush1.bf16.msra.mxu0 %v4641
        %5270 = vmatprep.subr.bf16.mxu0 %v4638
        %5271 = vmatpush1.bf16.msra.mxu0 %v4637
        %5272 = vmatprep.subr.bf16.mxu0 %v4698
        %5273 = vmatpush2.bf16.msra.mxu0 %v4697
        %5274 = vmatprep.subr.bf16.mxu0 %v4694
        %5275 = vmatpush2.bf16.msra.mxu0 %v4693
        %5276 = vmatprep.subr.bf16.mxu0 %v4690
        %5277 = vmatpush2.bf16.msra.mxu0 %v4689
        %5278 = vmatprep.subr.bf16.mxu0 %v4686
        %5279 = vmatpush2.bf16.msra.mxu0 %v4685
        %5280 = vmatprep.subr.bf16.mxu0 %v4682
        %5281 = vmatpush2.bf16.msra.mxu0 %v4681
        %5282 = vmatprep.subr.bf16.mxu0 %v4678
        %5283 = vmatpush2.bf16.msra.mxu0 %v4677
        %5284 = vmatprep.subr.bf16.mxu0 %v4674
        %5285 = vmatpush2.bf16.msra.mxu0 %v4673
        %5286 = vmatprep.subr.bf16.mxu0 %v4670
        %5287 = vmatpush2.bf16.msra.mxu0 %v4669
        %5288 = vmatprep.mubr.bf16.mxu0 %v3720
        %5289 = vmatmul.mubr.bf16.gmra.mxu0 %v3719
        %v5290 = vpop.f32.mrf.mxu0
        %v5291 = vadd.f32 %v5218, %v5290
        %v5292 = vpop.f32.mrf.mxu0
        %v5293 = vadd.f32 %v5220, %v5292
        %v5294 = vpop.f32.mrf.mxu0
        %v5295 = vadd.f32 %v5222, %v5294
        %v5296 = vpop.f32.mrf.mxu0
        %v5297 = vadd.f32 %v5224, %v5296
        %5298 = vmatprep.mubr.bf16.mxu0 %v3726
        %5299 = vmatmul.mubr.bf16.gmra.mxu0 %v3725
        %v5300 = vpop.f32.mrf.mxu0
        %v5301 = vadd.f32 %v5228, %v5300
        %v5302 = vpop.f32.mrf.mxu0
        %v5303 = vadd.f32 %v5230, %v5302
        %v5304 = vpop.f32.mrf.mxu0
        %v5305 = vadd.f32 %v5232, %v5304
        %v5306 = vpop.f32.mrf.mxu0
        %v5307 = vadd.f32 %v5234, %v5306
        %5308 = vmatprep.mubr.bf16.mxu0 %v3732
        %5309 = vmatmul.mubr.bf16.gmra.mxu0 %v3731
        %v5310 = vpop.f32.mrf.mxu0
        %v5311 = vadd.f32 %v5238, %v5310
        %v5312 = vpop.f32.mrf.mxu0
        %v5313 = vadd.f32 %v5240, %v5312
        %v5314 = vpop.f32.mrf.mxu0
        %v5315 = vadd.f32 %v5242, %v5314
        %v5316 = vpop.f32.mrf.mxu0
        %v5317 = vadd.f32 %v5244, %v5316
        %5318 = vmatprep.mubr.bf16.mxu0 %v3738
        %5319 = vmatmul.mubr.bf16.gmra.mxu0 %v3737
        %v5320 = vpop.f32.mrf.mxu0
        %v5321 = vadd.f32 %v5248, %v5320
        %v5322 = vpop.f32.mrf.mxu0
        %v5323 = vadd.f32 %v5250, %v5322
        %v5324 = vpop.f32.mrf.mxu0
        %v5325 = vadd.f32 %v5252, %v5324
        %v5326 = vpop.f32.mrf.mxu0
        %v5327 = vadd.f32 %v5254, %v5326
        %5328 = vdwg.mxu0
        %v5361 = vcombine.low %v5072, %v5074
        %v5362 = vcombine.high %v5072, %v5074
        %v5363 = vcombine.low %v5291, %v5293
        %v5364 = vcombine.high %v5291, %v5293
        %v5366 = vunpack.c.l.s4 1983009808
        %v5367 = vunpack.c.0.s8 %v5366
        %v5368 = vlaneseq
        %v5369 = vshrl.u32 %v5368, 7
        %v5370 = vsub.s32 %v5367, %v5369
        %v5371 = vrot.slane %v5361, %v5370
        %v5373 = vunpack.c.l.s4 1983009808
        %v5374 = vunpack.c.0.s8 %v5373
        %v5375 = vlaneseq
        %v5376 = vshrl.u32 %v5375, 7
        %v5377 = vsub.s32 %v5374, %v5376
        %v5378 = vrot.slane %v5362, %v5377
        %v5380 = vunpack.c.l.s4 1983009808
        %v5381 = vunpack.c.0.s8 %v5380
        %v5382 = vlaneseq
        %v5383 = vshrl.u32 %v5382, 7
        %v5384 = vsub.s32 %v5381, %v5383
        %v5385 = vrot.slane %v5363, %v5384
        %v5387 = vunpack.c.l.s4 1983009808
        %v5388 = vunpack.c.0.s8 %v5387
        %v5389 = vlaneseq
        %v5390 = vshrl.u32 %v5389, 7
        %v5391 = vsub.s32 %v5388, %v5390
        %v5392 = vrot.slane %v5364, %v5391
        %v5393 = vcombine.low %v5371, %v5385
        %v5394 = vcombine.high %v5371, %v5385
        %v5395 = vcombine.low %v5378, %v5392
        %v5396 = vcombine.high %v5378, %v5392
        %v5397 = vcombine.low %v5076, %v5078
        %v5398 = vcombine.high %v5076, %v5078
        %v5399 = vcombine.low %v5295, %v5297
        %v5400 = vcombine.high %v5295, %v5297
        %v5402 = vunpack.c.l.s4 1983009808
        %v5403 = vunpack.c.0.s8 %v5402
        %v5404 = vlaneseq
        %v5405 = vshrl.u32 %v5404, 7
        %v5406 = vsub.s32 %v5403, %v5405
        %v5407 = vrot.slane %v5397, %v5406
        %v5409 = vunpack.c.l.s4 1983009808
        %v5410 = vunpack.c.0.s8 %v5409
        %v5411 = vlaneseq
        %v5412 = vshrl.u32 %v5411, 7
        %v5413 = vsub.s32 %v5410, %v5412
        %v5414 = vrot.slane %v5398, %v5413
        %v5416 = vunpack.c.l.s4 1983009808
        %v5417 = vunpack.c.0.s8 %v5416
        %v5418 = vlaneseq
        %v5419 = vshrl.u32 %v5418, 7
        %v5420 = vsub.s32 %v5417, %v5419
        %v5421 = vrot.slane %v5399, %v5420
        %v5423 = vunpack.c.l.s4 1983009808
        %v5424 = vunpack.c.0.s8 %v5423
        %v5425 = vlaneseq
        %v5426 = vshrl.u32 %v5425, 7
        %v5427 = vsub.s32 %v5424, %v5426
        %v5428 = vrot.slane %v5400, %v5427
        %v5429 = vcombine.low %v5407, %v5421
        %v5430 = vcombine.high %v5407, %v5421
        %v5431 = vcombine.low %v5414, %v5428
        %v5432 = vcombine.high %v5414, %v5428
        %v5433 = vcombine.low %v5082, %v5084
        %v5434 = vcombine.high %v5082, %v5084
        %v5435 = vcombine.low %v5301, %v5303
        %v5436 = vcombine.high %v5301, %v5303
        %v5438 = vunpack.c.l.s4 1983009808
        %v5439 = vunpack.c.0.s8 %v5438
        %v5440 = vlaneseq
        %v5441 = vshrl.u32 %v5440, 7
        %v5442 = vsub.s32 %v5439, %v5441
        %v5443 = vrot.slane %v5433, %v5442
        %v5445 = vunpack.c.l.s4 1983009808
        %v5446 = vunpack.c.0.s8 %v5445
        %v5447 = vlaneseq
        %v5448 = vshrl.u32 %v5447, 7
        %v5449 = vsub.s32 %v5446, %v5448
        %v5450 = vrot.slane %v5434, %v5449
        %v5452 = vunpack.c.l.s4 1983009808
        %v5453 = vunpack.c.0.s8 %v5452
        %v5454 = vlaneseq
        %v5455 = vshrl.u32 %v5454, 7
        %v5456 = vsub.s32 %v5453, %v5455
        %v5457 = vrot.slane %v5435, %v5456
        %v5459 = vunpack.c.l.s4 1983009808
        %v5460 = vunpack.c.0.s8 %v5459
        %v5461 = vlaneseq
        %v5462 = vshrl.u32 %v5461, 7
        %v5463 = vsub.s32 %v5460, %v5462
        %v5464 = vrot.slane %v5436, %v5463
        %v5465 = vcombine.low %v5443, %v5457
        %v5466 = vcombine.high %v5443, %v5457
        %v5467 = vcombine.low %v5450, %v5464
        %v5468 = vcombine.high %v5450, %v5464
        %v5469 = vcombine.low %v5086, %v5088
        %v5470 = vcombine.high %v5086, %v5088
        %v5471 = vcombine.low %v5305, %v5307
        %v5472 = vcombine.high %v5305, %v5307
        %v5474 = vunpack.c.l.s4 1983009808
        %v5475 = vunpack.c.0.s8 %v5474
        %v5476 = vlaneseq
        %v5477 = vshrl.u32 %v5476, 7
        %v5478 = vsub.s32 %v5475, %v5477
        %v5479 = vrot.slane %v5469, %v5478
        %v5481 = vunpack.c.l.s4 1983009808
        %v5482 = vunpack.c.0.s8 %v5481
        %v5483 = vlaneseq
        %v5484 = vshrl.u32 %v5483, 7
        %v5485 = vsub.s32 %v5482, %v5484
        %v5486 = vrot.slane %v5470, %v5485
        %v5488 = vunpack.c.l.s4 1983009808
        %v5489 = vunpack.c.0.s8 %v5488
        %v5490 = vlaneseq
        %v5491 = vshrl.u32 %v5490, 7
        %v5492 = vsub.s32 %v5489, %v5491
        %v5493 = vrot.slane %v5471, %v5492
        %v5495 = vunpack.c.l.s4 1983009808
        %v5496 = vunpack.c.0.s8 %v5495
        %v5497 = vlaneseq
        %v5498 = vshrl.u32 %v5497, 7
        %v5499 = vsub.s32 %v5496, %v5498
        %v5500 = vrot.slane %v5472, %v5499
        %v5501 = vcombine.low %v5479, %v5493
        %v5502 = vcombine.high %v5479, %v5493
        %v5503 = vcombine.low %v5486, %v5500
        %v5504 = vcombine.high %v5486, %v5500
        %v5505 = vcombine.low %v5092, %v5094
        %v5506 = vcombine.high %v5092, %v5094
        %v5507 = vcombine.low %v5311, %v5313
        %v5508 = vcombine.high %v5311, %v5313
        %v5510 = vunpack.c.l.s4 1983009808
        %v5511 = vunpack.c.0.s8 %v5510
        %v5512 = vlaneseq
        %v5513 = vshrl.u32 %v5512, 7
        %v5514 = vsub.s32 %v5511, %v5513
        %v5515 = vrot.slane %v5505, %v5514
        %v5517 = vunpack.c.l.s4 1983009808
        %v5518 = vunpack.c.0.s8 %v5517
        %v5519 = vlaneseq
        %v5520 = vshrl.u32 %v5519, 7
        %v5521 = vsub.s32 %v5518, %v5520
        %v5522 = vrot.slane %v5506, %v5521
        %v5524 = vunpack.c.l.s4 1983009808
        %v5525 = vunpack.c.0.s8 %v5524
        %v5526 = vlaneseq
        %v5527 = vshrl.u32 %v5526, 7
        %v5528 = vsub.s32 %v5525, %v5527
        %v5529 = vrot.slane %v5507, %v5528
        %v5531 = vunpack.c.l.s4 1983009808
        %v5532 = vunpack.c.0.s8 %v5531
        %v5533 = vlaneseq
        %v5534 = vshrl.u32 %v5533, 7
        %v5535 = vsub.s32 %v5532, %v5534
        %v5536 = vrot.slane %v5508, %v5535
        %v5537 = vcombine.low %v5515, %v5529
        %v5538 = vcombine.high %v5515, %v5529
        %v5539 = vcombine.low %v5522, %v5536
        %v5540 = vcombine.high %v5522, %v5536
        %v5541 = vcombine.low %v5096, %v5098
        %v5542 = vcombine.high %v5096, %v5098
        %v5543 = vcombine.low %v5315, %v5317
        %v5544 = vcombine.high %v5315, %v5317
        %v5546 = vunpack.c.l.s4 1983009808
        %v5547 = vunpack.c.0.s8 %v5546
        %v5548 = vlaneseq
        %v5549 = vshrl.u32 %v5548, 7
        %v5550 = vsub.s32 %v5547, %v5549
        %v5551 = vrot.slane %v5541, %v5550
        %v5553 = vunpack.c.l.s4 1983009808
        %v5554 = vunpack.c.0.s8 %v5553
        %v5555 = vlaneseq
        %v5556 = vshrl.u32 %v5555, 7
        %v5557 = vsub.s32 %v5554, %v5556
        %v5558 = vrot.slane %v5542, %v5557
        %v5560 = vunpack.c.l.s4 1983009808
        %v5561 = vunpack.c.0.s8 %v5560
        %v5562 = vlaneseq
        %v5563 = vshrl.u32 %v5562, 7
        %v5564 = vsub.s32 %v5561, %v5563
        %v5565 = vrot.slane %v5543, %v5564
        %v5567 = vunpack.c.l.s4 1983009808
        %v5568 = vunpack.c.0.s8 %v5567
        %v5569 = vlaneseq
        %v5570 = vshrl.u32 %v5569, 7
        %v5571 = vsub.s32 %v5568, %v5570
        %v5572 = vrot.slane %v5544, %v5571
        %v5573 = vcombine.low %v5551, %v5565
        %v5574 = vcombine.high %v5551, %v5565
        %v5575 = vcombine.low %v5558, %v5572
        %v5576 = vcombine.high %v5558, %v5572
        %v5577 = vcombine.low %v5102, %v5104
        %v5578 = vcombine.high %v5102, %v5104
        %v5579 = vcombine.low %v5321, %v5323
        %v5580 = vcombine.high %v5321, %v5323
        %v5582 = vunpack.c.l.s4 1983009808
        %v5583 = vunpack.c.0.s8 %v5582
        %v5584 = vlaneseq
        %v5585 = vshrl.u32 %v5584, 7
        %v5586 = vsub.s32 %v5583, %v5585
        %v5587 = vrot.slane %v5577, %v5586
        %v5589 = vunpack.c.l.s4 1983009808
        %v5590 = vunpack.c.0.s8 %v5589
        %v5591 = vlaneseq
        %v5592 = vshrl.u32 %v5591, 7
        %v5593 = vsub.s32 %v5590, %v5592
        %v5594 = vrot.slane %v5578, %v5593
        %v5596 = vunpack.c.l.s4 1983009808
        %v5597 = vunpack.c.0.s8 %v5596
        %v5598 = vlaneseq
        %v5599 = vshrl.u32 %v5598, 7
        %v5600 = vsub.s32 %v5597, %v5599
        %v5601 = vrot.slane %v5579, %v5600
        %v5603 = vunpack.c.l.s4 1983009808
        %v5604 = vunpack.c.0.s8 %v5603
        %v5605 = vlaneseq
        %v5606 = vshrl.u32 %v5605, 7
        %v5607 = vsub.s32 %v5604, %v5606
        %v5608 = vrot.slane %v5580, %v5607
        %v5609 = vcombine.low %v5587, %v5601
        %v5610 = vcombine.high %v5587, %v5601
        %v5611 = vcombine.low %v5594, %v5608
        %v5612 = vcombine.high %v5594, %v5608
        %v5613 = vcombine.low %v5106, %v5108
        %v5614 = vcombine.high %v5106, %v5108
        %v5615 = vcombine.low %v5325, %v5327
        %v5616 = vcombine.high %v5325, %v5327
        %v5618 = vunpack.c.l.s4 1983009808
        %v5619 = vunpack.c.0.s8 %v5618
        %v5620 = vlaneseq
        %v5621 = vshrl.u32 %v5620, 7
        %v5622 = vsub.s32 %v5619, %v5621
        %v5623 = vrot.slane %v5613, %v5622
        %v5625 = vunpack.c.l.s4 1983009808
        %v5626 = vunpack.c.0.s8 %v5625
        %v5627 = vlaneseq
        %v5628 = vshrl.u32 %v5627, 7
        %v5629 = vsub.s32 %v5626, %v5628
        %v5630 = vrot.slane %v5614, %v5629
        %v5632 = vunpack.c.l.s4 1983009808
        %v5633 = vunpack.c.0.s8 %v5632
        %v5634 = vlaneseq
        %v5635 = vshrl.u32 %v5634, 7
        %v5636 = vsub.s32 %v5633, %v5635
        %v5637 = vrot.slane %v5615, %v5636
        %v5639 = vunpack.c.l.s4 1983009808
        %v5640 = vunpack.c.0.s8 %v5639
        %v5641 = vlaneseq
        %v5642 = vshrl.u32 %v5641, 7
        %v5643 = vsub.s32 %v5640, %v5642
        %v5644 = vrot.slane %v5616, %v5643
        %v5645 = vcombine.low %v5623, %v5637
        %v5646 = vcombine.high %v5623, %v5637
        %v5647 = vcombine.low %v5630, %v5644
        %v5648 = vcombine.high %v5630, %v5644
        %v5681 = vrot.slane %v5393, 7
        %v5682 = vrot.slane %v5681, 2
        %v5683 = vrot.slane %v5394, 7
        %v5684 = vrot.slane %v5683, 2
        %v5685 = vrot.slane %v5395, 7
        %v5686 = vrot.slane %v5685, 2
        %v5687 = vrot.slane %v5396, 7
        %v5688 = vrot.slane %v5687, 2
        %v5689 = vrot.slane %v5429, 7
        %v5690 = vrot.slane %v5689, 2
        %v5691 = vrot.slane %v5430, 7
        %v5692 = vrot.slane %v5691, 2
        %v5693 = vrot.slane %v5431, 7
        %v5694 = vrot.slane %v5693, 2
        %v5695 = vrot.slane %v5432, 7
        %v5696 = vrot.slane %v5695, 2
        %v5697 = vrot.slane %v5465, 7
        %v5698 = vrot.slane %v5697, 2
        %v5699 = vrot.slane %v5466, 7
        %v5700 = vrot.slane %v5699, 2
        %v5701 = vrot.slane %v5467, 7
        %v5702 = vrot.slane %v5701, 2
        %v5703 = vrot.slane %v5468, 7
        %v5704 = vrot.slane %v5703, 2
        %v5705 = vrot.slane %v5501, 7
        %v5706 = vrot.slane %v5705, 2
        %v5707 = vrot.slane %v5502, 7
        %v5708 = vrot.slane %v5707, 2
        %v5709 = vrot.slane %v5503, 7
        %v5710 = vrot.slane %v5709, 2
        %v5711 = vrot.slane %v5504, 7
        %v5712 = vrot.slane %v5711, 2
        %v5713 = vrot.slane %v5537, 7
        %v5714 = vrot.slane %v5713, 2
        %v5715 = vrot.slane %v5538, 7
        %v5716 = vrot.slane %v5715, 2
        %v5717 = vrot.slane %v5539, 7
        %v5718 = vrot.slane %v5717, 2
        %v5719 = vrot.slane %v5540, 7
        %v5720 = vrot.slane %v5719, 2
        %v5721 = vrot.slane %v5573, 7
        %v5722 = vrot.slane %v5721, 2
        %v5723 = vrot.slane %v5574, 7
        %v5724 = vrot.slane %v5723, 2
        %v5725 = vrot.slane %v5575, 7
        %v5726 = vrot.slane %v5725, 2
        %v5727 = vrot.slane %v5576, 7
        %v5728 = vrot.slane %v5727, 2
        %v5729 = vrot.slane %v5609, 7
        %v5730 = vrot.slane %v5729, 2
        %v5731 = vrot.slane %v5610, 7
        %v5732 = vrot.slane %v5731, 2
        %v5733 = vrot.slane %v5611, 7
        %v5734 = vrot.slane %v5733, 2
        %v5735 = vrot.slane %v5612, 7
        %v5736 = vrot.slane %v5735, 2
        %v5737 = vrot.slane %v5645, 7
        %v5738 = vrot.slane %v5737, 2
        %v5739 = vrot.slane %v5646, 7
        %v5740 = vrot.slane %v5739, 2
        %v5741 = vrot.slane %v5647, 7
        %v5742 = vrot.slane %v5741, 2
        %v5743 = vrot.slane %v5648, 7
        %v5744 = vrot.slane %v5743, 2
        %v5777 = vmax.f32 %v5393, %v5682
        %v5778 = vmax.f32 %v5394, %v5684
        %v5779 = vmax.f32 %v5395, %v5686
        %v5780 = vmax.f32 %v5396, %v5688
        %v5781 = vmax.f32 %v5429, %v5690
        %v5782 = vmax.f32 %v5430, %v5692
        %v5783 = vmax.f32 %v5431, %v5694
        %v5784 = vmax.f32 %v5432, %v5696
        %v5785 = vmax.f32 %v5465, %v5698
        %v5786 = vmax.f32 %v5466, %v5700
        %v5787 = vmax.f32 %v5467, %v5702
        %v5788 = vmax.f32 %v5468, %v5704
        %v5789 = vmax.f32 %v5501, %v5706
        %v5790 = vmax.f32 %v5502, %v5708
        %v5791 = vmax.f32 %v5503, %v5710
        %v5792 = vmax.f32 %v5504, %v5712
        %v5793 = vmax.f32 %v5537, %v5714
        %v5794 = vmax.f32 %v5538, %v5716
        %v5795 = vmax.f32 %v5539, %v5718
        %v5796 = vmax.f32 %v5540, %v5720
        %v5797 = vmax.f32 %v5573, %v5722
        %v5798 = vmax.f32 %v5574, %v5724
        %v5799 = vmax.f32 %v5575, %v5726
        %v5800 = vmax.f32 %v5576, %v5728
        %v5801 = vmax.f32 %v5609, %v5730
        %v5802 = vmax.f32 %v5610, %v5732
        %v5803 = vmax.f32 %v5611, %v5734
        %v5804 = vmax.f32 %v5612, %v5736
        %v5805 = vmax.f32 %v5645, %v5738
        %v5806 = vmax.f32 %v5646, %v5740
        %v5807 = vmax.f32 %v5647, %v5742
        %v5808 = vmax.f32 %v5648, %v5744
        %v5841 = vrot.slane %v5777, 4
        %v5842 = vrot.slane %v5778, 4
        %v5843 = vrot.slane %v5779, 4
        %v5844 = vrot.slane %v5780, 4
        %v5845 = vrot.slane %v5781, 4
        %v5846 = vrot.slane %v5782, 4
        %v5847 = vrot.slane %v5783, 4
        %v5848 = vrot.slane %v5784, 4
        %v5849 = vrot.slane %v5785, 4
        %v5850 = vrot.slane %v5786, 4
        %v5851 = vrot.slane %v5787, 4
        %v5852 = vrot.slane %v5788, 4
        %v5853 = vrot.slane %v5789, 4
        %v5854 = vrot.slane %v5790, 4
        %v5855 = vrot.slane %v5791, 4
        %v5856 = vrot.slane %v5792, 4
        %v5857 = vrot.slane %v5793, 4
        %v5858 = vrot.slane %v5794, 4
        %v5859 = vrot.slane %v5795, 4
        %v5860 = vrot.slane %v5796, 4
        %v5861 = vrot.slane %v5797, 4
        %v5862 = vrot.slane %v5798, 4
        %v5863 = vrot.slane %v5799, 4
        %v5864 = vrot.slane %v5800, 4
        %v5865 = vrot.slane %v5801, 4
        %v5866 = vrot.slane %v5802, 4
        %v5867 = vrot.slane %v5803, 4
        %v5868 = vrot.slane %v5804, 4
        %v5869 = vrot.slane %v5805, 4
        %v5870 = vrot.slane %v5806, 4
        %v5871 = vrot.slane %v5807, 4
        %v5872 = vrot.slane %v5808, 4
        %v5905 = vmax.f32 %v5777, %v5841
        %v5906 = vmax.f32 %v5778, %v5842
        %v5907 = vmax.f32 %v5779, %v5843
        %v5908 = vmax.f32 %v5780, %v5844
        %v5909 = vmax.f32 %v5781, %v5845
        %v5910 = vmax.f32 %v5782, %v5846
        %v5911 = vmax.f32 %v5783, %v5847
        %v5912 = vmax.f32 %v5784, %v5848
        %v5913 = vmax.f32 %v5785, %v5849
        %v5914 = vmax.f32 %v5786, %v5850
        %v5915 = vmax.f32 %v5787, %v5851
        %v5916 = vmax.f32 %v5788, %v5852
        %v5917 = vmax.f32 %v5789, %v5853
        %v5918 = vmax.f32 %v5790, %v5854
        %v5919 = vmax.f32 %v5791, %v5855
        %v5920 = vmax.f32 %v5792, %v5856
        %v5921 = vmax.f32 %v5793, %v5857
        %v5922 = vmax.f32 %v5794, %v5858
        %v5923 = vmax.f32 %v5795, %v5859
        %v5924 = vmax.f32 %v5796, %v5860
        %v5925 = vmax.f32 %v5797, %v5861
        %v5926 = vmax.f32 %v5798, %v5862
        %v5927 = vmax.f32 %v5799, %v5863
        %v5928 = vmax.f32 %v5800, %v5864
        %v5929 = vmax.f32 %v5801, %v5865
        %v5930 = vmax.f32 %v5802, %v5866
        %v5931 = vmax.f32 %v5803, %v5867
        %v5932 = vmax.f32 %v5804, %v5868
        %v5933 = vmax.f32 %v5805, %v5869
        %v5934 = vmax.f32 %v5806, %v5870
        %v5935 = vmax.f32 %v5807, %v5871
        %v5936 = vmax.f32 %v5808, %v5872
        %v5937 = vld [vmem:[%s4] sm:$0x3]
        %v5939 = vlaneseq
        %v5940 = vshrl.u32 %v5939, 7
        %v5941 = vsub.s32 0, %v5940
        %v5942 = vrot.slane %v5937, %v5941
        %v5943 = vlaneseq
        %v5944 = vshrl.u32 %v5943, 7
        %v5945 = vsub.s32 1, %v5944
        %v5946 = vrot.slane %v5937, %v5945
        %v5947 = vcombine.low %v5942, %v5946
        %v5948 = vcombine.high %v5942, %v5946
        %v5950 = vunpack.c.l.s4 1983009808
        %v5951 = vunpack.c.0.s8 %v5950
        %v5952 = vlaneseq
        %v5953 = vshrl.u32 %v5952, 7
        %v5954 = vsub.s32 %v5951, %v5953
        %v5955 = vrot.slane %v5947, %v5954
        %v5957 = vunpack.c.l.s4 1983009808
        %v5958 = vunpack.c.0.s8 %v5957
        %v5959 = vlaneseq
        %v5960 = vshrl.u32 %v5959, 7
        %v5961 = vsub.s32 %v5958, %v5960
        %v5962 = vrot.slane %v5948, %v5961
        %v5963 = vcombine.high %v5955, %v5955
        %v5964 = vcombine.high %v5962, %v5962
        %v5965 = vrot.slane %v5955, 1
        %v5966 = vrot.slane %v5963, 1
        %v5967 = vrot.slane %v5962, 1
        %v5968 = vrot.slane %v5964, 1
        %v5977 = vadd.f32 %v5905, %v5955
        %v5978 = vadd.f32 %v5906, %v5965
        %v5979 = vadd.f32 %v5907, %v5963
        %v5980 = vadd.f32 %v5908, %v5966
        %v5981 = vadd.f32 %v5909, %v5962
        %v5982 = vadd.f32 %v5910, %v5967
        %v5983 = vadd.f32 %v5911, %v5964
        %v5984 = vadd.f32 %v5912, %v5968
        %v5985 = vadd.f32 %v5913, %v5955
        %v5986 = vadd.f32 %v5914, %v5965
        %v5987 = vadd.f32 %v5915, %v5963
        %v5988 = vadd.f32 %v5916, %v5966
        %v5989 = vadd.f32 %v5917, %v5962
        %v5990 = vadd.f32 %v5918, %v5967
        %v5991 = vadd.f32 %v5919, %v5964
        %v5992 = vadd.f32 %v5920, %v5968
        %v5993 = vadd.f32 %v5921, %v5955
        %v5994 = vadd.f32 %v5922, %v5965
        %v5995 = vadd.f32 %v5923, %v5963
        %v5996 = vadd.f32 %v5924, %v5966
        %v5997 = vadd.f32 %v5925, %v5962
        %v5998 = vadd.f32 %v5926, %v5967
        %v5999 = vadd.f32 %v5927, %v5964
        %v6000 = vadd.f32 %v5928, %v5968
        %v6001 = vadd.f32 %v5929, %v5955
        %v6002 = vadd.f32 %v5930, %v5965
        %v6003 = vadd.f32 %v5931, %v5963
        %v6004 = vadd.f32 %v5932, %v5966
        %v6005 = vadd.f32 %v5933, %v5962
        %v6006 = vadd.f32 %v5934, %v5967
        %v6007 = vadd.f32 %v5935, %v5964
        %v6008 = vadd.f32 %v5936, %v5968
        %v6009 = vmax.f32 %v5977, 0.0
        %v6010 = vmax.f32 %v5978, 0.0
        %v6011 = vmax.f32 %v5979, 0.0
        %v6012 = vmax.f32 %v5980, 0.0
        %v6013 = vmax.f32 %v5981, 0.0
        %v6014 = vmax.f32 %v5982, 0.0
        %v6015 = vmax.f32 %v5983, 0.0
        %v6016 = vmax.f32 %v5984, 0.0
        %v6017 = vmax.f32 %v5985, 0.0
        %v6018 = vmax.f32 %v5986, 0.0
        %v6019 = vmax.f32 %v5987, 0.0
        %v6020 = vmax.f32 %v5988, 0.0
        %v6021 = vmax.f32 %v5989, 0.0
        %v6022 = vmax.f32 %v5990, 0.0
        %v6023 = vmax.f32 %v5991, 0.0
        %v6024 = vmax.f32 %v5992, 0.0
        %v6025 = vmax.f32 %v5993, 0.0
        %v6026 = vmax.f32 %v5994, 0.0
        %v6027 = vmax.f32 %v5995, 0.0
        %v6028 = vmax.f32 %v5996, 0.0
        %v6029 = vmax.f32 %v5997, 0.0
        %v6030 = vmax.f32 %v5998, 0.0
        %v6031 = vmax.f32 %v5999, 0.0
        %v6032 = vmax.f32 %v6000, 0.0
        %v6033 = vmax.f32 %v6001, 0.0
        %v6034 = vmax.f32 %v6002, 0.0
        %v6035 = vmax.f32 %v6003, 0.0
        %v6036 = vmax.f32 %v6004, 0.0
        %v6037 = vmax.f32 %v6005, 0.0
        %v6038 = vmax.f32 %v6006, 0.0
        %v6039 = vmax.f32 %v6007, 0.0
        %v6040 = vmax.f32 %v6008, 0.0
        %6041 = vst.msk [vmem:[#allocation4] ss:$8 sm:$0x3] %vm2651, 0.0
        %6042 = vst.msk [vmem:[#allocation4] ss:$8 sm:$0x0] %vm2651, 0.0
        %s6043 = scalar_lea.vmem [#allocation4], 16
        %6044 = vst.msk [vmem:[%s6043] ss:$8 sm:$0x3] %vm2651, 0.0
        %6045 = vst.msk [vmem:[%s6043] ss:$8 sm:$0x0] %vm2651, 0.0
        %s6046 = scalar_lea.vmem [#allocation4], 32
        %6047 = vst.msk [vmem:[%s6046] ss:$8 sm:$0x3] %vm2651, 0.0
        %6048 = vst.msk [vmem:[%s6046] ss:$8 sm:$0x0] %vm2651, 0.0
        %s6049 = scalar_lea.vmem [#allocation4], 48
        %6050 = vst.msk [vmem:[%s6049] ss:$8 sm:$0x3] %vm2651, 0.0
        %6051 = vst.msk [vmem:[%s6049] ss:$8 sm:$0x0] %vm2651, 0.0
        %s6052 = scalar_lea.vmem [#allocation4], 64
        %6053 = vst.msk [vmem:[%s6052] ss:$8 sm:$0x3] %vm2651, 0.0
        %6054 = vst.msk [vmem:[%s6052] ss:$8 sm:$0x0] %vm2651, 0.0
        %s6055 = scalar_lea.vmem [#allocation4], 80
        %6056 = vst.msk [vmem:[%s6055] ss:$8 sm:$0x3] %vm2651, 0.0
        %6057 = vst.msk [vmem:[%s6055] ss:$8 sm:$0x0] %vm2651, 0.0
        %s6058 = scalar_lea.vmem [#allocation4], 96
        %6059 = vst.msk [vmem:[%s6058] ss:$8 sm:$0x3] %vm2651, 0.0
        %6060 = vst.msk [vmem:[%s6058] ss:$8 sm:$0x0] %vm2651, 0.0
        %s6061 = scalar_lea.vmem [#allocation4], 112
        %6062 = vst.msk [vmem:[%s6061] ss:$8 sm:$0x3] %vm2651, 0.0
        %6063 = vst.msk [vmem:[%s6061] ss:$8 sm:$0x0] %vm2651, 0.0
        %s6064 = scalar_lea.vmem [#allocation4], 5
        %6065 = vst.msk [vmem:[%s6064] ss:$8 sm:$0x3] %vm2651, 0.0
        %6066 = vst.msk [vmem:[%s6064] ss:$8 sm:$0x0] %vm2651, 0.0
        %s6067 = scalar_lea.vmem [#allocation4], 21
        %6068 = vst.msk [vmem:[%s6067] ss:$8 sm:$0x3] %vm2651, 0.0
        %6069 = vst.msk [vmem:[%s6067] ss:$8 sm:$0x0] %vm2651, 0.0
        %s6070 = scalar_lea.vmem [#allocation4], 37
        %6071 = vst.msk [vmem:[%s6070] ss:$8 sm:$0x3] %vm2651, 0.0
        %6072 = vst.msk [vmem:[%s6070] ss:$8 sm:$0x0] %vm2651, 0.0
        %s6073 = scalar_lea.vmem [#allocation4], 53
        %6074 = vst.msk [vmem:[%s6073] ss:$8 sm:$0x3] %vm2651, 0.0
        %6075 = vst.msk [vmem:[%s6073] ss:$8 sm:$0x0] %vm2651, 0.0
        %s6076 = scalar_lea.vmem [#allocation4], 69
        %6077 = vst.msk [vmem:[%s6076] ss:$8 sm:$0x3] %vm2651, 0.0
        %6078 = vst.msk [vmem:[%s6076] ss:$8 sm:$0x0] %vm2651, 0.0
        %s6079 = scalar_lea.vmem [#allocation4], 85
        %6080 = vst.msk [vmem:[%s6079] ss:$8 sm:$0x3] %vm2651, 0.0
        %6081 = vst.msk [vmem:[%s6079] ss:$8 sm:$0x0] %vm2651, 0.0
        %s6082 = scalar_lea.vmem [#allocation4], 101
        %6083 = vst.msk [vmem:[%s6082] ss:$8 sm:$0x3] %vm2651, 0.0
        %6084 = vst.msk [vmem:[%s6082] ss:$8 sm:$0x0] %vm2651, 0.0
        %s6085 = scalar_lea.vmem [#allocation4], 117
        %6086 = vst.msk [vmem:[%s6085] ss:$8 sm:$0x3] %vm2651, 0.0
        %6087 = vst.msk [vmem:[%s6085] ss:$8 sm:$0x0] %vm2651, 0.0
        %v6120 = vlaneseq
        %v6121 = vshrl.u32 %v6120, 7
        %v6122 = vsub.s32 0, %v6121
        %v6123 = vrot.slane %v6009, %v6122
        %v6124 = vlaneseq
        %v6125 = vshrl.u32 %v6124, 7
        %v6126 = vsub.s32 2, %v6125
        %v6127 = vrot.slane %v6009, %v6126
        %v6128 = vlaneseq
        %v6129 = vshrl.u32 %v6128, 7
        %v6130 = vsub.s32 0, %v6129
        %v6131 = vrot.slane %v6010, %v6130
        %v6132 = vlaneseq
        %v6133 = vshrl.u32 %v6132, 7
        %v6134 = vsub.s32 2, %v6133
        %v6135 = vrot.slane %v6010, %v6134
        %v6136 = vlaneseq
        %v6137 = vshrl.u32 %v6136, 7
        %v6138 = vsub.s32 0, %v6137
        %v6139 = vrot.slane %v6011, %v6138
        %v6140 = vlaneseq
        %v6141 = vshrl.u32 %v6140, 7
        %v6142 = vsub.s32 2, %v6141
        %v6143 = vrot.slane %v6011, %v6142
        %v6144 = vlaneseq
        %v6145 = vshrl.u32 %v6144, 7
        %v6146 = vsub.s32 0, %v6145
        %v6147 = vrot.slane %v6012, %v6146
        %v6148 = vlaneseq
        %v6149 = vshrl.u32 %v6148, 7
        %v6150 = vsub.s32 2, %v6149
        %v6151 = vrot.slane %v6012, %v6150
        %v6152 = vlaneseq
        %v6153 = vshrl.u32 %v6152, 7
        %v6154 = vsub.s32 0, %v6153
        %v6155 = vrot.slane %v6013, %v6154
        %v6156 = vlaneseq
        %v6157 = vshrl.u32 %v6156, 7
        %v6158 = vsub.s32 2, %v6157
        %v6159 = vrot.slane %v6013, %v6158
        %v6160 = vlaneseq
        %v6161 = vshrl.u32 %v6160, 7
        %v6162 = vsub.s32 0, %v6161
        %v6163 = vrot.slane %v6014, %v6162
        %v6164 = vlaneseq
        %v6165 = vshrl.u32 %v6164, 7
        %v6166 = vsub.s32 2, %v6165
        %v6167 = vrot.slane %v6014, %v6166
        %v6168 = vlaneseq
        %v6169 = vshrl.u32 %v6168, 7
        %v6170 = vsub.s32 0, %v6169
        %v6171 = vrot.slane %v6015, %v6170
        %v6172 = vlaneseq
        %v6173 = vshrl.u32 %v6172, 7
        %v6174 = vsub.s32 2, %v6173
        %v6175 = vrot.slane %v6015, %v6174
        %v6176 = vlaneseq
        %v6177 = vshrl.u32 %v6176, 7
        %v6178 = vsub.s32 0, %v6177
        %v6179 = vrot.slane %v6016, %v6178
        %v6180 = vlaneseq
        %v6181 = vshrl.u32 %v6180, 7
        %v6182 = vsub.s32 2, %v6181
        %v6183 = vrot.slane %v6016, %v6182
        %v6184 = vlaneseq
        %v6185 = vshrl.u32 %v6184, 7
        %v6186 = vsub.s32 0, %v6185
        %v6187 = vrot.slane %v6017, %v6186
        %v6188 = vlaneseq
        %v6189 = vshrl.u32 %v6188, 7
        %v6190 = vsub.s32 2, %v6189
        %v6191 = vrot.slane %v6017, %v6190
        %v6192 = vlaneseq
        %v6193 = vshrl.u32 %v6192, 7
        %v6194 = vsub.s32 0, %v6193
        %v6195 = vrot.slane %v6018, %v6194
        %v6196 = vlaneseq
        %v6197 = vshrl.u32 %v6196, 7
        %v6198 = vsub.s32 2, %v6197
        %v6199 = vrot.slane %v6018, %v6198
        %v6200 = vlaneseq
        %v6201 = vshrl.u32 %v6200, 7
        %v6202 = vsub.s32 0, %v6201
        %v6203 = vrot.slane %v6019, %v6202
        %v6204 = vlaneseq
        %v6205 = vshrl.u32 %v6204, 7
        %v6206 = vsub.s32 2, %v6205
        %v6207 = vrot.slane %v6019, %v6206
        %v6208 = vlaneseq
        %v6209 = vshrl.u32 %v6208, 7
        %v6210 = vsub.s32 0, %v6209
        %v6211 = vrot.slane %v6020, %v6210
        %v6212 = vlaneseq
        %v6213 = vshrl.u32 %v6212, 7
        %v6214 = vsub.s32 2, %v6213
        %v6215 = vrot.slane %v6020, %v6214
        %v6216 = vlaneseq
        %v6217 = vshrl.u32 %v6216, 7
        %v6218 = vsub.s32 0, %v6217
        %v6219 = vrot.slane %v6021, %v6218
        %v6220 = vlaneseq
        %v6221 = vshrl.u32 %v6220, 7
        %v6222 = vsub.s32 2, %v6221
        %v6223 = vrot.slane %v6021, %v6222
        %v6224 = vlaneseq
        %v6225 = vshrl.u32 %v6224, 7
        %v6226 = vsub.s32 0, %v6225
        %v6227 = vrot.slane %v6022, %v6226
        %v6228 = vlaneseq
        %v6229 = vshrl.u32 %v6228, 7
        %v6230 = vsub.s32 2, %v6229
        %v6231 = vrot.slane %v6022, %v6230
        %v6232 = vlaneseq
        %v6233 = vshrl.u32 %v6232, 7
        %v6234 = vsub.s32 0, %v6233
        %v6235 = vrot.slane %v6023, %v6234
        %v6236 = vlaneseq
        %v6237 = vshrl.u32 %v6236, 7
        %v6238 = vsub.s32 2, %v6237
        %v6239 = vrot.slane %v6023, %v6238
        %v6240 = vlaneseq
        %v6241 = vshrl.u32 %v6240, 7
        %v6242 = vsub.s32 0, %v6241
        %v6243 = vrot.slane %v6024, %v6242
        %v6244 = vlaneseq
        %v6245 = vshrl.u32 %v6244, 7
        %v6246 = vsub.s32 2, %v6245
        %v6247 = vrot.slane %v6024, %v6246
        %v6248 = vlaneseq
        %v6249 = vshrl.u32 %v6248, 7
        %v6250 = vsub.s32 0, %v6249
        %v6251 = vrot.slane %v6025, %v6250
        %v6252 = vlaneseq
        %v6253 = vshrl.u32 %v6252, 7
        %v6254 = vsub.s32 2, %v6253
        %v6255 = vrot.slane %v6025, %v6254
        %v6256 = vlaneseq
        %v6257 = vshrl.u32 %v6256, 7
        %v6258 = vsub.s32 0, %v6257
        %v6259 = vrot.slane %v6026, %v6258
        %v6260 = vlaneseq
        %v6261 = vshrl.u32 %v6260, 7
        %v6262 = vsub.s32 2, %v6261
        %v6263 = vrot.slane %v6026, %v6262
        %v6264 = vlaneseq
        %v6265 = vshrl.u32 %v6264, 7
        %v6266 = vsub.s32 0, %v6265
        %v6267 = vrot.slane %v6027, %v6266
        %v6268 = vlaneseq
        %v6269 = vshrl.u32 %v6268, 7
        %v6270 = vsub.s32 2, %v6269
        %v6271 = vrot.slane %v6027, %v6270
        %v6272 = vlaneseq
        %v6273 = vshrl.u32 %v6272, 7
        %v6274 = vsub.s32 0, %v6273
        %v6275 = vrot.slane %v6028, %v6274
        %v6276 = vlaneseq
        %v6277 = vshrl.u32 %v6276, 7
        %v6278 = vsub.s32 2, %v6277
        %v6279 = vrot.slane %v6028, %v6278
        %v6280 = vlaneseq
        %v6281 = vshrl.u32 %v6280, 7
        %v6282 = vsub.s32 0, %v6281
        %v6283 = vrot.slane %v6029, %v6282
        %v6284 = vlaneseq
        %v6285 = vshrl.u32 %v6284, 7
        %v6286 = vsub.s32 2, %v6285
        %v6287 = vrot.slane %v6029, %v6286
        %v6288 = vlaneseq
        %v6289 = vshrl.u32 %v6288, 7
        %v6290 = vsub.s32 0, %v6289
        %v6291 = vrot.slane %v6030, %v6290
        %v6292 = vlaneseq
        %v6293 = vshrl.u32 %v6292, 7
        %v6294 = vsub.s32 2, %v6293
        %v6295 = vrot.slane %v6030, %v6294
        %v6296 = vlaneseq
        %v6297 = vshrl.u32 %v6296, 7
        %v6298 = vsub.s32 0, %v6297
        %v6299 = vrot.slane %v6031, %v6298
        %v6300 = vlaneseq
        %v6301 = vshrl.u32 %v6300, 7
        %v6302 = vsub.s32 2, %v6301
        %v6303 = vrot.slane %v6031, %v6302
        %v6304 = vlaneseq
        %v6305 = vshrl.u32 %v6304, 7
        %v6306 = vsub.s32 0, %v6305
        %v6307 = vrot.slane %v6032, %v6306
        %v6308 = vlaneseq
        %v6309 = vshrl.u32 %v6308, 7
        %v6310 = vsub.s32 2, %v6309
        %v6311 = vrot.slane %v6032, %v6310
        %v6312 = vlaneseq
        %v6313 = vshrl.u32 %v6312, 7
        %v6314 = vsub.s32 0, %v6313
        %v6315 = vrot.slane %v6033, %v6314
        %v6316 = vlaneseq
        %v6317 = vshrl.u32 %v6316, 7
        %v6318 = vsub.s32 2, %v6317
        %v6319 = vrot.slane %v6033, %v6318
        %v6320 = vlaneseq
        %v6321 = vshrl.u32 %v6320, 7
        %v6322 = vsub.s32 0, %v6321
        %v6323 = vrot.slane %v6034, %v6322
        %v6324 = vlaneseq
        %v6325 = vshrl.u32 %v6324, 7
        %v6326 = vsub.s32 2, %v6325
        %v6327 = vrot.slane %v6034, %v6326
        %v6328 = vlaneseq
        %v6329 = vshrl.u32 %v6328, 7
        %v6330 = vsub.s32 0, %v6329
        %v6331 = vrot.slane %v6035, %v6330
        %v6332 = vlaneseq
        %v6333 = vshrl.u32 %v6332, 7
        %v6334 = vsub.s32 2, %v6333
        %v6335 = vrot.slane %v6035, %v6334
        %v6336 = vlaneseq
        %v6337 = vshrl.u32 %v6336, 7
        %v6338 = vsub.s32 0, %v6337
        %v6339 = vrot.slane %v6036, %v6338
        %v6340 = vlaneseq
        %v6341 = vshrl.u32 %v6340, 7
        %v6342 = vsub.s32 2, %v6341
        %v6343 = vrot.slane %v6036, %v6342
        %v6344 = vlaneseq
        %v6345 = vshrl.u32 %v6344, 7
        %v6346 = vsub.s32 0, %v6345
        %v6347 = vrot.slane %v6037, %v6346
        %v6348 = vlaneseq
        %v6349 = vshrl.u32 %v6348, 7
        %v6350 = vsub.s32 2, %v6349
        %v6351 = vrot.slane %v6037, %v6350
        %v6352 = vlaneseq
        %v6353 = vshrl.u32 %v6352, 7
        %v6354 = vsub.s32 0, %v6353
        %v6355 = vrot.slane %v6038, %v6354
        %v6356 = vlaneseq
        %v6357 = vshrl.u32 %v6356, 7
        %v6358 = vsub.s32 2, %v6357
        %v6359 = vrot.slane %v6038, %v6358
        %v6360 = vlaneseq
        %v6361 = vshrl.u32 %v6360, 7
        %v6362 = vsub.s32 0, %v6361
        %v6363 = vrot.slane %v6039, %v6362
        %v6364 = vlaneseq
        %v6365 = vshrl.u32 %v6364, 7
        %v6366 = vsub.s32 2, %v6365
        %v6367 = vrot.slane %v6039, %v6366
        %v6368 = vlaneseq
        %v6369 = vshrl.u32 %v6368, 7
        %v6370 = vsub.s32 0, %v6369
        %v6371 = vrot.slane %v6040, %v6370
        %v6372 = vlaneseq
        %v6373 = vshrl.u32 %v6372, 7
        %v6374 = vsub.s32 2, %v6373
        %v6375 = vrot.slane %v6040, %v6374
        %v6376 = vsel %vm3275, %v6131, %v6123
        %v6377 = vsel %vm3277, %v6139, %v6376
        %v6378 = vsel %vm3279, %v6147, %v6377
        %v6379 = vsel %vm3275, %v6135, %v6127
        %v6380 = vsel %vm3277, %v6143, %v6379
        %v6381 = vsel %vm3279, %v6151, %v6380
        %v6382 = vsel %vm3275, %v6163, %v6155
        %v6383 = vsel %vm3277, %v6171, %v6382
        %v6384 = vsel %vm3279, %v6179, %v6383
        %v6385 = vsel %vm3275, %v6167, %v6159
        %v6386 = vsel %vm3277, %v6175, %v6385
        %v6387 = vsel %vm3279, %v6183, %v6386
        %v6388 = vsel %vm3275, %v6195, %v6187
        %v6389 = vsel %vm3277, %v6203, %v6388
        %v6390 = vsel %vm3279, %v6211, %v6389
        %v6391 = vsel %vm3275, %v6199, %v6191
        %v6392 = vsel %vm3277, %v6207, %v6391
        %v6393 = vsel %vm3279, %v6215, %v6392
        %v6394 = vsel %vm3275, %v6227, %v6219
        %v6395 = vsel %vm3277, %v6235, %v6394
        %v6396 = vsel %vm3279, %v6243, %v6395
        %v6397 = vsel %vm3275, %v6231, %v6223
        %v6398 = vsel %vm3277, %v6239, %v6397
        %v6399 = vsel %vm3279, %v6247, %v6398
        %v6400 = vsel %vm3275, %v6259, %v6251
        %v6401 = vsel %vm3277, %v6267, %v6400
        %v6402 = vsel %vm3279, %v6275, %v6401
        %v6403 = vsel %vm3275, %v6263, %v6255
        %v6404 = vsel %vm3277, %v6271, %v6403
        %v6405 = vsel %vm3279, %v6279, %v6404
        %v6406 = vsel %vm3275, %v6291, %v6283
        %v6407 = vsel %vm3277, %v6299, %v6406
        %v6408 = vsel %vm3279, %v6307, %v6407
        %v6409 = vsel %vm3275, %v6295, %v6287
        %v6410 = vsel %vm3277, %v6303, %v6409
        %v6411 = vsel %vm3279, %v6311, %v6410
        %v6412 = vsel %vm3275, %v6323, %v6315
        %v6413 = vsel %vm3277, %v6331, %v6412
        %v6414 = vsel %vm3279, %v6339, %v6413
        %v6415 = vsel %vm3275, %v6327, %v6319
        %v6416 = vsel %vm3277, %v6335, %v6415
        %v6417 = vsel %vm3279, %v6343, %v6416
        %v6418 = vsel %vm3275, %v6355, %v6347
        %v6419 = vsel %vm3277, %v6363, %v6418
        %v6420 = vsel %vm3279, %v6371, %v6419
        %v6421 = vsel %vm3275, %v6359, %v6351
        %v6422 = vsel %vm3277, %v6367, %v6421
        %v6423 = vsel %vm3279, %v6375, %v6422
        %6440 = vst [vmem:[#allocation4] sm:$0x1e] %v6378
        %6441 = vst [vmem:[#allocation4 + $0x8] sm:$0x1e] %v6381
        %6442 = vst [vmem:[#allocation4 + $0x10] sm:$0x1e] %v6384
        %6443 = vst [vmem:[#allocation4 + $0x18] sm:$0x1e] %v6387
        %6444 = vst [vmem:[#allocation4 + $0x20] sm:$0x1e] %v6390
        %6445 = vst [vmem:[#allocation4 + $0x28] sm:$0x1e] %v6393
        %6446 = vst [vmem:[#allocation4 + $0x30] sm:$0x1e] %v6396
        %6447 = vst [vmem:[#allocation4 + $0x38] sm:$0x1e] %v6399
        %6448 = vst [vmem:[#allocation4 + $0x40] sm:$0x1e] %v6402
        %6449 = vst [vmem:[#allocation4 + $0x48] sm:$0x1e] %v6405
        %6450 = vst [vmem:[#allocation4 + $0x50] sm:$0x1e] %v6408
        %6451 = vst [vmem:[#allocation4 + $0x58] sm:$0x1e] %v6411
        %6452 = vst [vmem:[#allocation4 + $0x60] sm:$0x1e] %v6414
        %6453 = vst [vmem:[#allocation4 + $0x68] sm:$0x1e] %v6417
        %6454 = vst [vmem:[#allocation4 + $0x70] sm:$0x1e] %v6420
        %6455 = vst [vmem:[#allocation4 + $0x78] sm:$0x1e] %v6423
        %v6456 = vld [vmem:[#allocation4] sm:$0xf]
        %v6457 = vld [vmem:[#allocation4 + $0x8] sm:$0xf]
        %v6458 = vld [vmem:[#allocation4 + $0x10] sm:$0xf]
        %v6459 = vld [vmem:[#allocation4 + $0x18] sm:$0xf]
        %v6460 = vld [vmem:[#allocation4 + $0x20] sm:$0xf]
        %v6461 = vld [vmem:[#allocation4 + $0x28] sm:$0xf]
        %v6462 = vld [vmem:[#allocation4 + $0x30] sm:$0xf]
        %v6463 = vld [vmem:[#allocation4 + $0x38] sm:$0xf]
        %v6464 = vld [vmem:[#allocation4 + $0x40] sm:$0xf]
        %v6465 = vld [vmem:[#allocation4 + $0x48] sm:$0xf]
        %v6466 = vld [vmem:[#allocation4 + $0x50] sm:$0xf]
        %v6467 = vld [vmem:[#allocation4 + $0x58] sm:$0xf]
        %v6468 = vld [vmem:[#allocation4 + $0x60] sm:$0xf]
        %v6469 = vld [vmem:[#allocation4 + $0x68] sm:$0xf]
        %v6470 = vld [vmem:[#allocation4 + $0x70] sm:$0xf]
        %v6471 = vld [vmem:[#allocation4 + $0x78] sm:$0xf]
        %v6472 = vld [vmem:[#allocation4] sm:$0x1e]
        %v6473 = vld [vmem:[#allocation4 + $0x8] sm:$0x1e]
        %v6474 = vld [vmem:[#allocation4 + $0x10] sm:$0x1e]
        %v6475 = vld [vmem:[#allocation4 + $0x18] sm:$0x1e]
        %v6476 = vld [vmem:[#allocation4 + $0x20] sm:$0x1e]
        %v6477 = vld [vmem:[#allocation4 + $0x28] sm:$0x1e]
        %v6478 = vld [vmem:[#allocation4 + $0x30] sm:$0x1e]
        %v6479 = vld [vmem:[#allocation4 + $0x38] sm:$0x1e]
        %v6480 = vld [vmem:[#allocation4 + $0x40] sm:$0x1e]
        %v6481 = vld [vmem:[#allocation4 + $0x48] sm:$0x1e]
        %v6482 = vld [vmem:[#allocation4 + $0x50] sm:$0x1e]
        %v6483 = vld [vmem:[#allocation4 + $0x58] sm:$0x1e]
        %v6484 = vld [vmem:[#allocation4 + $0x60] sm:$0x1e]
        %v6485 = vld [vmem:[#allocation4 + $0x68] sm:$0x1e]
        %v6486 = vld [vmem:[#allocation4 + $0x70] sm:$0x1e]
        %v6487 = vld [vmem:[#allocation4 + $0x78] sm:$0x1e]
        %v6488 = vld [vmem:[#allocation4] sm:$0x3c]
        %v6489 = vld [vmem:[#allocation4 + $0x8] sm:$0x3c]
        %v6490 = vld [vmem:[#allocation4 + $0x10] sm:$0x3c]
        %v6491 = vld [vmem:[#allocation4 + $0x18] sm:$0x3c]
        %v6492 = vld [vmem:[#allocation4 + $0x20] sm:$0x3c]
        %v6493 = vld [vmem:[#allocation4 + $0x28] sm:$0x3c]
        %v6494 = vld [vmem:[#allocation4 + $0x30] sm:$0x3c]
        %v6495 = vld [vmem:[#allocation4 + $0x38] sm:$0x3c]
        %v6496 = vld [vmem:[#allocation4 + $0x40] sm:$0x3c]
        %v6497 = vld [vmem:[#allocation4 + $0x48] sm:$0x3c]
        %v6498 = vld [vmem:[#allocation4 + $0x50] sm:$0x3c]
        %v6499 = vld [vmem:[#allocation4 + $0x58] sm:$0x3c]
        %v6500 = vld [vmem:[#allocation4 + $0x60] sm:$0x3c]
        %v6501 = vld [vmem:[#allocation4 + $0x68] sm:$0x3c]
        %v6502 = vld [vmem:[#allocation4 + $0x70] sm:$0x3c]
        %v6503 = vld [vmem:[#allocation4 + $0x78] sm:$0x3c]
        %v6520 = vrot.slane %v6472, 1
        %v6521 = vrot.slane %v6473, 1
        %v6522 = vrot.slane %v6474, 1
        %v6523 = vrot.slane %v6475, 1
        %v6524 = vrot.slane %v6476, 1
        %v6525 = vrot.slane %v6477, 1
        %v6526 = vrot.slane %v6478, 1
        %v6527 = vrot.slane %v6479, 1
        %v6528 = vrot.slane %v6480, 1
        %v6529 = vrot.slane %v6481, 1
        %v6530 = vrot.slane %v6482, 1
        %v6531 = vrot.slane %v6483, 1
        %v6532 = vrot.slane %v6484, 1
        %v6533 = vrot.slane %v6485, 1
        %v6534 = vrot.slane %v6486, 1
        %v6535 = vrot.slane %v6487, 1
        %v6552 = vrot.slane %v6488, 2
        %v6553 = vrot.slane %v6489, 2
        %v6554 = vrot.slane %v6490, 2
        %v6555 = vrot.slane %v6491, 2
        %v6556 = vrot.slane %v6492, 2
        %v6557 = vrot.slane %v6493, 2
        %v6558 = vrot.slane %v6494, 2
        %v6559 = vrot.slane %v6495, 2
        %v6560 = vrot.slane %v6496, 2
        %v6561 = vrot.slane %v6497, 2
        %v6562 = vrot.slane %v6498, 2
        %v6563 = vrot.slane %v6499, 2
        %v6564 = vrot.slane %v6500, 2
        %v6565 = vrot.slane %v6501, 2
        %v6566 = vrot.slane %v6502, 2
        %v6567 = vrot.slane %v6503, 2
        %v6584 = vcombine.low %v6456, %v6457
        %v6585 = vcombine.low %v6520, %v6521
        %v6586 = vcombine.low %v6552, %v6553
        %v6587 = vcombine.low %v6458, %v6459
        %v6588 = vcombine.low %v6522, %v6523
        %v6589 = vcombine.low %v6554, %v6555
        %v6590 = vcombine.low %v6460, %v6461
        %v6591 = vcombine.low %v6524, %v6525
        %v6592 = vcombine.low %v6556, %v6557
        %v6593 = vcombine.low %v6462, %v6463
        %v6594 = vcombine.low %v6526, %v6527
        %v6595 = vcombine.low %v6558, %v6559
        %v6596 = vcombine.low %v6464, %v6465
        %v6597 = vcombine.low %v6528, %v6529
        %v6598 = vcombine.low %v6560, %v6561
        %v6599 = vcombine.low %v6466, %v6467
        %v6600 = vcombine.low %v6530, %v6531
        %v6601 = vcombine.low %v6562, %v6563
        %v6602 = vcombine.low %v6468, %v6469
        %v6603 = vcombine.low %v6532, %v6533
        %v6604 = vcombine.low %v6564, %v6565
        %v6605 = vcombine.low %v6470, %v6471
        %v6606 = vcombine.low %v6534, %v6535
        %v6607 = vcombine.low %v6566, %v6567
        %v6608 = vcombine.low %v6584, %v6587
        %v6609 = vcombine.high %v6584, %v6587
        %v6610 = vcombine.low %v6585, %v6588
        %v6611 = vcombine.high %v6585, %v6588
        %v6612 = vcombine.low %v6586, %v6589
        %v6613 = vcombine.high %v6586, %v6589
        %v6614 = vcombine.low %v6590, %v6593
        %v6615 = vcombine.high %v6590, %v6593
        %v6616 = vcombine.low %v6591, %v6594
        %v6617 = vcombine.high %v6591, %v6594
        %v6618 = vcombine.low %v6592, %v6595
        %v6619 = vcombine.high %v6592, %v6595
        %v6620 = vcombine.low %v6596, %v6599
        %v6621 = vcombine.high %v6596, %v6599
        %v6622 = vcombine.low %v6597, %v6600
        %v6623 = vcombine.high %v6597, %v6600
        %v6624 = vcombine.low %v6598, %v6601
        %v6625 = vcombine.high %v6598, %v6601
        %v6626 = vcombine.low %v6602, %v6605
        %v6627 = vcombine.high %v6602, %v6605
        %v6628 = vcombine.low %v6603, %v6606
        %v6629 = vcombine.high %v6603, %v6606
        %v6630 = vcombine.low %v6604, %v6607
        %v6631 = vcombine.high %v6604, %v6607
        %v6656 = vpack.c.bf16 %v6614, %v6608
        %v6657 = vpack.c.bf16 %v6615, %v6609
        %v6658 = vpack.c.bf16 %v6616, %v6610
        %v6659 = vpack.c.bf16 %v6617, %v6611
        %v6660 = vpack.c.bf16 %v6618, %v6612
        %v6661 = vpack.c.bf16 %v6619, %v6613
        %v6662 = vpack.c.bf16 %v6626, %v6620
        %v6663 = vpack.c.bf16 %v6627, %v6621
        %v6664 = vpack.c.bf16 %v6628, %v6622
        %v6665 = vpack.c.bf16 %v6629, %v6623
        %v6666 = vpack.c.bf16 %v6630, %v6624
        %v6667 = vpack.c.bf16 %v6631, %v6625
        %v6668 = vld [vmem:[#allocation10] sm:$0xff]
        %v6669 = vld [vmem:[#allocation10 + $0x8] sm:$0xff]
        %v6670 = vld [vmem:[#allocation10 + $0x10] sm:$0xff]
        %v6671 = vld [vmem:[#allocation10 + $0x18] sm:$0xff]
        %v6672 = vld [vmem:[#allocation10 + $0x20] sm:$0xff]
        %v6673 = vld [vmem:[#allocation10 + $0x28] sm:$0xff]
        %v6674 = vld [vmem:[#allocation10 + $0x30] sm:$0xff]
        %v6675 = vld [vmem:[#allocation10 + $0x38] sm:$0xff]
        %v6676 = vld [vmem:[#allocation10 + $0x40] sm:$0xff]
        %v6677 = vld [vmem:[#allocation10 + $0x48] sm:$0xff]
        %v6678 = vld [vmem:[#allocation10 + $0x50] sm:$0xff]
        %v6679 = vld [vmem:[#allocation10 + $0x58] sm:$0xff]
        %v6680 = vld [vmem:[#allocation10 + $0x60] sm:$0xff]
        %v6681 = vld [vmem:[#allocation10 + $0x68] sm:$0xff]
        %v6682 = vld [vmem:[#allocation10 + $0x70] sm:$0xff]
        %v6683 = vld [vmem:[#allocation10 + $0x78] sm:$0xff]
        %v6684 = vld [vmem:[#allocation10 + $0x80] sm:$0xff]
        %v6685 = vld [vmem:[#allocation10 + $0x88] sm:$0xff]
        %v6686 = vld [vmem:[#allocation10 + $0x90] sm:$0xff]
        %v6687 = vld [vmem:[#allocation10 + $0x98] sm:$0xff]
        %v6688 = vld [vmem:[#allocation10 + $0xa0] sm:$0xff]
        %v6689 = vld [vmem:[#allocation10 + $0xa8] sm:$0xff]
        %v6690 = vld [vmem:[#allocation10 + $0xb0] sm:$0xff]
        %v6691 = vld [vmem:[#allocation10 + $0xb8] sm:$0xff]
        %v6692 = vld [vmem:[#allocation10 + $0xc0] sm:$0xff]
        %v6693 = vld [vmem:[#allocation10 + $0xc8] sm:$0xff]
        %v6694 = vld [vmem:[#allocation10 + $0xd0] sm:$0xff]
        %v6695 = vld [vmem:[#allocation10 + $0xd8] sm:$0xff]
        %v6696 = vld [vmem:[#allocation10 + $0xe0] sm:$0xff]
        %v6697 = vld [vmem:[#allocation10 + $0xe8] sm:$0xff]
        %v6698 = vld [vmem:[#allocation10 + $0xf0] sm:$0xff]
        %v6699 = vld [vmem:[#allocation10 + $0xf8] sm:$0xff]
        %v6700 = vld [vmem:[#allocation10 + $0x100] sm:$0xff]
        %v6701 = vld [vmem:[#allocation10 + $0x108] sm:$0xff]
        %v6702 = vld [vmem:[#allocation10 + $0x110] sm:$0xff]
        %v6703 = vld [vmem:[#allocation10 + $0x118] sm:$0xff]
        %v6704 = vld [vmem:[#allocation10 + $0x120] sm:$0xff]
        %v6705 = vld [vmem:[#allocation10 + $0x128] sm:$0xff]
        %v6706 = vld [vmem:[#allocation10 + $0x130] sm:$0xff]
        %v6707 = vld [vmem:[#allocation10 + $0x138] sm:$0xff]
        %v6708 = vld [vmem:[#allocation10 + $0x140] sm:$0xff]
        %v6709 = vld [vmem:[#allocation10 + $0x148] sm:$0xff]
        %v6710 = vld [vmem:[#allocation10 + $0x150] sm:$0xff]
        %v6711 = vld [vmem:[#allocation10 + $0x158] sm:$0xff]
        %v6712 = vld [vmem:[#allocation10 + $0x160] sm:$0xff]
        %v6713 = vld [vmem:[#allocation10 + $0x168] sm:$0xff]
        %v6714 = vld [vmem:[#allocation10 + $0x170] sm:$0xff]
        %v6715 = vld [vmem:[#allocation10 + $0x178] sm:$0xff]
        %v6716 = vld [vmem:[#allocation10 + $0x180] sm:$0xff]
        %v6717 = vld [vmem:[#allocation10 + $0x188] sm:$0xff]
        %v6718 = vld [vmem:[#allocation10 + $0x190] sm:$0xff]
        %v6719 = vld [vmem:[#allocation10 + $0x198] sm:$0xff]
        %v6720 = vld [vmem:[#allocation10 + $0x1a0] sm:$0xff]
        %v6721 = vld [vmem:[#allocation10 + $0x1a8] sm:$0xff]
        %v6722 = vld [vmem:[#allocation10 + $0x1b0] sm:$0xff]
        %v6723 = vld [vmem:[#allocation10 + $0x1b8] sm:$0xff]
        %v6724 = vld [vmem:[#allocation10 + $0x1c0] sm:$0xff]
        %v6725 = vld [vmem:[#allocation10 + $0x1c8] sm:$0xff]
        %v6726 = vld [vmem:[#allocation10 + $0x1d0] sm:$0xff]
        %v6727 = vld [vmem:[#allocation10 + $0x1d8] sm:$0xff]
        %v6728 = vld [vmem:[#allocation10 + $0x1e0] sm:$0xff]
        %v6729 = vld [vmem:[#allocation10 + $0x1e8] sm:$0xff]
        %v6730 = vld [vmem:[#allocation10 + $0x1f0] sm:$0xff]
        %v6731 = vld [vmem:[#allocation10 + $0x1f8] sm:$0xff]
        %v6732 = vld [vmem:[#allocation10 + $0x200] sm:$0xff]
        %v6733 = vld [vmem:[#allocation10 + $0x208] sm:$0xff]
        %v6734 = vld [vmem:[#allocation10 + $0x210] sm:$0xff]
        %v6735 = vld [vmem:[#allocation10 + $0x218] sm:$0xff]
        %v6736 = vld [vmem:[#allocation10 + $0x220] sm:$0xff]
        %v6737 = vld [vmem:[#allocation10 + $0x228] sm:$0xff]
        %v6738 = vld [vmem:[#allocation10 + $0x230] sm:$0xff]
        %v6739 = vld [vmem:[#allocation10 + $0x238] sm:$0xff]
        %v6740 = vld [vmem:[#allocation10 + $0x240] sm:$0xff]
        %v6741 = vld [vmem:[#allocation10 + $0x248] sm:$0xff]
        %v6742 = vld [vmem:[#allocation10 + $0x250] sm:$0xff]
        %v6743 = vld [vmem:[#allocation10 + $0x258] sm:$0xff]
        %v6744 = vld [vmem:[#allocation10 + $0x260] sm:$0xff]
        %v6745 = vld [vmem:[#allocation10 + $0x268] sm:$0xff]
        %v6746 = vld [vmem:[#allocation10 + $0x270] sm:$0xff]
        %v6747 = vld [vmem:[#allocation10 + $0x278] sm:$0xff]
        %v6748 = vld [vmem:[#allocation10 + $0x280] sm:$0xff]
        %v6749 = vld [vmem:[#allocation10 + $0x288] sm:$0xff]
        %v6750 = vld [vmem:[#allocation10 + $0x290] sm:$0xff]
        %v6751 = vld [vmem:[#allocation10 + $0x298] sm:$0xff]
        %v6752 = vld [vmem:[#allocation10 + $0x2a0] sm:$0xff]
        %v6753 = vld [vmem:[#allocation10 + $0x2a8] sm:$0xff]
        %v6754 = vld [vmem:[#allocation10 + $0x2b0] sm:$0xff]
        %v6755 = vld [vmem:[#allocation10 + $0x2b8] sm:$0xff]
        %v6756 = vld [vmem:[#allocation10 + $0x2c0] sm:$0xff]
        %v6757 = vld [vmem:[#allocation10 + $0x2c8] sm:$0xff]
        %v6758 = vld [vmem:[#allocation10 + $0x2d0] sm:$0xff]
        %v6759 = vld [vmem:[#allocation10 + $0x2d8] sm:$0xff]
        %v6760 = vld [vmem:[#allocation10 + $0x2e0] sm:$0xff]
        %v6761 = vld [vmem:[#allocation10 + $0x2e8] sm:$0xff]
        %v6762 = vld [vmem:[#allocation10 + $0x2f0] sm:$0xff]
        %v6763 = vld [vmem:[#allocation10 + $0x2f8] sm:$0xff]
        %v6764 = vld [vmem:[#allocation10 + $0x300] sm:$0xff]
        %v6765 = vld [vmem:[#allocation10 + $0x308] sm:$0xff]
        %v6766 = vld [vmem:[#allocation10 + $0x310] sm:$0xff]
        %v6767 = vld [vmem:[#allocation10 + $0x318] sm:$0xff]
        %v6768 = vld [vmem:[#allocation10 + $0x320] sm:$0xff]
        %v6769 = vld [vmem:[#allocation10 + $0x328] sm:$0xff]
        %v6770 = vld [vmem:[#allocation10 + $0x330] sm:$0xff]
        %v6771 = vld [vmem:[#allocation10 + $0x338] sm:$0xff]
        %v6772 = vld [vmem:[#allocation10 + $0x340] sm:$0xff]
        %v6773 = vld [vmem:[#allocation10 + $0x348] sm:$0xff]
        %v6774 = vld [vmem:[#allocation10 + $0x350] sm:$0xff]
        %v6775 = vld [vmem:[#allocation10 + $0x358] sm:$0xff]
        %v6776 = vld [vmem:[#allocation10 + $0x360] sm:$0xff]
        %v6777 = vld [vmem:[#allocation10 + $0x368] sm:$0xff]
        %v6778 = vld [vmem:[#allocation10 + $0x370] sm:$0xff]
        %v6779 = vld [vmem:[#allocation10 + $0x378] sm:$0xff]
        %v6780 = vld [vmem:[#allocation10 + $0x380] sm:$0xff]
        %v6781 = vld [vmem:[#allocation10 + $0x388] sm:$0xff]
        %v6782 = vld [vmem:[#allocation10 + $0x390] sm:$0xff]
        %v6783 = vld [vmem:[#allocation10 + $0x398] sm:$0xff]
        %v6784 = vld [vmem:[#allocation10 + $0x3a0] sm:$0xff]
        %v6785 = vld [vmem:[#allocation10 + $0x3a8] sm:$0xff]
        %v6786 = vld [vmem:[#allocation10 + $0x3b0] sm:$0xff]
        %v6787 = vld [vmem:[#allocation10 + $0x3b8] sm:$0xff]
        %v6788 = vld [vmem:[#allocation10 + $0x3c0] sm:$0xff]
        %v6789 = vld [vmem:[#allocation10 + $0x3c8] sm:$0xff]
        %v6790 = vld [vmem:[#allocation10 + $0x3d0] sm:$0xff]
        %v6791 = vld [vmem:[#allocation10 + $0x3d8] sm:$0xff]
        %v6792 = vld [vmem:[#allocation10 + $0x3e0] sm:$0xff]
        %v6793 = vld [vmem:[#allocation10 + $0x3e8] sm:$0xff]
        %v6794 = vld [vmem:[#allocation10 + $0x3f0] sm:$0xff]
        %v6795 = vld [vmem:[#allocation10 + $0x3f8] sm:$0xff]
        %v6796 = vld [vmem:[#allocation10 + $0x400] sm:$0xff]
        %v6797 = vld [vmem:[#allocation10 + $0x408] sm:$0xff]
        %v6798 = vld [vmem:[#allocation10 + $0x410] sm:$0xff]
        %v6799 = vld [vmem:[#allocation10 + $0x418] sm:$0xff]
        %v6800 = vld [vmem:[#allocation10 + $0x420] sm:$0xff]
        %v6801 = vld [vmem:[#allocation10 + $0x428] sm:$0xff]
        %v6802 = vld [vmem:[#allocation10 + $0x430] sm:$0xff]
        %v6803 = vld [vmem:[#allocation10 + $0x438] sm:$0xff]
        %v6804 = vld [vmem:[#allocation10 + $0x440] sm:$0xff]
        %v6805 = vld [vmem:[#allocation10 + $0x448] sm:$0xff]
        %v6806 = vld [vmem:[#allocation10 + $0x450] sm:$0xff]
        %v6807 = vld [vmem:[#allocation10 + $0x458] sm:$0xff]
        %v6808 = vld [vmem:[#allocation10 + $0x460] sm:$0xff]
        %v6809 = vld [vmem:[#allocation10 + $0x468] sm:$0xff]
        %v6810 = vld [vmem:[#allocation10 + $0x470] sm:$0xff]
        %v6811 = vld [vmem:[#allocation10 + $0x478] sm:$0xff]
        %v6812 = vld [vmem:[#allocation10 + $0x480] sm:$0xff]
        %v6813 = vld [vmem:[#allocation10 + $0x488] sm:$0xff]
        %v6814 = vld [vmem:[#allocation10 + $0x490] sm:$0xff]
        %v6815 = vld [vmem:[#allocation10 + $0x498] sm:$0xff]
        %v6816 = vld [vmem:[#allocation10 + $0x4a0] sm:$0xff]
        %v6817 = vld [vmem:[#allocation10 + $0x4a8] sm:$0xff]
        %v6818 = vld [vmem:[#allocation10 + $0x4b0] sm:$0xff]
        %v6819 = vld [vmem:[#allocation10 + $0x4b8] sm:$0xff]
        %v6820 = vld [vmem:[#allocation10 + $0x4c0] sm:$0xff]
        %v6821 = vld [vmem:[#allocation10 + $0x4c8] sm:$0xff]
        %v6822 = vld [vmem:[#allocation10 + $0x4d0] sm:$0xff]
        %v6823 = vld [vmem:[#allocation10 + $0x4d8] sm:$0xff]
        %v6824 = vld [vmem:[#allocation10 + $0x4e0] sm:$0xff]
        %v6825 = vld [vmem:[#allocation10 + $0x4e8] sm:$0xff]
        %v6826 = vld [vmem:[#allocation10 + $0x4f0] sm:$0xff]
        %v6827 = vld [vmem:[#allocation10 + $0x4f8] sm:$0xff]
        %v6828 = vld [vmem:[#allocation10 + $0x500] sm:$0xff]
        %v6829 = vld [vmem:[#allocation10 + $0x508] sm:$0xff]
        %v6830 = vld [vmem:[#allocation10 + $0x510] sm:$0xff]
        %v6831 = vld [vmem:[#allocation10 + $0x518] sm:$0xff]
        %v6832 = vld [vmem:[#allocation10 + $0x520] sm:$0xff]
        %v6833 = vld [vmem:[#allocation10 + $0x528] sm:$0xff]
        %v6834 = vld [vmem:[#allocation10 + $0x530] sm:$0xff]
        %v6835 = vld [vmem:[#allocation10 + $0x538] sm:$0xff]
        %v6836 = vld [vmem:[#allocation10 + $0x540] sm:$0xff]
        %v6837 = vld [vmem:[#allocation10 + $0x548] sm:$0xff]
        %v6838 = vld [vmem:[#allocation10 + $0x550] sm:$0xff]
        %v6839 = vld [vmem:[#allocation10 + $0x558] sm:$0xff]
        %v6840 = vld [vmem:[#allocation10 + $0x560] sm:$0xff]
        %v6841 = vld [vmem:[#allocation10 + $0x568] sm:$0xff]
        %v6842 = vld [vmem:[#allocation10 + $0x570] sm:$0xff]
        %v6843 = vld [vmem:[#allocation10 + $0x578] sm:$0xff]
        %v6844 = vld [vmem:[#allocation10 + $0x580] sm:$0xff]
        %v6845 = vld [vmem:[#allocation10 + $0x588] sm:$0xff]
        %v6846 = vld [vmem:[#allocation10 + $0x590] sm:$0xff]
        %v6847 = vld [vmem:[#allocation10 + $0x598] sm:$0xff]
        %v6848 = vld [vmem:[#allocation10 + $0x5a0] sm:$0xff]
        %v6849 = vld [vmem:[#allocation10 + $0x5a8] sm:$0xff]
        %v6850 = vld [vmem:[#allocation10 + $0x5b0] sm:$0xff]
        %v6851 = vld [vmem:[#allocation10 + $0x5b8] sm:$0xff]
        %v6852 = vld [vmem:[#allocation10 + $0x5c0] sm:$0xff]
        %v6853 = vld [vmem:[#allocation10 + $0x5c8] sm:$0xff]
        %v6854 = vld [vmem:[#allocation10 + $0x5d0] sm:$0xff]
        %v6855 = vld [vmem:[#allocation10 + $0x5d8] sm:$0xff]
        %v6856 = vld [vmem:[#allocation10 + $0x5e0] sm:$0xff]
        %v6857 = vld [vmem:[#allocation10 + $0x5e8] sm:$0xff]
        %v6858 = vld [vmem:[#allocation10 + $0x5f0] sm:$0xff]
        %v6859 = vld [vmem:[#allocation10 + $0x5f8] sm:$0xff]
        %v7052 = vunpack.c.l.b16 %v6668
        %v7053 = vunpack.c.h.b16 %v6668
        %v7054 = vunpack.c.l.b16 %v6669
        %v7055 = vunpack.c.h.b16 %v6669
        %v7056 = vunpack.c.l.b16 %v6670
        %v7057 = vunpack.c.h.b16 %v6670
        %v7058 = vunpack.c.l.b16 %v6671
        %v7059 = vunpack.c.h.b16 %v6671
        %v7060 = vunpack.c.l.b16 %v6672
        %v7061 = vunpack.c.h.b16 %v6672
        %v7062 = vunpack.c.l.b16 %v6673
        %v7063 = vunpack.c.h.b16 %v6673
        %v7064 = vunpack.c.l.b16 %v6674
        %v7065 = vunpack.c.h.b16 %v6674
        %v7066 = vunpack.c.l.b16 %v6675
        %v7067 = vunpack.c.h.b16 %v6675
        %v7068 = vunpack.c.l.b16 %v6676
        %v7069 = vunpack.c.h.b16 %v6676
        %v7070 = vunpack.c.l.b16 %v6677
        %v7071 = vunpack.c.h.b16 %v6677
        %v7072 = vunpack.c.l.b16 %v6678
        %v7073 = vunpack.c.h.b16 %v6678
        %v7074 = vunpack.c.l.b16 %v6679
        %v7075 = vunpack.c.h.b16 %v6679
        %v7076 = vunpack.c.l.b16 %v6680
        %v7077 = vunpack.c.h.b16 %v6680
        %v7078 = vunpack.c.l.b16 %v6681
        %v7079 = vunpack.c.h.b16 %v6681
        %v7080 = vunpack.c.l.b16 %v6682
        %v7081 = vunpack.c.h.b16 %v6682
        %v7082 = vunpack.c.l.b16 %v6683
        %v7083 = vunpack.c.h.b16 %v6683
        %v7084 = vunpack.c.l.b16 %v6684
        %v7085 = vunpack.c.h.b16 %v6684
        %v7086 = vunpack.c.l.b16 %v6685
        %v7087 = vunpack.c.h.b16 %v6685
        %v7088 = vunpack.c.l.b16 %v6686
        %v7089 = vunpack.c.h.b16 %v6686
        %v7090 = vunpack.c.l.b16 %v6687
        %v7091 = vunpack.c.h.b16 %v6687
        %v7092 = vunpack.c.l.b16 %v6688
        %v7093 = vunpack.c.h.b16 %v6688
        %v7094 = vunpack.c.l.b16 %v6689
        %v7095 = vunpack.c.h.b16 %v6689
        %v7096 = vunpack.c.l.b16 %v6690
        %v7097 = vunpack.c.h.b16 %v6690
        %v7098 = vunpack.c.l.b16 %v6691
        %v7099 = vunpack.c.h.b16 %v6691
        %v7100 = vunpack.c.l.b16 %v6692
        %v7101 = vunpack.c.h.b16 %v6692
        %v7102 = vunpack.c.l.b16 %v6693
        %v7103 = vunpack.c.h.b16 %v6693
        %v7104 = vunpack.c.l.b16 %v6694
        %v7105 = vunpack.c.h.b16 %v6694
        %v7106 = vunpack.c.l.b16 %v6695
        %v7107 = vunpack.c.h.b16 %v6695
        %v7108 = vunpack.c.l.b16 %v6696
        %v7109 = vunpack.c.h.b16 %v6696
        %v7110 = vunpack.c.l.b16 %v6697
        %v7111 = vunpack.c.h.b16 %v6697
        %v7112 = vunpack.c.l.b16 %v6698
        %v7113 = vunpack.c.h.b16 %v6698
        %v7114 = vunpack.c.l.b16 %v6699
        %v7115 = vunpack.c.h.b16 %v6699
        %v7116 = vunpack.c.l.b16 %v6700
        %v7117 = vunpack.c.h.b16 %v6700
        %v7118 = vunpack.c.l.b16 %v6701
        %v7119 = vunpack.c.h.b16 %v6701
        %v7120 = vunpack.c.l.b16 %v6702
        %v7121 = vunpack.c.h.b16 %v6702
        %v7122 = vunpack.c.l.b16 %v6703
        %v7123 = vunpack.c.h.b16 %v6703
        %v7124 = vunpack.c.l.b16 %v6704
        %v7125 = vunpack.c.h.b16 %v6704
        %v7126 = vunpack.c.l.b16 %v6705
        %v7127 = vunpack.c.h.b16 %v6705
        %v7128 = vunpack.c.l.b16 %v6706
        %v7129 = vunpack.c.h.b16 %v6706
        %v7130 = vunpack.c.l.b16 %v6707
        %v7131 = vunpack.c.h.b16 %v6707
        %v7132 = vunpack.c.l.b16 %v6708
        %v7133 = vunpack.c.h.b16 %v6708
        %v7134 = vunpack.c.l.b16 %v6709
        %v7135 = vunpack.c.h.b16 %v6709
        %v7136 = vunpack.c.l.b16 %v6710
        %v7137 = vunpack.c.h.b16 %v6710
        %v7138 = vunpack.c.l.b16 %v6711
        %v7139 = vunpack.c.h.b16 %v6711
        %v7140 = vunpack.c.l.b16 %v6712
        %v7141 = vunpack.c.h.b16 %v6712
        %v7142 = vunpack.c.l.b16 %v6713
        %v7143 = vunpack.c.h.b16 %v6713
        %v7144 = vunpack.c.l.b16 %v6714
        %v7145 = vunpack.c.h.b16 %v6714
        %v7146 = vunpack.c.l.b16 %v6715
        %v7147 = vunpack.c.h.b16 %v6715
        %v7148 = vunpack.c.l.b16 %v6716
        %v7149 = vunpack.c.h.b16 %v6716
        %v7150 = vunpack.c.l.b16 %v6717
        %v7151 = vunpack.c.h.b16 %v6717
        %v7152 = vunpack.c.l.b16 %v6718
        %v7153 = vunpack.c.h.b16 %v6718
        %v7154 = vunpack.c.l.b16 %v6719
        %v7155 = vunpack.c.h.b16 %v6719
        %v7156 = vunpack.c.l.b16 %v6720
        %v7157 = vunpack.c.h.b16 %v6720
        %v7158 = vunpack.c.l.b16 %v6721
        %v7159 = vunpack.c.h.b16 %v6721
        %v7160 = vunpack.c.l.b16 %v6722
        %v7161 = vunpack.c.h.b16 %v6722
        %v7162 = vunpack.c.l.b16 %v6723
        %v7163 = vunpack.c.h.b16 %v6723
        %v7164 = vunpack.c.l.b16 %v6724
        %v7165 = vunpack.c.h.b16 %v6724
        %v7166 = vunpack.c.l.b16 %v6725
        %v7167 = vunpack.c.h.b16 %v6725
        %v7168 = vunpack.c.l.b16 %v6726
        %v7169 = vunpack.c.h.b16 %v6726
        %v7170 = vunpack.c.l.b16 %v6727
        %v7171 = vunpack.c.h.b16 %v6727
        %v7172 = vunpack.c.l.b16 %v6728
        %v7173 = vunpack.c.h.b16 %v6728
        %v7174 = vunpack.c.l.b16 %v6729
        %v7175 = vunpack.c.h.b16 %v6729
        %v7176 = vunpack.c.l.b16 %v6730
        %v7177 = vunpack.c.h.b16 %v6730
        %v7178 = vunpack.c.l.b16 %v6731
        %v7179 = vunpack.c.h.b16 %v6731
        %v7180 = vunpack.c.l.b16 %v6732
        %v7181 = vunpack.c.h.b16 %v6732
        %v7182 = vunpack.c.l.b16 %v6733
        %v7183 = vunpack.c.h.b16 %v6733
        %v7184 = vunpack.c.l.b16 %v6734
        %v7185 = vunpack.c.h.b16 %v6734
        %v7186 = vunpack.c.l.b16 %v6735
        %v7187 = vunpack.c.h.b16 %v6735
        %v7188 = vunpack.c.l.b16 %v6736
        %v7189 = vunpack.c.h.b16 %v6736
        %v7190 = vunpack.c.l.b16 %v6737
        %v7191 = vunpack.c.h.b16 %v6737
        %v7192 = vunpack.c.l.b16 %v6738
        %v7193 = vunpack.c.h.b16 %v6738
        %v7194 = vunpack.c.l.b16 %v6739
        %v7195 = vunpack.c.h.b16 %v6739
        %v7196 = vunpack.c.l.b16 %v6740
        %v7197 = vunpack.c.h.b16 %v6740
        %v7198 = vunpack.c.l.b16 %v6741
        %v7199 = vunpack.c.h.b16 %v6741
        %v7200 = vunpack.c.l.b16 %v6742
        %v7201 = vunpack.c.h.b16 %v6742
        %v7202 = vunpack.c.l.b16 %v6743
        %v7203 = vunpack.c.h.b16 %v6743
        %v7204 = vunpack.c.l.b16 %v6744
        %v7205 = vunpack.c.h.b16 %v6744
        %v7206 = vunpack.c.l.b16 %v6745
        %v7207 = vunpack.c.h.b16 %v6745
        %v7208 = vunpack.c.l.b16 %v6746
        %v7209 = vunpack.c.h.b16 %v6746
        %v7210 = vunpack.c.l.b16 %v6747
        %v7211 = vunpack.c.h.b16 %v6747
        %v7212 = vunpack.c.l.b16 %v6748
        %v7213 = vunpack.c.h.b16 %v6748
        %v7214 = vunpack.c.l.b16 %v6749
        %v7215 = vunpack.c.h.b16 %v6749
        %v7216 = vunpack.c.l.b16 %v6750
        %v7217 = vunpack.c.h.b16 %v6750
        %v7218 = vunpack.c.l.b16 %v6751
        %v7219 = vunpack.c.h.b16 %v6751
        %v7220 = vunpack.c.l.b16 %v6752
        %v7221 = vunpack.c.h.b16 %v6752
        %v7222 = vunpack.c.l.b16 %v6753
        %v7223 = vunpack.c.h.b16 %v6753
        %v7224 = vunpack.c.l.b16 %v6754
        %v7225 = vunpack.c.h.b16 %v6754
        %v7226 = vunpack.c.l.b16 %v6755
        %v7227 = vunpack.c.h.b16 %v6755
        %v7228 = vunpack.c.l.b16 %v6756
        %v7229 = vunpack.c.h.b16 %v6756
        %v7230 = vunpack.c.l.b16 %v6757
        %v7231 = vunpack.c.h.b16 %v6757
        %v7232 = vunpack.c.l.b16 %v6758
        %v7233 = vunpack.c.h.b16 %v6758
        %v7234 = vunpack.c.l.b16 %v6759
        %v7235 = vunpack.c.h.b16 %v6759
        %v7236 = vunpack.c.l.b16 %v6760
        %v7237 = vunpack.c.h.b16 %v6760
        %v7238 = vunpack.c.l.b16 %v6761
        %v7239 = vunpack.c.h.b16 %v6761
        %v7240 = vunpack.c.l.b16 %v6762
        %v7241 = vunpack.c.h.b16 %v6762
        %v7242 = vunpack.c.l.b16 %v6763
        %v7243 = vunpack.c.h.b16 %v6763
        %v7244 = vunpack.c.l.b16 %v6764
        %v7245 = vunpack.c.h.b16 %v6764
        %v7246 = vunpack.c.l.b16 %v6765
        %v7247 = vunpack.c.h.b16 %v6765
        %v7248 = vunpack.c.l.b16 %v6766
        %v7249 = vunpack.c.h.b16 %v6766
        %v7250 = vunpack.c.l.b16 %v6767
        %v7251 = vunpack.c.h.b16 %v6767
        %v7252 = vunpack.c.l.b16 %v6768
        %v7253 = vunpack.c.h.b16 %v6768
        %v7254 = vunpack.c.l.b16 %v6769
        %v7255 = vunpack.c.h.b16 %v6769
        %v7256 = vunpack.c.l.b16 %v6770
        %v7257 = vunpack.c.h.b16 %v6770
        %v7258 = vunpack.c.l.b16 %v6771
        %v7259 = vunpack.c.h.b16 %v6771
        %v7260 = vunpack.c.l.b16 %v6772
        %v7261 = vunpack.c.h.b16 %v6772
        %v7262 = vunpack.c.l.b16 %v6773
        %v7263 = vunpack.c.h.b16 %v6773
        %v7264 = vunpack.c.l.b16 %v6774
        %v7265 = vunpack.c.h.b16 %v6774
        %v7266 = vunpack.c.l.b16 %v6775
        %v7267 = vunpack.c.h.b16 %v6775
        %v7268 = vunpack.c.l.b16 %v6776
        %v7269 = vunpack.c.h.b16 %v6776
        %v7270 = vunpack.c.l.b16 %v6777
        %v7271 = vunpack.c.h.b16 %v6777
        %v7272 = vunpack.c.l.b16 %v6778
        %v7273 = vunpack.c.h.b16 %v6778
        %v7274 = vunpack.c.l.b16 %v6779
        %v7275 = vunpack.c.h.b16 %v6779
        %v7276 = vunpack.c.l.b16 %v6780
        %v7277 = vunpack.c.h.b16 %v6780
        %v7278 = vunpack.c.l.b16 %v6781
        %v7279 = vunpack.c.h.b16 %v6781
        %v7280 = vunpack.c.l.b16 %v6782
        %v7281 = vunpack.c.h.b16 %v6782
        %v7282 = vunpack.c.l.b16 %v6783
        %v7283 = vunpack.c.h.b16 %v6783
        %v7284 = vunpack.c.l.b16 %v6784
        %v7285 = vunpack.c.h.b16 %v6784
        %v7286 = vunpack.c.l.b16 %v6785
        %v7287 = vunpack.c.h.b16 %v6785
        %v7288 = vunpack.c.l.b16 %v6786
        %v7289 = vunpack.c.h.b16 %v6786
        %v7290 = vunpack.c.l.b16 %v6787
        %v7291 = vunpack.c.h.b16 %v6787
        %v7292 = vunpack.c.l.b16 %v6788
        %v7293 = vunpack.c.h.b16 %v6788
        %v7294 = vunpack.c.l.b16 %v6789
        %v7295 = vunpack.c.h.b16 %v6789
        %v7296 = vunpack.c.l.b16 %v6790
        %v7297 = vunpack.c.h.b16 %v6790
        %v7298 = vunpack.c.l.b16 %v6791
        %v7299 = vunpack.c.h.b16 %v6791
        %v7300 = vunpack.c.l.b16 %v6792
        %v7301 = vunpack.c.h.b16 %v6792
        %v7302 = vunpack.c.l.b16 %v6793
        %v7303 = vunpack.c.h.b16 %v6793
        %v7304 = vunpack.c.l.b16 %v6794
        %v7305 = vunpack.c.h.b16 %v6794
        %v7306 = vunpack.c.l.b16 %v6795
        %v7307 = vunpack.c.h.b16 %v6795
        %v7308 = vunpack.c.l.b16 %v6796
        %v7309 = vunpack.c.h.b16 %v6796
        %v7310 = vunpack.c.l.b16 %v6797
        %v7311 = vunpack.c.h.b16 %v6797
        %v7312 = vunpack.c.l.b16 %v6798
        %v7313 = vunpack.c.h.b16 %v6798
        %v7314 = vunpack.c.l.b16 %v6799
        %v7315 = vunpack.c.h.b16 %v6799
        %v7316 = vunpack.c.l.b16 %v6800
        %v7317 = vunpack.c.h.b16 %v6800
        %v7318 = vunpack.c.l.b16 %v6801
        %v7319 = vunpack.c.h.b16 %v6801
        %v7320 = vunpack.c.l.b16 %v6802
        %v7321 = vunpack.c.h.b16 %v6802
        %v7322 = vunpack.c.l.b16 %v6803
        %v7323 = vunpack.c.h.b16 %v6803
        %v7324 = vunpack.c.l.b16 %v6804
        %v7325 = vunpack.c.h.b16 %v6804
        %v7326 = vunpack.c.l.b16 %v6805
        %v7327 = vunpack.c.h.b16 %v6805
        %v7328 = vunpack.c.l.b16 %v6806
        %v7329 = vunpack.c.h.b16 %v6806
        %v7330 = vunpack.c.l.b16 %v6807
        %v7331 = vunpack.c.h.b16 %v6807
        %v7332 = vunpack.c.l.b16 %v6808
        %v7333 = vunpack.c.h.b16 %v6808
        %v7334 = vunpack.c.l.b16 %v6809
        %v7335 = vunpack.c.h.b16 %v6809
        %v7336 = vunpack.c.l.b16 %v6810
        %v7337 = vunpack.c.h.b16 %v6810
        %v7338 = vunpack.c.l.b16 %v6811
        %v7339 = vunpack.c.h.b16 %v6811
        %v7340 = vunpack.c.l.b16 %v6812
        %v7341 = vunpack.c.h.b16 %v6812
        %v7342 = vunpack.c.l.b16 %v6813
        %v7343 = vunpack.c.h.b16 %v6813
        %v7344 = vunpack.c.l.b16 %v6814
        %v7345 = vunpack.c.h.b16 %v6814
        %v7346 = vunpack.c.l.b16 %v6815
        %v7347 = vunpack.c.h.b16 %v6815
        %v7348 = vunpack.c.l.b16 %v6816
        %v7349 = vunpack.c.h.b16 %v6816
        %v7350 = vunpack.c.l.b16 %v6817
        %v7351 = vunpack.c.h.b16 %v6817
        %v7352 = vunpack.c.l.b16 %v6818
        %v7353 = vunpack.c.h.b16 %v6818
        %v7354 = vunpack.c.l.b16 %v6819
        %v7355 = vunpack.c.h.b16 %v6819
        %v7356 = vunpack.c.l.b16 %v6820
        %v7357 = vunpack.c.h.b16 %v6820
        %v7358 = vunpack.c.l.b16 %v6821
        %v7359 = vunpack.c.h.b16 %v6821
        %v7360 = vunpack.c.l.b16 %v6822
        %v7361 = vunpack.c.h.b16 %v6822
        %v7362 = vunpack.c.l.b16 %v6823
        %v7363 = vunpack.c.h.b16 %v6823
        %v7364 = vunpack.c.l.b16 %v6824
        %v7365 = vunpack.c.h.b16 %v6824
        %v7366 = vunpack.c.l.b16 %v6825
        %v7367 = vunpack.c.h.b16 %v6825
        %v7368 = vunpack.c.l.b16 %v6826
        %v7369 = vunpack.c.h.b16 %v6826
        %v7370 = vunpack.c.l.b16 %v6827
        %v7371 = vunpack.c.h.b16 %v6827
        %v7372 = vunpack.c.l.b16 %v6828
        %v7373 = vunpack.c.h.b16 %v6828
        %v7374 = vunpack.c.l.b16 %v6829
        %v7375 = vunpack.c.h.b16 %v6829
        %v7376 = vunpack.c.l.b16 %v6830
        %v7377 = vunpack.c.h.b16 %v6830
        %v7378 = vunpack.c.l.b16 %v6831
        %v7379 = vunpack.c.h.b16 %v6831
        %v7380 = vunpack.c.l.b16 %v6832
        %v7381 = vunpack.c.h.b16 %v6832
        %v7382 = vunpack.c.l.b16 %v6833
        %v7383 = vunpack.c.h.b16 %v6833
        %v7384 = vunpack.c.l.b16 %v6834
        %v7385 = vunpack.c.h.b16 %v6834
        %v7386 = vunpack.c.l.b16 %v6835
        %v7387 = vunpack.c.h.b16 %v6835
        %v7388 = vunpack.c.l.b16 %v6836
        %v7389 = vunpack.c.h.b16 %v6836
        %v7390 = vunpack.c.l.b16 %v6837
        %v7391 = vunpack.c.h.b16 %v6837
        %v7392 = vunpack.c.l.b16 %v6838
        %v7393 = vunpack.c.h.b16 %v6838
        %v7394 = vunpack.c.l.b16 %v6839
        %v7395 = vunpack.c.h.b16 %v6839
        %v7396 = vunpack.c.l.b16 %v6840
        %v7397 = vunpack.c.h.b16 %v6840
        %v7398 = vunpack.c.l.b16 %v6841
        %v7399 = vunpack.c.h.b16 %v6841
        %v7400 = vunpack.c.l.b16 %v6842
        %v7401 = vunpack.c.h.b16 %v6842
        %v7402 = vunpack.c.l.b16 %v6843
        %v7403 = vunpack.c.h.b16 %v6843
        %v7404 = vunpack.c.l.b16 %v6844
        %v7405 = vunpack.c.h.b16 %v6844
        %v7406 = vunpack.c.l.b16 %v6845
        %v7407 = vunpack.c.h.b16 %v6845
        %v7408 = vunpack.c.l.b16 %v6846
        %v7409 = vunpack.c.h.b16 %v6846
        %v7410 = vunpack.c.l.b16 %v6847
        %v7411 = vunpack.c.h.b16 %v6847
        %v7412 = vunpack.c.l.b16 %v6848
        %v7413 = vunpack.c.h.b16 %v6848
        %v7414 = vunpack.c.l.b16 %v6849
        %v7415 = vunpack.c.h.b16 %v6849
        %v7416 = vunpack.c.l.b16 %v6850
        %v7417 = vunpack.c.h.b16 %v6850
        %v7418 = vunpack.c.l.b16 %v6851
        %v7419 = vunpack.c.h.b16 %v6851
        %v7420 = vunpack.c.l.b16 %v6852
        %v7421 = vunpack.c.h.b16 %v6852
        %v7422 = vunpack.c.l.b16 %v6853
        %v7423 = vunpack.c.h.b16 %v6853
        %v7424 = vunpack.c.l.b16 %v6854
        %v7425 = vunpack.c.h.b16 %v6854
        %v7426 = vunpack.c.l.b16 %v6855
        %v7427 = vunpack.c.h.b16 %v6855
        %v7428 = vunpack.c.l.b16 %v6856
        %v7429 = vunpack.c.h.b16 %v6856
        %v7430 = vunpack.c.l.b16 %v6857
        %v7431 = vunpack.c.h.b16 %v6857
        %v7432 = vunpack.c.l.b16 %v6858
        %v7433 = vunpack.c.h.b16 %v6858
        %v7434 = vunpack.c.l.b16 %v6859
        %v7435 = vunpack.c.h.b16 %v6859
        %v7436 = vpack.c.b16 %v7056, %v7052
        %v7437 = vpack.c.b16 %v7057, %v7053
        %v7438 = vpack.c.b16 %v7058, %v7054
        %v7439 = vpack.c.b16 %v7059, %v7055
        %v7440 = vpack.c.b16 %v7064, %v7060
        %v7441 = vpack.c.b16 %v7065, %v7061
        %v7442 = vpack.c.b16 %v7066, %v7062
        %v7443 = vpack.c.b16 %v7067, %v7063
        %v7444 = vpack.c.b16 %v7072, %v7068
        %v7445 = vpack.c.b16 %v7073, %v7069
        %v7446 = vpack.c.b16 %v7074, %v7070
        %v7447 = vpack.c.b16 %v7075, %v7071
        %v7448 = vpack.c.b16 %v7080, %v7076
        %v7449 = vpack.c.b16 %v7081, %v7077
        %v7450 = vpack.c.b16 %v7082, %v7078
        %v7451 = vpack.c.b16 %v7083, %v7079
        %v7452 = vpack.c.b16 %v7088, %v7084
        %v7453 = vpack.c.b16 %v7089, %v7085
        %v7454 = vpack.c.b16 %v7090, %v7086
        %v7455 = vpack.c.b16 %v7091, %v7087
        %v7456 = vpack.c.b16 %v7096, %v7092
        %v7457 = vpack.c.b16 %v7097, %v7093
        %v7458 = vpack.c.b16 %v7098, %v7094
        %v7459 = vpack.c.b16 %v7099, %v7095
        %v7460 = vpack.c.b16 %v7104, %v7100
        %v7461 = vpack.c.b16 %v7105, %v7101
        %v7462 = vpack.c.b16 %v7106, %v7102
        %v7463 = vpack.c.b16 %v7107, %v7103
        %v7464 = vpack.c.b16 %v7112, %v7108
        %v7465 = vpack.c.b16 %v7113, %v7109
        %v7466 = vpack.c.b16 %v7114, %v7110
        %v7467 = vpack.c.b16 %v7115, %v7111
        %v7468 = vpack.c.b16 %v7120, %v7116
        %v7469 = vpack.c.b16 %v7121, %v7117
        %v7470 = vpack.c.b16 %v7122, %v7118
        %v7471 = vpack.c.b16 %v7123, %v7119
        %v7472 = vpack.c.b16 %v7128, %v7124
        %v7473 = vpack.c.b16 %v7129, %v7125
        %v7474 = vpack.c.b16 %v7130, %v7126
        %v7475 = vpack.c.b16 %v7131, %v7127
        %v7476 = vpack.c.b16 %v7136, %v7132
        %v7477 = vpack.c.b16 %v7137, %v7133
        %v7478 = vpack.c.b16 %v7138, %v7134
        %v7479 = vpack.c.b16 %v7139, %v7135
        %v7480 = vpack.c.b16 %v7144, %v7140
        %v7481 = vpack.c.b16 %v7145, %v7141
        %v7482 = vpack.c.b16 %v7146, %v7142
        %v7483 = vpack.c.b16 %v7147, %v7143
        %v7484 = vpack.c.b16 %v7152, %v7148
        %v7485 = vpack.c.b16 %v7153, %v7149
        %v7486 = vpack.c.b16 %v7154, %v7150
        %v7487 = vpack.c.b16 %v7155, %v7151
        %v7488 = vpack.c.b16 %v7160, %v7156
        %v7489 = vpack.c.b16 %v7161, %v7157
        %v7490 = vpack.c.b16 %v7162, %v7158
        %v7491 = vpack.c.b16 %v7163, %v7159
        %v7492 = vpack.c.b16 %v7168, %v7164
        %v7493 = vpack.c.b16 %v7169, %v7165
        %v7494 = vpack.c.b16 %v7170, %v7166
        %v7495 = vpack.c.b16 %v7171, %v7167
        %v7496 = vpack.c.b16 %v7176, %v7172
        %v7497 = vpack.c.b16 %v7177, %v7173
        %v7498 = vpack.c.b16 %v7178, %v7174
        %v7499 = vpack.c.b16 %v7179, %v7175
        %v7500 = vpack.c.b16 %v7184, %v7180
        %v7501 = vpack.c.b16 %v7185, %v7181
        %v7502 = vpack.c.b16 %v7186, %v7182
        %v7503 = vpack.c.b16 %v7187, %v7183
        %v7504 = vpack.c.b16 %v7192, %v7188
        %v7505 = vpack.c.b16 %v7193, %v7189
        %v7506 = vpack.c.b16 %v7194, %v7190
        %v7507 = vpack.c.b16 %v7195, %v7191
        %v7508 = vpack.c.b16 %v7200, %v7196
        %v7509 = vpack.c.b16 %v7201, %v7197
        %v7510 = vpack.c.b16 %v7202, %v7198
        %v7511 = vpack.c.b16 %v7203, %v7199
        %v7512 = vpack.c.b16 %v7208, %v7204
        %v7513 = vpack.c.b16 %v7209, %v7205
        %v7514 = vpack.c.b16 %v7210, %v7206
        %v7515 = vpack.c.b16 %v7211, %v7207
        %v7516 = vpack.c.b16 %v7216, %v7212
        %v7517 = vpack.c.b16 %v7217, %v7213
        %v7518 = vpack.c.b16 %v7218, %v7214
        %v7519 = vpack.c.b16 %v7219, %v7215
        %v7520 = vpack.c.b16 %v7224, %v7220
        %v7521 = vpack.c.b16 %v7225, %v7221
        %v7522 = vpack.c.b16 %v7226, %v7222
        %v7523 = vpack.c.b16 %v7227, %v7223
        %v7524 = vpack.c.b16 %v7232, %v7228
        %v7525 = vpack.c.b16 %v7233, %v7229
        %v7526 = vpack.c.b16 %v7234, %v7230
        %v7527 = vpack.c.b16 %v7235, %v7231
        %v7528 = vpack.c.b16 %v7240, %v7236
        %v7529 = vpack.c.b16 %v7241, %v7237
        %v7530 = vpack.c.b16 %v7242, %v7238
        %v7531 = vpack.c.b16 %v7243, %v7239
        %v7532 = vpack.c.b16 %v7248, %v7244
        %v7533 = vpack.c.b16 %v7249, %v7245
        %v7534 = vpack.c.b16 %v7250, %v7246
        %v7535 = vpack.c.b16 %v7251, %v7247
        %v7536 = vpack.c.b16 %v7256, %v7252
        %v7537 = vpack.c.b16 %v7257, %v7253
        %v7538 = vpack.c.b16 %v7258, %v7254
        %v7539 = vpack.c.b16 %v7259, %v7255
        %v7540 = vpack.c.b16 %v7264, %v7260
        %v7541 = vpack.c.b16 %v7265, %v7261
        %v7542 = vpack.c.b16 %v7266, %v7262
        %v7543 = vpack.c.b16 %v7267, %v7263
        %v7544 = vpack.c.b16 %v7272, %v7268
        %v7545 = vpack.c.b16 %v7273, %v7269
        %v7546 = vpack.c.b16 %v7274, %v7270
        %v7547 = vpack.c.b16 %v7275, %v7271
        %v7548 = vpack.c.b16 %v7280, %v7276
        %v7549 = vpack.c.b16 %v7281, %v7277
        %v7550 = vpack.c.b16 %v7282, %v7278
        %v7551 = vpack.c.b16 %v7283, %v7279
        %v7552 = vpack.c.b16 %v7288, %v7284
        %v7553 = vpack.c.b16 %v7289, %v7285
        %v7554 = vpack.c.b16 %v7290, %v7286
        %v7555 = vpack.c.b16 %v7291, %v7287
        %v7556 = vpack.c.b16 %v7296, %v7292
        %v7557 = vpack.c.b16 %v7297, %v7293
        %v7558 = vpack.c.b16 %v7298, %v7294
        %v7559 = vpack.c.b16 %v7299, %v7295
        %v7560 = vpack.c.b16 %v7304, %v7300
        %v7561 = vpack.c.b16 %v7305, %v7301
        %v7562 = vpack.c.b16 %v7306, %v7302
        %v7563 = vpack.c.b16 %v7307, %v7303
        %v7564 = vpack.c.b16 %v7312, %v7308
        %v7565 = vpack.c.b16 %v7313, %v7309
        %v7566 = vpack.c.b16 %v7314, %v7310
        %v7567 = vpack.c.b16 %v7315, %v7311
        %v7568 = vpack.c.b16 %v7320, %v7316
        %v7569 = vpack.c.b16 %v7321, %v7317
        %v7570 = vpack.c.b16 %v7322, %v7318
        %v7571 = vpack.c.b16 %v7323, %v7319
        %v7572 = vpack.c.b16 %v7328, %v7324
        %v7573 = vpack.c.b16 %v7329, %v7325
        %v7574 = vpack.c.b16 %v7330, %v7326
        %v7575 = vpack.c.b16 %v7331, %v7327
        %v7576 = vpack.c.b16 %v7336, %v7332
        %v7577 = vpack.c.b16 %v7337, %v7333
        %v7578 = vpack.c.b16 %v7338, %v7334
        %v7579 = vpack.c.b16 %v7339, %v7335
        %v7580 = vpack.c.b16 %v7344, %v7340
        %v7581 = vpack.c.b16 %v7345, %v7341
        %v7582 = vpack.c.b16 %v7346, %v7342
        %v7583 = vpack.c.b16 %v7347, %v7343
        %v7584 = vpack.c.b16 %v7352, %v7348
        %v7585 = vpack.c.b16 %v7353, %v7349
        %v7586 = vpack.c.b16 %v7354, %v7350
        %v7587 = vpack.c.b16 %v7355, %v7351
        %v7588 = vpack.c.b16 %v7360, %v7356
        %v7589 = vpack.c.b16 %v7361, %v7357
        %v7590 = vpack.c.b16 %v7362, %v7358
        %v7591 = vpack.c.b16 %v7363, %v7359
        %v7592 = vpack.c.b16 %v7368, %v7364
        %v7593 = vpack.c.b16 %v7369, %v7365
        %v7594 = vpack.c.b16 %v7370, %v7366
        %v7595 = vpack.c.b16 %v7371, %v7367
        %v7596 = vpack.c.b16 %v7376, %v7372
        %v7597 = vpack.c.b16 %v7377, %v7373
        %v7598 = vpack.c.b16 %v7378, %v7374
        %v7599 = vpack.c.b16 %v7379, %v7375
        %v7600 = vpack.c.b16 %v7384, %v7380
        %v7601 = vpack.c.b16 %v7385, %v7381
        %v7602 = vpack.c.b16 %v7386, %v7382
        %v7603 = vpack.c.b16 %v7387, %v7383
        %v7604 = vpack.c.b16 %v7392, %v7388
        %v7605 = vpack.c.b16 %v7393, %v7389
        %v7606 = vpack.c.b16 %v7394, %v7390
        %v7607 = vpack.c.b16 %v7395, %v7391
        %v7608 = vpack.c.b16 %v7400, %v7396
        %v7609 = vpack.c.b16 %v7401, %v7397
        %v7610 = vpack.c.b16 %v7402, %v7398
        %v7611 = vpack.c.b16 %v7403, %v7399
        %v7612 = vpack.c.b16 %v7408, %v7404
        %v7613 = vpack.c.b16 %v7409, %v7405
        %v7614 = vpack.c.b16 %v7410, %v7406
        %v7615 = vpack.c.b16 %v7411, %v7407
        %v7616 = vpack.c.b16 %v7416, %v7412
        %v7617 = vpack.c.b16 %v7417, %v7413
        %v7618 = vpack.c.b16 %v7418, %v7414
        %v7619 = vpack.c.b16 %v7419, %v7415
        %v7620 = vpack.c.b16 %v7424, %v7420
        %v7621 = vpack.c.b16 %v7425, %v7421
        %v7622 = vpack.c.b16 %v7426, %v7422
        %v7623 = vpack.c.b16 %v7427, %v7423
        %v7624 = vpack.c.b16 %v7432, %v7428
        %v7625 = vpack.c.b16 %v7433, %v7429
        %v7626 = vpack.c.b16 %v7434, %v7430
        %v7627 = vpack.c.b16 %v7435, %v7431
        %7820 = vmatprep.subr.bf16.mxu0 %v7465
        %7821 = vmatpush1.bf16.msra.mxu0 %v7464
        %7822 = vmatprep.subr.bf16.mxu0 %v7461
        %7823 = vmatpush1.bf16.msra.mxu0 %v7460
        %7824 = vmatprep.subr.bf16.mxu0 %v7457
        %7825 = vmatpush1.bf16.msra.mxu0 %v7456
        %7826 = vmatprep.subr.bf16.mxu0 %v7453
        %7827 = vmatpush1.bf16.msra.mxu0 %v7452
        %7828 = vmatprep.subr.bf16.mxu0 %v7449
        %7829 = vmatpush1.bf16.msra.mxu0 %v7448
        %7830 = vmatprep.subr.bf16.mxu0 %v7445
        %7831 = vmatpush1.bf16.msra.mxu0 %v7444
        %7832 = vmatprep.subr.bf16.mxu0 %v7441
        %7833 = vmatpush1.bf16.msra.mxu0 %v7440
        %7834 = vmatprep.subr.bf16.mxu0 %v7437
        %7835 = vmatpush1.bf16.msra.mxu0 %v7436
        %7836 = vmatprep.subr.bf16.mxu0 %v7497
        %7837 = vmatpush2.bf16.msra.mxu0 %v7496
        %7838 = vmatprep.subr.bf16.mxu0 %v7493
        %7839 = vmatpush2.bf16.msra.mxu0 %v7492
        %7840 = vmatprep.subr.bf16.mxu0 %v7489
        %7841 = vmatpush2.bf16.msra.mxu0 %v7488
        %7842 = vmatprep.subr.bf16.mxu0 %v7485
        %7843 = vmatpush2.bf16.msra.mxu0 %v7484
        %7844 = vmatprep.subr.bf16.mxu0 %v7481
        %7845 = vmatpush2.bf16.msra.mxu0 %v7480
        %7846 = vmatprep.subr.bf16.mxu0 %v7477
        %7847 = vmatpush2.bf16.msra.mxu0 %v7476
        %7848 = vmatprep.subr.bf16.mxu0 %v7473
        %7849 = vmatpush2.bf16.msra.mxu0 %v7472
        %7850 = vmatprep.subr.bf16.mxu0 %v7469
        %7851 = vmatpush2.bf16.msra.mxu0 %v7468
        %7852 = vmatprep.mubr.bf16.mxu0 %v6657
        %7853 = vmatmul.mubr.bf16.gmra.mxu0 %v6656
        %v7854 = vpop.f32.mrf.mxu0
        %v7855 = vadd.f32 0.0, %v7854
        %v7856 = vpop.f32.mrf.mxu0
        %v7857 = vadd.f32 0.0, %v7856
        %v7858 = vpop.f32.mrf.mxu0
        %v7859 = vadd.f32 0.0, %v7858
        %v7860 = vpop.f32.mrf.mxu0
        %v7861 = vadd.f32 0.0, %v7860
        %7862 = vmatprep.mubr.bf16.mxu0 %v6663
        %7863 = vmatmul.mubr.bf16.gmra.mxu0 %v6662
        %v7864 = vpop.f32.mrf.mxu0
        %v7865 = vadd.f32 0.0, %v7864
        %v7866 = vpop.f32.mrf.mxu0
        %v7867 = vadd.f32 0.0, %v7866
        %v7868 = vpop.f32.mrf.mxu0
        %v7869 = vadd.f32 0.0, %v7868
        %v7870 = vpop.f32.mrf.mxu0
        %v7871 = vadd.f32 0.0, %v7870
        %7872 = vdwg.mxu0
        %7873 = vmatprep.subr.bf16.mxu0 %v7529
        %7874 = vmatpush1.bf16.msra.mxu0 %v7528
        %7875 = vmatprep.subr.bf16.mxu0 %v7525
        %7876 = vmatpush1.bf16.msra.mxu0 %v7524
        %7877 = vmatprep.subr.bf16.mxu0 %v7521
        %7878 = vmatpush1.bf16.msra.mxu0 %v7520
        %7879 = vmatprep.subr.bf16.mxu0 %v7517
        %7880 = vmatpush1.bf16.msra.mxu0 %v7516
        %7881 = vmatprep.subr.bf16.mxu0 %v7513
        %7882 = vmatpush1.bf16.msra.mxu0 %v7512
        %7883 = vmatprep.subr.bf16.mxu0 %v7509
        %7884 = vmatpush1.bf16.msra.mxu0 %v7508
        %7885 = vmatprep.subr.bf16.mxu0 %v7505
        %7886 = vmatpush1.bf16.msra.mxu0 %v7504
        %7887 = vmatprep.subr.bf16.mxu0 %v7501
        %7888 = vmatpush1.bf16.msra.mxu0 %v7500
        %7889 = vmatprep.subr.bf16.mxu0 %v7561
        %7890 = vmatpush2.bf16.msra.mxu0 %v7560
        %7891 = vmatprep.subr.bf16.mxu0 %v7557
        %7892 = vmatpush2.bf16.msra.mxu0 %v7556
        %7893 = vmatprep.subr.bf16.mxu0 %v7553
        %7894 = vmatpush2.bf16.msra.mxu0 %v7552
        %7895 = vmatprep.subr.bf16.mxu0 %v7549
        %7896 = vmatpush2.bf16.msra.mxu0 %v7548
        %7897 = vmatprep.subr.bf16.mxu0 %v7545
        %7898 = vmatpush2.bf16.msra.mxu0 %v7544
        %7899 = vmatprep.subr.bf16.mxu0 %v7541
        %7900 = vmatpush2.bf16.msra.mxu0 %v7540
        %7901 = vmatprep.subr.bf16.mxu0 %v7537
        %7902 = vmatpush2.bf16.msra.mxu0 %v7536
        %7903 = vmatprep.subr.bf16.mxu0 %v7533
        %7904 = vmatpush2.bf16.msra.mxu0 %v7532
        %7905 = vmatprep.mubr.bf16.mxu0 %v6659
        %7906 = vmatmul.mubr.bf16.gmra.mxu0 %v6658
        %v7907 = vpop.f32.mrf.mxu0
        %v7908 = vadd.f32 %v7855, %v7907
        %v7909 = vpop.f32.mrf.mxu0
        %v7910 = vadd.f32 %v7857, %v7909
        %v7911 = vpop.f32.mrf.mxu0
        %v7912 = vadd.f32 %v7859, %v7911
        %v7913 = vpop.f32.mrf.mxu0
        %v7914 = vadd.f32 %v7861, %v7913
        %7915 = vmatprep.mubr.bf16.mxu0 %v6665
        %7916 = vmatmul.mubr.bf16.gmra.mxu0 %v6664
        %v7917 = vpop.f32.mrf.mxu0
        %v7918 = vadd.f32 %v7865, %v7917
        %v7919 = vpop.f32.mrf.mxu0
        %v7920 = vadd.f32 %v7867, %v7919
        %v7921 = vpop.f32.mrf.mxu0
        %v7922 = vadd.f32 %v7869, %v7921
        %v7923 = vpop.f32.mrf.mxu0
        %v7924 = vadd.f32 %v7871, %v7923
        %7925 = vdwg.mxu0
        %7926 = vmatprep.subr.bf16.mxu0 %v7593
        %7927 = vmatpush1.bf16.msra.mxu0 %v7592
        %7928 = vmatprep.subr.bf16.mxu0 %v7589
        %7929 = vmatpush1.bf16.msra.mxu0 %v7588
        %7930 = vmatprep.subr.bf16.mxu0 %v7585
        %7931 = vmatpush1.bf16.msra.mxu0 %v7584
        %7932 = vmatprep.subr.bf16.mxu0 %v7581
        %7933 = vmatpush1.bf16.msra.mxu0 %v7580
        %7934 = vmatprep.subr.bf16.mxu0 %v7577
        %7935 = vmatpush1.bf16.msra.mxu0 %v7576
        %7936 = vmatprep.subr.bf16.mxu0 %v7573
        %7937 = vmatpush1.bf16.msra.mxu0 %v7572
        %7938 = vmatprep.subr.bf16.mxu0 %v7569
        %7939 = vmatpush1.bf16.msra.mxu0 %v7568
        %7940 = vmatprep.subr.bf16.mxu0 %v7565
        %7941 = vmatpush1.bf16.msra.mxu0 %v7564
        %7942 = vmatprep.subr.bf16.mxu0 %v7625
        %7943 = vmatpush2.bf16.msra.mxu0 %v7624
        %7944 = vmatprep.subr.bf16.mxu0 %v7621
        %7945 = vmatpush2.bf16.msra.mxu0 %v7620
        %7946 = vmatprep.subr.bf16.mxu0 %v7617
        %7947 = vmatpush2.bf16.msra.mxu0 %v7616
        %7948 = vmatprep.subr.bf16.mxu0 %v7613
        %7949 = vmatpush2.bf16.msra.mxu0 %v7612
        %7950 = vmatprep.subr.bf16.mxu0 %v7609
        %7951 = vmatpush2.bf16.msra.mxu0 %v7608
        %7952 = vmatprep.subr.bf16.mxu0 %v7605
        %7953 = vmatpush2.bf16.msra.mxu0 %v7604
        %7954 = vmatprep.subr.bf16.mxu0 %v7601
        %7955 = vmatpush2.bf16.msra.mxu0 %v7600
        %7956 = vmatprep.subr.bf16.mxu0 %v7597
        %7957 = vmatpush2.bf16.msra.mxu0 %v7596
        %7958 = vmatprep.mubr.bf16.mxu0 %v6661
        %7959 = vmatmul.mubr.bf16.gmra.mxu0 %v6660
        %v7960 = vpop.f32.mrf.mxu0
        %v7961 = vadd.f32 %v7908, %v7960
        %v7962 = vpop.f32.mrf.mxu0
        %v7963 = vadd.f32 %v7910, %v7962
        %v7964 = vpop.f32.mrf.mxu0
        %v7965 = vadd.f32 %v7912, %v7964
        %v7966 = vpop.f32.mrf.mxu0
        %v7967 = vadd.f32 %v7914, %v7966
        %7968 = vmatprep.mubr.bf16.mxu0 %v6667
        %7969 = vmatmul.mubr.bf16.gmra.mxu0 %v6666
        %v7970 = vpop.f32.mrf.mxu0
        %v7971 = vadd.f32 %v7918, %v7970
        %v7972 = vpop.f32.mrf.mxu0
        %v7973 = vadd.f32 %v7920, %v7972
        %v7974 = vpop.f32.mrf.mxu0
        %v7975 = vadd.f32 %v7922, %v7974
        %v7976 = vpop.f32.mrf.mxu0
        %v7977 = vadd.f32 %v7924, %v7976
        %7978 = vdwg.mxu0
        %7979 = vmatprep.subr.bf16.mxu0 %v7467
        %7980 = vmatpush1.bf16.msra.mxu0 %v7466
        %7981 = vmatprep.subr.bf16.mxu0 %v7463
        %7982 = vmatpush1.bf16.msra.mxu0 %v7462
        %7983 = vmatprep.subr.bf16.mxu0 %v7459
        %7984 = vmatpush1.bf16.msra.mxu0 %v7458
        %7985 = vmatprep.subr.bf16.mxu0 %v7455
        %7986 = vmatpush1.bf16.msra.mxu0 %v7454
        %7987 = vmatprep.subr.bf16.mxu0 %v7451
        %7988 = vmatpush1.bf16.msra.mxu0 %v7450
        %7989 = vmatprep.subr.bf16.mxu0 %v7447
        %7990 = vmatpush1.bf16.msra.mxu0 %v7446
        %7991 = vmatprep.subr.bf16.mxu0 %v7443
        %7992 = vmatpush1.bf16.msra.mxu0 %v7442
        %7993 = vmatprep.subr.bf16.mxu0 %v7439
        %7994 = vmatpush1.bf16.msra.mxu0 %v7438
        %7995 = vmatprep.subr.bf16.mxu0 %v7499
        %7996 = vmatpush2.bf16.msra.mxu0 %v7498
        %7997 = vmatprep.subr.bf16.mxu0 %v7495
        %7998 = vmatpush2.bf16.msra.mxu0 %v7494
        %7999 = vmatprep.subr.bf16.mxu0 %v7491
        %8000 = vmatpush2.bf16.msra.mxu0 %v7490
        %8001 = vmatprep.subr.bf16.mxu0 %v7487
        %8002 = vmatpush2.bf16.msra.mxu0 %v7486
        %8003 = vmatprep.subr.bf16.mxu0 %v7483
        %8004 = vmatpush2.bf16.msra.mxu0 %v7482
        %8005 = vmatprep.subr.bf16.mxu0 %v7479
        %8006 = vmatpush2.bf16.msra.mxu0 %v7478
        %8007 = vmatprep.subr.bf16.mxu0 %v7475
        %8008 = vmatpush2.bf16.msra.mxu0 %v7474
        %8009 = vmatprep.subr.bf16.mxu0 %v7471
        %8010 = vmatpush2.bf16.msra.mxu0 %v7470
        %8011 = vmatprep.mubr.bf16.mxu0 %v6657
        %8012 = vmatmul.mubr.bf16.gmra.mxu0 %v6656
        %v8013 = vpop.f32.mrf.mxu0
        %v8014 = vadd.f32 0.0, %v8013
        %v8015 = vpop.f32.mrf.mxu0
        %v8016 = vadd.f32 0.0, %v8015
        %v8017 = vpop.f32.mrf.mxu0
        %v8018 = vadd.f32 0.0, %v8017
        %v8019 = vpop.f32.mrf.mxu0
        %v8020 = vadd.f32 0.0, %v8019
        %8021 = vmatprep.mubr.bf16.mxu0 %v6663
        %8022 = vmatmul.mubr.bf16.gmra.mxu0 %v6662
        %v8023 = vpop.f32.mrf.mxu0
        %v8024 = vadd.f32 0.0, %v8023
        %v8025 = vpop.f32.mrf.mxu0
        %v8026 = vadd.f32 0.0, %v8025
        %v8027 = vpop.f32.mrf.mxu0
        %v8028 = vadd.f32 0.0, %v8027
        %v8029 = vpop.f32.mrf.mxu0
        %v8030 = vadd.f32 0.0, %v8029
        %8031 = vdwg.mxu0
        %8032 = vmatprep.subr.bf16.mxu0 %v7531
        %8033 = vmatpush1.bf16.msra.mxu0 %v7530
        %8034 = vmatprep.subr.bf16.mxu0 %v7527
        %8035 = vmatpush1.bf16.msra.mxu0 %v7526
        %8036 = vmatprep.subr.bf16.mxu0 %v7523
        %8037 = vmatpush1.bf16.msra.mxu0 %v7522
        %8038 = vmatprep.subr.bf16.mxu0 %v7519
        %8039 = vmatpush1.bf16.msra.mxu0 %v7518
        %8040 = vmatprep.subr.bf16.mxu0 %v7515
        %8041 = vmatpush1.bf16.msra.mxu0 %v7514
        %8042 = vmatprep.subr.bf16.mxu0 %v7511
        %8043 = vmatpush1.bf16.msra.mxu0 %v7510
        %8044 = vmatprep.subr.bf16.mxu0 %v7507
        %8045 = vmatpush1.bf16.msra.mxu0 %v7506
        %8046 = vmatprep.subr.bf16.mxu0 %v7503
        %8047 = vmatpush1.bf16.msra.mxu0 %v7502
        %8048 = vmatprep.subr.bf16.mxu0 %v7563
        %8049 = vmatpush2.bf16.msra.mxu0 %v7562
        %8050 = vmatprep.subr.bf16.mxu0 %v7559
        %8051 = vmatpush2.bf16.msra.mxu0 %v7558
        %8052 = vmatprep.subr.bf16.mxu0 %v7555
        %8053 = vmatpush2.bf16.msra.mxu0 %v7554
        %8054 = vmatprep.subr.bf16.mxu0 %v7551
        %8055 = vmatpush2.bf16.msra.mxu0 %v7550
        %8056 = vmatprep.subr.bf16.mxu0 %v7547
        %8057 = vmatpush2.bf16.msra.mxu0 %v7546
        %8058 = vmatprep.subr.bf16.mxu0 %v7543
        %8059 = vmatpush2.bf16.msra.mxu0 %v7542
        %8060 = vmatprep.subr.bf16.mxu0 %v7539
        %8061 = vmatpush2.bf16.msra.mxu0 %v7538
        %8062 = vmatprep.subr.bf16.mxu0 %v7535
        %8063 = vmatpush2.bf16.msra.mxu0 %v7534
        %8064 = vmatprep.mubr.bf16.mxu0 %v6659
        %8065 = vmatmul.mubr.bf16.gmra.mxu0 %v6658
        %v8066 = vpop.f32.mrf.mxu0
        %v8067 = vadd.f32 %v8014, %v8066
        %v8068 = vpop.f32.mrf.mxu0
        %v8069 = vadd.f32 %v8016, %v8068
        %v8070 = vpop.f32.mrf.mxu0
        %v8071 = vadd.f32 %v8018, %v8070
        %v8072 = vpop.f32.mrf.mxu0
        %v8073 = vadd.f32 %v8020, %v8072
        %8074 = vmatprep.mubr.bf16.mxu0 %v6665
        %8075 = vmatmul.mubr.bf16.gmra.mxu0 %v6664
        %v8076 = vpop.f32.mrf.mxu0
        %v8077 = vadd.f32 %v8024, %v8076
        %v8078 = vpop.f32.mrf.mxu0
        %v8079 = vadd.f32 %v8026, %v8078
        %v8080 = vpop.f32.mrf.mxu0
        %v8081 = vadd.f32 %v8028, %v8080
        %v8082 = vpop.f32.mrf.mxu0
        %v8083 = vadd.f32 %v8030, %v8082
        %8084 = vdwg.mxu0
        %8085 = vmatprep.subr.bf16.mxu0 %v7595
        %8086 = vmatpush1.bf16.msra.mxu0 %v7594
        %8087 = vmatprep.subr.bf16.mxu0 %v7591
        %8088 = vmatpush1.bf16.msra.mxu0 %v7590
        %8089 = vmatprep.subr.bf16.mxu0 %v7587
        %8090 = vmatpush1.bf16.msra.mxu0 %v7586
        %8091 = vmatprep.subr.bf16.mxu0 %v7583
        %8092 = vmatpush1.bf16.msra.mxu0 %v7582
        %8093 = vmatprep.subr.bf16.mxu0 %v7579
        %8094 = vmatpush1.bf16.msra.mxu0 %v7578
        %8095 = vmatprep.subr.bf16.mxu0 %v7575
        %8096 = vmatpush1.bf16.msra.mxu0 %v7574
        %8097 = vmatprep.subr.bf16.mxu0 %v7571
        %8098 = vmatpush1.bf16.msra.mxu0 %v7570
        %8099 = vmatprep.subr.bf16.mxu0 %v7567
        %8100 = vmatpush1.bf16.msra.mxu0 %v7566
        %8101 = vmatprep.subr.bf16.mxu0 %v7627
        %8102 = vmatpush2.bf16.msra.mxu0 %v7626
        %8103 = vmatprep.subr.bf16.mxu0 %v7623
        %8104 = vmatpush2.bf16.msra.mxu0 %v7622
        %8105 = vmatprep.subr.bf16.mxu0 %v7619
        %8106 = vmatpush2.bf16.msra.mxu0 %v7618
        %8107 = vmatprep.subr.bf16.mxu0 %v7615
        %8108 = vmatpush2.bf16.msra.mxu0 %v7614
        %8109 = vmatprep.subr.bf16.mxu0 %v7611
        %8110 = vmatpush2.bf16.msra.mxu0 %v7610
        %8111 = vmatprep.subr.bf16.mxu0 %v7607
        %8112 = vmatpush2.bf16.msra.mxu0 %v7606
        %8113 = vmatprep.subr.bf16.mxu0 %v7603
        %8114 = vmatpush2.bf16.msra.mxu0 %v7602
        %8115 = vmatprep.subr.bf16.mxu0 %v7599
        %8116 = vmatpush2.bf16.msra.mxu0 %v7598
        %8117 = vmatprep.mubr.bf16.mxu0 %v6661
        %8118 = vmatmul.mubr.bf16.gmra.mxu0 %v6660
        %v8119 = vpop.f32.mrf.mxu0
        %v8120 = vadd.f32 %v8067, %v8119
        %v8121 = vpop.f32.mrf.mxu0
        %v8122 = vadd.f32 %v8069, %v8121
        %v8123 = vpop.f32.mrf.mxu0
        %v8124 = vadd.f32 %v8071, %v8123
        %v8125 = vpop.f32.mrf.mxu0
        %v8126 = vadd.f32 %v8073, %v8125
        %8127 = vmatprep.mubr.bf16.mxu0 %v6667
        %8128 = vmatmul.mubr.bf16.gmra.mxu0 %v6666
        %v8129 = vpop.f32.mrf.mxu0
        %v8130 = vadd.f32 %v8077, %v8129
        %v8131 = vpop.f32.mrf.mxu0
        %v8132 = vadd.f32 %v8079, %v8131
        %v8133 = vpop.f32.mrf.mxu0
        %v8134 = vadd.f32 %v8081, %v8133
        %v8135 = vpop.f32.mrf.mxu0
        %v8136 = vadd.f32 %v8083, %v8135
        %8137 = vdwg.mxu0
        %v8154 = vcombine.low %v7961, %v7963
        %v8155 = vcombine.high %v7961, %v7963
        %v8156 = vcombine.low %v8120, %v8122
        %v8157 = vcombine.high %v8120, %v8122
        %v8159 = vunpack.c.l.s4 1983009808
        %v8160 = vunpack.c.0.s8 %v8159
        %v8161 = vlaneseq
        %v8162 = vshrl.u32 %v8161, 7
        %v8163 = vsub.s32 %v8160, %v8162
        %v8164 = vrot.slane %v8154, %v8163
        %v8166 = vunpack.c.l.s4 1983009808
        %v8167 = vunpack.c.0.s8 %v8166
        %v8168 = vlaneseq
        %v8169 = vshrl.u32 %v8168, 7
        %v8170 = vsub.s32 %v8167, %v8169
        %v8171 = vrot.slane %v8155, %v8170
        %v8173 = vunpack.c.l.s4 1983009808
        %v8174 = vunpack.c.0.s8 %v8173
        %v8175 = vlaneseq
        %v8176 = vshrl.u32 %v8175, 7
        %v8177 = vsub.s32 %v8174, %v8176
        %v8178 = vrot.slane %v8156, %v8177
        %v8180 = vunpack.c.l.s4 1983009808
        %v8181 = vunpack.c.0.s8 %v8180
        %v8182 = vlaneseq
        %v8183 = vshrl.u32 %v8182, 7
        %v8184 = vsub.s32 %v8181, %v8183
        %v8185 = vrot.slane %v8157, %v8184
        %v8186 = vcombine.low %v8164, %v8178
        %v8187 = vcombine.high %v8164, %v8178
        %v8188 = vcombine.low %v8171, %v8185
        %v8189 = vcombine.high %v8171, %v8185
        %v8190 = vcombine.low %v7965, %v7967
        %v8191 = vcombine.high %v7965, %v7967
        %v8192 = vcombine.low %v8124, %v8126
        %v8193 = vcombine.high %v8124, %v8126
        %v8195 = vunpack.c.l.s4 1983009808
        %v8196 = vunpack.c.0.s8 %v8195
        %v8197 = vlaneseq
        %v8198 = vshrl.u32 %v8197, 7
        %v8199 = vsub.s32 %v8196, %v8198
        %v8200 = vrot.slane %v8190, %v8199
        %v8202 = vunpack.c.l.s4 1983009808
        %v8203 = vunpack.c.0.s8 %v8202
        %v8204 = vlaneseq
        %v8205 = vshrl.u32 %v8204, 7
        %v8206 = vsub.s32 %v8203, %v8205
        %v8207 = vrot.slane %v8191, %v8206
        %v8209 = vunpack.c.l.s4 1983009808
        %v8210 = vunpack.c.0.s8 %v8209
        %v8211 = vlaneseq
        %v8212 = vshrl.u32 %v8211, 7
        %v8213 = vsub.s32 %v8210, %v8212
        %v8214 = vrot.slane %v8192, %v8213
        %v8216 = vunpack.c.l.s4 1983009808
        %v8217 = vunpack.c.0.s8 %v8216
        %v8218 = vlaneseq
        %v8219 = vshrl.u32 %v8218, 7
        %v8220 = vsub.s32 %v8217, %v8219
        %v8221 = vrot.slane %v8193, %v8220
        %v8222 = vcombine.low %v8200, %v8214
        %v8223 = vcombine.high %v8200, %v8214
        %v8224 = vcombine.low %v8207, %v8221
        %v8225 = vcombine.high %v8207, %v8221
        %v8226 = vcombine.low %v7971, %v7973
        %v8227 = vcombine.high %v7971, %v7973
        %v8228 = vcombine.low %v8130, %v8132
        %v8229 = vcombine.high %v8130, %v8132
        %v8231 = vunpack.c.l.s4 1983009808
        %v8232 = vunpack.c.0.s8 %v8231
        %v8233 = vlaneseq
        %v8234 = vshrl.u32 %v8233, 7
        %v8235 = vsub.s32 %v8232, %v8234
        %v8236 = vrot.slane %v8226, %v8235
        %v8238 = vunpack.c.l.s4 1983009808
        %v8239 = vunpack.c.0.s8 %v8238
        %v8240 = vlaneseq
        %v8241 = vshrl.u32 %v8240, 7
        %v8242 = vsub.s32 %v8239, %v8241
        %v8243 = vrot.slane %v8227, %v8242
        %v8245 = vunpack.c.l.s4 1983009808
        %v8246 = vunpack.c.0.s8 %v8245
        %v8247 = vlaneseq
        %v8248 = vshrl.u32 %v8247, 7
        %v8249 = vsub.s32 %v8246, %v8248
        %v8250 = vrot.slane %v8228, %v8249
        %v8252 = vunpack.c.l.s4 1983009808
        %v8253 = vunpack.c.0.s8 %v8252
        %v8254 = vlaneseq
        %v8255 = vshrl.u32 %v8254, 7
        %v8256 = vsub.s32 %v8253, %v8255
        %v8257 = vrot.slane %v8229, %v8256
        %v8258 = vcombine.low %v8236, %v8250
        %v8259 = vcombine.high %v8236, %v8250
        %v8260 = vcombine.low %v8243, %v8257
        %v8261 = vcombine.high %v8243, %v8257
        %v8262 = vcombine.low %v7975, %v7977
        %v8263 = vcombine.high %v7975, %v7977
        %v8264 = vcombine.low %v8134, %v8136
        %v8265 = vcombine.high %v8134, %v8136
        %v8267 = vunpack.c.l.s4 1983009808
        %v8268 = vunpack.c.0.s8 %v8267
        %v8269 = vlaneseq
        %v8270 = vshrl.u32 %v8269, 7
        %v8271 = vsub.s32 %v8268, %v8270
        %v8272 = vrot.slane %v8262, %v8271
        %v8274 = vunpack.c.l.s4 1983009808
        %v8275 = vunpack.c.0.s8 %v8274
        %v8276 = vlaneseq
        %v8277 = vshrl.u32 %v8276, 7
        %v8278 = vsub.s32 %v8275, %v8277
        %v8279 = vrot.slane %v8263, %v8278
        %v8281 = vunpack.c.l.s4 1983009808
        %v8282 = vunpack.c.0.s8 %v8281
        %v8283 = vlaneseq
        %v8284 = vshrl.u32 %v8283, 7
        %v8285 = vsub.s32 %v8282, %v8284
        %v8286 = vrot.slane %v8264, %v8285
        %v8288 = vunpack.c.l.s4 1983009808
        %v8289 = vunpack.c.0.s8 %v8288
        %v8290 = vlaneseq
        %v8291 = vshrl.u32 %v8290, 7
        %v8292 = vsub.s32 %v8289, %v8291
        %v8293 = vrot.slane %v8265, %v8292
        %v8294 = vcombine.low %v8272, %v8286
        %v8295 = vcombine.high %v8272, %v8286
        %v8296 = vcombine.low %v8279, %v8293
        %v8297 = vcombine.high %v8279, %v8293
        %v8314 = vrot.slane %v8186, 7
        %v8315 = vrot.slane %v8314, 2
        %v8316 = vrot.slane %v8187, 7
        %v8317 = vrot.slane %v8316, 2
        %v8318 = vrot.slane %v8188, 7
        %v8319 = vrot.slane %v8318, 2
        %v8320 = vrot.slane %v8189, 7
        %v8321 = vrot.slane %v8320, 2
        %v8322 = vrot.slane %v8222, 7
        %v8323 = vrot.slane %v8322, 2
        %v8324 = vrot.slane %v8223, 7
        %v8325 = vrot.slane %v8324, 2
        %v8326 = vrot.slane %v8224, 7
        %v8327 = vrot.slane %v8326, 2
        %v8328 = vrot.slane %v8225, 7
        %v8329 = vrot.slane %v8328, 2
        %v8330 = vrot.slane %v8258, 7
        %v8331 = vrot.slane %v8330, 2
        %v8332 = vrot.slane %v8259, 7
        %v8333 = vrot.slane %v8332, 2
        %v8334 = vrot.slane %v8260, 7
        %v8335 = vrot.slane %v8334, 2
        %v8336 = vrot.slane %v8261, 7
        %v8337 = vrot.slane %v8336, 2
        %v8338 = vrot.slane %v8294, 7
        %v8339 = vrot.slane %v8338, 2
        %v8340 = vrot.slane %v8295, 7
        %v8341 = vrot.slane %v8340, 2
        %v8342 = vrot.slane %v8296, 7
        %v8343 = vrot.slane %v8342, 2
        %v8344 = vrot.slane %v8297, 7
        %v8345 = vrot.slane %v8344, 2
        %v8362 = vmax.f32 %v8186, %v8315
        %v8363 = vmax.f32 %v8187, %v8317
        %v8364 = vmax.f32 %v8188, %v8319
        %v8365 = vmax.f32 %v8189, %v8321
        %v8366 = vmax.f32 %v8222, %v8323
        %v8367 = vmax.f32 %v8223, %v8325
        %v8368 = vmax.f32 %v8224, %v8327
        %v8369 = vmax.f32 %v8225, %v8329
        %v8370 = vmax.f32 %v8258, %v8331
        %v8371 = vmax.f32 %v8259, %v8333
        %v8372 = vmax.f32 %v8260, %v8335
        %v8373 = vmax.f32 %v8261, %v8337
        %v8374 = vmax.f32 %v8294, %v8339
        %v8375 = vmax.f32 %v8295, %v8341
        %v8376 = vmax.f32 %v8296, %v8343
        %v8377 = vmax.f32 %v8297, %v8345
        %v8394 = vrot.slane %v8362, 4
        %v8395 = vrot.slane %v8363, 4
        %v8396 = vrot.slane %v8364, 4
        %v8397 = vrot.slane %v8365, 4
        %v8398 = vrot.slane %v8366, 4
        %v8399 = vrot.slane %v8367, 4
        %v8400 = vrot.slane %v8368, 4
        %v8401 = vrot.slane %v8369, 4
        %v8402 = vrot.slane %v8370, 4
        %v8403 = vrot.slane %v8371, 4
        %v8404 = vrot.slane %v8372, 4
        %v8405 = vrot.slane %v8373, 4
        %v8406 = vrot.slane %v8374, 4
        %v8407 = vrot.slane %v8375, 4
        %v8408 = vrot.slane %v8376, 4
        %v8409 = vrot.slane %v8377, 4
        %v8426 = vmax.f32 %v8362, %v8394
        %v8427 = vmax.f32 %v8363, %v8395
        %v8428 = vmax.f32 %v8364, %v8396
        %v8429 = vmax.f32 %v8365, %v8397
        %v8430 = vmax.f32 %v8366, %v8398
        %v8431 = vmax.f32 %v8367, %v8399
        %v8432 = vmax.f32 %v8368, %v8400
        %v8433 = vmax.f32 %v8369, %v8401
        %v8434 = vmax.f32 %v8370, %v8402
        %v8435 = vmax.f32 %v8371, %v8403
        %v8436 = vmax.f32 %v8372, %v8404
        %v8437 = vmax.f32 %v8373, %v8405
        %v8438 = vmax.f32 %v8374, %v8406
        %v8439 = vmax.f32 %v8375, %v8407
        %v8440 = vmax.f32 %v8376, %v8408
        %v8441 = vmax.f32 %v8377, %v8409
        %v8442 = vld [vmem:[%s6] sm:$0x3]
        %v8444 = vlaneseq
        %v8445 = vshrl.u32 %v8444, 7
        %v8446 = vsub.s32 0, %v8445
        %v8447 = vrot.slane %v8442, %v8446
        %v8448 = vlaneseq
        %v8449 = vshrl.u32 %v8448, 7
        %v8450 = vsub.s32 1, %v8449
        %v8451 = vrot.slane %v8442, %v8450
        %v8452 = vcombine.low %v8447, %v8451
        %v8453 = vcombine.high %v8447, %v8451
        %v8455 = vunpack.c.l.s4 1983009808
        %v8456 = vunpack.c.0.s8 %v8455
        %v8457 = vlaneseq
        %v8458 = vshrl.u32 %v8457, 7
        %v8459 = vsub.s32 %v8456, %v8458
        %v8460 = vrot.slane %v8452, %v8459
        %v8462 = vunpack.c.l.s4 1983009808
        %v8463 = vunpack.c.0.s8 %v8462
        %v8464 = vlaneseq
        %v8465 = vshrl.u32 %v8464, 7
        %v8466 = vsub.s32 %v8463, %v8465
        %v8467 = vrot.slane %v8453, %v8466
        %v8468 = vcombine.high %v8460, %v8460
        %v8469 = vcombine.high %v8467, %v8467
        %v8470 = vrot.slane %v8460, 1
        %v8471 = vrot.slane %v8468, 1
        %v8472 = vrot.slane %v8467, 1
        %v8473 = vrot.slane %v8469, 1
        %v8482 = vadd.f32 %v8426, %v8460
        %v8483 = vadd.f32 %v8427, %v8470
        %v8484 = vadd.f32 %v8428, %v8468
        %v8485 = vadd.f32 %v8429, %v8471
        %v8486 = vadd.f32 %v8430, %v8467
        %v8487 = vadd.f32 %v8431, %v8472
        %v8488 = vadd.f32 %v8432, %v8469
        %v8489 = vadd.f32 %v8433, %v8473
        %v8490 = vadd.f32 %v8434, %v8460
        %v8491 = vadd.f32 %v8435, %v8470
        %v8492 = vadd.f32 %v8436, %v8468
        %v8493 = vadd.f32 %v8437, %v8471
        %v8494 = vadd.f32 %v8438, %v8467
        %v8495 = vadd.f32 %v8439, %v8472
        %v8496 = vadd.f32 %v8440, %v8469
        %v8497 = vadd.f32 %v8441, %v8473
        %v8498 = vmax.f32 %v8482, 0.0
        %v8499 = vmax.f32 %v8483, 0.0
        %v8500 = vmax.f32 %v8484, 0.0
        %v8501 = vmax.f32 %v8485, 0.0
        %v8502 = vmax.f32 %v8486, 0.0
        %v8503 = vmax.f32 %v8487, 0.0
        %v8504 = vmax.f32 %v8488, 0.0
        %v8505 = vmax.f32 %v8489, 0.0
        %v8506 = vmax.f32 %v8490, 0.0
        %v8507 = vmax.f32 %v8491, 0.0
        %v8508 = vmax.f32 %v8492, 0.0
        %v8509 = vmax.f32 %v8493, 0.0
        %v8510 = vmax.f32 %v8494, 0.0
        %v8511 = vmax.f32 %v8495, 0.0
        %v8512 = vmax.f32 %v8496, 0.0
        %v8513 = vmax.f32 %v8497, 0.0
        %v8514 = vlaneseq
        %v8515 = vand.u32 %v8514, 127
        %v8516 = vadd.s32 %v8515, 128
        %v8517 = vand.u32 %v8515, 63
        %v8518 = vand.u32 %v8516, 63
        %vm8519 = vcmp.lt.s32.totalorder %v8517, 32
        %vm8520 = vcmp.lt.s32.totalorder %v8518, 32
        %v8529 = vlaneseq
        %v8530 = vshrl.u32 %v8529, 7
        %v8531 = vsub.s32 0, %v8530
        %v8532 = vrot.slane %v8498, %v8531
        %v8533 = vlaneseq
        %v8534 = vshrl.u32 %v8533, 7
        %v8535 = vsub.s32 2, %v8534
        %v8536 = vrot.slane %v8498, %v8535
        %v8537 = vlaneseq
        %v8538 = vshrl.u32 %v8537, 7
        %v8539 = vsub.s32 0, %v8538
        %v8540 = vrot.slane %v8500, %v8539
        %v8541 = vlaneseq
        %v8542 = vshrl.u32 %v8541, 7
        %v8543 = vsub.s32 2, %v8542
        %v8544 = vrot.slane %v8500, %v8543
        %v8545 = vlaneseq
        %v8546 = vshrl.u32 %v8545, 7
        %v8547 = vsub.s32 0, %v8546
        %v8548 = vrot.slane %v8502, %v8547
        %v8549 = vlaneseq
        %v8550 = vshrl.u32 %v8549, 7
        %v8551 = vsub.s32 2, %v8550
        %v8552 = vrot.slane %v8502, %v8551
        %v8553 = vlaneseq
        %v8554 = vshrl.u32 %v8553, 7
        %v8555 = vsub.s32 0, %v8554
        %v8556 = vrot.slane %v8504, %v8555
        %v8557 = vlaneseq
        %v8558 = vshrl.u32 %v8557, 7
        %v8559 = vsub.s32 2, %v8558
        %v8560 = vrot.slane %v8504, %v8559
        %v8561 = vlaneseq
        %v8562 = vshrl.u32 %v8561, 7
        %v8563 = vsub.s32 0, %v8562
        %v8564 = vrot.slane %v8506, %v8563
        %v8565 = vlaneseq
        %v8566 = vshrl.u32 %v8565, 7
        %v8567 = vsub.s32 2, %v8566
        %v8568 = vrot.slane %v8506, %v8567
        %v8569 = vlaneseq
        %v8570 = vshrl.u32 %v8569, 7
        %v8571 = vsub.s32 0, %v8570
        %v8572 = vrot.slane %v8508, %v8571
        %v8573 = vlaneseq
        %v8574 = vshrl.u32 %v8573, 7
        %v8575 = vsub.s32 2, %v8574
        %v8576 = vrot.slane %v8508, %v8575
        %v8577 = vlaneseq
        %v8578 = vshrl.u32 %v8577, 7
        %v8579 = vsub.s32 0, %v8578
        %v8580 = vrot.slane %v8510, %v8579
        %v8581 = vlaneseq
        %v8582 = vshrl.u32 %v8581, 7
        %v8583 = vsub.s32 2, %v8582
        %v8584 = vrot.slane %v8510, %v8583
        %v8585 = vlaneseq
        %v8586 = vshrl.u32 %v8585, 7
        %v8587 = vsub.s32 0, %v8586
        %v8588 = vrot.slane %v8512, %v8587
        %v8589 = vlaneseq
        %v8590 = vshrl.u32 %v8589, 7
        %v8591 = vsub.s32 2, %v8590
        %v8592 = vrot.slane %v8512, %v8591
        %v8609 = vpack.c.bf16 %v8532, %v8532
        %v8610 = vpack.c.bf16 %v8536, %v8536
        %v8611 = vpack.c.bf16 %v8540, %v8540
        %v8612 = vpack.c.bf16 %v8544, %v8544
        %v8613 = vpack.c.bf16 %v8548, %v8548
        %v8614 = vpack.c.bf16 %v8552, %v8552
        %v8615 = vpack.c.bf16 %v8556, %v8556
        %v8616 = vpack.c.bf16 %v8560, %v8560
        %v8617 = vpack.c.bf16 %v8564, %v8564
        %v8618 = vpack.c.bf16 %v8568, %v8568
        %v8619 = vpack.c.bf16 %v8572, %v8572
        %v8620 = vpack.c.bf16 %v8576, %v8576
        %v8621 = vpack.c.bf16 %v8580, %v8580
        %v8622 = vpack.c.bf16 %v8584, %v8584
        %v8623 = vpack.c.bf16 %v8588, %v8588
        %v8624 = vpack.c.bf16 %v8592, %v8592
        %v8625 = vld [vmem:[#allocation12] sm:$0xff]
        %v8626 = vld [vmem:[#allocation12 + $0x8] sm:$0xff]
        %v8627 = vld [vmem:[#allocation12 + $0x10] sm:$0xff]
        %v8628 = vld [vmem:[#allocation12 + $0x18] sm:$0xff]
        %v8629 = vld [vmem:[#allocation12 + $0x20] sm:$0xff]
        %v8630 = vld [vmem:[#allocation12 + $0x28] sm:$0xff]
        %v8631 = vld [vmem:[#allocation12 + $0x30] sm:$0xff]
        %v8632 = vld [vmem:[#allocation12 + $0x38] sm:$0xff]
        %v8633 = vld [vmem:[#allocation12 + $0x40] sm:$0xff]
        %v8634 = vld [vmem:[#allocation12 + $0x48] sm:$0xff]
        %v8635 = vld [vmem:[#allocation12 + $0x50] sm:$0xff]
        %v8636 = vld [vmem:[#allocation12 + $0x58] sm:$0xff]
        %v8637 = vld [vmem:[#allocation12 + $0x60] sm:$0xff]
        %v8638 = vld [vmem:[#allocation12 + $0x68] sm:$0xff]
        %v8639 = vld [vmem:[#allocation12 + $0x70] sm:$0xff]
        %v8640 = vld [vmem:[#allocation12 + $0x78] sm:$0xff]
        %v8641 = vld [vmem:[#allocation12 + $0x80] sm:$0xff]
        %v8642 = vld [vmem:[#allocation12 + $0x88] sm:$0xff]
        %v8643 = vld [vmem:[#allocation12 + $0x90] sm:$0xff]
        %v8644 = vld [vmem:[#allocation12 + $0x98] sm:$0xff]
        %v8645 = vld [vmem:[#allocation12 + $0xa0] sm:$0xff]
        %v8646 = vld [vmem:[#allocation12 + $0xa8] sm:$0xff]
        %v8647 = vld [vmem:[#allocation12 + $0xb0] sm:$0xff]
        %v8648 = vld [vmem:[#allocation12 + $0xb8] sm:$0xff]
        %v8649 = vld [vmem:[#allocation12 + $0xc0] sm:$0xff]
        %v8650 = vld [vmem:[#allocation12 + $0xc8] sm:$0xff]
        %v8651 = vld [vmem:[#allocation12 + $0xd0] sm:$0xff]
        %v8652 = vld [vmem:[#allocation12 + $0xd8] sm:$0xff]
        %v8653 = vld [vmem:[#allocation12 + $0xe0] sm:$0xff]
        %v8654 = vld [vmem:[#allocation12 + $0xe8] sm:$0xff]
        %v8655 = vld [vmem:[#allocation12 + $0xf0] sm:$0xff]
        %v8656 = vld [vmem:[#allocation12 + $0xf8] sm:$0xff]
        %v8657 = vld [vmem:[#allocation12 + $0x100] sm:$0xff]
        %v8658 = vld [vmem:[#allocation12 + $0x108] sm:$0xff]
        %v8659 = vld [vmem:[#allocation12 + $0x110] sm:$0xff]
        %v8660 = vld [vmem:[#allocation12 + $0x118] sm:$0xff]
        %v8661 = vld [vmem:[#allocation12 + $0x120] sm:$0xff]
        %v8662 = vld [vmem:[#allocation12 + $0x128] sm:$0xff]
        %v8663 = vld [vmem:[#allocation12 + $0x130] sm:$0xff]
        %v8664 = vld [vmem:[#allocation12 + $0x138] sm:$0xff]
        %v8665 = vld [vmem:[#allocation12 + $0x140] sm:$0xff]
        %v8666 = vld [vmem:[#allocation12 + $0x148] sm:$0xff]
        %v8667 = vld [vmem:[#allocation12 + $0x150] sm:$0xff]
        %v8668 = vld [vmem:[#allocation12 + $0x158] sm:$0xff]
        %v8669 = vld [vmem:[#allocation12 + $0x160] sm:$0xff]
        %v8670 = vld [vmem:[#allocation12 + $0x168] sm:$0xff]
        %v8671 = vld [vmem:[#allocation12 + $0x170] sm:$0xff]
        %v8672 = vld [vmem:[#allocation12 + $0x178] sm:$0xff]
        %v8673 = vld [vmem:[#allocation12 + $0x180] sm:$0xff]
        %v8674 = vld [vmem:[#allocation12 + $0x188] sm:$0xff]
        %v8675 = vld [vmem:[#allocation12 + $0x190] sm:$0xff]
        %v8676 = vld [vmem:[#allocation12 + $0x198] sm:$0xff]
        %v8677 = vld [vmem:[#allocation12 + $0x1a0] sm:$0xff]
        %v8678 = vld [vmem:[#allocation12 + $0x1a8] sm:$0xff]
        %v8679 = vld [vmem:[#allocation12 + $0x1b0] sm:$0xff]
        %v8680 = vld [vmem:[#allocation12 + $0x1b8] sm:$0xff]
        %v8681 = vld [vmem:[#allocation12 + $0x1c0] sm:$0xff]
        %v8682 = vld [vmem:[#allocation12 + $0x1c8] sm:$0xff]
        %v8683 = vld [vmem:[#allocation12 + $0x1d0] sm:$0xff]
        %v8684 = vld [vmem:[#allocation12 + $0x1d8] sm:$0xff]
        %v8685 = vld [vmem:[#allocation12 + $0x1e0] sm:$0xff]
        %v8686 = vld [vmem:[#allocation12 + $0x1e8] sm:$0xff]
        %v8687 = vld [vmem:[#allocation12 + $0x1f0] sm:$0xff]
        %v8688 = vld [vmem:[#allocation12 + $0x1f8] sm:$0xff]
        %v8689 = vld [vmem:[#allocation12 + $0x200] sm:$0xff]
        %v8690 = vld [vmem:[#allocation12 + $0x208] sm:$0xff]
        %v8691 = vld [vmem:[#allocation12 + $0x210] sm:$0xff]
        %v8692 = vld [vmem:[#allocation12 + $0x218] sm:$0xff]
        %v8693 = vld [vmem:[#allocation12 + $0x220] sm:$0xff]
        %v8694 = vld [vmem:[#allocation12 + $0x228] sm:$0xff]
        %v8695 = vld [vmem:[#allocation12 + $0x230] sm:$0xff]
        %v8696 = vld [vmem:[#allocation12 + $0x238] sm:$0xff]
        %v8697 = vld [vmem:[#allocation12 + $0x240] sm:$0xff]
        %v8698 = vld [vmem:[#allocation12 + $0x248] sm:$0xff]
        %v8699 = vld [vmem:[#allocation12 + $0x250] sm:$0xff]
        %v8700 = vld [vmem:[#allocation12 + $0x258] sm:$0xff]
        %v8701 = vld [vmem:[#allocation12 + $0x260] sm:$0xff]
        %v8702 = vld [vmem:[#allocation12 + $0x268] sm:$0xff]
        %v8703 = vld [vmem:[#allocation12 + $0x270] sm:$0xff]
        %v8704 = vld [vmem:[#allocation12 + $0x278] sm:$0xff]
        %v8705 = vld [vmem:[#allocation12 + $0x280] sm:$0xff]
        %v8706 = vld [vmem:[#allocation12 + $0x288] sm:$0xff]
        %v8707 = vld [vmem:[#allocation12 + $0x290] sm:$0xff]
        %v8708 = vld [vmem:[#allocation12 + $0x298] sm:$0xff]
        %v8709 = vld [vmem:[#allocation12 + $0x2a0] sm:$0xff]
        %v8710 = vld [vmem:[#allocation12 + $0x2a8] sm:$0xff]
        %v8711 = vld [vmem:[#allocation12 + $0x2b0] sm:$0xff]
        %v8712 = vld [vmem:[#allocation12 + $0x2b8] sm:$0xff]
        %v8713 = vld [vmem:[#allocation12 + $0x2c0] sm:$0xff]
        %v8714 = vld [vmem:[#allocation12 + $0x2c8] sm:$0xff]
        %v8715 = vld [vmem:[#allocation12 + $0x2d0] sm:$0xff]
        %v8716 = vld [vmem:[#allocation12 + $0x2d8] sm:$0xff]
        %v8717 = vld [vmem:[#allocation12 + $0x2e0] sm:$0xff]
        %v8718 = vld [vmem:[#allocation12 + $0x2e8] sm:$0xff]
        %v8719 = vld [vmem:[#allocation12 + $0x2f0] sm:$0xff]
        %v8720 = vld [vmem:[#allocation12 + $0x2f8] sm:$0xff]
        %v8721 = vld [vmem:[#allocation12 + $0x300] sm:$0xff]
        %v8722 = vld [vmem:[#allocation12 + $0x308] sm:$0xff]
        %v8723 = vld [vmem:[#allocation12 + $0x310] sm:$0xff]
        %v8724 = vld [vmem:[#allocation12 + $0x318] sm:$0xff]
        %v8725 = vld [vmem:[#allocation12 + $0x320] sm:$0xff]
        %v8726 = vld [vmem:[#allocation12 + $0x328] sm:$0xff]
        %v8727 = vld [vmem:[#allocation12 + $0x330] sm:$0xff]
        %v8728 = vld [vmem:[#allocation12 + $0x338] sm:$0xff]
        %v8729 = vld [vmem:[#allocation12 + $0x340] sm:$0xff]
        %v8730 = vld [vmem:[#allocation12 + $0x348] sm:$0xff]
        %v8731 = vld [vmem:[#allocation12 + $0x350] sm:$0xff]
        %v8732 = vld [vmem:[#allocation12 + $0x358] sm:$0xff]
        %v8733 = vld [vmem:[#allocation12 + $0x360] sm:$0xff]
        %v8734 = vld [vmem:[#allocation12 + $0x368] sm:$0xff]
        %v8735 = vld [vmem:[#allocation12 + $0x370] sm:$0xff]
        %v8736 = vld [vmem:[#allocation12 + $0x378] sm:$0xff]
        %v8737 = vld [vmem:[#allocation12 + $0x380] sm:$0xff]
        %v8738 = vld [vmem:[#allocation12 + $0x388] sm:$0xff]
        %v8739 = vld [vmem:[#allocation12 + $0x390] sm:$0xff]
        %v8740 = vld [vmem:[#allocation12 + $0x398] sm:$0xff]
        %v8741 = vld [vmem:[#allocation12 + $0x3a0] sm:$0xff]
        %v8742 = vld [vmem:[#allocation12 + $0x3a8] sm:$0xff]
        %v8743 = vld [vmem:[#allocation12 + $0x3b0] sm:$0xff]
        %v8744 = vld [vmem:[#allocation12 + $0x3b8] sm:$0xff]
        %v8745 = vld [vmem:[#allocation12 + $0x3c0] sm:$0xff]
        %v8746 = vld [vmem:[#allocation12 + $0x3c8] sm:$0xff]
        %v8747 = vld [vmem:[#allocation12 + $0x3d0] sm:$0xff]
        %v8748 = vld [vmem:[#allocation12 + $0x3d8] sm:$0xff]
        %v8749 = vld [vmem:[#allocation12 + $0x3e0] sm:$0xff]
        %v8750 = vld [vmem:[#allocation12 + $0x3e8] sm:$0xff]
        %v8751 = vld [vmem:[#allocation12 + $0x3f0] sm:$0xff]
        %v8752 = vld [vmem:[#allocation12 + $0x3f8] sm:$0xff]
        %v8761 = vlaneseq
        %v8762 = vshrl.u32 %v8761, 7
        %v8763 = vsub.s32 0, %v8762
        %v8764 = vrot.slane %v8499, %v8763
        %v8765 = vlaneseq
        %v8766 = vshrl.u32 %v8765, 7
        %v8767 = vsub.s32 2, %v8766
        %v8768 = vrot.slane %v8499, %v8767
        %v8769 = vlaneseq
        %v8770 = vshrl.u32 %v8769, 7
        %v8771 = vsub.s32 0, %v8770
        %v8772 = vrot.slane %v8501, %v8771
        %v8773 = vlaneseq
        %v8774 = vshrl.u32 %v8773, 7
        %v8775 = vsub.s32 2, %v8774
        %v8776 = vrot.slane %v8501, %v8775
        %v8777 = vlaneseq
        %v8778 = vshrl.u32 %v8777, 7
        %v8779 = vsub.s32 0, %v8778
        %v8780 = vrot.slane %v8503, %v8779
        %v8781 = vlaneseq
        %v8782 = vshrl.u32 %v8781, 7
        %v8783 = vsub.s32 2, %v8782
        %v8784 = vrot.slane %v8503, %v8783
        %v8785 = vlaneseq
        %v8786 = vshrl.u32 %v8785, 7
        %v8787 = vsub.s32 0, %v8786
        %v8788 = vrot.slane %v8505, %v8787
        %v8789 = vlaneseq
        %v8790 = vshrl.u32 %v8789, 7
        %v8791 = vsub.s32 2, %v8790
        %v8792 = vrot.slane %v8505, %v8791
        %v8793 = vlaneseq
        %v8794 = vshrl.u32 %v8793, 7
        %v8795 = vsub.s32 0, %v8794
        %v8796 = vrot.slane %v8507, %v8795
        %v8797 = vlaneseq
        %v8798 = vshrl.u32 %v8797, 7
        %v8799 = vsub.s32 2, %v8798
        %v8800 = vrot.slane %v8507, %v8799
        %v8801 = vlaneseq
        %v8802 = vshrl.u32 %v8801, 7
        %v8803 = vsub.s32 0, %v8802
        %v8804 = vrot.slane %v8509, %v8803
        %v8805 = vlaneseq
        %v8806 = vshrl.u32 %v8805, 7
        %v8807 = vsub.s32 2, %v8806
        %v8808 = vrot.slane %v8509, %v8807
        %v8809 = vlaneseq
        %v8810 = vshrl.u32 %v8809, 7
        %v8811 = vsub.s32 0, %v8810
        %v8812 = vrot.slane %v8511, %v8811
        %v8813 = vlaneseq
        %v8814 = vshrl.u32 %v8813, 7
        %v8815 = vsub.s32 2, %v8814
        %v8816 = vrot.slane %v8511, %v8815
        %v8817 = vlaneseq
        %v8818 = vshrl.u32 %v8817, 7
        %v8819 = vsub.s32 0, %v8818
        %v8820 = vrot.slane %v8513, %v8819
        %v8821 = vlaneseq
        %v8822 = vshrl.u32 %v8821, 7
        %v8823 = vsub.s32 2, %v8822
        %v8824 = vrot.slane %v8513, %v8823
        %v8841 = vpack.c.bf16 %v8764, %v8764
        %v8842 = vpack.c.bf16 %v8768, %v8768
        %v8843 = vpack.c.bf16 %v8772, %v8772
        %v8844 = vpack.c.bf16 %v8776, %v8776
        %v8845 = vpack.c.bf16 %v8780, %v8780
        %v8846 = vpack.c.bf16 %v8784, %v8784
        %v8847 = vpack.c.bf16 %v8788, %v8788
        %v8848 = vpack.c.bf16 %v8792, %v8792
        %v8849 = vpack.c.bf16 %v8796, %v8796
        %v8850 = vpack.c.bf16 %v8800, %v8800
        %v8851 = vpack.c.bf16 %v8804, %v8804
        %v8852 = vpack.c.bf16 %v8808, %v8808
        %v8853 = vpack.c.bf16 %v8812, %v8812
        %v8854 = vpack.c.bf16 %v8816, %v8816
        %v8855 = vpack.c.bf16 %v8820, %v8820
        %v8856 = vpack.c.bf16 %v8824, %v8824
        %v8857 = vld [vmem:[#allocation13] sm:$0xff]
        %v8858 = vld [vmem:[#allocation13 + $0x8] sm:$0xff]
        %v8859 = vld [vmem:[#allocation13 + $0x10] sm:$0xff]
        %v8860 = vld [vmem:[#allocation13 + $0x18] sm:$0xff]
        %v8861 = vld [vmem:[#allocation13 + $0x20] sm:$0xff]
        %v8862 = vld [vmem:[#allocation13 + $0x28] sm:$0xff]
        %v8863 = vld [vmem:[#allocation13 + $0x30] sm:$0xff]
        %v8864 = vld [vmem:[#allocation13 + $0x38] sm:$0xff]
        %v8865 = vld [vmem:[#allocation13 + $0x40] sm:$0xff]
        %v8866 = vld [vmem:[#allocation13 + $0x48] sm:$0xff]
        %v8867 = vld [vmem:[#allocation13 + $0x50] sm:$0xff]
        %v8868 = vld [vmem:[#allocation13 + $0x58] sm:$0xff]
        %v8869 = vld [vmem:[#allocation13 + $0x60] sm:$0xff]
        %v8870 = vld [vmem:[#allocation13 + $0x68] sm:$0xff]
        %v8871 = vld [vmem:[#allocation13 + $0x70] sm:$0xff]
        %v8872 = vld [vmem:[#allocation13 + $0x78] sm:$0xff]
        %v8873 = vld [vmem:[#allocation13 + $0x80] sm:$0xff]
        %v8874 = vld [vmem:[#allocation13 + $0x88] sm:$0xff]
        %v8875 = vld [vmem:[#allocation13 + $0x90] sm:$0xff]
        %v8876 = vld [vmem:[#allocation13 + $0x98] sm:$0xff]
        %v8877 = vld [vmem:[#allocation13 + $0xa0] sm:$0xff]
        %v8878 = vld [vmem:[#allocation13 + $0xa8] sm:$0xff]
        %v8879 = vld [vmem:[#allocation13 + $0xb0] sm:$0xff]
        %v8880 = vld [vmem:[#allocation13 + $0xb8] sm:$0xff]
        %v8881 = vld [vmem:[#allocation13 + $0xc0] sm:$0xff]
        %v8882 = vld [vmem:[#allocation13 + $0xc8] sm:$0xff]
        %v8883 = vld [vmem:[#allocation13 + $0xd0] sm:$0xff]
        %v8884 = vld [vmem:[#allocation13 + $0xd8] sm:$0xff]
        %v8885 = vld [vmem:[#allocation13 + $0xe0] sm:$0xff]
        %v8886 = vld [vmem:[#allocation13 + $0xe8] sm:$0xff]
        %v8887 = vld [vmem:[#allocation13 + $0xf0] sm:$0xff]
        %v8888 = vld [vmem:[#allocation13 + $0xf8] sm:$0xff]
        %v8889 = vld [vmem:[#allocation13 + $0x100] sm:$0xff]
        %v8890 = vld [vmem:[#allocation13 + $0x108] sm:$0xff]
        %v8891 = vld [vmem:[#allocation13 + $0x110] sm:$0xff]
        %v8892 = vld [vmem:[#allocation13 + $0x118] sm:$0xff]
        %v8893 = vld [vmem:[#allocation13 + $0x120] sm:$0xff]
        %v8894 = vld [vmem:[#allocation13 + $0x128] sm:$0xff]
        %v8895 = vld [vmem:[#allocation13 + $0x130] sm:$0xff]
        %v8896 = vld [vmem:[#allocation13 + $0x138] sm:$0xff]
        %v8897 = vld [vmem:[#allocation13 + $0x140] sm:$0xff]
        %v8898 = vld [vmem:[#allocation13 + $0x148] sm:$0xff]
        %v8899 = vld [vmem:[#allocation13 + $0x150] sm:$0xff]
        %v8900 = vld [vmem:[#allocation13 + $0x158] sm:$0xff]
        %v8901 = vld [vmem:[#allocation13 + $0x160] sm:$0xff]
        %v8902 = vld [vmem:[#allocation13 + $0x168] sm:$0xff]
        %v8903 = vld [vmem:[#allocation13 + $0x170] sm:$0xff]
        %v8904 = vld [vmem:[#allocation13 + $0x178] sm:$0xff]
        %v8905 = vld [vmem:[#allocation13 + $0x180] sm:$0xff]
        %v8906 = vld [vmem:[#allocation13 + $0x188] sm:$0xff]
        %v8907 = vld [vmem:[#allocation13 + $0x190] sm:$0xff]
        %v8908 = vld [vmem:[#allocation13 + $0x198] sm:$0xff]
        %v8909 = vld [vmem:[#allocation13 + $0x1a0] sm:$0xff]
        %v8910 = vld [vmem:[#allocation13 + $0x1a8] sm:$0xff]
        %v8911 = vld [vmem:[#allocation13 + $0x1b0] sm:$0xff]
        %v8912 = vld [vmem:[#allocation13 + $0x1b8] sm:$0xff]
        %v8913 = vld [vmem:[#allocation13 + $0x1c0] sm:$0xff]
        %v8914 = vld [vmem:[#allocation13 + $0x1c8] sm:$0xff]
        %v8915 = vld [vmem:[#allocation13 + $0x1d0] sm:$0xff]
        %v8916 = vld [vmem:[#allocation13 + $0x1d8] sm:$0xff]
        %v8917 = vld [vmem:[#allocation13 + $0x1e0] sm:$0xff]
        %v8918 = vld [vmem:[#allocation13 + $0x1e8] sm:$0xff]
        %v8919 = vld [vmem:[#allocation13 + $0x1f0] sm:$0xff]
        %v8920 = vld [vmem:[#allocation13 + $0x1f8] sm:$0xff]
        %v8921 = vld [vmem:[#allocation13 + $0x200] sm:$0xff]
        %v8922 = vld [vmem:[#allocation13 + $0x208] sm:$0xff]
        %v8923 = vld [vmem:[#allocation13 + $0x210] sm:$0xff]
        %v8924 = vld [vmem:[#allocation13 + $0x218] sm:$0xff]
        %v8925 = vld [vmem:[#allocation13 + $0x220] sm:$0xff]
        %v8926 = vld [vmem:[#allocation13 + $0x228] sm:$0xff]
        %v8927 = vld [vmem:[#allocation13 + $0x230] sm:$0xff]
        %v8928 = vld [vmem:[#allocation13 + $0x238] sm:$0xff]
        %v8929 = vld [vmem:[#allocation13 + $0x240] sm:$0xff]
        %v8930 = vld [vmem:[#allocation13 + $0x248] sm:$0xff]
        %v8931 = vld [vmem:[#allocation13 + $0x250] sm:$0xff]
        %v8932 = vld [vmem:[#allocation13 + $0x258] sm:$0xff]
        %v8933 = vld [vmem:[#allocation13 + $0x260] sm:$0xff]
        %v8934 = vld [vmem:[#allocation13 + $0x268] sm:$0xff]
        %v8935 = vld [vmem:[#allocation13 + $0x270] sm:$0xff]
        %v8936 = vld [vmem:[#allocation13 + $0x278] sm:$0xff]
        %v8937 = vld [vmem:[#allocation13 + $0x280] sm:$0xff]
        %v8938 = vld [vmem:[#allocation13 + $0x288] sm:$0xff]
        %v8939 = vld [vmem:[#allocation13 + $0x290] sm:$0xff]
        %v8940 = vld [vmem:[#allocation13 + $0x298] sm:$0xff]
        %v8941 = vld [vmem:[#allocation13 + $0x2a0] sm:$0xff]
        %v8942 = vld [vmem:[#allocation13 + $0x2a8] sm:$0xff]
        %v8943 = vld [vmem:[#allocation13 + $0x2b0] sm:$0xff]
        %v8944 = vld [vmem:[#allocation13 + $0x2b8] sm:$0xff]
        %v8945 = vld [vmem:[#allocation13 + $0x2c0] sm:$0xff]
        %v8946 = vld [vmem:[#allocation13 + $0x2c8] sm:$0xff]
        %v8947 = vld [vmem:[#allocation13 + $0x2d0] sm:$0xff]
        %v8948 = vld [vmem:[#allocation13 + $0x2d8] sm:$0xff]
        %v8949 = vld [vmem:[#allocation13 + $0x2e0] sm:$0xff]
        %v8950 = vld [vmem:[#allocation13 + $0x2e8] sm:$0xff]
        %v8951 = vld [vmem:[#allocation13 + $0x2f0] sm:$0xff]
        %v8952 = vld [vmem:[#allocation13 + $0x2f8] sm:$0xff]
        %v8953 = vld [vmem:[#allocation13 + $0x300] sm:$0xff]
        %v8954 = vld [vmem:[#allocation13 + $0x308] sm:$0xff]
        %v8955 = vld [vmem:[#allocation13 + $0x310] sm:$0xff]
        %v8956 = vld [vmem:[#allocation13 + $0x318] sm:$0xff]
        %v8957 = vld [vmem:[#allocation13 + $0x320] sm:$0xff]
        %v8958 = vld [vmem:[#allocation13 + $0x328] sm:$0xff]
        %v8959 = vld [vmem:[#allocation13 + $0x330] sm:$0xff]
        %v8960 = vld [vmem:[#allocation13 + $0x338] sm:$0xff]
        %v8961 = vld [vmem:[#allocation13 + $0x340] sm:$0xff]
        %v8962 = vld [vmem:[#allocation13 + $0x348] sm:$0xff]
        %v8963 = vld [vmem:[#allocation13 + $0x350] sm:$0xff]
        %v8964 = vld [vmem:[#allocation13 + $0x358] sm:$0xff]
        %v8965 = vld [vmem:[#allocation13 + $0x360] sm:$0xff]
        %v8966 = vld [vmem:[#allocation13 + $0x368] sm:$0xff]
        %v8967 = vld [vmem:[#allocation13 + $0x370] sm:$0xff]
        %v8968 = vld [vmem:[#allocation13 + $0x378] sm:$0xff]
        %v8969 = vld [vmem:[#allocation13 + $0x380] sm:$0xff]
        %v8970 = vld [vmem:[#allocation13 + $0x388] sm:$0xff]
        %v8971 = vld [vmem:[#allocation13 + $0x390] sm:$0xff]
        %v8972 = vld [vmem:[#allocation13 + $0x398] sm:$0xff]
        %v8973 = vld [vmem:[#allocation13 + $0x3a0] sm:$0xff]
        %v8974 = vld [vmem:[#allocation13 + $0x3a8] sm:$0xff]
        %v8975 = vld [vmem:[#allocation13 + $0x3b0] sm:$0xff]
        %v8976 = vld [vmem:[#allocation13 + $0x3b8] sm:$0xff]
        %v8977 = vld [vmem:[#allocation13 + $0x3c0] sm:$0xff]
        %v8978 = vld [vmem:[#allocation13 + $0x3c8] sm:$0xff]
        %v8979 = vld [vmem:[#allocation13 + $0x3d0] sm:$0xff]
        %v8980 = vld [vmem:[#allocation13 + $0x3d8] sm:$0xff]
        %v8981 = vld [vmem:[#allocation13 + $0x3e0] sm:$0xff]
        %v8982 = vld [vmem:[#allocation13 + $0x3e8] sm:$0xff]
        %v8983 = vld [vmem:[#allocation13 + $0x3f0] sm:$0xff]
        %v8984 = vld [vmem:[#allocation13 + $0x3f8] sm:$0xff]
        %v9001 = vunpack.c.l.b16 %v8841
        %v9002 = vunpack.c.l.b16 %v8842
        %v9003 = vunpack.c.l.b16 %v8843
        %v9004 = vunpack.c.l.b16 %v8844
        %v9005 = vunpack.c.l.b16 %v8845
        %v9006 = vunpack.c.l.b16 %v8846
        %v9007 = vunpack.c.l.b16 %v8847
        %v9008 = vunpack.c.l.b16 %v8848
        %v9009 = vunpack.c.l.b16 %v8849
        %v9010 = vunpack.c.l.b16 %v8850
        %v9011 = vunpack.c.l.b16 %v8851
        %v9012 = vunpack.c.l.b16 %v8852
        %v9013 = vunpack.c.l.b16 %v8853
        %v9014 = vunpack.c.l.b16 %v8854
        %v9015 = vunpack.c.l.b16 %v8855
        %v9016 = vunpack.c.l.b16 %v8856
        %v9017 = vrot.slane %v9003, 7
        %vm9018 = vcmask 1041409
        %v9019 = vsel %vm9018, %v9017, %v9001
        %v9020 = vrot.slane %v9005, 6
        %v9021 = vsel %vm3275, %v9020, %v9019
        %v9022 = vrot.slane %v9007, 5
        %v9023 = vsel %vm3277, %v9022, %v9021
        %v9024 = vrot.slane %v9009, 4
        %v9025 = vsel %vm3279, %v9024, %v9023
        %v9026 = vrot.slane %v9011, 3
        %v9027 = vsel %vm3281, %v9026, %v9025
        %v9028 = vrot.slane %v9013, 2
        %v9029 = vsel %vm3283, %v9028, %v9027
        %v9030 = vrot.slane %v9015, 1
        %v9031 = vsel %vm3285, %v9030, %v9029
        %v9032 = vrot.slane %v9004, 7
        %v9033 = vsel %vm9018, %v9032, %v9002
        %v9034 = vrot.slane %v9006, 6
        %v9035 = vsel %vm3275, %v9034, %v9033
        %v9036 = vrot.slane %v9008, 5
        %v9037 = vsel %vm3277, %v9036, %v9035
        %v9038 = vrot.slane %v9010, 4
        %v9039 = vsel %vm3279, %v9038, %v9037
        %v9040 = vrot.slane %v9012, 3
        %v9041 = vsel %vm3281, %v9040, %v9039
        %v9042 = vrot.slane %v9014, 2
        %v9043 = vsel %vm3283, %v9042, %v9041
        %v9044 = vrot.slane %v9016, 1
        %v9045 = vsel %vm3285, %v9044, %v9043
        %v9046 = vpack.c.b16 %v9031, %v9031
        %v9047 = vpack.c.b16 %v9045, %v9045
        %v9178 = vunpack.c.l.b16 %v8857
        %v9179 = vunpack.c.h.b16 %v8857
        %v9180 = vunpack.c.l.b16 %v8858
        %v9181 = vunpack.c.h.b16 %v8858
        %v9182 = vunpack.c.l.b16 %v8859
        %v9183 = vunpack.c.h.b16 %v8859
        %v9184 = vunpack.c.l.b16 %v8860
        %v9185 = vunpack.c.h.b16 %v8860
        %v9186 = vunpack.c.l.b16 %v8861
        %v9187 = vunpack.c.h.b16 %v8861
        %v9188 = vunpack.c.l.b16 %v8862
        %v9189 = vunpack.c.h.b16 %v8862
        %v9190 = vunpack.c.l.b16 %v8863
        %v9191 = vunpack.c.h.b16 %v8863
        %v9192 = vunpack.c.l.b16 %v8864
        %v9193 = vunpack.c.h.b16 %v8864
        %v9194 = vunpack.c.l.b16 %v8865
        %v9195 = vunpack.c.h.b16 %v8865
        %v9196 = vunpack.c.l.b16 %v8866
        %v9197 = vunpack.c.h.b16 %v8866
        %v9198 = vunpack.c.l.b16 %v8867
        %v9199 = vunpack.c.h.b16 %v8867
        %v9200 = vunpack.c.l.b16 %v8868
        %v9201 = vunpack.c.h.b16 %v8868
        %v9202 = vunpack.c.l.b16 %v8869
        %v9203 = vunpack.c.h.b16 %v8869
        %v9204 = vunpack.c.l.b16 %v8870
        %v9205 = vunpack.c.h.b16 %v8870
        %v9206 = vunpack.c.l.b16 %v8871
        %v9207 = vunpack.c.h.b16 %v8871
        %v9208 = vunpack.c.l.b16 %v8872
        %v9209 = vunpack.c.h.b16 %v8872
        %v9210 = vunpack.c.l.b16 %v8873
        %v9211 = vunpack.c.h.b16 %v8873
        %v9212 = vunpack.c.l.b16 %v8874
        %v9213 = vunpack.c.h.b16 %v8874
        %v9214 = vunpack.c.l.b16 %v8875
        %v9215 = vunpack.c.h.b16 %v8875
        %v9216 = vunpack.c.l.b16 %v8876
        %v9217 = vunpack.c.h.b16 %v8876
        %v9218 = vunpack.c.l.b16 %v8877
        %v9219 = vunpack.c.h.b16 %v8877
        %v9220 = vunpack.c.l.b16 %v8878
        %v9221 = vunpack.c.h.b16 %v8878
        %v9222 = vunpack.c.l.b16 %v8879
        %v9223 = vunpack.c.h.b16 %v8879
        %v9224 = vunpack.c.l.b16 %v8880
        %v9225 = vunpack.c.h.b16 %v8880
        %v9226 = vunpack.c.l.b16 %v8881
        %v9227 = vunpack.c.h.b16 %v8881
        %v9228 = vunpack.c.l.b16 %v8882
        %v9229 = vunpack.c.h.b16 %v8882
        %v9230 = vunpack.c.l.b16 %v8883
        %v9231 = vunpack.c.h.b16 %v8883
        %v9232 = vunpack.c.l.b16 %v8884
        %v9233 = vunpack.c.h.b16 %v8884
        %v9234 = vunpack.c.l.b16 %v8885
        %v9235 = vunpack.c.h.b16 %v8885
        %v9236 = vunpack.c.l.b16 %v8886
        %v9237 = vunpack.c.h.b16 %v8886
        %v9238 = vunpack.c.l.b16 %v8887
        %v9239 = vunpack.c.h.b16 %v8887
        %v9240 = vunpack.c.l.b16 %v8888
        %v9241 = vunpack.c.h.b16 %v8888
        %v9242 = vunpack.c.l.b16 %v8889
        %v9243 = vunpack.c.h.b16 %v8889
        %v9244 = vunpack.c.l.b16 %v8890
        %v9245 = vunpack.c.h.b16 %v8890
        %v9246 = vunpack.c.l.b16 %v8891
        %v9247 = vunpack.c.h.b16 %v8891
        %v9248 = vunpack.c.l.b16 %v8892
        %v9249 = vunpack.c.h.b16 %v8892
        %v9250 = vunpack.c.l.b16 %v8893
        %v9251 = vunpack.c.h.b16 %v8893
        %v9252 = vunpack.c.l.b16 %v8894
        %v9253 = vunpack.c.h.b16 %v8894
        %v9254 = vunpack.c.l.b16 %v8895
        %v9255 = vunpack.c.h.b16 %v8895
        %v9256 = vunpack.c.l.b16 %v8896
        %v9257 = vunpack.c.h.b16 %v8896
        %v9258 = vunpack.c.l.b16 %v8897
        %v9259 = vunpack.c.h.b16 %v8897
        %v9260 = vunpack.c.l.b16 %v8898
        %v9261 = vunpack.c.h.b16 %v8898
        %v9262 = vunpack.c.l.b16 %v8899
        %v9263 = vunpack.c.h.b16 %v8899
        %v9264 = vunpack.c.l.b16 %v8900
        %v9265 = vunpack.c.h.b16 %v8900
        %v9266 = vunpack.c.l.b16 %v8901
        %v9267 = vunpack.c.h.b16 %v8901
        %v9268 = vunpack.c.l.b16 %v8902
        %v9269 = vunpack.c.h.b16 %v8902
        %v9270 = vunpack.c.l.b16 %v8903
        %v9271 = vunpack.c.h.b16 %v8903
        %v9272 = vunpack.c.l.b16 %v8904
        %v9273 = vunpack.c.h.b16 %v8904
        %v9274 = vunpack.c.l.b16 %v8905
        %v9275 = vunpack.c.h.b16 %v8905
        %v9276 = vunpack.c.l.b16 %v8906
        %v9277 = vunpack.c.h.b16 %v8906
        %v9278 = vunpack.c.l.b16 %v8907
        %v9279 = vunpack.c.h.b16 %v8907
        %v9280 = vunpack.c.l.b16 %v8908
        %v9281 = vunpack.c.h.b16 %v8908
        %v9282 = vunpack.c.l.b16 %v8909
        %v9283 = vunpack.c.h.b16 %v8909
        %v9284 = vunpack.c.l.b16 %v8910
        %v9285 = vunpack.c.h.b16 %v8910
        %v9286 = vunpack.c.l.b16 %v8911
        %v9287 = vunpack.c.h.b16 %v8911
        %v9288 = vunpack.c.l.b16 %v8912
        %v9289 = vunpack.c.h.b16 %v8912
        %v9290 = vunpack.c.l.b16 %v8913
        %v9291 = vunpack.c.h.b16 %v8913
        %v9292 = vunpack.c.l.b16 %v8914
        %v9293 = vunpack.c.h.b16 %v8914
        %v9294 = vunpack.c.l.b16 %v8915
        %v9295 = vunpack.c.h.b16 %v8915
        %v9296 = vunpack.c.l.b16 %v8916
        %v9297 = vunpack.c.h.b16 %v8916
        %v9298 = vunpack.c.l.b16 %v8917
        %v9299 = vunpack.c.h.b16 %v8917
        %v9300 = vunpack.c.l.b16 %v8918
        %v9301 = vunpack.c.h.b16 %v8918
        %v9302 = vunpack.c.l.b16 %v8919
        %v9303 = vunpack.c.h.b16 %v8919
        %v9304 = vunpack.c.l.b16 %v8920
        %v9305 = vunpack.c.h.b16 %v8920
        %v9306 = vunpack.c.l.b16 %v8921
        %v9307 = vunpack.c.h.b16 %v8921
        %v9308 = vunpack.c.l.b16 %v8922
        %v9309 = vunpack.c.h.b16 %v8922
        %v9310 = vunpack.c.l.b16 %v8923
        %v9311 = vunpack.c.h.b16 %v8923
        %v9312 = vunpack.c.l.b16 %v8924
        %v9313 = vunpack.c.h.b16 %v8924
        %v9314 = vunpack.c.l.b16 %v8925
        %v9315 = vunpack.c.h.b16 %v8925
        %v9316 = vunpack.c.l.b16 %v8926
        %v9317 = vunpack.c.h.b16 %v8926
        %v9318 = vunpack.c.l.b16 %v8927
        %v9319 = vunpack.c.h.b16 %v8927
        %v9320 = vunpack.c.l.b16 %v8928
        %v9321 = vunpack.c.h.b16 %v8928
        %v9322 = vunpack.c.l.b16 %v8929
        %v9323 = vunpack.c.h.b16 %v8929
        %v9324 = vunpack.c.l.b16 %v8930
        %v9325 = vunpack.c.h.b16 %v8930
        %v9326 = vunpack.c.l.b16 %v8931
        %v9327 = vunpack.c.h.b16 %v8931
        %v9328 = vunpack.c.l.b16 %v8932
        %v9329 = vunpack.c.h.b16 %v8932
        %v9330 = vunpack.c.l.b16 %v8933
        %v9331 = vunpack.c.h.b16 %v8933
        %v9332 = vunpack.c.l.b16 %v8934
        %v9333 = vunpack.c.h.b16 %v8934
        %v9334 = vunpack.c.l.b16 %v8935
        %v9335 = vunpack.c.h.b16 %v8935
        %v9336 = vunpack.c.l.b16 %v8936
        %v9337 = vunpack.c.h.b16 %v8936
        %v9338 = vunpack.c.l.b16 %v8937
        %v9339 = vunpack.c.h.b16 %v8937
        %v9340 = vunpack.c.l.b16 %v8938
        %v9341 = vunpack.c.h.b16 %v8938
        %v9342 = vunpack.c.l.b16 %v8939
        %v9343 = vunpack.c.h.b16 %v8939
        %v9344 = vunpack.c.l.b16 %v8940
        %v9345 = vunpack.c.h.b16 %v8940
        %v9346 = vunpack.c.l.b16 %v8941
        %v9347 = vunpack.c.h.b16 %v8941
        %v9348 = vunpack.c.l.b16 %v8942
        %v9349 = vunpack.c.h.b16 %v8942
        %v9350 = vunpack.c.l.b16 %v8943
        %v9351 = vunpack.c.h.b16 %v8943
        %v9352 = vunpack.c.l.b16 %v8944
        %v9353 = vunpack.c.h.b16 %v8944
        %v9354 = vunpack.c.l.b16 %v8945
        %v9355 = vunpack.c.h.b16 %v8945
        %v9356 = vunpack.c.l.b16 %v8946
        %v9357 = vunpack.c.h.b16 %v8946
        %v9358 = vunpack.c.l.b16 %v8947
        %v9359 = vunpack.c.h.b16 %v8947
        %v9360 = vunpack.c.l.b16 %v8948
        %v9361 = vunpack.c.h.b16 %v8948
        %v9362 = vunpack.c.l.b16 %v8949
        %v9363 = vunpack.c.h.b16 %v8949
        %v9364 = vunpack.c.l.b16 %v8950
        %v9365 = vunpack.c.h.b16 %v8950
        %v9366 = vunpack.c.l.b16 %v8951
        %v9367 = vunpack.c.h.b16 %v8951
        %v9368 = vunpack.c.l.b16 %v8952
        %v9369 = vunpack.c.h.b16 %v8952
        %v9370 = vunpack.c.l.b16 %v8953
        %v9371 = vunpack.c.h.b16 %v8953
        %v9372 = vunpack.c.l.b16 %v8954
        %v9373 = vunpack.c.h.b16 %v8954
        %v9374 = vunpack.c.l.b16 %v8955
        %v9375 = vunpack.c.h.b16 %v8955
        %v9376 = vunpack.c.l.b16 %v8956
        %v9377 = vunpack.c.h.b16 %v8956
        %v9378 = vunpack.c.l.b16 %v8957
        %v9379 = vunpack.c.h.b16 %v8957
        %v9380 = vunpack.c.l.b16 %v8958
        %v9381 = vunpack.c.h.b16 %v8958
        %v9382 = vunpack.c.l.b16 %v8959
        %v9383 = vunpack.c.h.b16 %v8959
        %v9384 = vunpack.c.l.b16 %v8960
        %v9385 = vunpack.c.h.b16 %v8960
        %v9386 = vunpack.c.l.b16 %v8961
        %v9387 = vunpack.c.h.b16 %v8961
        %v9388 = vunpack.c.l.b16 %v8962
        %v9389 = vunpack.c.h.b16 %v8962
        %v9390 = vunpack.c.l.b16 %v8963
        %v9391 = vunpack.c.h.b16 %v8963
        %v9392 = vunpack.c.l.b16 %v8964
        %v9393 = vunpack.c.h.b16 %v8964
        %v9394 = vunpack.c.l.b16 %v8965
        %v9395 = vunpack.c.h.b16 %v8965
        %v9396 = vunpack.c.l.b16 %v8966
        %v9397 = vunpack.c.h.b16 %v8966
        %v9398 = vunpack.c.l.b16 %v8967
        %v9399 = vunpack.c.h.b16 %v8967
        %v9400 = vunpack.c.l.b16 %v8968
        %v9401 = vunpack.c.h.b16 %v8968
        %v9402 = vunpack.c.l.b16 %v8969
        %v9403 = vunpack.c.h.b16 %v8969
        %v9404 = vunpack.c.l.b16 %v8970
        %v9405 = vunpack.c.h.b16 %v8970
        %v9406 = vunpack.c.l.b16 %v8971
        %v9407 = vunpack.c.h.b16 %v8971
        %v9408 = vunpack.c.l.b16 %v8972
        %v9409 = vunpack.c.h.b16 %v8972
        %v9410 = vunpack.c.l.b16 %v8973
        %v9411 = vunpack.c.h.b16 %v8973
        %v9412 = vunpack.c.l.b16 %v8974
        %v9413 = vunpack.c.h.b16 %v8974
        %v9414 = vunpack.c.l.b16 %v8975
        %v9415 = vunpack.c.h.b16 %v8975
        %v9416 = vunpack.c.l.b16 %v8976
        %v9417 = vunpack.c.h.b16 %v8976
        %v9418 = vunpack.c.l.b16 %v8977
        %v9419 = vunpack.c.h.b16 %v8977
        %v9420 = vunpack.c.l.b16 %v8978
        %v9421 = vunpack.c.h.b16 %v8978
        %v9422 = vunpack.c.l.b16 %v8979
        %v9423 = vunpack.c.h.b16 %v8979
        %v9424 = vunpack.c.l.b16 %v8980
        %v9425 = vunpack.c.h.b16 %v8980
        %v9426 = vunpack.c.l.b16 %v8981
        %v9427 = vunpack.c.h.b16 %v8981
        %v9428 = vunpack.c.l.b16 %v8982
        %v9429 = vunpack.c.h.b16 %v8982
        %v9430 = vunpack.c.l.b16 %v8983
        %v9431 = vunpack.c.h.b16 %v8983
        %v9432 = vunpack.c.l.b16 %v8984
        %v9433 = vunpack.c.h.b16 %v8984
        %v9434 = vpack.c.b16 %v9186, %v9178
        %v9435 = vpack.c.b16 %v9187, %v9179
        %v9436 = vpack.c.b16 %v9188, %v9180
        %v9437 = vpack.c.b16 %v9189, %v9181
        %v9438 = vpack.c.b16 %v9190, %v9182
        %v9439 = vpack.c.b16 %v9191, %v9183
        %v9440 = vpack.c.b16 %v9192, %v9184
        %v9441 = vpack.c.b16 %v9193, %v9185
        %v9442 = vpack.c.b16 %v9202, %v9194
        %v9443 = vpack.c.b16 %v9203, %v9195
        %v9444 = vpack.c.b16 %v9204, %v9196
        %v9445 = vpack.c.b16 %v9205, %v9197
        %v9446 = vpack.c.b16 %v9206, %v9198
        %v9447 = vpack.c.b16 %v9207, %v9199
        %v9448 = vpack.c.b16 %v9208, %v9200
        %v9449 = vpack.c.b16 %v9209, %v9201
        %v9450 = vpack.c.b16 %v9218, %v9210
        %v9451 = vpack.c.b16 %v9219, %v9211
        %v9452 = vpack.c.b16 %v9220, %v9212
        %v9453 = vpack.c.b16 %v9221, %v9213
        %v9454 = vpack.c.b16 %v9222, %v9214
        %v9455 = vpack.c.b16 %v9223, %v9215
        %v9456 = vpack.c.b16 %v9224, %v9216
        %v9457 = vpack.c.b16 %v9225, %v9217
        %v9458 = vpack.c.b16 %v9234, %v9226
        %v9459 = vpack.c.b16 %v9235, %v9227
        %v9460 = vpack.c.b16 %v9236, %v9228
        %v9461 = vpack.c.b16 %v9237, %v9229
        %v9462 = vpack.c.b16 %v9238, %v9230
        %v9463 = vpack.c.b16 %v9239, %v9231
        %v9464 = vpack.c.b16 %v9240, %v9232
        %v9465 = vpack.c.b16 %v9241, %v9233
        %v9466 = vpack.c.b16 %v9250, %v9242
        %v9467 = vpack.c.b16 %v9251, %v9243
        %v9468 = vpack.c.b16 %v9252, %v9244
        %v9469 = vpack.c.b16 %v9253, %v9245
        %v9470 = vpack.c.b16 %v9254, %v9246
        %v9471 = vpack.c.b16 %v9255, %v9247
        %v9472 = vpack.c.b16 %v9256, %v9248
        %v9473 = vpack.c.b16 %v9257, %v9249
        %v9474 = vpack.c.b16 %v9266, %v9258
        %v9475 = vpack.c.b16 %v9267, %v9259
        %v9476 = vpack.c.b16 %v9268, %v9260
        %v9477 = vpack.c.b16 %v9269, %v9261
        %v9478 = vpack.c.b16 %v9270, %v9262
        %v9479 = vpack.c.b16 %v9271, %v9263
        %v9480 = vpack.c.b16 %v9272, %v9264
        %v9481 = vpack.c.b16 %v9273, %v9265
        %v9482 = vpack.c.b16 %v9282, %v9274
        %v9483 = vpack.c.b16 %v9283, %v9275
        %v9484 = vpack.c.b16 %v9284, %v9276
        %v9485 = vpack.c.b16 %v9285, %v9277
        %v9486 = vpack.c.b16 %v9286, %v9278
        %v9487 = vpack.c.b16 %v9287, %v9279
        %v9488 = vpack.c.b16 %v9288, %v9280
        %v9489 = vpack.c.b16 %v9289, %v9281
        %v9490 = vpack.c.b16 %v9298, %v9290
        %v9491 = vpack.c.b16 %v9299, %v9291
        %v9492 = vpack.c.b16 %v9300, %v9292
        %v9493 = vpack.c.b16 %v9301, %v9293
        %v9494 = vpack.c.b16 %v9302, %v9294
        %v9495 = vpack.c.b16 %v9303, %v9295
        %v9496 = vpack.c.b16 %v9304, %v9296
        %v9497 = vpack.c.b16 %v9305, %v9297
        %v9498 = vpack.c.b16 %v9314, %v9306
        %v9499 = vpack.c.b16 %v9315, %v9307
        %v9500 = vpack.c.b16 %v9316, %v9308
        %v9501 = vpack.c.b16 %v9317, %v9309
        %v9502 = vpack.c.b16 %v9318, %v9310
        %v9503 = vpack.c.b16 %v9319, %v9311
        %v9504 = vpack.c.b16 %v9320, %v9312
        %v9505 = vpack.c.b16 %v9321, %v9313
        %v9506 = vpack.c.b16 %v9330, %v9322
        %v9507 = vpack.c.b16 %v9331, %v9323
        %v9508 = vpack.c.b16 %v9332, %v9324
        %v9509 = vpack.c.b16 %v9333, %v9325
        %v9510 = vpack.c.b16 %v9334, %v9326
        %v9511 = vpack.c.b16 %v9335, %v9327
        %v9512 = vpack.c.b16 %v9336, %v9328
        %v9513 = vpack.c.b16 %v9337, %v9329
        %v9514 = vpack.c.b16 %v9346, %v9338
        %v9515 = vpack.c.b16 %v9347, %v9339
        %v9516 = vpack.c.b16 %v9348, %v9340
        %v9517 = vpack.c.b16 %v9349, %v9341
        %v9518 = vpack.c.b16 %v9350, %v9342
        %v9519 = vpack.c.b16 %v9351, %v9343
        %v9520 = vpack.c.b16 %v9352, %v9344
        %v9521 = vpack.c.b16 %v9353, %v9345
        %v9522 = vpack.c.b16 %v9362, %v9354
        %v9523 = vpack.c.b16 %v9363, %v9355
        %v9524 = vpack.c.b16 %v9364, %v9356
        %v9525 = vpack.c.b16 %v9365, %v9357
        %v9526 = vpack.c.b16 %v9366, %v9358
        %v9527 = vpack.c.b16 %v9367, %v9359
        %v9528 = vpack.c.b16 %v9368, %v9360
        %v9529 = vpack.c.b16 %v9369, %v9361
        %v9530 = vpack.c.b16 %v9378, %v9370
        %v9531 = vpack.c.b16 %v9379, %v9371
        %v9532 = vpack.c.b16 %v9380, %v9372
        %v9533 = vpack.c.b16 %v9381, %v9373
        %v9534 = vpack.c.b16 %v9382, %v9374
        %v9535 = vpack.c.b16 %v9383, %v9375
        %v9536 = vpack.c.b16 %v9384, %v9376
        %v9537 = vpack.c.b16 %v9385, %v9377
        %v9538 = vpack.c.b16 %v9394, %v9386
        %v9539 = vpack.c.b16 %v9395, %v9387
        %v9540 = vpack.c.b16 %v9396, %v9388
        %v9541 = vpack.c.b16 %v9397, %v9389
        %v9542 = vpack.c.b16 %v9398, %v9390
        %v9543 = vpack.c.b16 %v9399, %v9391
        %v9544 = vpack.c.b16 %v9400, %v9392
        %v9545 = vpack.c.b16 %v9401, %v9393
        %v9546 = vpack.c.b16 %v9410, %v9402
        %v9547 = vpack.c.b16 %v9411, %v9403
        %v9548 = vpack.c.b16 %v9412, %v9404
        %v9549 = vpack.c.b16 %v9413, %v9405
        %v9550 = vpack.c.b16 %v9414, %v9406
        %v9551 = vpack.c.b16 %v9415, %v9407
        %v9552 = vpack.c.b16 %v9416, %v9408
        %v9553 = vpack.c.b16 %v9417, %v9409
        %v9554 = vpack.c.b16 %v9426, %v9418
        %v9555 = vpack.c.b16 %v9427, %v9419
        %v9556 = vpack.c.b16 %v9428, %v9420
        %v9557 = vpack.c.b16 %v9429, %v9421
        %v9558 = vpack.c.b16 %v9430, %v9422
        %v9559 = vpack.c.b16 %v9431, %v9423
        %v9560 = vpack.c.b16 %v9432, %v9424
        %v9561 = vpack.c.b16 %v9433, %v9425
        %9690 = vmatprep.subr.bf16.mxu0 %v9491
        %9691 = vmatpush1.bf16.msra.mxu0 %v9490
        %9692 = vmatprep.subr.bf16.mxu0 %v9483
        %9693 = vmatpush1.bf16.msra.mxu0 %v9482
        %9694 = vmatprep.subr.bf16.mxu0 %v9475
        %9695 = vmatpush1.bf16.msra.mxu0 %v9474
        %9696 = vmatprep.subr.bf16.mxu0 %v9467
        %9697 = vmatpush1.bf16.msra.mxu0 %v9466
        %9698 = vmatprep.subr.bf16.mxu0 %v9459
        %9699 = vmatpush1.bf16.msra.mxu0 %v9458
        %9700 = vmatprep.subr.bf16.mxu0 %v9451
        %9701 = vmatpush1.bf16.msra.mxu0 %v9450
        %9702 = vmatprep.subr.bf16.mxu0 %v9443
        %9703 = vmatpush1.bf16.msra.mxu0 %v9442
        %9704 = vmatprep.subr.bf16.mxu0 %v9435
        %9705 = vmatpush1.bf16.msra.mxu0 %v9434
        %9706 = vmatprep.subr.bf16.mxu0 %v9555
        %9707 = vmatpush2.bf16.msra.mxu0 %v9554
        %9708 = vmatprep.subr.bf16.mxu0 %v9547
        %9709 = vmatpush2.bf16.msra.mxu0 %v9546
        %9710 = vmatprep.subr.bf16.mxu0 %v9539
        %9711 = vmatpush2.bf16.msra.mxu0 %v9538
        %9712 = vmatprep.subr.bf16.mxu0 %v9531
        %9713 = vmatpush2.bf16.msra.mxu0 %v9530
        %9714 = vmatprep.subr.bf16.mxu0 %v9523
        %9715 = vmatpush2.bf16.msra.mxu0 %v9522
        %9716 = vmatprep.subr.bf16.mxu0 %v9515
        %9717 = vmatpush2.bf16.msra.mxu0 %v9514
        %9718 = vmatprep.subr.bf16.mxu0 %v9507
        %9719 = vmatpush2.bf16.msra.mxu0 %v9506
        %9720 = vmatprep.subr.bf16.mxu0 %v9499
        %9721 = vmatpush2.bf16.msra.mxu0 %v9498
        %9722 = vmatprep.mubr.bf16.mxu0 %v9047
        %9723 = vmatmul.mubr.bf16.gmra.mxu0 %v9046
        %v9724 = vpop.f32.mrf.mxu0
        %v9725 = vadd.f32 0.0, %v9724
        %v9726 = vpop.f32.mrf.mxu0
        %v9727 = vadd.f32 0.0, %v9726
        %v9728 = vpop.f32.mrf.mxu0
        %v9729 = vpop.f32.mrf.mxu0
        %9730 = vdwg.mxu0
        %9731 = vmatprep.subr.bf16.mxu0 %v9493
        %9732 = vmatpush1.bf16.msra.mxu0 %v9492
        %9733 = vmatprep.subr.bf16.mxu0 %v9485
        %9734 = vmatpush1.bf16.msra.mxu0 %v9484
        %9735 = vmatprep.subr.bf16.mxu0 %v9477
        %9736 = vmatpush1.bf16.msra.mxu0 %v9476
        %9737 = vmatprep.subr.bf16.mxu0 %v9469
        %9738 = vmatpush1.bf16.msra.mxu0 %v9468
        %9739 = vmatprep.subr.bf16.mxu0 %v9461
        %9740 = vmatpush1.bf16.msra.mxu0 %v9460
        %9741 = vmatprep.subr.bf16.mxu0 %v9453
        %9742 = vmatpush1.bf16.msra.mxu0 %v9452
        %9743 = vmatprep.subr.bf16.mxu0 %v9445
        %9744 = vmatpush1.bf16.msra.mxu0 %v9444
        %9745 = vmatprep.subr.bf16.mxu0 %v9437
        %9746 = vmatpush1.bf16.msra.mxu0 %v9436
        %9747 = vmatprep.subr.bf16.mxu0 %v9557
        %9748 = vmatpush2.bf16.msra.mxu0 %v9556
        %9749 = vmatprep.subr.bf16.mxu0 %v9549
        %9750 = vmatpush2.bf16.msra.mxu0 %v9548
        %9751 = vmatprep.subr.bf16.mxu0 %v9541
        %9752 = vmatpush2.bf16.msra.mxu0 %v9540
        %9753 = vmatprep.subr.bf16.mxu0 %v9533
        %9754 = vmatpush2.bf16.msra.mxu0 %v9532
        %9755 = vmatprep.subr.bf16.mxu0 %v9525
        %9756 = vmatpush2.bf16.msra.mxu0 %v9524
        %9757 = vmatprep.subr.bf16.mxu0 %v9517
        %9758 = vmatpush2.bf16.msra.mxu0 %v9516
        %9759 = vmatprep.subr.bf16.mxu0 %v9509
        %9760 = vmatpush2.bf16.msra.mxu0 %v9508
        %9761 = vmatprep.subr.bf16.mxu0 %v9501
        %9762 = vmatpush2.bf16.msra.mxu0 %v9500
        %9763 = vmatprep.mubr.bf16.mxu0 %v9047
        %9764 = vmatmul.mubr.bf16.gmra.mxu0 %v9046
        %v9765 = vpop.f32.mrf.mxu0
        %v9766 = vadd.f32 0.0, %v9765
        %v9767 = vpop.f32.mrf.mxu0
        %v9768 = vadd.f32 0.0, %v9767
        %v9769 = vpop.f32.mrf.mxu0
        %v9770 = vpop.f32.mrf.mxu0
        %9771 = vdwg.mxu0
        %9772 = vmatprep.subr.bf16.mxu0 %v9495
        %9773 = vmatpush1.bf16.msra.mxu0 %v9494
        %9774 = vmatprep.subr.bf16.mxu0 %v9487
        %9775 = vmatpush1.bf16.msra.mxu0 %v9486
        %9776 = vmatprep.subr.bf16.mxu0 %v9479
        %9777 = vmatpush1.bf16.msra.mxu0 %v9478
        %9778 = vmatprep.subr.bf16.mxu0 %v9471
        %9779 = vmatpush1.bf16.msra.mxu0 %v9470
        %9780 = vmatprep.subr.bf16.mxu0 %v9463
        %9781 = vmatpush1.bf16.msra.mxu0 %v9462
        %9782 = vmatprep.subr.bf16.mxu0 %v9455
        %9783 = vmatpush1.bf16.msra.mxu0 %v9454
        %9784 = vmatprep.subr.bf16.mxu0 %v9447
        %9785 = vmatpush1.bf16.msra.mxu0 %v9446
        %9786 = vmatprep.subr.bf16.mxu0 %v9439
        %9787 = vmatpush1.bf16.msra.mxu0 %v9438
        %9788 = vmatprep.subr.bf16.mxu0 %v9559
        %9789 = vmatpush2.bf16.msra.mxu0 %v9558
        %9790 = vmatprep.subr.bf16.mxu0 %v9551
        %9791 = vmatpush2.bf16.msra.mxu0 %v9550
        %9792 = vmatprep.subr.bf16.mxu0 %v9543
        %9793 = vmatpush2.bf16.msra.mxu0 %v9542
        %9794 = vmatprep.subr.bf16.mxu0 %v9535
        %9795 = vmatpush2.bf16.msra.mxu0 %v9534
        %9796 = vmatprep.subr.bf16.mxu0 %v9527
        %9797 = vmatpush2.bf16.msra.mxu0 %v9526
        %9798 = vmatprep.subr.bf16.mxu0 %v9519
        %9799 = vmatpush2.bf16.msra.mxu0 %v9518
        %9800 = vmatprep.subr.bf16.mxu0 %v9511
        %9801 = vmatpush2.bf16.msra.mxu0 %v9510
        %9802 = vmatprep.subr.bf16.mxu0 %v9503
        %9803 = vmatpush2.bf16.msra.mxu0 %v9502
        %9804 = vmatprep.mubr.bf16.mxu0 %v9047
        %9805 = vmatmul.mubr.bf16.gmra.mxu0 %v9046
        %v9806 = vpop.f32.mrf.mxu0
        %v9807 = vadd.f32 0.0, %v9806
        %v9808 = vpop.f32.mrf.mxu0
        %v9809 = vadd.f32 0.0, %v9808
        %v9810 = vpop.f32.mrf.mxu0
        %v9811 = vpop.f32.mrf.mxu0
        %9812 = vdwg.mxu0
        %9813 = vmatprep.subr.bf16.mxu0 %v9497
        %9814 = vmatpush1.bf16.msra.mxu0 %v9496
        %9815 = vmatprep.subr.bf16.mxu0 %v9489
        %9816 = vmatpush1.bf16.msra.mxu0 %v9488
        %9817 = vmatprep.subr.bf16.mxu0 %v9481
        %9818 = vmatpush1.bf16.msra.mxu0 %v9480
        %9819 = vmatprep.subr.bf16.mxu0 %v9473
        %9820 = vmatpush1.bf16.msra.mxu0 %v9472
        %9821 = vmatprep.subr.bf16.mxu0 %v9465
        %9822 = vmatpush1.bf16.msra.mxu0 %v9464
        %9823 = vmatprep.subr.bf16.mxu0 %v9457
        %9824 = vmatpush1.bf16.msra.mxu0 %v9456
        %9825 = vmatprep.subr.bf16.mxu0 %v9449
        %9826 = vmatpush1.bf16.msra.mxu0 %v9448
        %9827 = vmatprep.subr.bf16.mxu0 %v9441
        %9828 = vmatpush1.bf16.msra.mxu0 %v9440
        %9829 = vmatprep.subr.bf16.mxu0 %v9561
        %9830 = vmatpush2.bf16.msra.mxu0 %v9560
        %9831 = vmatprep.subr.bf16.mxu0 %v9553
        %9832 = vmatpush2.bf16.msra.mxu0 %v9552
        %9833 = vmatprep.subr.bf16.mxu0 %v9545
        %9834 = vmatpush2.bf16.msra.mxu0 %v9544
        %9835 = vmatprep.subr.bf16.mxu0 %v9537
        %9836 = vmatpush2.bf16.msra.mxu0 %v9536
        %9837 = vmatprep.subr.bf16.mxu0 %v9529
        %9838 = vmatpush2.bf16.msra.mxu0 %v9528
        %9839 = vmatprep.subr.bf16.mxu0 %v9521
        %9840 = vmatpush2.bf16.msra.mxu0 %v9520
        %9841 = vmatprep.subr.bf16.mxu0 %v9513
        %9842 = vmatpush2.bf16.msra.mxu0 %v9512
        %9843 = vmatprep.subr.bf16.mxu0 %v9505
        %9844 = vmatpush2.bf16.msra.mxu0 %v9504
        %9845 = vmatprep.mubr.bf16.mxu0 %v9047
        %9846 = vmatmul.mubr.bf16.gmra.mxu0 %v9046
        %v9847 = vpop.f32.mrf.mxu0
        %v9848 = vadd.f32 0.0, %v9847
        %v9849 = vpop.f32.mrf.mxu0
        %v9850 = vadd.f32 0.0, %v9849
        %v9851 = vpop.f32.mrf.mxu0
        %v9852 = vpop.f32.mrf.mxu0
        %9853 = vdwg.mxu0
        %v9870 = vunpack.c.l.b16 %v8609
        %v9871 = vunpack.c.l.b16 %v8610
        %v9872 = vunpack.c.l.b16 %v8611
        %v9873 = vunpack.c.l.b16 %v8612
        %v9874 = vunpack.c.l.b16 %v8613
        %v9875 = vunpack.c.l.b16 %v8614
        %v9876 = vunpack.c.l.b16 %v8615
        %v9877 = vunpack.c.l.b16 %v8616
        %v9878 = vunpack.c.l.b16 %v8617
        %v9879 = vunpack.c.l.b16 %v8618
        %v9880 = vunpack.c.l.b16 %v8619
        %v9881 = vunpack.c.l.b16 %v8620
        %v9882 = vunpack.c.l.b16 %v8621
        %v9883 = vunpack.c.l.b16 %v8622
        %v9884 = vunpack.c.l.b16 %v8623
        %v9885 = vunpack.c.l.b16 %v8624
        %v9886 = vrot.slane %v9872, 7
        %v9887 = vsel %vm9018, %v9886, %v9870
        %v9888 = vrot.slane %v9874, 6
        %v9889 = vsel %vm3275, %v9888, %v9887
        %v9890 = vrot.slane %v9876, 5
        %v9891 = vsel %vm3277, %v9890, %v9889
        %v9892 = vrot.slane %v9878, 4
        %v9893 = vsel %vm3279, %v9892, %v9891
        %v9894 = vrot.slane %v9880, 3
        %v9895 = vsel %vm3281, %v9894, %v9893
        %v9896 = vrot.slane %v9882, 2
        %v9897 = vsel %vm3283, %v9896, %v9895
        %v9898 = vrot.slane %v9884, 1
        %v9899 = vsel %vm3285, %v9898, %v9897
        %v9900 = vrot.slane %v9873, 7
        %v9901 = vsel %vm9018, %v9900, %v9871
        %v9902 = vrot.slane %v9875, 6
        %v9903 = vsel %vm3275, %v9902, %v9901
        %v9904 = vrot.slane %v9877, 5
        %v9905 = vsel %vm3277, %v9904, %v9903
        %v9906 = vrot.slane %v9879, 4
        %v9907 = vsel %vm3279, %v9906, %v9905
        %v9908 = vrot.slane %v9881, 3
        %v9909 = vsel %vm3281, %v9908, %v9907
        %v9910 = vrot.slane %v9883, 2
        %v9911 = vsel %vm3283, %v9910, %v9909
        %v9912 = vrot.slane %v9885, 1
        %v9913 = vsel %vm3285, %v9912, %v9911
        %v9914 = vpack.c.b16 %v9899, %v9899
        %v9915 = vpack.c.b16 %v9913, %v9913
        %v10046 = vunpack.c.l.b16 %v8625
        %v10047 = vunpack.c.h.b16 %v8625
        %v10048 = vunpack.c.l.b16 %v8626
        %v10049 = vunpack.c.h.b16 %v8626
        %v10050 = vunpack.c.l.b16 %v8627
        %v10051 = vunpack.c.h.b16 %v8627
        %v10052 = vunpack.c.l.b16 %v8628
        %v10053 = vunpack.c.h.b16 %v8628
        %v10054 = vunpack.c.l.b16 %v8629
        %v10055 = vunpack.c.h.b16 %v8629
        %v10056 = vunpack.c.l.b16 %v8630
        %v10057 = vunpack.c.h.b16 %v8630
        %v10058 = vunpack.c.l.b16 %v8631
        %v10059 = vunpack.c.h.b16 %v8631
        %v10060 = vunpack.c.l.b16 %v8632
        %v10061 = vunpack.c.h.b16 %v8632
        %v10062 = vunpack.c.l.b16 %v8633
        %v10063 = vunpack.c.h.b16 %v8633
        %v10064 = vunpack.c.l.b16 %v8634
        %v10065 = vunpack.c.h.b16 %v8634
        %v10066 = vunpack.c.l.b16 %v8635
        %v10067 = vunpack.c.h.b16 %v8635
        %v10068 = vunpack.c.l.b16 %v8636
        %v10069 = vunpack.c.h.b16 %v8636
        %v10070 = vunpack.c.l.b16 %v8637
        %v10071 = vunpack.c.h.b16 %v8637
        %v10072 = vunpack.c.l.b16 %v8638
        %v10073 = vunpack.c.h.b16 %v8638
        %v10074 = vunpack.c.l.b16 %v8639
        %v10075 = vunpack.c.h.b16 %v8639
        %v10076 = vunpack.c.l.b16 %v8640
        %v10077 = vunpack.c.h.b16 %v8640
        %v10078 = vunpack.c.l.b16 %v8641
        %v10079 = vunpack.c.h.b16 %v8641
        %v10080 = vunpack.c.l.b16 %v8642
        %v10081 = vunpack.c.h.b16 %v8642
        %v10082 = vunpack.c.l.b16 %v8643
        %v10083 = vunpack.c.h.b16 %v8643
        %v10084 = vunpack.c.l.b16 %v8644
        %v10085 = vunpack.c.h.b16 %v8644
        %v10086 = vunpack.c.l.b16 %v8645
        %v10087 = vunpack.c.h.b16 %v8645
        %v10088 = vunpack.c.l.b16 %v8646
        %v10089 = vunpack.c.h.b16 %v8646
        %v10090 = vunpack.c.l.b16 %v8647
        %v10091 = vunpack.c.h.b16 %v8647
        %v10092 = vunpack.c.l.b16 %v8648
        %v10093 = vunpack.c.h.b16 %v8648
        %v10094 = vunpack.c.l.b16 %v8649
        %v10095 = vunpack.c.h.b16 %v8649
        %v10096 = vunpack.c.l.b16 %v8650
        %v10097 = vunpack.c.h.b16 %v8650
        %v10098 = vunpack.c.l.b16 %v8651
        %v10099 = vunpack.c.h.b16 %v8651
        %v10100 = vunpack.c.l.b16 %v8652
        %v10101 = vunpack.c.h.b16 %v8652
        %v10102 = vunpack.c.l.b16 %v8653
        %v10103 = vunpack.c.h.b16 %v8653
        %v10104 = vunpack.c.l.b16 %v8654
        %v10105 = vunpack.c.h.b16 %v8654
        %v10106 = vunpack.c.l.b16 %v8655
        %v10107 = vunpack.c.h.b16 %v8655
        %v10108 = vunpack.c.l.b16 %v8656
        %v10109 = vunpack.c.h.b16 %v8656
        %v10110 = vunpack.c.l.b16 %v8657
        %v10111 = vunpack.c.h.b16 %v8657
        %v10112 = vunpack.c.l.b16 %v8658
        %v10113 = vunpack.c.h.b16 %v8658
        %v10114 = vunpack.c.l.b16 %v8659
        %v10115 = vunpack.c.h.b16 %v8659
        %v10116 = vunpack.c.l.b16 %v8660
        %v10117 = vunpack.c.h.b16 %v8660
        %v10118 = vunpack.c.l.b16 %v8661
        %v10119 = vunpack.c.h.b16 %v8661
        %v10120 = vunpack.c.l.b16 %v8662
        %v10121 = vunpack.c.h.b16 %v8662
        %v10122 = vunpack.c.l.b16 %v8663
        %v10123 = vunpack.c.h.b16 %v8663
        %v10124 = vunpack.c.l.b16 %v8664
        %v10125 = vunpack.c.h.b16 %v8664
        %v10126 = vunpack.c.l.b16 %v8665
        %v10127 = vunpack.c.h.b16 %v8665
        %v10128 = vunpack.c.l.b16 %v8666
        %v10129 = vunpack.c.h.b16 %v8666
        %v10130 = vunpack.c.l.b16 %v8667
        %v10131 = vunpack.c.h.b16 %v8667
        %v10132 = vunpack.c.l.b16 %v8668
        %v10133 = vunpack.c.h.b16 %v8668
        %v10134 = vunpack.c.l.b16 %v8669
        %v10135 = vunpack.c.h.b16 %v8669
        %v10136 = vunpack.c.l.b16 %v8670
        %v10137 = vunpack.c.h.b16 %v8670
        %v10138 = vunpack.c.l.b16 %v8671
        %v10139 = vunpack.c.h.b16 %v8671
        %v10140 = vunpack.c.l.b16 %v8672
        %v10141 = vunpack.c.h.b16 %v8672
        %v10142 = vunpack.c.l.b16 %v8673
        %v10143 = vunpack.c.h.b16 %v8673
        %v10144 = vunpack.c.l.b16 %v8674
        %v10145 = vunpack.c.h.b16 %v8674
        %v10146 = vunpack.c.l.b16 %v8675
        %v10147 = vunpack.c.h.b16 %v8675
        %v10148 = vunpack.c.l.b16 %v8676
        %v10149 = vunpack.c.h.b16 %v8676
        %v10150 = vunpack.c.l.b16 %v8677
        %v10151 = vunpack.c.h.b16 %v8677
        %v10152 = vunpack.c.l.b16 %v8678
        %v10153 = vunpack.c.h.b16 %v8678
        %v10154 = vunpack.c.l.b16 %v8679
        %v10155 = vunpack.c.h.b16 %v8679
        %v10156 = vunpack.c.l.b16 %v8680
        %v10157 = vunpack.c.h.b16 %v8680
        %v10158 = vunpack.c.l.b16 %v8681
        %v10159 = vunpack.c.h.b16 %v8681
        %v10160 = vunpack.c.l.b16 %v8682
        %v10161 = vunpack.c.h.b16 %v8682
        %v10162 = vunpack.c.l.b16 %v8683
        %v10163 = vunpack.c.h.b16 %v8683
        %v10164 = vunpack.c.l.b16 %v8684
        %v10165 = vunpack.c.h.b16 %v8684
        %v10166 = vunpack.c.l.b16 %v8685
        %v10167 = vunpack.c.h.b16 %v8685
        %v10168 = vunpack.c.l.b16 %v8686
        %v10169 = vunpack.c.h.b16 %v8686
        %v10170 = vunpack.c.l.b16 %v8687
        %v10171 = vunpack.c.h.b16 %v8687
        %v10172 = vunpack.c.l.b16 %v8688
        %v10173 = vunpack.c.h.b16 %v8688
        %v10174 = vunpack.c.l.b16 %v8689
        %v10175 = vunpack.c.h.b16 %v8689
        %v10176 = vunpack.c.l.b16 %v8690
        %v10177 = vunpack.c.h.b16 %v8690
        %v10178 = vunpack.c.l.b16 %v8691
        %v10179 = vunpack.c.h.b16 %v8691
        %v10180 = vunpack.c.l.b16 %v8692
        %v10181 = vunpack.c.h.b16 %v8692
        %v10182 = vunpack.c.l.b16 %v8693
        %v10183 = vunpack.c.h.b16 %v8693
        %v10184 = vunpack.c.l.b16 %v8694
        %v10185 = vunpack.c.h.b16 %v8694
        %v10186 = vunpack.c.l.b16 %v8695
        %v10187 = vunpack.c.h.b16 %v8695
        %v10188 = vunpack.c.l.b16 %v8696
        %v10189 = vunpack.c.h.b16 %v8696
        %v10190 = vunpack.c.l.b16 %v8697
        %v10191 = vunpack.c.h.b16 %v8697
        %v10192 = vunpack.c.l.b16 %v8698
        %v10193 = vunpack.c.h.b16 %v8698
        %v10194 = vunpack.c.l.b16 %v8699
        %v10195 = vunpack.c.h.b16 %v8699
        %v10196 = vunpack.c.l.b16 %v8700
        %v10197 = vunpack.c.h.b16 %v8700
        %v10198 = vunpack.c.l.b16 %v8701
        %v10199 = vunpack.c.h.b16 %v8701
        %v10200 = vunpack.c.l.b16 %v8702
        %v10201 = vunpack.c.h.b16 %v8702
        %v10202 = vunpack.c.l.b16 %v8703
        %v10203 = vunpack.c.h.b16 %v8703
        %v10204 = vunpack.c.l.b16 %v8704
        %v10205 = vunpack.c.h.b16 %v8704
        %v10206 = vunpack.c.l.b16 %v8705
        %v10207 = vunpack.c.h.b16 %v8705
        %v10208 = vunpack.c.l.b16 %v8706
        %v10209 = vunpack.c.h.b16 %v8706
        %v10210 = vunpack.c.l.b16 %v8707
        %v10211 = vunpack.c.h.b16 %v8707
        %v10212 = vunpack.c.l.b16 %v8708
        %v10213 = vunpack.c.h.b16 %v8708
        %v10214 = vunpack.c.l.b16 %v8709
        %v10215 = vunpack.c.h.b16 %v8709
        %v10216 = vunpack.c.l.b16 %v8710
        %v10217 = vunpack.c.h.b16 %v8710
        %v10218 = vunpack.c.l.b16 %v8711
        %v10219 = vunpack.c.h.b16 %v8711
        %v10220 = vunpack.c.l.b16 %v8712
        %v10221 = vunpack.c.h.b16 %v8712
        %v10222 = vunpack.c.l.b16 %v8713
        %v10223 = vunpack.c.h.b16 %v8713
        %v10224 = vunpack.c.l.b16 %v8714
        %v10225 = vunpack.c.h.b16 %v8714
        %v10226 = vunpack.c.l.b16 %v8715
        %v10227 = vunpack.c.h.b16 %v8715
        %v10228 = vunpack.c.l.b16 %v8716
        %v10229 = vunpack.c.h.b16 %v8716
        %v10230 = vunpack.c.l.b16 %v8717
        %v10231 = vunpack.c.h.b16 %v8717
        %v10232 = vunpack.c.l.b16 %v8718
        %v10233 = vunpack.c.h.b16 %v8718
        %v10234 = vunpack.c.l.b16 %v8719
        %v10235 = vunpack.c.h.b16 %v8719
        %v10236 = vunpack.c.l.b16 %v8720
        %v10237 = vunpack.c.h.b16 %v8720
        %v10238 = vunpack.c.l.b16 %v8721
        %v10239 = vunpack.c.h.b16 %v8721
        %v10240 = vunpack.c.l.b16 %v8722
        %v10241 = vunpack.c.h.b16 %v8722
        %v10242 = vunpack.c.l.b16 %v8723
        %v10243 = vunpack.c.h.b16 %v8723
        %v10244 = vunpack.c.l.b16 %v8724
        %v10245 = vunpack.c.h.b16 %v8724
        %v10246 = vunpack.c.l.b16 %v8725
        %v10247 = vunpack.c.h.b16 %v8725
        %v10248 = vunpack.c.l.b16 %v8726
        %v10249 = vunpack.c.h.b16 %v8726
        %v10250 = vunpack.c.l.b16 %v8727
        %v10251 = vunpack.c.h.b16 %v8727
        %v10252 = vunpack.c.l.b16 %v8728
        %v10253 = vunpack.c.h.b16 %v8728
        %v10254 = vunpack.c.l.b16 %v8729
        %v10255 = vunpack.c.h.b16 %v8729
        %v10256 = vunpack.c.l.b16 %v8730
        %v10257 = vunpack.c.h.b16 %v8730
        %v10258 = vunpack.c.l.b16 %v8731
        %v10259 = vunpack.c.h.b16 %v8731
        %v10260 = vunpack.c.l.b16 %v8732
        %v10261 = vunpack.c.h.b16 %v8732
        %v10262 = vunpack.c.l.b16 %v8733
        %v10263 = vunpack.c.h.b16 %v8733
        %v10264 = vunpack.c.l.b16 %v8734
        %v10265 = vunpack.c.h.b16 %v8734
        %v10266 = vunpack.c.l.b16 %v8735
        %v10267 = vunpack.c.h.b16 %v8735
        %v10268 = vunpack.c.l.b16 %v8736
        %v10269 = vunpack.c.h.b16 %v8736
        %v10270 = vunpack.c.l.b16 %v8737
        %v10271 = vunpack.c.h.b16 %v8737
        %v10272 = vunpack.c.l.b16 %v8738
        %v10273 = vunpack.c.h.b16 %v8738
        %v10274 = vunpack.c.l.b16 %v8739
        %v10275 = vunpack.c.h.b16 %v8739
        %v10276 = vunpack.c.l.b16 %v8740
        %v10277 = vunpack.c.h.b16 %v8740
        %v10278 = vunpack.c.l.b16 %v8741
        %v10279 = vunpack.c.h.b16 %v8741
        %v10280 = vunpack.c.l.b16 %v8742
        %v10281 = vunpack.c.h.b16 %v8742
        %v10282 = vunpack.c.l.b16 %v8743
        %v10283 = vunpack.c.h.b16 %v8743
        %v10284 = vunpack.c.l.b16 %v8744
        %v10285 = vunpack.c.h.b16 %v8744
        %v10286 = vunpack.c.l.b16 %v8745
        %v10287 = vunpack.c.h.b16 %v8745
        %v10288 = vunpack.c.l.b16 %v8746
        %v10289 = vunpack.c.h.b16 %v8746
        %v10290 = vunpack.c.l.b16 %v8747
        %v10291 = vunpack.c.h.b16 %v8747
        %v10292 = vunpack.c.l.b16 %v8748
        %v10293 = vunpack.c.h.b16 %v8748
        %v10294 = vunpack.c.l.b16 %v8749
        %v10295 = vunpack.c.h.b16 %v8749
        %v10296 = vunpack.c.l.b16 %v8750
        %v10297 = vunpack.c.h.b16 %v8750
        %v10298 = vunpack.c.l.b16 %v8751
        %v10299 = vunpack.c.h.b16 %v8751
        %v10300 = vunpack.c.l.b16 %v8752
        %v10301 = vunpack.c.h.b16 %v8752
        %v10302 = vpack.c.b16 %v10054, %v10046
        %v10303 = vpack.c.b16 %v10055, %v10047
        %v10304 = vpack.c.b16 %v10056, %v10048
        %v10305 = vpack.c.b16 %v10057, %v10049
        %v10306 = vpack.c.b16 %v10058, %v10050
        %v10307 = vpack.c.b16 %v10059, %v10051
        %v10308 = vpack.c.b16 %v10060, %v10052
        %v10309 = vpack.c.b16 %v10061, %v10053
        %v10310 = vpack.c.b16 %v10070, %v10062
        %v10311 = vpack.c.b16 %v10071, %v10063
        %v10312 = vpack.c.b16 %v10072, %v10064
        %v10313 = vpack.c.b16 %v10073, %v10065
        %v10314 = vpack.c.b16 %v10074, %v10066
        %v10315 = vpack.c.b16 %v10075, %v10067
        %v10316 = vpack.c.b16 %v10076, %v10068
        %v10317 = vpack.c.b16 %v10077, %v10069
        %v10318 = vpack.c.b16 %v10086, %v10078
        %v10319 = vpack.c.b16 %v10087, %v10079
        %v10320 = vpack.c.b16 %v10088, %v10080
        %v10321 = vpack.c.b16 %v10089, %v10081
        %v10322 = vpack.c.b16 %v10090, %v10082
        %v10323 = vpack.c.b16 %v10091, %v10083
        %v10324 = vpack.c.b16 %v10092, %v10084
        %v10325 = vpack.c.b16 %v10093, %v10085
        %v10326 = vpack.c.b16 %v10102, %v10094
        %v10327 = vpack.c.b16 %v10103, %v10095
        %v10328 = vpack.c.b16 %v10104, %v10096
        %v10329 = vpack.c.b16 %v10105, %v10097
        %v10330 = vpack.c.b16 %v10106, %v10098
        %v10331 = vpack.c.b16 %v10107, %v10099
        %v10332 = vpack.c.b16 %v10108, %v10100
        %v10333 = vpack.c.b16 %v10109, %v10101
        %v10334 = vpack.c.b16 %v10118, %v10110
        %v10335 = vpack.c.b16 %v10119, %v10111
        %v10336 = vpack.c.b16 %v10120, %v10112
        %v10337 = vpack.c.b16 %v10121, %v10113
        %v10338 = vpack.c.b16 %v10122, %v10114
        %v10339 = vpack.c.b16 %v10123, %v10115
        %v10340 = vpack.c.b16 %v10124, %v10116
        %v10341 = vpack.c.b16 %v10125, %v10117
        %v10342 = vpack.c.b16 %v10134, %v10126
        %v10343 = vpack.c.b16 %v10135, %v10127
        %v10344 = vpack.c.b16 %v10136, %v10128
        %v10345 = vpack.c.b16 %v10137, %v10129
        %v10346 = vpack.c.b16 %v10138, %v10130
        %v10347 = vpack.c.b16 %v10139, %v10131
        %v10348 = vpack.c.b16 %v10140, %v10132
        %v10349 = vpack.c.b16 %v10141, %v10133
        %v10350 = vpack.c.b16 %v10150, %v10142
        %v10351 = vpack.c.b16 %v10151, %v10143
        %v10352 = vpack.c.b16 %v10152, %v10144
        %v10353 = vpack.c.b16 %v10153, %v10145
        %v10354 = vpack.c.b16 %v10154, %v10146
        %v10355 = vpack.c.b16 %v10155, %v10147
        %v10356 = vpack.c.b16 %v10156, %v10148
        %v10357 = vpack.c.b16 %v10157, %v10149
        %v10358 = vpack.c.b16 %v10166, %v10158
        %v10359 = vpack.c.b16 %v10167, %v10159
        %v10360 = vpack.c.b16 %v10168, %v10160
        %v10361 = vpack.c.b16 %v10169, %v10161
        %v10362 = vpack.c.b16 %v10170, %v10162
        %v10363 = vpack.c.b16 %v10171, %v10163
        %v10364 = vpack.c.b16 %v10172, %v10164
        %v10365 = vpack.c.b16 %v10173, %v10165
        %v10366 = vpack.c.b16 %v10182, %v10174
        %v10367 = vpack.c.b16 %v10183, %v10175
        %v10368 = vpack.c.b16 %v10184, %v10176
        %v10369 = vpack.c.b16 %v10185, %v10177
        %v10370 = vpack.c.b16 %v10186, %v10178
        %v10371 = vpack.c.b16 %v10187, %v10179
        %v10372 = vpack.c.b16 %v10188, %v10180
        %v10373 = vpack.c.b16 %v10189, %v10181
        %v10374 = vpack.c.b16 %v10198, %v10190
        %v10375 = vpack.c.b16 %v10199, %v10191
        %v10376 = vpack.c.b16 %v10200, %v10192
        %v10377 = vpack.c.b16 %v10201, %v10193
        %v10378 = vpack.c.b16 %v10202, %v10194
        %v10379 = vpack.c.b16 %v10203, %v10195
        %v10380 = vpack.c.b16 %v10204, %v10196
        %v10381 = vpack.c.b16 %v10205, %v10197
        %v10382 = vpack.c.b16 %v10214, %v10206
        %v10383 = vpack.c.b16 %v10215, %v10207
        %v10384 = vpack.c.b16 %v10216, %v10208
        %v10385 = vpack.c.b16 %v10217, %v10209
        %v10386 = vpack.c.b16 %v10218, %v10210
        %v10387 = vpack.c.b16 %v10219, %v10211
        %v10388 = vpack.c.b16 %v10220, %v10212
        %v10389 = vpack.c.b16 %v10221, %v10213
        %v10390 = vpack.c.b16 %v10230, %v10222
        %v10391 = vpack.c.b16 %v10231, %v10223
        %v10392 = vpack.c.b16 %v10232, %v10224
        %v10393 = vpack.c.b16 %v10233, %v10225
        %v10394 = vpack.c.b16 %v10234, %v10226
        %v10395 = vpack.c.b16 %v10235, %v10227
        %v10396 = vpack.c.b16 %v10236, %v10228
        %v10397 = vpack.c.b16 %v10237, %v10229
        %v10398 = vpack.c.b16 %v10246, %v10238
        %v10399 = vpack.c.b16 %v10247, %v10239
        %v10400 = vpack.c.b16 %v10248, %v10240
        %v10401 = vpack.c.b16 %v10249, %v10241
        %v10402 = vpack.c.b16 %v10250, %v10242
        %v10403 = vpack.c.b16 %v10251, %v10243
        %v10404 = vpack.c.b16 %v10252, %v10244
        %v10405 = vpack.c.b16 %v10253, %v10245
        %v10406 = vpack.c.b16 %v10262, %v10254
        %v10407 = vpack.c.b16 %v10263, %v10255
        %v10408 = vpack.c.b16 %v10264, %v10256
        %v10409 = vpack.c.b16 %v10265, %v10257
        %v10410 = vpack.c.b16 %v10266, %v10258
        %v10411 = vpack.c.b16 %v10267, %v10259
        %v10412 = vpack.c.b16 %v10268, %v10260
        %v10413 = vpack.c.b16 %v10269, %v10261
        %v10414 = vpack.c.b16 %v10278, %v10270
        %v10415 = vpack.c.b16 %v10279, %v10271
        %v10416 = vpack.c.b16 %v10280, %v10272
        %v10417 = vpack.c.b16 %v10281, %v10273
        %v10418 = vpack.c.b16 %v10282, %v10274
        %v10419 = vpack.c.b16 %v10283, %v10275
        %v10420 = vpack.c.b16 %v10284, %v10276
        %v10421 = vpack.c.b16 %v10285, %v10277
        %v10422 = vpack.c.b16 %v10294, %v10286
        %v10423 = vpack.c.b16 %v10295, %v10287
        %v10424 = vpack.c.b16 %v10296, %v10288
        %v10425 = vpack.c.b16 %v10297, %v10289
        %v10426 = vpack.c.b16 %v10298, %v10290
        %v10427 = vpack.c.b16 %v10299, %v10291
        %v10428 = vpack.c.b16 %v10300, %v10292
        %v10429 = vpack.c.b16 %v10301, %v10293
        %10558 = vmatprep.subr.bf16.mxu0 %v10359
        %10559 = vmatpush1.bf16.msra.mxu0 %v10358
        %10560 = vmatprep.subr.bf16.mxu0 %v10351
        %10561 = vmatpush1.bf16.msra.mxu0 %v10350
        %10562 = vmatprep.subr.bf16.mxu0 %v10343
        %10563 = vmatpush1.bf16.msra.mxu0 %v10342
        %10564 = vmatprep.subr.bf16.mxu0 %v10335
        %10565 = vmatpush1.bf16.msra.mxu0 %v10334
        %10566 = vmatprep.subr.bf16.mxu0 %v10327
        %10567 = vmatpush1.bf16.msra.mxu0 %v10326
        %10568 = vmatprep.subr.bf16.mxu0 %v10319
        %10569 = vmatpush1.bf16.msra.mxu0 %v10318
        %10570 = vmatprep.subr.bf16.mxu0 %v10311
        %10571 = vmatpush1.bf16.msra.mxu0 %v10310
        %10572 = vmatprep.subr.bf16.mxu0 %v10303
        %10573 = vmatpush1.bf16.msra.mxu0 %v10302
        %10574 = vmatprep.subr.bf16.mxu0 %v10423
        %10575 = vmatpush2.bf16.msra.mxu0 %v10422
        %10576 = vmatprep.subr.bf16.mxu0 %v10415
        %10577 = vmatpush2.bf16.msra.mxu0 %v10414
        %10578 = vmatprep.subr.bf16.mxu0 %v10407
        %10579 = vmatpush2.bf16.msra.mxu0 %v10406
        %10580 = vmatprep.subr.bf16.mxu0 %v10399
        %10581 = vmatpush2.bf16.msra.mxu0 %v10398
        %10582 = vmatprep.subr.bf16.mxu0 %v10391
        %10583 = vmatpush2.bf16.msra.mxu0 %v10390
        %10584 = vmatprep.subr.bf16.mxu0 %v10383
        %10585 = vmatpush2.bf16.msra.mxu0 %v10382
        %10586 = vmatprep.subr.bf16.mxu0 %v10375
        %10587 = vmatpush2.bf16.msra.mxu0 %v10374
        %10588 = vmatprep.subr.bf16.mxu0 %v10367
        %10589 = vmatpush2.bf16.msra.mxu0 %v10366
        %10590 = vmatprep.mubr.bf16.mxu0 %v9915
        %10591 = vmatmul.mubr.bf16.gmra.mxu0 %v9914
        %v10592 = vpop.f32.mrf.mxu0
        %v10593 = vadd.f32 %v9725, %v10592
        %v10594 = vpop.f32.mrf.mxu0
        %v10595 = vadd.f32 %v9727, %v10594
        %v10596 = vpop.f32.mrf.mxu0
        %v10597 = vpop.f32.mrf.mxu0
        %10598 = vdwg.mxu0
        %10599 = vmatprep.subr.bf16.mxu0 %v10361
        %10600 = vmatpush1.bf16.msra.mxu0 %v10360
        %10601 = vmatprep.subr.bf16.mxu0 %v10353
        %10602 = vmatpush1.bf16.msra.mxu0 %v10352
        %10603 = vmatprep.subr.bf16.mxu0 %v10345
        %10604 = vmatpush1.bf16.msra.mxu0 %v10344
        %10605 = vmatprep.subr.bf16.mxu0 %v10337
        %10606 = vmatpush1.bf16.msra.mxu0 %v10336
        %10607 = vmatprep.subr.bf16.mxu0 %v10329
        %10608 = vmatpush1.bf16.msra.mxu0 %v10328
        %10609 = vmatprep.subr.bf16.mxu0 %v10321
        %10610 = vmatpush1.bf16.msra.mxu0 %v10320
        %10611 = vmatprep.subr.bf16.mxu0 %v10313
        %10612 = vmatpush1.bf16.msra.mxu0 %v10312
        %10613 = vmatprep.subr.bf16.mxu0 %v10305
        %10614 = vmatpush1.bf16.msra.mxu0 %v10304
        %10615 = vmatprep.subr.bf16.mxu0 %v10425
        %10616 = vmatpush2.bf16.msra.mxu0 %v10424
        %10617 = vmatprep.subr.bf16.mxu0 %v10417
        %10618 = vmatpush2.bf16.msra.mxu0 %v10416
        %10619 = vmatprep.subr.bf16.mxu0 %v10409
        %10620 = vmatpush2.bf16.msra.mxu0 %v10408
        %10621 = vmatprep.subr.bf16.mxu0 %v10401
        %10622 = vmatpush2.bf16.msra.mxu0 %v10400
        %10623 = vmatprep.subr.bf16.mxu0 %v10393
        %10624 = vmatpush2.bf16.msra.mxu0 %v10392
        %10625 = vmatprep.subr.bf16.mxu0 %v10385
        %10626 = vmatpush2.bf16.msra.mxu0 %v10384
        %10627 = vmatprep.subr.bf16.mxu0 %v10377
        %10628 = vmatpush2.bf16.msra.mxu0 %v10376
        %10629 = vmatprep.subr.bf16.mxu0 %v10369
        %10630 = vmatpush2.bf16.msra.mxu0 %v10368
        %10631 = vmatprep.mubr.bf16.mxu0 %v9915
        %10632 = vmatmul.mubr.bf16.gmra.mxu0 %v9914
        %v10633 = vpop.f32.mrf.mxu0
        %v10634 = vadd.f32 %v9766, %v10633
        %v10635 = vpop.f32.mrf.mxu0
        %v10636 = vadd.f32 %v9768, %v10635
        %v10637 = vpop.f32.mrf.mxu0
        %v10638 = vpop.f32.mrf.mxu0
        %10639 = vdwg.mxu0
        %10640 = vmatprep.subr.bf16.mxu0 %v10363
        %10641 = vmatpush1.bf16.msra.mxu0 %v10362
        %10642 = vmatprep.subr.bf16.mxu0 %v10355
        %10643 = vmatpush1.bf16.msra.mxu0 %v10354
        %10644 = vmatprep.subr.bf16.mxu0 %v10347
        %10645 = vmatpush1.bf16.msra.mxu0 %v10346
        %10646 = vmatprep.subr.bf16.mxu0 %v10339
        %10647 = vmatpush1.bf16.msra.mxu0 %v10338
        %10648 = vmatprep.subr.bf16.mxu0 %v10331
        %10649 = vmatpush1.bf16.msra.mxu0 %v10330
        %10650 = vmatprep.subr.bf16.mxu0 %v10323
        %10651 = vmatpush1.bf16.msra.mxu0 %v10322
        %10652 = vmatprep.subr.bf16.mxu0 %v10315
        %10653 = vmatpush1.bf16.msra.mxu0 %v10314
        %10654 = vmatprep.subr.bf16.mxu0 %v10307
        %10655 = vmatpush1.bf16.msra.mxu0 %v10306
        %10656 = vmatprep.subr.bf16.mxu0 %v10427
        %10657 = vmatpush2.bf16.msra.mxu0 %v10426
        %10658 = vmatprep.subr.bf16.mxu0 %v10419
        %10659 = vmatpush2.bf16.msra.mxu0 %v10418
        %10660 = vmatprep.subr.bf16.mxu0 %v10411
        %10661 = vmatpush2.bf16.msra.mxu0 %v10410
        %10662 = vmatprep.subr.bf16.mxu0 %v10403
        %10663 = vmatpush2.bf16.msra.mxu0 %v10402
        %10664 = vmatprep.subr.bf16.mxu0 %v10395
        %10665 = vmatpush2.bf16.msra.mxu0 %v10394
        %10666 = vmatprep.subr.bf16.mxu0 %v10387
        %10667 = vmatpush2.bf16.msra.mxu0 %v10386
        %10668 = vmatprep.subr.bf16.mxu0 %v10379
        %10669 = vmatpush2.bf16.msra.mxu0 %v10378
        %10670 = vmatprep.subr.bf16.mxu0 %v10371
        %10671 = vmatpush2.bf16.msra.mxu0 %v10370
        %10672 = vmatprep.mubr.bf16.mxu0 %v9915
        %10673 = vmatmul.mubr.bf16.gmra.mxu0 %v9914
        %v10674 = vpop.f32.mrf.mxu0
        %v10675 = vadd.f32 %v9807, %v10674
        %v10676 = vpop.f32.mrf.mxu0
        %v10677 = vadd.f32 %v9809, %v10676
        %v10678 = vpop.f32.mrf.mxu0
        %v10679 = vpop.f32.mrf.mxu0
        %10680 = vdwg.mxu0
        %10681 = vmatprep.subr.bf16.mxu0 %v10365
        %10682 = vmatpush1.bf16.msra.mxu0 %v10364
        %10683 = vmatprep.subr.bf16.mxu0 %v10357
        %10684 = vmatpush1.bf16.msra.mxu0 %v10356
        %10685 = vmatprep.subr.bf16.mxu0 %v10349
        %10686 = vmatpush1.bf16.msra.mxu0 %v10348
        %10687 = vmatprep.subr.bf16.mxu0 %v10341
        %10688 = vmatpush1.bf16.msra.mxu0 %v10340
        %10689 = vmatprep.subr.bf16.mxu0 %v10333
        %10690 = vmatpush1.bf16.msra.mxu0 %v10332
        %10691 = vmatprep.subr.bf16.mxu0 %v10325
        %10692 = vmatpush1.bf16.msra.mxu0 %v10324
        %10693 = vmatprep.subr.bf16.mxu0 %v10317
        %10694 = vmatpush1.bf16.msra.mxu0 %v10316
        %10695 = vmatprep.subr.bf16.mxu0 %v10309
        %10696 = vmatpush1.bf16.msra.mxu0 %v10308
        %10697 = vmatprep.subr.bf16.mxu0 %v10429
        %10698 = vmatpush2.bf16.msra.mxu0 %v10428
        %10699 = vmatprep.subr.bf16.mxu0 %v10421
        %10700 = vmatpush2.bf16.msra.mxu0 %v10420
        %10701 = vmatprep.subr.bf16.mxu0 %v10413
        %10702 = vmatpush2.bf16.msra.mxu0 %v10412
        %10703 = vmatprep.subr.bf16.mxu0 %v10405
        %10704 = vmatpush2.bf16.msra.mxu0 %v10404
        %10705 = vmatprep.subr.bf16.mxu0 %v10397
        %10706 = vmatpush2.bf16.msra.mxu0 %v10396
        %10707 = vmatprep.subr.bf16.mxu0 %v10389
        %10708 = vmatpush2.bf16.msra.mxu0 %v10388
        %10709 = vmatprep.subr.bf16.mxu0 %v10381
        %10710 = vmatpush2.bf16.msra.mxu0 %v10380
        %10711 = vmatprep.subr.bf16.mxu0 %v10373
        %10712 = vmatpush2.bf16.msra.mxu0 %v10372
        %10713 = vmatprep.mubr.bf16.mxu0 %v9915
        %10714 = vmatmul.mubr.bf16.gmra.mxu0 %v9914
        %v10715 = vpop.f32.mrf.mxu0
        %v10716 = vadd.f32 %v9848, %v10715
        %v10717 = vpop.f32.mrf.mxu0
        %v10718 = vadd.f32 %v9850, %v10717
        %v10719 = vpop.f32.mrf.mxu0
        %v10720 = vpop.f32.mrf.mxu0
        %10721 = vdwg.mxu0
        %v10722 = vld [vmem:[%s9] sm:$0xff]
        %v10724 = vlaneseq
        %v10725 = vshrl.u32 %v10724, 7
        %v10726 = vsub.s32 0, %v10725
        %v10727 = vrot.slane %v10722, %v10726
        %v10728 = vlaneseq
        %v10729 = vshrl.u32 %v10728, 7
        %v10730 = vsub.s32 1, %v10729
        %v10731 = vrot.slane %v10722, %v10730
        %v10732 = vlaneseq
        %v10733 = vshrl.u32 %v10732, 7
        %v10734 = vsub.s32 2, %v10733
        %v10735 = vrot.slane %v10722, %v10734
        %v10736 = vlaneseq
        %v10737 = vshrl.u32 %v10736, 7
        %v10738 = vsub.s32 3, %v10737
        %v10739 = vrot.slane %v10722, %v10738
        %v10740 = vlaneseq
        %v10741 = vshrl.u32 %v10740, 7
        %v10742 = vsub.s32 4, %v10741
        %v10743 = vrot.slane %v10722, %v10742
        %v10744 = vlaneseq
        %v10745 = vshrl.u32 %v10744, 7
        %v10746 = vsub.s32 5, %v10745
        %v10747 = vrot.slane %v10722, %v10746
        %v10748 = vlaneseq
        %v10749 = vshrl.u32 %v10748, 7
        %v10750 = vsub.s32 6, %v10749
        %v10751 = vrot.slane %v10722, %v10750
        %v10752 = vlaneseq
        %v10753 = vshrl.u32 %v10752, 7
        %v10754 = vsub.s32 7, %v10753
        %v10755 = vrot.slane %v10722, %v10754
        %v10764 = vadd.f32 %v10593, %v10727
        %v10765 = vadd.f32 %v10595, %v10731
        %v10766 = vadd.f32 %v10634, %v10735
        %v10767 = vadd.f32 %v10636, %v10739
        %v10768 = vadd.f32 %v10675, %v10743
        %v10769 = vadd.f32 %v10677, %v10747
        %v10770 = vadd.f32 %v10716, %v10751
        %v10771 = vadd.f32 %v10718, %v10755
        %v10772 = vld [vmem:[#allocation15] sm:$0xff]
        %v10773 = vld [vmem:[#allocation15 + $0x8] sm:$0xff]
        %v10774 = vld [vmem:[#allocation15 + $0x10] sm:$0xff]
        %v10775 = vld [vmem:[#allocation15 + $0x18] sm:$0xff]
        %v10776 = vld [vmem:[#allocation15 + $0x20] sm:$0xff]
        %v10777 = vld [vmem:[#allocation15 + $0x28] sm:$0xff]
        %v10778 = vld [vmem:[#allocation15 + $0x30] sm:$0xff]
        %v10779 = vld [vmem:[#allocation15 + $0x38] sm:$0xff]
        %v10780 = vsel %vm8519, 1, 0
        %v10781 = vsel %vm8520, 1, 0
        %vm10782 = vcmp.eq.s32.totalorder %v10780, 1
        %vm10783 = vcmp.eq.s32.totalorder %v10781, 1
        %v10784 = vsel %vm10782, %v10764, %v10770
        %v10785 = vsel %vm10783, %v10765, %v10771
        %v10794 = vunpack.c.l.b16 %v10772
        %v10795 = vunpack.c.h.b16 %v10772
        %v10796 = vunpack.c.l.b16 %v10773
        %v10797 = vunpack.c.h.b16 %v10773
        %v10798 = vunpack.c.l.b16 %v10774
        %v10799 = vunpack.c.h.b16 %v10774
        %v10800 = vunpack.c.l.b16 %v10775
        %v10801 = vunpack.c.h.b16 %v10775
        %v10802 = vunpack.c.l.b16 %v10776
        %v10803 = vunpack.c.h.b16 %v10776
        %v10804 = vunpack.c.l.b16 %v10777
        %v10805 = vunpack.c.h.b16 %v10777
        %v10806 = vunpack.c.l.b16 %v10778
        %v10807 = vunpack.c.h.b16 %v10778
        %v10808 = vunpack.c.l.b16 %v10779
        %v10809 = vunpack.c.h.b16 %v10779
        %v10810 = vpack.c.b16 %v10796, %v10794
        %v10811 = vpack.c.b16 %v10797, %v10795
        %v10812 = vpack.c.b16 %v10800, %v10798
        %v10813 = vpack.c.b16 %v10801, %v10799
        %v10814 = vpack.c.b16 %v10804, %v10802
        %v10815 = vpack.c.b16 %v10805, %v10803
        %v10816 = vpack.c.b16 %v10808, %v10806
        %v10817 = vpack.c.b16 %v10809, %v10807
        %vm10826 = vcmask 523264
        %v10828 = vsel %vm10826, 0, 0
        %10830 = vmatprep.subr.bf16.mxu0 0
        %10831 = vmatpush1.bf16.msra.mxu0 0
        %10832 = vmatprep.subr.bf16.mxu0 0
        %10833 = vmatpush1.bf16.msra.mxu0 0
        %10834 = vmatprep.subr.bf16.mxu0 0
        %10835 = vmatpush1.bf16.msra.mxu0 0
        %10836 = vmatprep.subr.bf16.mxu0 0
        %10837 = vmatpush1.bf16.msra.mxu0 0
        %10838 = vmatprep.subr.bf16.mxu0 %v10817
        %10839 = vmatpush1.bf16.msra.mxu0 %v10816
        %10840 = vmatprep.subr.bf16.mxu0 %v10815
        %10841 = vmatpush1.bf16.msra.mxu0 %v10814
        %10842 = vmatprep.subr.bf16.mxu0 %v10813
        %10843 = vmatpush1.bf16.msra.mxu0 %v10812
        %10844 = vmatprep.subr.bf16.mxu0 %v10811
        %10845 = vmatpush1.bf16.msra.mxu0 %v10810
        %10846 = vmatprep.subr.bf16.mxu0 0
        %10847 = vmatpush2.bf16.msra.mxu0 0
        %10848 = vmatprep.subr.bf16.mxu0 0
        %10849 = vmatpush2.bf16.msra.mxu0 0
        %10850 = vmatprep.subr.bf16.mxu0 0
        %10851 = vmatpush2.bf16.msra.mxu0 0
        %10852 = vmatprep.subr.bf16.mxu0 0
        %10853 = vmatpush2.bf16.msra.mxu0 0
        %10854 = vmatprep.subr.bf16.mxu0 0
        %10855 = vmatpush2.bf16.msra.mxu0 0
        %10856 = vmatprep.subr.bf16.mxu0 0
        %10857 = vmatpush2.bf16.msra.mxu0 0
        %10858 = vmatprep.subr.bf16.mxu0 0
        %10859 = vmatpush2.bf16.msra.mxu0 0
        %10860 = vmatprep.subr.bf16.mxu0 0
        %10861 = vmatpush2.bf16.msra.mxu0 0
        %10862 = vmatprep.mubr.bf16.mxu0 0
        %10863 = vmatmul.mubr.bf16.gmra.mxu0 %v10828
        %v10864 = vpop.f32.mrf.mxu0
        %v10865 = vadd.f32 0.0, %v10864
        %v10866 = vpop.f32.mrf.mxu0
        %v10867 = vadd.f32 0.0, %v10866
        %v10868 = vpop.f32.mrf.mxu0
        %v10869 = vpop.f32.mrf.mxu0
        %10870 = vdwg.mxu0
        %v10871 = vadd.f32 %v10784, %v10865
        %v10872 = vadd.f32 %v10785, %v10867
        %v10873 = vxor.u32 %v10871, 2147483648
        %v10874 = vxor.u32 %v10872, 2147483648
        %v10875 = vmul.f32 %v10873, 1.442695
        %v10876 = vpow.pop %v10875
        %v10877 = vmul.f32 %v10874, 1.442695
        %v10878 = vpow.pop %v10877
        %v10879 = vadd.f32 %v10876, 1.0
        %v10880 = vadd.f32 %v10878, 1.0
        %v10881 = vrcp.pop %v10879
        %v10882 = vmul.f32 1.0, %v10881
        %v10883 = vrcp.pop %v10880
        %v10884 = vmul.f32 1.0, %v10883
        %v10885 = vtanh.pop %v10872
        %v10886 = vmul.f32 %v10882, 0.0
        %10888 = vrot.lane.b32.xlu0 %v10885, 64
        %v10889 = vpop.permute.xlu0 %10888
        %v10891 = vmul.f32 %v10882, %v10889
        %10893 = vrot.lane.b32.xlu0 %v10891, 64
        %v10894 = vpop.permute.xlu0 %10893
        %v10896 = vadd.f32 %v10886, %v10894
        %v10897 = vtanh.pop %v10896
        %10899 = vrot.lane.b32.xlu0 %v10897, 64
        %v10900 = vpop.permute.xlu0 %10899
        %v10902 = vmul.f32 %v10884, %v10900
        %v10903 = vsel %vm10782, %v10766, %v10768
        %v10904 = vsel %vm10783, %v10767, %v10769
        %v10905 = vpack.c.bf16 %v10902, %v10902
        %v10907 = vsel %vm10826, %v10905, 0
        %10909 = vmatprep.subr.bf16.mxu0 0
        %10910 = vmatpush1.bf16.msra.mxu0 0
        %10911 = vmatprep.subr.bf16.mxu0 0
        %10912 = vmatpush1.bf16.msra.mxu0 0
        %10913 = vmatprep.subr.bf16.mxu0 0
        %10914 = vmatpush1.bf16.msra.mxu0 0
        %10915 = vmatprep.subr.bf16.mxu0 0
        %10916 = vmatpush1.bf16.msra.mxu0 0
        %10917 = vmatprep.subr.bf16.mxu0 %v10817
        %10918 = vmatpush1.bf16.msra.mxu0 %v10816
        %10919 = vmatprep.subr.bf16.mxu0 %v10815
        %10920 = vmatpush1.bf16.msra.mxu0 %v10814
        %10921 = vmatprep.subr.bf16.mxu0 %v10813
        %10922 = vmatpush1.bf16.msra.mxu0 %v10812
        %10923 = vmatprep.subr.bf16.mxu0 %v10811
        %10924 = vmatpush1.bf16.msra.mxu0 %v10810
        %10925 = vmatprep.subr.bf16.mxu0 0
        %10926 = vmatpush2.bf16.msra.mxu0 0
        %10927 = vmatprep.subr.bf16.mxu0 0
        %10928 = vmatpush2.bf16.msra.mxu0 0
        %10929 = vmatprep.subr.bf16.mxu0 0
        %10930 = vmatpush2.bf16.msra.mxu0 0
        %10931 = vmatprep.subr.bf16.mxu0 0
        %10932 = vmatpush2.bf16.msra.mxu0 0
        %10933 = vmatprep.subr.bf16.mxu0 0
        %10934 = vmatpush2.bf16.msra.mxu0 0
        %10935 = vmatprep.subr.bf16.mxu0 0
        %10936 = vmatpush2.bf16.msra.mxu0 0
        %10937 = vmatprep.subr.bf16.mxu0 0
        %10938 = vmatpush2.bf16.msra.mxu0 0
        %10939 = vmatprep.subr.bf16.mxu0 0
        %10940 = vmatpush2.bf16.msra.mxu0 0
        %10941 = vmatprep.mubr.bf16.mxu0 0
        %10942 = vmatmul.mubr.bf16.gmra.mxu0 %v10907
        %v10943 = vpop.f32.mrf.mxu0
        %v10944 = vadd.f32 0.0, %v10943
        %v10945 = vpop.f32.mrf.mxu0
        %v10946 = vadd.f32 0.0, %v10945
        %v10947 = vpop.f32.mrf.mxu0
        %v10948 = vpop.f32.mrf.mxu0
        %10949 = vdwg.mxu0
        %v10950 = vadd.f32 %v10903, %v10944
        %v10951 = vadd.f32 %v10904, %v10946
        %v10952 = vxor.u32 %v10950, 2147483648
        %v10953 = vxor.u32 %v10951, 2147483648
        %v10954 = vmul.f32 %v10952, 1.442695
        %v10955 = vpow.pop %v10954
        %v10956 = vmul.f32 %v10953, 1.442695
        %v10957 = vpow.pop %v10956
        %v10958 = vadd.f32 %v10955, 1.0
        %v10959 = vadd.f32 %v10957, 1.0
        %v10960 = vrcp.pop %v10958
        %v10961 = vmul.f32 1.0, %v10960
        %v10962 = vrcp.pop %v10959
        %v10963 = vmul.f32 1.0, %v10962
        %v10964 = vtanh.pop %v10951
        %v10965 = vmul.f32 %v10961, %v10896
        %10967 = vrot.lane.b32.xlu0 %v10964, 64
        %v10968 = vpop.permute.xlu0 %10967
        %v10970 = vmul.f32 %v10961, %v10968
        %10972 = vrot.lane.b32.xlu0 %v10970, 64
        %v10973 = vpop.permute.xlu0 %10972
        %v10975 = vadd.f32 %v10965, %v10973
        %v10976 = vtanh.pop %v10975
        %10978 = vrot.lane.b32.xlu0 %v10976, 64
        %v10979 = vpop.permute.xlu0 %10978
        %v10981 = vmul.f32 %v10963, %v10979
        %v10982 = vsel %vm10782, %v10768, %v10766
        %v10983 = vsel %vm10783, %v10769, %v10767
        %v10984 = vpack.c.bf16 %v10981, %v10981
        %v10986 = vsel %vm10826, %v10984, 0
        %10988 = vmatprep.subr.bf16.mxu0 0
        %10989 = vmatpush1.bf16.msra.mxu0 0
        %10990 = vmatprep.subr.bf16.mxu0 0
        %10991 = vmatpush1.bf16.msra.mxu0 0
        %10992 = vmatprep.subr.bf16.mxu0 0
        %10993 = vmatpush1.bf16.msra.mxu0 0
        %10994 = vmatprep.subr.bf16.mxu0 0
        %10995 = vmatpush1.bf16.msra.mxu0 0
        %10996 = vmatprep.subr.bf16.mxu0 %v10817
        %10997 = vmatpush1.bf16.msra.mxu0 %v10816
        %10998 = vmatprep.subr.bf16.mxu0 %v10815
        %10999 = vmatpush1.bf16.msra.mxu0 %v10814
        %11000 = vmatprep.subr.bf16.mxu0 %v10813
        %11001 = vmatpush1.bf16.msra.mxu0 %v10812
        %11002 = vmatprep.subr.bf16.mxu0 %v10811
        %11003 = vmatpush1.bf16.msra.mxu0 %v10810
        %11004 = vmatprep.subr.bf16.mxu0 0
        %11005 = vmatpush2.bf16.msra.mxu0 0
        %11006 = vmatprep.subr.bf16.mxu0 0
        %11007 = vmatpush2.bf16.msra.mxu0 0
        %11008 = vmatprep.subr.bf16.mxu0 0
        %11009 = vmatpush2.bf16.msra.mxu0 0
        %11010 = vmatprep.subr.bf16.mxu0 0
        %11011 = vmatpush2.bf16.msra.mxu0 0
        %11012 = vmatprep.subr.bf16.mxu0 0
        %11013 = vmatpush2.bf16.msra.mxu0 0
        %11014 = vmatprep.subr.bf16.mxu0 0
        %11015 = vmatpush2.bf16.msra.mxu0 0
        %11016 = vmatprep.subr.bf16.mxu0 0
        %11017 = vmatpush2.bf16.msra.mxu0 0
        %11018 = vmatprep.subr.bf16.mxu0 0
        %11019 = vmatpush2.bf16.msra.mxu0 0
        %11020 = vmatprep.mubr.bf16.mxu0 0
        %11021 = vmatmul.mubr.bf16.gmra.mxu0 %v10986
        %v11022 = vpop.f32.mrf.mxu0
        %v11023 = vadd.f32 0.0, %v11022
        %v11024 = vpop.f32.mrf.mxu0
        %v11025 = vadd.f32 0.0, %v11024
        %v11026 = vpop.f32.mrf.mxu0
        %v11027 = vpop.f32.mrf.mxu0
        %11028 = vdwg.mxu0
        %v11029 = vadd.f32 %v10982, %v11023
        %v11030 = vadd.f32 %v10983, %v11025
        %v11031 = vxor.u32 %v11029, 2147483648
        %v11032 = vxor.u32 %v11030, 2147483648
        %v11033 = vmul.f32 %v11031, 1.442695
        %v11034 = vpow.pop %v11033
        %v11035 = vmul.f32 %v11032, 1.442695
        %v11036 = vpow.pop %v11035
        %v11037 = vadd.f32 %v11034, 1.0
        %v11038 = vadd.f32 %v11036, 1.0
        %v11039 = vrcp.pop %v11037
        %v11040 = vmul.f32 1.0, %v11039
        %v11041 = vrcp.pop %v11038
        %v11042 = vmul.f32 1.0, %v11041
        %v11043 = vtanh.pop %v11030
        %v11044 = vmul.f32 %v11040, %v10975
        %11046 = vrot.lane.b32.xlu0 %v11043, 64
        %v11047 = vpop.permute.xlu0 %11046
        %v11049 = vmul.f32 %v11040, %v11047
        %11051 = vrot.lane.b32.xlu0 %v11049, 64
        %v11052 = vpop.permute.xlu0 %11051
        %v11054 = vadd.f32 %v11044, %v11052
        %v11055 = vtanh.pop %v11054
        %11057 = vrot.lane.b32.xlu0 %v11055, 64
        %v11058 = vpop.permute.xlu0 %11057
        %v11060 = vmul.f32 %v11042, %v11058
        %v11061 = vsel %vm10782, %v10770, %v10764
        %v11062 = vsel %vm10783, %v10771, %v10765
        %v11063 = vpack.c.bf16 %v11060, %v11060
        %v11065 = vsel %vm10826, %v11063, 0
        %11067 = vmatprep.subr.bf16.mxu0 0
        %11068 = vmatpush1.bf16.msra.mxu0 0
        %11069 = vmatprep.subr.bf16.mxu0 0
        %11070 = vmatpush1.bf16.msra.mxu0 0
        %11071 = vmatprep.subr.bf16.mxu0 0
        %11072 = vmatpush1.bf16.msra.mxu0 0
        %11073 = vmatprep.subr.bf16.mxu0 0
        %11074 = vmatpush1.bf16.msra.mxu0 0
        %11075 = vmatprep.subr.bf16.mxu0 %v10817
        %11076 = vmatpush1.bf16.msra.mxu0 %v10816
        %11077 = vmatprep.subr.bf16.mxu0 %v10815
        %11078 = vmatpush1.bf16.msra.mxu0 %v10814
        %11079 = vmatprep.subr.bf16.mxu0 %v10813
        %11080 = vmatpush1.bf16.msra.mxu0 %v10812
        %11081 = vmatprep.subr.bf16.mxu0 %v10811
        %11082 = vmatpush1.bf16.msra.mxu0 %v10810
        %11083 = vmatprep.subr.bf16.mxu0 0
        %11084 = vmatpush2.bf16.msra.mxu0 0
        %11085 = vmatprep.subr.bf16.mxu0 0
        %11086 = vmatpush2.bf16.msra.mxu0 0
        %11087 = vmatprep.subr.bf16.mxu0 0
        %11088 = vmatpush2.bf16.msra.mxu0 0
        %11089 = vmatprep.subr.bf16.mxu0 0
        %11090 = vmatpush2.bf16.msra.mxu0 0
        %11091 = vmatprep.subr.bf16.mxu0 0
        %11092 = vmatpush2.bf16.msra.mxu0 0
        %11093 = vmatprep.subr.bf16.mxu0 0
        %11094 = vmatpush2.bf16.msra.mxu0 0
        %11095 = vmatprep.subr.bf16.mxu0 0
        %11096 = vmatpush2.bf16.msra.mxu0 0
        %11097 = vmatprep.subr.bf16.mxu0 0
        %11098 = vmatpush2.bf16.msra.mxu0 0
        %11099 = vmatprep.mubr.bf16.mxu0 0
        %11100 = vmatmul.mubr.bf16.gmra.mxu0 %v11065
        %v11101 = vpop.f32.mrf.mxu0
        %v11102 = vadd.f32 0.0, %v11101
        %v11103 = vpop.f32.mrf.mxu0
        %v11104 = vadd.f32 0.0, %v11103
        %v11105 = vpop.f32.mrf.mxu0
        %v11106 = vpop.f32.mrf.mxu0
        %11107 = vdwg.mxu0
        %v11108 = vadd.f32 %v11061, %v11102
        %v11109 = vadd.f32 %v11062, %v11104
        %v11110 = vxor.u32 %v11108, 2147483648
        %v11111 = vxor.u32 %v11109, 2147483648
        %v11112 = vmul.f32 %v11110, 1.442695
        %v11113 = vpow.pop %v11112
        %v11114 = vmul.f32 %v11111, 1.442695
        %v11115 = vpow.pop %v11114
        %v11116 = vadd.f32 %v11113, 1.0
        %v11117 = vadd.f32 %v11115, 1.0
        %v11118 = vrcp.pop %v11116
        %v11119 = vmul.f32 1.0, %v11118
        %v11120 = vrcp.pop %v11117
        %v11121 = vmul.f32 1.0, %v11120
        %v11122 = vtanh.pop %v11109
        %v11123 = vmul.f32 %v11119, %v11054
        %11125 = vrot.lane.b32.xlu0 %v11122, 64
        %v11126 = vpop.permute.xlu0 %11125
        %v11128 = vmul.f32 %v11119, %v11126
        %11130 = vrot.lane.b32.xlu0 %v11128, 64
        %v11131 = vpop.permute.xlu0 %11130
        %v11133 = vadd.f32 %v11123, %v11131
        %v11134 = vtanh.pop %v11133
        %11136 = vrot.lane.b32.xlu0 %v11134, 64
        %v11137 = vpop.permute.xlu0 %11136
        %v11139 = vmul.f32 %v11121, %v11137
        %v11140 = vsel %vm916, %v10902, %v11139
        %v11141 = vsel %vm916, %v10981, %v11060
        %v11142 = vsel %vm916, %v11060, %v10981
        %v11143 = vsel %vm916, %v11139, %v10902
        %v11144 = vpack.c.bf16 %v11141, %v11140
        %v11145 = vpack.c.bf16 %v11143, %v11142
        %v11146 = vld [vmem:[#allocation16] sm:$0xff]
        %v11147 = vld [vmem:[#allocation16 + $0x8] sm:$0xff]
        %v11148 = vld [vmem:[#allocation16 + $0x10] sm:$0xff]
        %v11149 = vld [vmem:[#allocation16 + $0x18] sm:$0xff]
        %v11150 = vld [vmem:[#allocation16 + $0x20] sm:$0xff]
        %v11151 = vld [vmem:[#allocation16 + $0x28] sm:$0xff]
        %v11152 = vld [vmem:[#allocation16 + $0x30] sm:$0xff]
        %v11153 = vld [vmem:[#allocation16 + $0x38] sm:$0xff]
        %v11154 = vld [vmem:[%s12] sm:$0x3]
        %v11156 = vlaneseq
        %v11157 = vshrl.u32 %v11156, 7
        %v11158 = vsub.s32 0, %v11157
        %v11159 = vrot.slane %v11154, %v11158
        %v11160 = vlaneseq
        %v11161 = vshrl.u32 %v11160, 7
        %v11162 = vsub.s32 1, %v11161
        %v11163 = vrot.slane %v11154, %v11162
        %v11174 = vunpack.c.l.b16 %v11146
        %v11175 = vunpack.c.h.b16 %v11146
        %v11176 = vunpack.c.l.b16 %v11147
        %v11177 = vunpack.c.h.b16 %v11147
        %v11178 = vunpack.c.l.b16 %v11148
        %v11179 = vunpack.c.h.b16 %v11148
        %v11180 = vunpack.c.l.b16 %v11149
        %v11181 = vunpack.c.h.b16 %v11149
        %v11182 = vunpack.c.l.b16 %v11150
        %v11183 = vunpack.c.h.b16 %v11150
        %v11184 = vunpack.c.l.b16 %v11151
        %v11185 = vunpack.c.h.b16 %v11151
        %v11186 = vunpack.c.l.b16 %v11152
        %v11187 = vunpack.c.h.b16 %v11152
        %v11188 = vunpack.c.l.b16 %v11153
        %v11189 = vunpack.c.h.b16 %v11153
        %v11190 = vpack.c.b16 %v11176, %v11174
        %v11191 = vpack.c.b16 %v11177, %v11175
        %v11192 = vpack.c.b16 %v11180, %v11178
        %v11193 = vpack.c.b16 %v11181, %v11179
        %v11194 = vpack.c.b16 %v11184, %v11182
        %v11195 = vpack.c.b16 %v11185, %v11183
        %v11196 = vpack.c.b16 %v11188, %v11186
        %v11197 = vpack.c.b16 %v11189, %v11187
        %v11207 = vsel %vm10826, %v11144, 0
        %v11210 = vsel %vm10826, %v11145, 0
        %11212 = vmatprep.subr.bf16.mxu0 0
        %11213 = vmatpush1.bf16.msra.mxu0 0
        %11214 = vmatprep.subr.bf16.mxu0 0
        %11215 = vmatpush1.bf16.msra.mxu0 0
        %11216 = vmatprep.subr.bf16.mxu0 0
        %11217 = vmatpush1.bf16.msra.mxu0 0
        %11218 = vmatprep.subr.bf16.mxu0 0
        %11219 = vmatpush1.bf16.msra.mxu0 0
        %11220 = vmatprep.subr.bf16.mxu0 %v11197
        %11221 = vmatpush1.bf16.msra.mxu0 %v11196
        %11222 = vmatprep.subr.bf16.mxu0 %v11195
        %11223 = vmatpush1.bf16.msra.mxu0 %v11194
        %11224 = vmatprep.subr.bf16.mxu0 %v11193
        %11225 = vmatpush1.bf16.msra.mxu0 %v11192
        %11226 = vmatprep.subr.bf16.mxu0 %v11191
        %11227 = vmatpush1.bf16.msra.mxu0 %v11190
        %11228 = vmatprep.subr.bf16.mxu0 0
        %11229 = vmatpush2.bf16.msra.mxu0 0
        %11230 = vmatprep.subr.bf16.mxu0 0
        %11231 = vmatpush2.bf16.msra.mxu0 0
        %11232 = vmatprep.subr.bf16.mxu0 0
        %11233 = vmatpush2.bf16.msra.mxu0 0
        %11234 = vmatprep.subr.bf16.mxu0 0
        %11235 = vmatpush2.bf16.msra.mxu0 0
        %11236 = vmatprep.subr.bf16.mxu0 0
        %11237 = vmatpush2.bf16.msra.mxu0 0
        %11238 = vmatprep.subr.bf16.mxu0 0
        %11239 = vmatpush2.bf16.msra.mxu0 0
        %11240 = vmatprep.subr.bf16.mxu0 0
        %11241 = vmatpush2.bf16.msra.mxu0 0
        %11242 = vmatprep.subr.bf16.mxu0 0
        %11243 = vmatpush2.bf16.msra.mxu0 0
        %11244 = vmatprep.mubr.bf16.mxu0 0
        %11245 = vmatmul.mubr.bf16.gmra.mxu0 %v11207
        %v11246 = vpop.f32.mrf.mxu0
        %v11247 = vadd.f32 %v11159, %v11246
        %v11248 = vpop.f32.mrf.mxu0
        %v11249 = vadd.f32 %v11163, %v11248
        %v11250 = vpop.f32.mrf.mxu0
        %v11251 = vadd.f32 %v11159, %v11250
        %v11252 = vpop.f32.mrf.mxu0
        %v11253 = vadd.f32 %v11163, %v11252
        %11254 = vmatprep.mubr.bf16.mxu0 0
        %11255 = vmatmul.mubr.bf16.gmra.mxu0 %v11210
        %v11256 = vpop.f32.mrf.mxu0
        %v11257 = vadd.f32 %v11159, %v11256
        %v11258 = vpop.f32.mrf.mxu0
        %v11259 = vadd.f32 %v11163, %v11258
        %v11260 = vpop.f32.mrf.mxu0
        %v11261 = vadd.f32 %v11159, %v11260
        %v11262 = vpop.f32.mrf.mxu0
        %v11263 = vadd.f32 %v11163, %v11262
        %11264 = vdwg.mxu0
        %v11265 = vld [vmem:[#allocation18] sm:$0xff]
        %v11266 = vld [vmem:[#allocation18 + $0x8] sm:$0xff]
        %v11267 = vld [vmem:[#allocation18 + $0x10] sm:$0xff]
        %v11268 = vld [vmem:[#allocation18 + $0x18] sm:$0xff]
        %v11269 = vld [vmem:[#allocation18 + $0x20] sm:$0xff]
        %v11270 = vld [vmem:[#allocation18 + $0x28] sm:$0xff]
        %v11271 = vld [vmem:[#allocation18 + $0x30] sm:$0xff]
        %v11272 = vld [vmem:[#allocation18 + $0x38] sm:$0xff]
        %v11273 = vsel %vm10782, %v11247, %v11261
        %v11274 = vsel %vm10783, %v11249, %v11263
        %v11283 = vunpack.c.l.b16 %v11265
        %v11284 = vunpack.c.h.b16 %v11265
        %v11285 = vunpack.c.l.b16 %v11266
        %v11286 = vunpack.c.h.b16 %v11266
        %v11287 = vunpack.c.l.b16 %v11267
        %v11288 = vunpack.c.h.b16 %v11267
        %v11289 = vunpack.c.l.b16 %v11268
        %v11290 = vunpack.c.h.b16 %v11268
        %v11291 = vunpack.c.l.b16 %v11269
        %v11292 = vunpack.c.h.b16 %v11269
        %v11293 = vunpack.c.l.b16 %v11270
        %v11294 = vunpack.c.h.b16 %v11270
        %v11295 = vunpack.c.l.b16 %v11271
        %v11296 = vunpack.c.h.b16 %v11271
        %v11297 = vunpack.c.l.b16 %v11272
        %v11298 = vunpack.c.h.b16 %v11272
        %v11299 = vpack.c.b16 %v11285, %v11283
        %v11300 = vpack.c.b16 %v11286, %v11284
        %v11301 = vpack.c.b16 %v11289, %v11287
        %v11302 = vpack.c.b16 %v11290, %v11288
        %v11303 = vpack.c.b16 %v11293, %v11291
        %v11304 = vpack.c.b16 %v11294, %v11292
        %v11305 = vpack.c.b16 %v11297, %v11295
        %v11306 = vpack.c.b16 %v11298, %v11296
        %11315 = vmatprep.subr.bf16.mxu0 0
        %11316 = vmatpush1.bf16.msra.mxu0 0
        %11317 = vmatprep.subr.bf16.mxu0 0
        %11318 = vmatpush1.bf16.msra.mxu0 0
        %11319 = vmatprep.subr.bf16.mxu0 0
        %11320 = vmatpush1.bf16.msra.mxu0 0
        %11321 = vmatprep.subr.bf16.mxu0 0
        %11322 = vmatpush1.bf16.msra.mxu0 0
        %11323 = vmatprep.subr.bf16.mxu0 %v11306
        %11324 = vmatpush1.bf16.msra.mxu0 %v11305
        %11325 = vmatprep.subr.bf16.mxu0 %v11304
        %11326 = vmatpush1.bf16.msra.mxu0 %v11303
        %11327 = vmatprep.subr.bf16.mxu0 %v11302
        %11328 = vmatpush1.bf16.msra.mxu0 %v11301
        %11329 = vmatprep.subr.bf16.mxu0 %v11300
        %11330 = vmatpush1.bf16.msra.mxu0 %v11299
        %11331 = vmatprep.subr.bf16.mxu0 0
        %11332 = vmatpush2.bf16.msra.mxu0 0
        %11333 = vmatprep.subr.bf16.mxu0 0
        %11334 = vmatpush2.bf16.msra.mxu0 0
        %11335 = vmatprep.subr.bf16.mxu0 0
        %11336 = vmatpush2.bf16.msra.mxu0 0
        %11337 = vmatprep.subr.bf16.mxu0 0
        %11338 = vmatpush2.bf16.msra.mxu0 0
        %11339 = vmatprep.subr.bf16.mxu0 0
        %11340 = vmatpush2.bf16.msra.mxu0 0
        %11341 = vmatprep.subr.bf16.mxu0 0
        %11342 = vmatpush2.bf16.msra.mxu0 0
        %11343 = vmatprep.subr.bf16.mxu0 0
        %11344 = vmatpush2.bf16.msra.mxu0 0
        %11345 = vmatprep.subr.bf16.mxu0 0
        %11346 = vmatpush2.bf16.msra.mxu0 0
        %11347 = vmatprep.mubr.bf16.mxu0 0
        %11348 = vmatmul.mubr.bf16.gmra.mxu0 %v10828
        %v11349 = vpop.f32.mrf.mxu0
        %v11350 = vadd.f32 0.0, %v11349
        %v11351 = vpop.f32.mrf.mxu0
        %v11352 = vadd.f32 0.0, %v11351
        %v11353 = vpop.f32.mrf.mxu0
        %v11354 = vpop.f32.mrf.mxu0
        %11355 = vdwg.mxu0
        %v11356 = vadd.f32 %v11273, %v11350
        %v11357 = vadd.f32 %v11274, %v11352
        %v11358 = vxor.u32 %v11356, 2147483648
        %v11359 = vxor.u32 %v11357, 2147483648
        %v11360 = vmul.f32 %v11358, 1.442695
        %v11361 = vpow.pop %v11360
        %v11362 = vmul.f32 %v11359, 1.442695
        %v11363 = vpow.pop %v11362
        %v11364 = vadd.f32 %v11361, 1.0
        %v11365 = vadd.f32 %v11363, 1.0
        %v11366 = vrcp.pop %v11364
        %v11367 = vmul.f32 1.0, %v11366
        %v11368 = vrcp.pop %v11365
        %v11369 = vmul.f32 1.0, %v11368
        %v11370 = vtanh.pop %v11357
        %v11371 = vmul.f32 %v11367, 0.0
        %11373 = vrot.lane.b32.xlu0 %v11370, 64
        %v11374 = vpop.permute.xlu0 %11373
        %v11376 = vmul.f32 %v11367, %v11374
        %11378 = vrot.lane.b32.xlu0 %v11376, 64
        %v11379 = vpop.permute.xlu0 %11378
        %v11381 = vadd.f32 %v11371, %v11379
        %v11382 = vtanh.pop %v11381
        %11384 = vrot.lane.b32.xlu0 %v11382, 64
        %v11385 = vpop.permute.xlu0 %11384
        %v11387 = vmul.f32 %v11369, %v11385
        %v11388 = vsel %vm10782, %v11251, %v11257
        %v11389 = vsel %vm10783, %v11253, %v11259
        %v11390 = vpack.c.bf16 %v11387, %v11387
        %v11392 = vsel %vm10826, %v11390, 0
        %11394 = vmatprep.subr.bf16.mxu0 0
        %11395 = vmatpush1.bf16.msra.mxu0 0
        %11396 = vmatprep.subr.bf16.mxu0 0
        %11397 = vmatpush1.bf16.msra.mxu0 0
        %11398 = vmatprep.subr.bf16.mxu0 0
        %11399 = vmatpush1.bf16.msra.mxu0 0
        %11400 = vmatprep.subr.bf16.mxu0 0
        %11401 = vmatpush1.bf16.msra.mxu0 0
        %11402 = vmatprep.subr.bf16.mxu0 %v11306
        %11403 = vmatpush1.bf16.msra.mxu0 %v11305
        %11404 = vmatprep.subr.bf16.mxu0 %v11304
        %11405 = vmatpush1.bf16.msra.mxu0 %v11303
        %11406 = vmatprep.subr.bf16.mxu0 %v11302
        %11407 = vmatpush1.bf16.msra.mxu0 %v11301
        %11408 = vmatprep.subr.bf16.mxu0 %v11300
        %11409 = vmatpush1.bf16.msra.mxu0 %v11299
        %11410 = vmatprep.subr.bf16.mxu0 0
        %11411 = vmatpush2.bf16.msra.mxu0 0
        %11412 = vmatprep.subr.bf16.mxu0 0
        %11413 = vmatpush2.bf16.msra.mxu0 0
        %11414 = vmatprep.subr.bf16.mxu0 0
        %11415 = vmatpush2.bf16.msra.mxu0 0
        %11416 = vmatprep.subr.bf16.mxu0 0
        %11417 = vmatpush2.bf16.msra.mxu0 0
        %11418 = vmatprep.subr.bf16.mxu0 0
        %11419 = vmatpush2.bf16.msra.mxu0 0
        %11420 = vmatprep.subr.bf16.mxu0 0
        %11421 = vmatpush2.bf16.msra.mxu0 0
        %11422 = vmatprep.subr.bf16.mxu0 0
        %11423 = vmatpush2.bf16.msra.mxu0 0
        %11424 = vmatprep.subr.bf16.mxu0 0
        %11425 = vmatpush2.bf16.msra.mxu0 0
        %11426 = vmatprep.mubr.bf16.mxu0 0
        %11427 = vmatmul.mubr.bf16.gmra.mxu0 %v11392
        %v11428 = vpop.f32.mrf.mxu0
        %v11429 = vadd.f32 0.0, %v11428
        %v11430 = vpop.f32.mrf.mxu0
        %v11431 = vadd.f32 0.0, %v11430
        %v11432 = vpop.f32.mrf.mxu0
        %v11433 = vpop.f32.mrf.mxu0
        %11434 = vdwg.mxu0
        %v11435 = vadd.f32 %v11388, %v11429
        %v11436 = vadd.f32 %v11389, %v11431
        %v11437 = vxor.u32 %v11435, 2147483648
        %v11438 = vxor.u32 %v11436, 2147483648
        %v11439 = vmul.f32 %v11437, 1.442695
        %v11440 = vpow.pop %v11439
        %v11441 = vmul.f32 %v11438, 1.442695
        %v11442 = vpow.pop %v11441
        %v11443 = vadd.f32 %v11440, 1.0
        %v11444 = vadd.f32 %v11442, 1.0
        %v11445 = vrcp.pop %v11443
        %v11446 = vmul.f32 1.0, %v11445
        %v11447 = vrcp.pop %v11444
        %v11448 = vmul.f32 1.0, %v11447
        %v11449 = vtanh.pop %v11436
        %v11450 = vmul.f32 %v11446, %v11381
        %11452 = vrot.lane.b32.xlu0 %v11449, 64
        %v11453 = vpop.permute.xlu0 %11452
        %v11455 = vmul.f32 %v11446, %v11453
        %11457 = vrot.lane.b32.xlu0 %v11455, 64
        %v11458 = vpop.permute.xlu0 %11457
        %v11460 = vadd.f32 %v11450, %v11458
        %v11461 = vtanh.pop %v11460
        %11463 = vrot.lane.b32.xlu0 %v11461, 64
        %v11464 = vpop.permute.xlu0 %11463
        %v11466 = vmul.f32 %v11448, %v11464
        %v11467 = vsel %vm10782, %v11257, %v11251
        %v11468 = vsel %vm10783, %v11259, %v11253
        %v11469 = vpack.c.bf16 %v11466, %v11466
        %v11471 = vsel %vm10826, %v11469, 0
        %11473 = vmatprep.subr.bf16.mxu0 0
        %11474 = vmatpush1.bf16.msra.mxu0 0
        %11475 = vmatprep.subr.bf16.mxu0 0
        %11476 = vmatpush1.bf16.msra.mxu0 0
        %11477 = vmatprep.subr.bf16.mxu0 0
        %11478 = vmatpush1.bf16.msra.mxu0 0
        %11479 = vmatprep.subr.bf16.mxu0 0
        %11480 = vmatpush1.bf16.msra.mxu0 0
        %11481 = vmatprep.subr.bf16.mxu0 %v11306
        %11482 = vmatpush1.bf16.msra.mxu0 %v11305
        %11483 = vmatprep.subr.bf16.mxu0 %v11304
        %11484 = vmatpush1.bf16.msra.mxu0 %v11303
        %11485 = vmatprep.subr.bf16.mxu0 %v11302
        %11486 = vmatpush1.bf16.msra.mxu0 %v11301
        %11487 = vmatprep.subr.bf16.mxu0 %v11300
        %11488 = vmatpush1.bf16.msra.mxu0 %v11299
        %11489 = vmatprep.subr.bf16.mxu0 0
        %11490 = vmatpush2.bf16.msra.mxu0 0
        %11491 = vmatprep.subr.bf16.mxu0 0
        %11492 = vmatpush2.bf16.msra.mxu0 0
        %11493 = vmatprep.subr.bf16.mxu0 0
        %11494 = vmatpush2.bf16.msra.mxu0 0
        %11495 = vmatprep.subr.bf16.mxu0 0
        %11496 = vmatpush2.bf16.msra.mxu0 0
        %11497 = vmatprep.subr.bf16.mxu0 0
        %11498 = vmatpush2.bf16.msra.mxu0 0
        %11499 = vmatprep.subr.bf16.mxu0 0
        %11500 = vmatpush2.bf16.msra.mxu0 0
        %11501 = vmatprep.subr.bf16.mxu0 0
        %11502 = vmatpush2.bf16.msra.mxu0 0
        %11503 = vmatprep.subr.bf16.mxu0 0
        %11504 = vmatpush2.bf16.msra.mxu0 0
        %11505 = vmatprep.mubr.bf16.mxu0 0
        %11506 = vmatmul.mubr.bf16.gmra.mxu0 %v11471
        %v11507 = vpop.f32.mrf.mxu0
        %v11508 = vadd.f32 0.0, %v11507
        %v11509 = vpop.f32.mrf.mxu0
        %v11510 = vadd.f32 0.0, %v11509
        %v11511 = vpop.f32.mrf.mxu0
        %v11512 = vpop.f32.mrf.mxu0
        %11513 = vdwg.mxu0
        %v11514 = vadd.f32 %v11467, %v11508
        %v11515 = vadd.f32 %v11468, %v11510
        %v11516 = vxor.u32 %v11514, 2147483648
        %v11517 = vxor.u32 %v11515, 2147483648
        %v11518 = vmul.f32 %v11516, 1.442695
        %v11519 = vpow.pop %v11518
        %v11520 = vmul.f32 %v11517, 1.442695
        %v11521 = vpow.pop %v11520
        %v11522 = vadd.f32 %v11519, 1.0
        %v11523 = vadd.f32 %v11521, 1.0
        %v11524 = vrcp.pop %v11522
        %v11525 = vmul.f32 1.0, %v11524
        %v11526 = vrcp.pop %v11523
        %v11527 = vmul.f32 1.0, %v11526
        %v11528 = vtanh.pop %v11515
        %v11529 = vmul.f32 %v11525, %v11460
        %11531 = vrot.lane.b32.xlu0 %v11528, 64
        %v11532 = vpop.permute.xlu0 %11531
        %v11534 = vmul.f32 %v11525, %v11532
        %11536 = vrot.lane.b32.xlu0 %v11534, 64
        %v11537 = vpop.permute.xlu0 %11536
        %v11539 = vadd.f32 %v11529, %v11537
        %v11540 = vtanh.pop %v11539
        %11542 = vrot.lane.b32.xlu0 %v11540, 64
        %v11543 = vpop.permute.xlu0 %11542
        %v11545 = vmul.f32 %v11527, %v11543
        %v11546 = vsel %vm10782, %v11261, %v11247
        %v11547 = vsel %vm10783, %v11263, %v11249
        %v11548 = vpack.c.bf16 %v11545, %v11545
        %v11550 = vsel %vm10826, %v11548, 0
        %11552 = vmatprep.subr.bf16.mxu0 0
        %11553 = vmatpush1.bf16.msra.mxu0 0
        %11554 = vmatprep.subr.bf16.mxu0 0
        %11555 = vmatpush1.bf16.msra.mxu0 0
        %11556 = vmatprep.subr.bf16.mxu0 0
        %11557 = vmatpush1.bf16.msra.mxu0 0
        %11558 = vmatprep.subr.bf16.mxu0 0
        %11559 = vmatpush1.bf16.msra.mxu0 0
        %11560 = vmatprep.subr.bf16.mxu0 %v11306
        %11561 = vmatpush1.bf16.msra.mxu0 %v11305
        %11562 = vmatprep.subr.bf16.mxu0 %v11304
        %11563 = vmatpush1.bf16.msra.mxu0 %v11303
        %11564 = vmatprep.subr.bf16.mxu0 %v11302
        %11565 = vmatpush1.bf16.msra.mxu0 %v11301
        %11566 = vmatprep.subr.bf16.mxu0 %v11300
        %11567 = vmatpush1.bf16.msra.mxu0 %v11299
        %11568 = vmatprep.subr.bf16.mxu0 0
        %11569 = vmatpush2.bf16.msra.mxu0 0
        %11570 = vmatprep.subr.bf16.mxu0 0
        %11571 = vmatpush2.bf16.msra.mxu0 0
        %11572 = vmatprep.subr.bf16.mxu0 0
        %11573 = vmatpush2.bf16.msra.mxu0 0
        %11574 = vmatprep.subr.bf16.mxu0 0
        %11575 = vmatpush2.bf16.msra.mxu0 0
        %11576 = vmatprep.subr.bf16.mxu0 0
        %11577 = vmatpush2.bf16.msra.mxu0 0
        %11578 = vmatprep.subr.bf16.mxu0 0
        %11579 = vmatpush2.bf16.msra.mxu0 0
        %11580 = vmatprep.subr.bf16.mxu0 0
        %11581 = vmatpush2.bf16.msra.mxu0 0
        %11582 = vmatprep.subr.bf16.mxu0 0
        %11583 = vmatpush2.bf16.msra.mxu0 0
        %11584 = vmatprep.mubr.bf16.mxu0 0
        %11585 = vmatmul.mubr.bf16.gmra.mxu0 %v11550
        %v11586 = vpop.f32.mrf.mxu0
        %v11587 = vadd.f32 0.0, %v11586
        %v11588 = vpop.f32.mrf.mxu0
        %v11589 = vadd.f32 0.0, %v11588
        %v11590 = vpop.f32.mrf.mxu0
        %v11591 = vpop.f32.mrf.mxu0
        %11592 = vdwg.mxu0
        %v11593 = vadd.f32 %v11546, %v11587
        %v11594 = vadd.f32 %v11547, %v11589
        %v11595 = vxor.u32 %v11593, 2147483648
        %v11596 = vxor.u32 %v11594, 2147483648
        %v11597 = vmul.f32 %v11595, 1.442695
        %v11598 = vpow.pop %v11597
        %v11599 = vmul.f32 %v11596, 1.442695
        %v11600 = vpow.pop %v11599
        %v11601 = vadd.f32 %v11598, 1.0
        %v11602 = vadd.f32 %v11600, 1.0
        %v11603 = vrcp.pop %v11601
        %v11604 = vmul.f32 1.0, %v11603
        %v11605 = vrcp.pop %v11602
        %v11606 = vmul.f32 1.0, %v11605
        %v11607 = vtanh.pop %v11594
        %v11608 = vmul.f32 %v11604, %v11539
        %11610 = vrot.lane.b32.xlu0 %v11607, 64
        %v11611 = vpop.permute.xlu0 %11610
        %v11613 = vmul.f32 %v11604, %v11611
        %11615 = vrot.lane.b32.xlu0 %v11613, 64
        %v11616 = vpop.permute.xlu0 %11615
        %v11618 = vadd.f32 %v11608, %v11616
        %v11619 = vtanh.pop %v11618
        %11621 = vrot.lane.b32.xlu0 %v11619, 64
        %v11622 = vpop.permute.xlu0 %11621
        %v11624 = vmul.f32 %v11606, %v11622
        %v11625 = vsel %vm916, %v11624, %v11387
        %v11626 = vpack.c.bf16 %v11625, %v11625
        %v11627 = vld [vmem:[#allocation19] sm:$0xf]
        %v11628 = vld [vmem:[#allocation19 + $0x4] sm:$0xf]
        %v11629 = vld [vmem:[#allocation19 + $0x8] sm:$0xf]
        %v11630 = vld [vmem:[#allocation19 + $0xc] sm:$0xf]
        %v11631 = vld [vmem:[#allocation19 + $0x10] sm:$0xf]
        %v11632 = vld [vmem:[#allocation19 + $0x14] sm:$0xf]
        %v11633 = vld [vmem:[#allocation19 + $0x18] sm:$0xf]
        %v11634 = vld [vmem:[#allocation19 + $0x1c] sm:$0xf]
        %v11635 = vld [vmem:[%s15] sm:$0x1]
        %v11637 = vlaneseq
        %v11638 = vshrl.u32 %v11637, 7
        %v11639 = vsub.s32 0, %v11638
        %v11640 = vrot.slane %v11635, %v11639
        %v11650 = vunpack.c.l.b16 %v11627
        %v11651 = vunpack.c.l.b16 %v11628
        %v11652 = vunpack.c.l.b16 %v11629
        %v11653 = vunpack.c.l.b16 %v11630
        %v11654 = vunpack.c.l.b16 %v11631
        %v11655 = vunpack.c.l.b16 %v11632
        %v11656 = vunpack.c.l.b16 %v11633
        %v11657 = vunpack.c.l.b16 %v11634
        %v11658 = vpack.c.b16 %v11651, %v11650
        %v11659 = vpack.c.b16 %v11653, %v11652
        %v11660 = vpack.c.b16 %v11655, %v11654
        %v11661 = vpack.c.b16 %v11657, %v11656
        %v11667 = vsel %vm10826, %v11626, 0
        %11669 = vmatprep.subr.bf16.mxu0 0
        %11670 = vmatpush1.bf16.msra.mxu0 0
        %11671 = vmatprep.subr.bf16.mxu0 0
        %11672 = vmatpush1.bf16.msra.mxu0 0
        %11673 = vmatprep.subr.bf16.mxu0 0
        %11674 = vmatpush1.bf16.msra.mxu0 0
        %11675 = vmatprep.subr.bf16.mxu0 0
        %11676 = vmatpush1.bf16.msra.mxu0 0
        %11677 = vmatprep.subr.bf16.mxu0 0
        %11678 = vmatpush1.bf16.msra.mxu0 %v11661
        %11679 = vmatprep.subr.bf16.mxu0 0
        %11680 = vmatpush1.bf16.msra.mxu0 %v11660
        %11681 = vmatprep.subr.bf16.mxu0 0
        %11682 = vmatpush1.bf16.msra.mxu0 %v11659
        %11683 = vmatprep.subr.bf16.mxu0 0
        %11684 = vmatpush1.bf16.msra.mxu0 %v11658
        %11685 = vmatprep.subr.bf16.mxu0 0
        %11686 = vmatpush2.bf16.msra.mxu0 0
        %11687 = vmatprep.subr.bf16.mxu0 0
        %11688 = vmatpush2.bf16.msra.mxu0 0
        %11689 = vmatprep.subr.bf16.mxu0 0
        %11690 = vmatpush2.bf16.msra.mxu0 0
        %11691 = vmatprep.subr.bf16.mxu0 0
        %11692 = vmatpush2.bf16.msra.mxu0 0
        %11693 = vmatprep.subr.bf16.mxu0 0
        %11694 = vmatpush2.bf16.msra.mxu0 0
        %11695 = vmatprep.subr.bf16.mxu0 0
        %11696 = vmatpush2.bf16.msra.mxu0 0
        %11697 = vmatprep.subr.bf16.mxu0 0
        %11698 = vmatpush2.bf16.msra.mxu0 0
        %11699 = vmatprep.subr.bf16.mxu0 0
        %11700 = vmatpush2.bf16.msra.mxu0 0
        %11701 = vmatprep.mubr.bf16.mxu0 0
        %11702 = vmatmul.mubr.bf16.gmra.mxu0 %v11667
        %v11703 = vpop.f32.mrf.mxu0
        %v11704 = vadd.f32 %v11640, %v11703
        %v11705 = vpop.f32.mrf.mxu0
        %v11706 = vpop.f32.mrf.mxu0
        %v11707 = vpop.f32.mrf.mxu0
        %11708 = vdwg.mxu0
        %11709 = vst [vmem:[%s672] sm:$0xff] %v11704
        %p11710 = scmp.lt.s32.totalorder %s35, 1
        %s11711 = scalar_select %p11710, %s35, 1
        %s11712 = smul.addr %s11711, 8
        %s11713 = scalar_lea.vmem %s16, %s11712
        // Predicated region
        $region125: #{forward.1} parent=83 // pred_check
          %p11714 = pneg %p394
        $region126: #{forward.1} parent=83 // pred_check_branch
          %11716 = sbr.rel (%p11714) target = $region128
        $region127: #{forward.1} parent=83 // pred_region
          _
        $region128: #{forward.1} parent=83 // pred_fallthru
          _
      $region84: #{forward.1} parent=5 // pred_fallthru
        _
      %p11717 = scmp.le.s32.totalorder 2, %s30
      // Predicated region
      $region129: #{forward.1} parent=5 // pred_check
        %p11718 = pneg %p11717
      $region130: #{forward.1} parent=5 // pred_check_branch
        %11720 = sbr.rel (%p11718) target = $region132
      $region131: #{forward.1} parent=5 // pred_region
        %s11721 = ssub.s32 %s30, 2
        // Predicated region
        $region133: #{forward.1} parent=131 // pred_check
          %p11722 = pneg %p400
        $region134: #{forward.1} parent=131 // pred_check_branch
          %11724 = sbr.rel (%p11722) target = $region136
        $region135: #{forward.1} parent=131 // pred_region
          %p11725 = scmp.lt.s32.totalorder %s36, 1
          %s11726 = scalar_select %p11725, %s36, 1
          %s11727 = smul.addr %s11726, 8
          %s11728 = scalar_lea.vmem %s16, %s11727
        $region136: #{forward.1} parent=131 // pred_fallthru
          _
      $region132: #{forward.1} parent=5 // pred_fallthru
        _
    $region6: #{forward.1} parent=1 // loop_footer
      %s34 = sadd.s32 1, %s30
    $region7: #{forward.1} parent=1 // loop_footer_branch
      %29 = sbr.rel target = $region3
    $region8: #{forward.1} parent=1 // loop_exit
      _
    %11729 = vsyncpa [#allocation6], 1
    %s11730 = scalar_lea.sflag [#allocation6], 1
    %11731 = vsyncpa %s11730, 1
    %11732 = vsyncpa [#allocation8], 1
    %11733 = vsyncpa [#allocation11], 1
    %11734 = vsyncpa [#allocation14], 1
    %11735 = vsyncpa [#allocation17], 1
    %11736 = vsyncpa [#allocation20], 1

</llo_original>
